<compile_context>
chip_gen: v7x
topology: tpu7x:2x2x1
jax: 0.10.0
libtpu: 0.0.40
codegen_flags: <defaults>
</compile_context>

<pallas_src>
import functools

import jax
import jax.numpy as jnp
from jax.experimental import pallas as pl
from jax.experimental.pallas import tpu as pltpu


# -----------------------------------------------------------------------------
# Static geometry of the fused conv tower ("garbage grid" layout).
#
# The input is space-to-depth'ed by 4 -> a 21x21 grid of 64-channel cells,
# zero-padded to 22x22 and split into 4 parity phases of an 11x11 grid each
# (row index r = u*11 + v).  On that representation:
#   conv1 (8x8,s4)  == a 2x2, stride-1 conv computed per output-parity phase,
#   conv2 (4x4,s2)  == a 2x2, stride-1 conv over the 4-phase (=2x2 s2d) grid,
#   conv3 (3x3,s1)  == a 3x3, stride-1 conv,
# all on 11-wide flattened grids where a kernel offset (a,b) is just a
# contiguous row shift of a*11+b.  Rows with column index >= the valid width
# are garbage and are never read when producing valid outputs.
# -----------------------------------------------------------------------------
L1 = 109   # conv1 rows computed per phase (valid at r=m*11+n, m,n<10)
L2 = 97    # conv2 rows computed           (valid at r=i*11+j, i,j<9)
L3 = 73    # conv3 rows computed           (valid at r=i*11+j, i,j<7)


# -----------------------------------------------------------------------------
# Kernel 1: fused conv tower for `nb` images per grid step.
# -----------------------------------------------------------------------------
def _conv_tower_kernel(xph_ref, w1_ref, b1_ref, w2_ref, b2_ref, w3_ref, b3_ref,
                       out_ref, *, nb):
    """conv1->relu->conv2->relu->conv3->relu, fully fused in VMEM.

    xph_ref : (nb, 4, 121, 64) bf16  phase-split space-to-depth(4) input
    w1_ref  : (256, 32)  bf16        conv1 weights, rows = (a,b,e,g,ci)
    w2_ref  : (512, 64)  bf16        conv2 weights, rows = (A,B,p,q,c1)
    w3_ref  : (576, 64)  bf16        conv3 weights, rows = (eh,ew,c2)
    b*_ref  : (1, Cout) f32
    out_ref : (nb, 49, 64) bf16      conv3 output in HWC flatten order
    """
    w1 = w1_ref[...]
    w2 = w2_ref[...]
    w3 = w3_ref[...]
    b1 = b1_ref[...]
    b2 = b2_ref[...]
    b3 = b3_ref[...]

    for ib in range(nb):
        xp = [xph_ref[ib, ph] for ph in range(4)]            # 4 x (121, 64)

        # ---- conv1: one 2x2/s1 conv per output parity phase (py, qy) -------
        # output (2m+py, 2n+qy) reads s2d4 cell (2m+py+a, 2n+qy+b), a,b in {0,1}
        # -> source phase ((py+a)%2, (qy+b)%2), row shift ((py+a)//2)*11+(qy+b)//2
        y1 = []                                              # 4 x (L1, 32) bf16
        for py in (0, 1):
            for qy in (0, 1):
                acc = None
                for a in (0, 1):
                    for b_ in (0, 1):
                        src = ((py + a) % 2) * 2 + ((qy + b_) % 2)
                        shift = ((py + a) // 2) * 11 + ((qy + b_) // 2)
                        patch = xp[src][shift:shift + L1, :]          # (L1, 64)
                        wchunk = w1[(a * 2 + b_) * 64:(a * 2 + b_ + 1) * 64, :]
                        d = jnp.dot(patch, wchunk,
                                    preferred_element_type=jnp.float32)
                        acc = d if acc is None else acc + d
                y1.append(jnp.maximum(acc + b1, 0.0).astype(jnp.bfloat16))

        # ---- conv2: 2x2/s1 conv over the (phase x 32ch) representation -----
        # kernel offset (dh,dw) = (2A+p, 2B+q): row shift A*11+B, phase (p,q).
        acc2 = None
        for A in (0, 1):
            for Bb in (0, 1):
                shift = A * 11 + Bb
                for ph in range(4):
                    patch = y1[ph][shift:shift + L2, :]               # (L2, 32)
                    r0 = (A * 2 + Bb) * 128 + ph * 32
                    d = jnp.dot(patch, w2[r0:r0 + 32, :],
                                preferred_element_type=jnp.float32)
                    acc2 = d if acc2 is None else acc2 + d
        y2 = jnp.maximum(acc2 + b2, 0.0).astype(jnp.bfloat16)         # (L2, 64)

        # ---- conv3: plain 3x3/s1 conv ---------------------------------------
        acc3 = None
        for eh in range(3):
            for ew in range(3):
                shift = eh * 11 + ew
                r0 = (eh * 3 + ew) * 64
                d = jnp.dot(y2[shift:shift + L3, :], w3[r0:r0 + 64, :],
                            preferred_element_type=jnp.float32)
                acc3 = d if acc3 is None else acc3 + d
        y3 = jnp.maximum(acc3 + b3, 0.0)                              # (L3, 64)

        # ---- compact valid 7x7 rows (r = i*11 + j, i,j < 7) -> (49, 64) -----
        for i in range(7):
            out_ref[ib, i * 7:(i + 1) * 7, :] = (
                y3[i * 11:i * 11 + 7, :].astype(out_ref.dtype))


def conv_tower(xph, w1, b1, w2, b2, w3, b3, nb):
    B = xph.shape[0]
    kernel = functools.partial(_conv_tower_kernel, nb=nb)
    return pl.pallas_call(
        kernel,
        out_shape=jax.ShapeDtypeStruct((B, 49, 64), jnp.bfloat16),
        grid=(B // nb,),
        in_specs=[
            pl.BlockSpec((nb, 4, 121, 64), lambda i: (i, 0, 0, 0)),
            pl.BlockSpec((256, 32), lambda i: (0, 0)),
            pl.BlockSpec((1, 32), lambda i: (0, 0)),
            pl.BlockSpec((512, 64), lambda i: (0, 0)),
            pl.BlockSpec((1, 64), lambda i: (0, 0)),
            pl.BlockSpec((576, 64), lambda i: (0, 0)),
            pl.BlockSpec((1, 64), lambda i: (0, 0)),
        ],
        out_specs=pl.BlockSpec((nb, 49, 64), lambda i: (i, 0, 0)),
        compiler_params=pltpu.CompilerParams(
            dimension_semantics=("parallel",)),
    )(xph, w1, b1, w2, b2, w3, b3)


# -----------------------------------------------------------------------------
# Kernel 2: fused FC head  out = tanh(x @ Wf1 + b1) @ Wf2 + b2
# -----------------------------------------------------------------------------
def _fc_kernel(x_ref, wf1_ref, bf1_ref, wf2_ref, bf2_ref, o_ref):
    h = jnp.dot(x_ref[...], wf1_ref[...], preferred_element_type=jnp.float32)
    h = jnp.tanh(h + bf1_ref[...])
    # TODO(synk): Dropout(0.5) uses eval/inference semantics (identity);
    # training-mode stochastic mask intentionally omitted.
    o = jnp.dot(h.astype(jnp.bfloat16), wf2_ref[...],
                preferred_element_type=jnp.float32) + bf2_ref[...]
    o_ref[...] = o


def fc_head(x, wf1, bf1, wf2, bf2, tb):
    B = x.shape[0]
    return pl.pallas_call(
        _fc_kernel,
        out_shape=jax.ShapeDtypeStruct((B, 128), jnp.float32),
        grid=(B // tb,),
        in_specs=[
            pl.BlockSpec((tb, 3136), lambda i: (i, 0)),
            pl.BlockSpec((3136, 512), lambda i: (0, 0)),
            pl.BlockSpec((1, 512), lambda i: (0, 0)),
            pl.BlockSpec((512, 128), lambda i: (0, 0)),
            pl.BlockSpec((1, 128), lambda i: (0, 0)),
        ],
        out_specs=pl.BlockSpec((tb, 128), lambda i: (i, 0)),
        compiler_params=pltpu.CompilerParams(
            dimension_semantics=("parallel",)),
    )(x, wf1, bf1, wf2, bf2)


# -----------------------------------------------------------------------------
# Parameters: PyTorch-layout init + one-time repack into kernel layouts.
# -----------------------------------------------------------------------------
def init_params(key):
    ks = jax.random.split(key, 10)

    def w(k, shape, fan_in):
        return jax.random.normal(k, shape, jnp.float32) * (1.0 / jnp.sqrt(fan_in))

    return {
        "w1": w(ks[0], (32, 4, 8, 8), 4 * 8 * 8),
        "b1": w(ks[1], (32,), 4 * 8 * 8),
        "w2": w(ks[2], (64, 32, 4, 4), 32 * 4 * 4),
        "b2": w(ks[3], (64,), 32 * 4 * 4),
        "w3": w(ks[4], (64, 64, 3, 3), 64 * 3 * 3),
        "b3": w(ks[5], (64,), 64 * 3 * 3),
        "wf1": w(ks[6], (7 * 7 * 64, 512), 7 * 7 * 64),
        "bf1": w(ks[7], (512,), 7 * 7 * 64),
        "wf2": w(ks[8], (512, 1), 512),
        "bf2": w(ks[9], (1,), 512),
    }


def prepare_params(p):
    """Repack PyTorch-layout params into the kernel's matrix layouts (bf16)."""
    # conv1: rows = (a, b, e, g, ci) with kh = 4a+e, kw = 4b+g.
    w1 = (p["w1"].reshape(32, 4, 2, 4, 2, 4)
          .transpose(2, 4, 3, 5, 1, 0).reshape(256, 32))
    # conv2: rows = (A, B, p, q, c1) with dh = 2A+p, dw = 2B+q.
    w2 = (p["w2"].reshape(64, 32, 2, 2, 2, 2)
          .transpose(2, 4, 3, 5, 1, 0).reshape(512, 64))
    # conv3: rows = (eh, ew, c2).
    w3 = p["w3"].transpose(2, 3, 1, 0).reshape(576, 64)
    # fc1: permute rows from CHW flatten (PyTorch nn.Flatten) to HWC flatten
    # so the kernel never has to transpose activations at runtime.
    wf1 = (p["wf1"].reshape(64, 7, 7, 512)
           .transpose(1, 2, 0, 3).reshape(3136, 512))
    # fc2: pad N from 1 to 128 (lane-dense output); real value lives in col 0.
    wf2 = jnp.pad(p["wf2"], ((0, 0), (0, 127)))
    bf2 = jnp.pad(p["bf2"], ((0, 127),))
    return {
        "w1": w1.astype(jnp.bfloat16), "b1": p["b1"].reshape(1, 32),
        "w2": w2.astype(jnp.bfloat16), "b2": p["b2"].reshape(1, 64),
        "w3": w3.astype(jnp.bfloat16), "b3": p["b3"].reshape(1, 64),
        "wf1": wf1.astype(jnp.bfloat16), "bf1": p["bf1"].reshape(1, 512),
        "wf2": wf2.astype(jnp.bfloat16), "bf2": bf2.reshape(1, 128),
    }


# -----------------------------------------------------------------------------
# Forward pass
# -----------------------------------------------------------------------------
def _phase_split_input(x_nchw):
    """NCHW (B,4,84,84) -> (B, 4, 121, 64) bf16: s2d(4) + 2x2 parity phases."""
    B = x_nchw.shape[0]
    xh = jnp.transpose(x_nchw, (0, 2, 3, 1)).astype(jnp.float32)   # (B,84,84,4)
    xs = (xh.reshape(B, 21, 4, 21, 4, 4)
          .transpose(0, 1, 3, 2, 4, 5).reshape(B, 21, 21, 64))     # s2d(4)
    xs = jnp.pad(xs, ((0, 0), (0, 1), (0, 1), (0, 0)))             # (B,22,22,64)
    phases = [xs[:, p::2, q::2, :] for p in (0, 1) for q in (0, 1)]
    xph = jnp.stack(phases, axis=1).reshape(B, 4, 121, 64)
    return xph.astype(jnp.bfloat16)


def value_net_forward(kp, x_nchw):
    B = x_nchw.shape[0]

    # --- fused conv tower (grid over batch; both v7x cores used at small B) --
    nb = 1 if B <= 4 else 8                # images per grid step
    Bp = ((B + nb - 1) // nb) * nb
    xph = _phase_split_input(x_nchw)
    if Bp != B:
        xph = jnp.pad(xph, ((0, Bp - B), (0, 0), (0, 0), (0, 0)))
    feat = conv_tower(xph, kp["w1"], kp["b1"], kp["w2"], kp["b2"],
                      kp["w3"], kp["b3"], nb)                      # (Bp,49,64)
    feat = feat[:B].reshape(B, 49 * 64)    # HWC flatten; wf1 rows pre-permuted

    # --- fused FC head: M = B (no 128-row padding) ---------------------------
    tb = B if B <= 256 else 256
    Bp2 = ((B + tb - 1) // tb) * tb
    if Bp2 != B:
        feat = jnp.pad(feat, ((0, Bp2 - B), (0, 0)))
    out = fc_head(feat, kp["wf1"], kp["bf1"], kp["wf2"], kp["bf2"], tb)
    return out[:B, :1]                     # value estimate, shape (B, 1)


if __name__ == "__main__":
    key = jax.random.PRNGKey(0)
    pkey, xkey = jax.random.split(key)
    params = init_params(pkey)
    kparams = prepare_params(params)

    # Input must be 84x84 so the conv stack produces the 7x7x64 flatten size.
    x = jax.random.normal(xkey, (2, 4, 84, 84), dtype=jnp.float32)

    fwd = jax.jit(value_net_forward)
    out = jax.block_until_ready(fwd(kparams, x))
    assert out.shape == (2, 1), out.shape
    assert bool(jnp.all(jnp.isfinite(out)))
    print("KERNEL_OK")
</pallas_src>

<mosaic_0001>
module attributes {stable_mosaic.version = 11 : i64} {
  func.func @_conv_tower_kernel(%arg0: i32, %arg1: memref<1x4x121x64xbf16, #tpu.memory_space<vmem>>, %arg2: memref<256x32xbf16, #tpu.memory_space<vmem>>, %arg3: memref<1x32xf32, #tpu.memory_space<vmem>>, %arg4: memref<512x64xbf16, #tpu.memory_space<vmem>>, %arg5: memref<1x64xf32, #tpu.memory_space<vmem>>, %arg6: memref<576x64xbf16, #tpu.memory_space<vmem>>, %arg7: memref<1x64xf32, #tpu.memory_space<vmem>>, %arg8: memref<1x49x64xbf16, #tpu.memory_space<vmem>>) attributes {dimension_semantics = [#tpu.dimension_semantics<parallel>], iteration_bounds = array<i64: 2>, scalar_prefetch = 0 : i64, scratch_operands = 0 : i64, tpu.core_type = #tpu.core_type<tc>, window_params = [{transform_indices = @transform_0, window_bounds = array<i64: 1, 4, 121, 64>}, {pipeline_mode = #tpu.pipeline_mode<synchronous>, transform_indices = @transform_1, window_bounds = array<i64: 256, 32>}, {pipeline_mode = #tpu.pipeline_mode<synchronous>, transform_indices = @transform_2, window_bounds = array<i64: 1, 32>}, {pipeline_mode = #tpu.pipeline_mode<synchronous>, transform_indices = @transform_3, window_bounds = array<i64: 512, 64>}, {pipeline_mode = #tpu.pipeline_mode<synchronous>, transform_indices = @transform_4, window_bounds = array<i64: 1, 64>}, {pipeline_mode = #tpu.pipeline_mode<synchronous>, transform_indices = @transform_5, window_bounds = array<i64: 576, 64>}, {pipeline_mode = #tpu.pipeline_mode<synchronous>, transform_indices = @transform_6, window_bounds = array<i64: 1, 64>}, {transform_indices = @transform_7, window_bounds = array<i64: 1, 49, 64>}]} {
    %c0 = arith.constant 0 : index
    %c0_0 = arith.constant 0 : index
    %0 = vector.load %arg2[%c0, %c0_0] : memref<256x32xbf16, #tpu.memory_space<vmem>>, vector<256x32xbf16>
    %c0_1 = arith.constant 0 : index
    %c0_2 = arith.constant 0 : index
    %1 = vector.load %arg4[%c0_1, %c0_2] : memref<512x64xbf16, #tpu.memory_space<vmem>>, vector<512x64xbf16>
    %c0_3 = arith.constant 0 : index
    %c0_4 = arith.constant 0 : index
    %2 = vector.load %arg6[%c0_3, %c0_4] : memref<576x64xbf16, #tpu.memory_space<vmem>>, vector<576x64xbf16>
    %c0_5 = arith.constant 0 : index
    %c0_6 = arith.constant 0 : index
    %3 = vector.load %arg3[%c0_5, %c0_6] : memref<1x32xf32, #tpu.memory_space<vmem>>, vector<1x32xf32>
    %c0_7 = arith.constant 0 : index
    %c0_8 = arith.constant 0 : index
    %4 = vector.load %arg5[%c0_7, %c0_8] : memref<1x64xf32, #tpu.memory_space<vmem>>, vector<1x64xf32>
    %c0_9 = arith.constant 0 : index
    %c0_10 = arith.constant 0 : index
    %5 = vector.load %arg7[%c0_9, %c0_10] : memref<1x64xf32, #tpu.memory_space<vmem>>, vector<1x64xf32>
    %c0_11 = arith.constant 0 : index
    %c0_12 = arith.constant 0 : index
    %c0_13 = arith.constant 0 : index
    %c0_14 = arith.constant 0 : index
    %6 = vector.load %arg1[%c0_11, %c0_12, %c0_13, %c0_14] : memref<1x4x121x64xbf16, #tpu.memory_space<vmem>>, vector<1x1x121x64xbf16>
    %7 = vector.shape_cast %6 : vector<1x1x121x64xbf16> to vector<121x64xbf16>
    %c0_15 = arith.constant 0 : index
    %c1 = arith.constant 1 : index
    %c0_16 = arith.constant 0 : index
    %c0_17 = arith.constant 0 : index
    %8 = vector.load %arg1[%c0_15, %c1, %c0_16, %c0_17] : memref<1x4x121x64xbf16, #tpu.memory_space<vmem>>, vector<1x1x121x64xbf16>
    %9 = vector.shape_cast %8 : vector<1x1x121x64xbf16> to vector<121x64xbf16>
    %c0_18 = arith.constant 0 : index
    %c2 = arith.constant 2 : index
    %c0_19 = arith.constant 0 : index
    %c0_20 = arith.constant 0 : index
    %10 = vector.load %arg1[%c0_18, %c2, %c0_19, %c0_20] : memref<1x4x121x64xbf16, #tpu.memory_space<vmem>>, vector<1x1x121x64xbf16>
    %11 = vector.shape_cast %10 : vector<1x1x121x64xbf16> to vector<121x64xbf16>
    %c0_21 = arith.constant 0 : index
    %c3 = arith.constant 3 : index
    %c0_22 = arith.constant 0 : index
    %c0_23 = arith.constant 0 : index
    %12 = vector.load %arg1[%c0_21, %c3, %c0_22, %c0_23] : memref<1x4x121x64xbf16, #tpu.memory_space<vmem>>, vector<1x1x121x64xbf16>
    %13 = vector.shape_cast %12 : vector<1x1x121x64xbf16> to vector<121x64xbf16>
    %14 = vector.extract_strided_slice %7 {offsets = [0, 0], sizes = [109, 64], strides = [1, 1]} : vector<121x64xbf16> to vector<109x64xbf16>
    %15 = vector.extract_strided_slice %0 {offsets = [0, 0], sizes = [64, 32], strides = [1, 1]} : vector<256x32xbf16> to vector<64x32xbf16>
    %cst = arith.constant dense<0.000000e+00> : vector<109x32xf32>
    %16 = tpu.matmul %14, %15, %cst {dimension_numbers = #tpu.dot_dimension_numbers<[1], [0], [0], [1], [0, 0, 1, 1], [], []>} : vector<109x64xbf16>, vector<64x32xbf16>, vector<109x32xf32> -> vector<109x32xf32>
    %17 = vector.extract_strided_slice %9 {offsets = [0, 0], sizes = [109, 64], strides = [1, 1]} : vector<121x64xbf16> to vector<109x64xbf16>
    %18 = vector.extract_strided_slice %0 {offsets = [64, 0], sizes = [64, 32], strides = [1, 1]} : vector<256x32xbf16> to vector<64x32xbf16>
    %cst_24 = arith.constant dense<0.000000e+00> : vector<109x32xf32>
    %19 = tpu.matmul %17, %18, %cst_24 {dimension_numbers = #tpu.dot_dimension_numbers<[1], [0], [0], [1], [0, 0, 1, 1], [], []>} : vector<109x64xbf16>, vector<64x32xbf16>, vector<109x32xf32> -> vector<109x32xf32>
    %20 = arith.addf %16, %19 : vector<109x32xf32>
    %21 = vector.extract_strided_slice %11 {offsets = [0, 0], sizes = [109, 64], strides = [1, 1]} : vector<121x64xbf16> to vector<109x64xbf16>
    %22 = vector.extract_strided_slice %0 {offsets = [128, 0], sizes = [64, 32], strides = [1, 1]} : vector<256x32xbf16> to vector<64x32xbf16>
    %cst_25 = arith.constant dense<0.000000e+00> : vector<109x32xf32>
    %23 = tpu.matmul %21, %22, %cst_25 {dimension_numbers = #tpu.dot_dimension_numbers<[1], [0], [0], [1], [0, 0, 1, 1], [], []>} : vector<109x64xbf16>, vector<64x32xbf16>, vector<109x32xf32> -> vector<109x32xf32>
    %24 = arith.addf %20, %23 : vector<109x32xf32>
    %25 = vector.extract_strided_slice %13 {offsets = [0, 0], sizes = [109, 64], strides = [1, 1]} : vector<121x64xbf16> to vector<109x64xbf16>
    %26 = vector.extract_strided_slice %0 {offsets = [192, 0], sizes = [64, 32], strides = [1, 1]} : vector<256x32xbf16> to vector<64x32xbf16>
    %cst_26 = arith.constant dense<0.000000e+00> : vector<109x32xf32>
    %27 = tpu.matmul %25, %26, %cst_26 {dimension_numbers = #tpu.dot_dimension_numbers<[1], [0], [0], [1], [0, 0, 1, 1], [], []>} : vector<109x64xbf16>, vector<64x32xbf16>, vector<109x32xf32> -> vector<109x32xf32>
    %28 = arith.addf %24, %27 : vector<109x32xf32>
    %29 = vector.broadcast %3 : vector<1x32xf32> to vector<109x32xf32>
    %30 = arith.addf %28, %29 : vector<109x32xf32>
    %cst_27 = arith.constant 0.000000e+00 : f32
    %31 = vector.broadcast %cst_27 : f32 to vector<109x32xf32>
    %32 = arith.maximumf %30, %31 : vector<109x32xf32>
    %33 = arith.truncf %32 : vector<109x32xf32> to vector<109x32xbf16>
    %34 = vector.extract_strided_slice %9 {offsets = [0, 0], sizes = [109, 64], strides = [1, 1]} : vector<121x64xbf16> to vector<109x64xbf16>
    %35 = vector.extract_strided_slice %0 {offsets = [0, 0], sizes = [64, 32], strides = [1, 1]} : vector<256x32xbf16> to vector<64x32xbf16>
    %cst_28 = arith.constant dense<0.000000e+00> : vector<109x32xf32>
    %36 = tpu.matmul %34, %35, %cst_28 {dimension_numbers = #tpu.dot_dimension_numbers<[1], [0], [0], [1], [0, 0, 1, 1], [], []>} : vector<109x64xbf16>, vector<64x32xbf16>, vector<109x32xf32> -> vector<109x32xf32>
    %37 = vector.extract_strided_slice %7 {offsets = [1, 0], sizes = [109, 64], strides = [1, 1]} : vector<121x64xbf16> to vector<109x64xbf16>
    %38 = vector.extract_strided_slice %0 {offsets = [64, 0], sizes = [64, 32], strides = [1, 1]} : vector<256x32xbf16> to vector<64x32xbf16>
    %cst_29 = arith.constant dense<0.000000e+00> : vector<109x32xf32>
    %39 = tpu.matmul %37, %38, %cst_29 {dimension_numbers = #tpu.dot_dimension_numbers<[1], [0], [0], [1], [0, 0, 1, 1], [], []>} : vector<109x64xbf16>, vector<64x32xbf16>, vector<109x32xf32> -> vector<109x32xf32>
    %40 = arith.addf %36, %39 : vector<109x32xf32>
    %41 = vector.extract_strided_slice %13 {offsets = [0, 0], sizes = [109, 64], strides = [1, 1]} : vector<121x64xbf16> to vector<109x64xbf16>
    %42 = vector.extract_strided_slice %0 {offsets = [128, 0], sizes = [64, 32], strides = [1, 1]} : vector<256x32xbf16> to vector<64x32xbf16>
    %cst_30 = arith.constant dense<0.000000e+00> : vector<109x32xf32>
    %43 = tpu.matmul %41, %42, %cst_30 {dimension_numbers = #tpu.dot_dimension_numbers<[1], [0], [0], [1], [0, 0, 1, 1], [], []>} : vector<109x64xbf16>, vector<64x32xbf16>, vector<109x32xf32> -> vector<109x32xf32>
    %44 = arith.addf %40, %43 : vector<109x32xf32>
    %45 = vector.extract_strided_slice %11 {offsets = [1, 0], sizes = [109, 64], strides = [1, 1]} : vector<121x64xbf16> to vector<109x64xbf16>
    %46 = vector.extract_strided_slice %0 {offsets = [192, 0], sizes = [64, 32], strides = [1, 1]} : vector<256x32xbf16> to vector<64x32xbf16>
    %cst_31 = arith.constant dense<0.000000e+00> : vector<109x32xf32>
    %47 = tpu.matmul %45, %46, %cst_31 {dimension_numbers = #tpu.dot_dimension_numbers<[1], [0], [0], [1], [0, 0, 1, 1], [], []>} : vector<109x64xbf16>, vector<64x32xbf16>, vector<109x32xf32> -> vector<109x32xf32>
    %48 = arith.addf %44, %47 : vector<109x32xf32>
    %49 = vector.broadcast %3 : vector<1x32xf32> to vector<109x32xf32>
    %50 = arith.addf %48, %49 : vector<109x32xf32>
    %cst_32 = arith.constant 0.000000e+00 : f32
    %51 = vector.broadcast %cst_32 : f32 to vector<109x32xf32>
    %52 = arith.maximumf %50, %51 : vector<109x32xf32>
    %53 = arith.truncf %52 : vector<109x32xf32> to vector<109x32xbf16>
    %54 = vector.extract_strided_slice %11 {offsets = [0, 0], sizes = [109, 64], strides = [1, 1]} : vector<121x64xbf16> to vector<109x64xbf16>
    %55 = vector.extract_strided_slice %0 {offsets = [0, 0], sizes = [64, 32], strides = [1, 1]} : vector<256x32xbf16> to vector<64x32xbf16>
    %cst_33 = arith.constant dense<0.000000e+00> : vector<109x32xf32>
    %56 = tpu.matmul %54, %55, %cst_33 {dimension_numbers = #tpu.dot_dimension_numbers<[1], [0], [0], [1], [0, 0, 1, 1], [], []>} : vector<109x64xbf16>, vector<64x32xbf16>, vector<109x32xf32> -> vector<109x32xf32>
    %57 = vector.extract_strided_slice %13 {offsets = [0, 0], sizes = [109, 64], strides = [1, 1]} : vector<121x64xbf16> to vector<109x64xbf16>
    %58 = vector.extract_strided_slice %0 {offsets = [64, 0], sizes = [64, 32], strides = [1, 1]} : vector<256x32xbf16> to vector<64x32xbf16>
    %cst_34 = arith.constant dense<0.000000e+00> : vector<109x32xf32>
    %59 = tpu.matmul %57, %58, %cst_34 {dimension_numbers = #tpu.dot_dimension_numbers<[1], [0], [0], [1], [0, 0, 1, 1], [], []>} : vector<109x64xbf16>, vector<64x32xbf16>, vector<109x32xf32> -> vector<109x32xf32>
    %60 = arith.addf %56, %59 : vector<109x32xf32>
    %61 = vector.extract_strided_slice %7 {offsets = [11, 0], sizes = [109, 64], strides = [1, 1]} : vector<121x64xbf16> to vector<109x64xbf16>
    %62 = vector.extract_strided_slice %0 {offsets = [128, 0], sizes = [64, 32], strides = [1, 1]} : vector<256x32xbf16> to vector<64x32xbf16>
    %cst_35 = arith.constant dense<0.000000e+00> : vector<109x32xf32>
    %63 = tpu.matmul %61, %62, %cst_35 {dimension_numbers = #tpu.dot_dimension_numbers<[1], [0], [0], [1], [0, 0, 1, 1], [], []>} : vector<109x64xbf16>, vector<64x32xbf16>, vector<109x32xf32> -> vector<109x32xf32>
    %64 = arith.addf %60, %63 : vector<109x32xf32>
    %65 = vector.extract_strided_slice %9 {offsets = [11, 0], sizes = [109, 64], strides = [1, 1]} : vector<121x64xbf16> to vector<109x64xbf16>
    %66 = vector.extract_strided_slice %0 {offsets = [192, 0], sizes = [64, 32], strides = [1, 1]} : vector<256x32xbf16> to vector<64x32xbf16>
    %cst_36 = arith.constant dense<0.000000e+00> : vector<109x32xf32>
    %67 = tpu.matmul %65, %66, %cst_36 {dimension_numbers = #tpu.dot_dimension_numbers<[1], [0], [0], [1], [0, 0, 1, 1], [], []>} : vector<109x64xbf16>, vector<64x32xbf16>, vector<109x32xf32> -> vector<109x32xf32>
    %68 = arith.addf %64, %67 : vector<109x32xf32>
    %69 = vector.broadcast %3 : vector<1x32xf32> to vector<109x32xf32>
    %70 = arith.addf %68, %69 : vector<109x32xf32>
    %cst_37 = arith.constant 0.000000e+00 : f32
    %71 = vector.broadcast %cst_37 : f32 to vector<109x32xf32>
    %72 = arith.maximumf %70, %71 : vector<109x32xf32>
    %73 = arith.truncf %72 : vector<109x32xf32> to vector<109x32xbf16>
    %74 = vector.extract_strided_slice %13 {offsets = [0, 0], sizes = [109, 64], strides = [1, 1]} : vector<121x64xbf16> to vector<109x64xbf16>
    %75 = vector.extract_strided_slice %0 {offsets = [0, 0], sizes = [64, 32], strides = [1, 1]} : vector<256x32xbf16> to vector<64x32xbf16>
    %cst_38 = arith.constant dense<0.000000e+00> : vector<109x32xf32>
    %76 = tpu.matmul %74, %75, %cst_38 {dimension_numbers = #tpu.dot_dimension_numbers<[1], [0], [0], [1], [0, 0, 1, 1], [], []>} : vector<109x64xbf16>, vector<64x32xbf16>, vector<109x32xf32> -> vector<109x32xf32>
    %77 = vector.extract_strided_slice %11 {offsets = [1, 0], sizes = [109, 64], strides = [1, 1]} : vector<121x64xbf16> to vector<109x64xbf16>
    %78 = vector.extract_strided_slice %0 {offsets = [64, 0], sizes = [64, 32], strides = [1, 1]} : vector<256x32xbf16> to vector<64x32xbf16>
    %cst_39 = arith.constant dense<0.000000e+00> : vector<109x32xf32>
    %79 = tpu.matmul %77, %78, %cst_39 {dimension_numbers = #tpu.dot_dimension_numbers<[1], [0], [0], [1], [0, 0, 1, 1], [], []>} : vector<109x64xbf16>, vector<64x32xbf16>, vector<109x32xf32> -> vector<109x32xf32>
    %80 = arith.addf %76, %79 : vector<109x32xf32>
    %81 = vector.extract_strided_slice %9 {offsets = [11, 0], sizes = [109, 64], strides = [1, 1]} : vector<121x64xbf16> to vector<109x64xbf16>
    %82 = vector.extract_strided_slice %0 {offsets = [128, 0], sizes = [64, 32], strides = [1, 1]} : vector<256x32xbf16> to vector<64x32xbf16>
    %cst_40 = arith.constant dense<0.000000e+00> : vector<109x32xf32>
    %83 = tpu.matmul %81, %82, %cst_40 {dimension_numbers = #tpu.dot_dimension_numbers<[1], [0], [0], [1], [0, 0, 1, 1], [], []>} : vector<109x64xbf16>, vector<64x32xbf16>, vector<109x32xf32> -> vector<109x32xf32>
    %84 = arith.addf %80, %83 : vector<109x32xf32>
    %85 = vector.extract_strided_slice %7 {offsets = [12, 0], sizes = [109, 64], strides = [1, 1]} : vector<121x64xbf16> to vector<109x64xbf16>
    %86 = vector.extract_strided_slice %0 {offsets = [192, 0], sizes = [64, 32], strides = [1, 1]} : vector<256x32xbf16> to vector<64x32xbf16>
    %cst_41 = arith.constant dense<0.000000e+00> : vector<109x32xf32>
    %87 = tpu.matmul %85, %86, %cst_41 {dimension_numbers = #tpu.dot_dimension_numbers<[1], [0], [0], [1], [0, 0, 1, 1], [], []>} : vector<109x64xbf16>, vector<64x32xbf16>, vector<109x32xf32> -> vector<109x32xf32>
    %88 = arith.addf %84, %87 : vector<109x32xf32>
    %89 = vector.broadcast %3 : vector<1x32xf32> to vector<109x32xf32>
    %90 = arith.addf %88, %89 : vector<109x32xf32>
    %cst_42 = arith.constant 0.000000e+00 : f32
    %91 = vector.broadcast %cst_42 : f32 to vector<109x32xf32>
    %92 = arith.maximumf %90, %91 : vector<109x32xf32>
    %93 = arith.truncf %92 : vector<109x32xf32> to vector<109x32xbf16>
    %94 = vector.extract_strided_slice %33 {offsets = [0, 0], sizes = [97, 32], strides = [1, 1]} : vector<109x32xbf16> to vector<97x32xbf16>
    %95 = vector.extract_strided_slice %1 {offsets = [0, 0], sizes = [32, 64], strides = [1, 1]} : vector<512x64xbf16> to vector<32x64xbf16>
    %cst_43 = arith.constant dense<0.000000e+00> : vector<97x64xf32>
    %96 = tpu.matmul %94, %95, %cst_43 {dimension_numbers = #tpu.dot_dimension_numbers<[1], [0], [0], [1], [0, 0, 1, 1], [], []>} : vector<97x32xbf16>, vector<32x64xbf16>, vector<97x64xf32> -> vector<97x64xf32>
    %97 = vector.extract_strided_slice %53 {offsets = [0, 0], sizes = [97, 32], strides = [1, 1]} : vector<109x32xbf16> to vector<97x32xbf16>
    %98 = vector.extract_strided_slice %1 {offsets = [32, 0], sizes = [32, 64], strides = [1, 1]} : vector<512x64xbf16> to vector<32x64xbf16>
    %cst_44 = arith.constant dense<0.000000e+00> : vector<97x64xf32>
    %99 = tpu.matmul %97, %98, %cst_44 {dimension_numbers = #tpu.dot_dimension_numbers<[1], [0], [0], [1], [0, 0, 1, 1], [], []>} : vector<97x32xbf16>, vector<32x64xbf16>, vector<97x64xf32> -> vector<97x64xf32>
    %100 = arith.addf %96, %99 : vector<97x64xf32>
    %101 = vector.extract_strided_slice %73 {offsets = [0, 0], sizes = [97, 32], strides = [1, 1]} : vector<109x32xbf16> to vector<97x32xbf16>
    %102 = vector.extract_strided_slice %1 {offsets = [64, 0], sizes = [32, 64], strides = [1, 1]} : vector<512x64xbf16> to vector<32x64xbf16>
    %cst_45 = arith.constant dense<0.000000e+00> : vector<97x64xf32>
    %103 = tpu.matmul %101, %102, %cst_45 {dimension_numbers = #tpu.dot_dimension_numbers<[1], [0], [0], [1], [0, 0, 1, 1], [], []>} : vector<97x32xbf16>, vector<32x64xbf16>, vector<97x64xf32> -> vector<97x64xf32>
    %104 = arith.addf %100, %103 : vector<97x64xf32>
    %105 = vector.extract_strided_slice %93 {offsets = [0, 0], sizes = [97, 32], strides = [1, 1]} : vector<109x32xbf16> to vector<97x32xbf16>
    %106 = vector.extract_strided_slice %1 {offsets = [96, 0], sizes = [32, 64], strides = [1, 1]} : vector<512x64xbf16> to vector<32x64xbf16>
    %cst_46 = arith.constant dense<0.000000e+00> : vector<97x64xf32>
    %107 = tpu.matmul %105, %106, %cst_46 {dimension_numbers = #tpu.dot_dimension_numbers<[1], [0], [0], [1], [0, 0, 1, 1], [], []>} : vector<97x32xbf16>, vector<32x64xbf16>, vector<97x64xf32> -> vector<97x64xf32>
    %108 = arith.addf %104, %107 : vector<97x64xf32>
    %109 = vector.extract_strided_slice %33 {offsets = [1, 0], sizes = [97, 32], strides = [1, 1]} : vector<109x32xbf16> to vector<97x32xbf16>
    %110 = vector.extract_strided_slice %1 {offsets = [128, 0], sizes = [32, 64], strides = [1, 1]} : vector<512x64xbf16> to vector<32x64xbf16>
    %cst_47 = arith.constant dense<0.000000e+00> : vector<97x64xf32>
    %111 = tpu.matmul %109, %110, %cst_47 {dimension_numbers = #tpu.dot_dimension_numbers<[1], [0], [0], [1], [0, 0, 1, 1], [], []>} : vector<97x32xbf16>, vector<32x64xbf16>, vector<97x64xf32> -> vector<97x64xf32>
    %112 = arith.addf %108, %111 : vector<97x64xf32>
    %113 = vector.extract_strided_slice %53 {offsets = [1, 0], sizes = [97, 32], strides = [1, 1]} : vector<109x32xbf16> to vector<97x32xbf16>
    %114 = vector.extract_strided_slice %1 {offsets = [160, 0], sizes = [32, 64], strides = [1, 1]} : vector<512x64xbf16> to vector<32x64xbf16>
    %cst_48 = arith.constant dense<0.000000e+00> : vector<97x64xf32>
    %115 = tpu.matmul %113, %114, %cst_48 {dimension_numbers = #tpu.dot_dimension_numbers<[1], [0], [0], [1], [0, 0, 1, 1], [], []>} : vector<97x32xbf16>, vector<32x64xbf16>, vector<97x64xf32> -> vector<97x64xf32>
    %116 = arith.addf %112, %115 : vector<97x64xf32>
    %117 = vector.extract_strided_slice %73 {offsets = [1, 0], sizes = [97, 32], strides = [1, 1]} : vector<109x32xbf16> to vector<97x32xbf16>
    %118 = vector.extract_strided_slice %1 {offsets = [192, 0], sizes = [32, 64], strides = [1, 1]} : vector<512x64xbf16> to vector<32x64xbf16>
    %cst_49 = arith.constant dense<0.000000e+00> : vector<97x64xf32>
    %119 = tpu.matmul %117, %118, %cst_49 {dimension_numbers = #tpu.dot_dimension_numbers<[1], [0], [0], [1], [0, 0, 1, 1], [], []>} : vector<97x32xbf16>, vector<32x64xbf16>, vector<97x64xf32> -> vector<97x64xf32>
    %120 = arith.addf %116, %119 : vector<97x64xf32>
    %121 = vector.extract_strided_slice %93 {offsets = [1, 0], sizes = [97, 32], strides = [1, 1]} : vector<109x32xbf16> to vector<97x32xbf16>
    %122 = vector.extract_strided_slice %1 {offsets = [224, 0], sizes = [32, 64], strides = [1, 1]} : vector<512x64xbf16> to vector<32x64xbf16>
    %cst_50 = arith.constant dense<0.000000e+00> : vector<97x64xf32>
    %123 = tpu.matmul %121, %122, %cst_50 {dimension_numbers = #tpu.dot_dimension_numbers<[1], [0], [0], [1], [0, 0, 1, 1], [], []>} : vector<97x32xbf16>, vector<32x64xbf16>, vector<97x64xf32> -> vector<97x64xf32>
    %124 = arith.addf %120, %123 : vector<97x64xf32>
    %125 = vector.extract_strided_slice %33 {offsets = [11, 0], sizes = [97, 32], strides = [1, 1]} : vector<109x32xbf16> to vector<97x32xbf16>
    %126 = vector.extract_strided_slice %1 {offsets = [256, 0], sizes = [32, 64], strides = [1, 1]} : vector<512x64xbf16> to vector<32x64xbf16>
    %cst_51 = arith.constant dense<0.000000e+00> : vector<97x64xf32>
    %127 = tpu.matmul %125, %126, %cst_51 {dimension_numbers = #tpu.dot_dimension_numbers<[1], [0], [0], [1], [0, 0, 1, 1], [], []>} : vector<97x32xbf16>, vector<32x64xbf16>, vector<97x64xf32> -> vector<97x64xf32>
    %128 = arith.addf %124, %127 : vector<97x64xf32>
    %129 = vector.extract_strided_slice %53 {offsets = [11, 0], sizes = [97, 32], strides = [1, 1]} : vector<109x32xbf16> to vector<97x32xbf16>
    %130 = vector.extract_strided_slice %1 {offsets = [288, 0], sizes = [32, 64], strides = [1, 1]} : vector<512x64xbf16> to vector<32x64xbf16>
    %cst_52 = arith.constant dense<0.000000e+00> : vector<97x64xf32>
    %131 = tpu.matmul %129, %130, %cst_52 {dimension_numbers = #tpu.dot_dimension_numbers<[1], [0], [0], [1], [0, 0, 1, 1], [], []>} : vector<97x32xbf16>, vector<32x64xbf16>, vector<97x64xf32> -> vector<97x64xf32>
    %132 = arith.addf %128, %131 : vector<97x64xf32>
    %133 = vector.extract_strided_slice %73 {offsets = [11, 0], sizes = [97, 32], strides = [1, 1]} : vector<109x32xbf16> to vector<97x32xbf16>
    %134 = vector.extract_strided_slice %1 {offsets = [320, 0], sizes = [32, 64], strides = [1, 1]} : vector<512x64xbf16> to vector<32x64xbf16>
    %cst_53 = arith.constant dense<0.000000e+00> : vector<97x64xf32>
    %135 = tpu.matmul %133, %134, %cst_53 {dimension_numbers = #tpu.dot_dimension_numbers<[1], [0], [0], [1], [0, 0, 1, 1], [], []>} : vector<97x32xbf16>, vector<32x64xbf16>, vector<97x64xf32> -> vector<97x64xf32>
    %136 = arith.addf %132, %135 : vector<97x64xf32>
    %137 = vector.extract_strided_slice %93 {offsets = [11, 0], sizes = [97, 32], strides = [1, 1]} : vector<109x32xbf16> to vector<97x32xbf16>
    %138 = vector.extract_strided_slice %1 {offsets = [352, 0], sizes = [32, 64], strides = [1, 1]} : vector<512x64xbf16> to vector<32x64xbf16>
    %cst_54 = arith.constant dense<0.000000e+00> : vector<97x64xf32>
    %139 = tpu.matmul %137, %138, %cst_54 {dimension_numbers = #tpu.dot_dimension_numbers<[1], [0], [0], [1], [0, 0, 1, 1], [], []>} : vector<97x32xbf16>, vector<32x64xbf16>, vector<97x64xf32> -> vector<97x64xf32>
    %140 = arith.addf %136, %139 : vector<97x64xf32>
    %141 = vector.extract_strided_slice %33 {offsets = [12, 0], sizes = [97, 32], strides = [1, 1]} : vector<109x32xbf16> to vector<97x32xbf16>
    %142 = vector.extract_strided_slice %1 {offsets = [384, 0], sizes = [32, 64], strides = [1, 1]} : vector<512x64xbf16> to vector<32x64xbf16>
    %cst_55 = arith.constant dense<0.000000e+00> : vector<97x64xf32>
    %143 = tpu.matmul %141, %142, %cst_55 {dimension_numbers = #tpu.dot_dimension_numbers<[1], [0], [0], [1], [0, 0, 1, 1], [], []>} : vector<97x32xbf16>, vector<32x64xbf16>, vector<97x64xf32> -> vector<97x64xf32>
    %144 = arith.addf %140, %143 : vector<97x64xf32>
    %145 = vector.extract_strided_slice %53 {offsets = [12, 0], sizes = [97, 32], strides = [1, 1]} : vector<109x32xbf16> to vector<97x32xbf16>
    %146 = vector.extract_strided_slice %1 {offsets = [416, 0], sizes = [32, 64], strides = [1, 1]} : vector<512x64xbf16> to vector<32x64xbf16>
    %cst_56 = arith.constant dense<0.000000e+00> : vector<97x64xf32>
    %147 = tpu.matmul %145, %146, %cst_56 {dimension_numbers = #tpu.dot_dimension_numbers<[1], [0], [0], [1], [0, 0, 1, 1], [], []>} : vector<97x32xbf16>, vector<32x64xbf16>, vector<97x64xf32> -> vector<97x64xf32>
    %148 = arith.addf %144, %147 : vector<97x64xf32>
    %149 = vector.extract_strided_slice %73 {offsets = [12, 0], sizes = [97, 32], strides = [1, 1]} : vector<109x32xbf16> to vector<97x32xbf16>
    %150 = vector.extract_strided_slice %1 {offsets = [448, 0], sizes = [32, 64], strides = [1, 1]} : vector<512x64xbf16> to vector<32x64xbf16>
    %cst_57 = arith.constant dense<0.000000e+00> : vector<97x64xf32>
    %151 = tpu.matmul %149, %150, %cst_57 {dimension_numbers = #tpu.dot_dimension_numbers<[1], [0], [0], [1], [0, 0, 1, 1], [], []>} : vector<97x32xbf16>, vector<32x64xbf16>, vector<97x64xf32> -> vector<97x64xf32>
    %152 = arith.addf %148, %151 : vector<97x64xf32>
    %153 = vector.extract_strided_slice %93 {offsets = [12, 0], sizes = [97, 32], strides = [1, 1]} : vector<109x32xbf16> to vector<97x32xbf16>
    %154 = vector.extract_strided_slice %1 {offsets = [480, 0], sizes = [32, 64], strides = [1, 1]} : vector<512x64xbf16> to vector<32x64xbf16>
    %cst_58 = arith.constant dense<0.000000e+00> : vector<97x64xf32>
    %155 = tpu.matmul %153, %154, %cst_58 {dimension_numbers = #tpu.dot_dimension_numbers<[1], [0], [0], [1], [0, 0, 1, 1], [], []>} : vector<97x32xbf16>, vector<32x64xbf16>, vector<97x64xf32> -> vector<97x64xf32>
    %156 = arith.addf %152, %155 : vector<97x64xf32>
    %157 = vector.broadcast %4 : vector<1x64xf32> to vector<97x64xf32>
    %158 = arith.addf %156, %157 : vector<97x64xf32>
    %cst_59 = arith.constant 0.000000e+00 : f32
    %159 = vector.broadcast %cst_59 : f32 to vector<97x64xf32>
    %160 = arith.maximumf %158, %159 : vector<97x64xf32>
    %161 = arith.truncf %160 : vector<97x64xf32> to vector<97x64xbf16>
    %162 = vector.extract_strided_slice %161 {offsets = [0, 0], sizes = [73, 64], strides = [1, 1]} : vector<97x64xbf16> to vector<73x64xbf16>
    %163 = vector.extract_strided_slice %2 {offsets = [0, 0], sizes = [64, 64], strides = [1, 1]} : vector<576x64xbf16> to vector<64x64xbf16>
    %cst_60 = arith.constant dense<0.000000e+00> : vector<73x64xf32>
    %164 = tpu.matmul %162, %163, %cst_60 {dimension_numbers = #tpu.dot_dimension_numbers<[1], [0], [0], [1], [0, 0, 1, 1], [], []>} : vector<73x64xbf16>, vector<64x64xbf16>, vector<73x64xf32> -> vector<73x64xf32>
    %165 = vector.extract_strided_slice %161 {offsets = [1, 0], sizes = [73, 64], strides = [1, 1]} : vector<97x64xbf16> to vector<73x64xbf16>
    %166 = vector.extract_strided_slice %2 {offsets = [64, 0], sizes = [64, 64], strides = [1, 1]} : vector<576x64xbf16> to vector<64x64xbf16>
    %cst_61 = arith.constant dense<0.000000e+00> : vector<73x64xf32>
    %167 = tpu.matmul %165, %166, %cst_61 {dimension_numbers = #tpu.dot_dimension_numbers<[1], [0], [0], [1], [0, 0, 1, 1], [], []>} : vector<73x64xbf16>, vector<64x64xbf16>, vector<73x64xf32> -> vector<73x64xf32>
    %168 = arith.addf %164, %167 : vector<73x64xf32>
    %169 = vector.extract_strided_slice %161 {offsets = [2, 0], sizes = [73, 64], strides = [1, 1]} : vector<97x64xbf16> to vector<73x64xbf16>
    %170 = vector.extract_strided_slice %2 {offsets = [128, 0], sizes = [64, 64], strides = [1, 1]} : vector<576x64xbf16> to vector<64x64xbf16>
    %cst_62 = arith.constant dense<0.000000e+00> : vector<73x64xf32>
    %171 = tpu.matmul %169, %170, %cst_62 {dimension_numbers = #tpu.dot_dimension_numbers<[1], [0], [0], [1], [0, 0, 1, 1], [], []>} : vector<73x64xbf16>, vector<64x64xbf16>, vector<73x64xf32> -> vector<73x64xf32>
    %172 = arith.addf %168, %171 : vector<73x64xf32>
    %173 = vector.extract_strided_slice %161 {offsets = [11, 0], sizes = [73, 64], strides = [1, 1]} : vector<97x64xbf16> to vector<73x64xbf16>
    %174 = vector.extract_strided_slice %2 {offsets = [192, 0], sizes = [64, 64], strides = [1, 1]} : vector<576x64xbf16> to vector<64x64xbf16>
    %cst_63 = arith.constant dense<0.000000e+00> : vector<73x64xf32>
    %175 = tpu.matmul %173, %174, %cst_63 {dimension_numbers = #tpu.dot_dimension_numbers<[1], [0], [0], [1], [0, 0, 1, 1], [], []>} : vector<73x64xbf16>, vector<64x64xbf16>, vector<73x64xf32> -> vector<73x64xf32>
    %176 = arith.addf %172, %175 : vector<73x64xf32>
    %177 = vector.extract_strided_slice %161 {offsets = [12, 0], sizes = [73, 64], strides = [1, 1]} : vector<97x64xbf16> to vector<73x64xbf16>
    %178 = vector.extract_strided_slice %2 {offsets = [256, 0], sizes = [64, 64], strides = [1, 1]} : vector<576x64xbf16> to vector<64x64xbf16>
    %cst_64 = arith.constant dense<0.000000e+00> : vector<73x64xf32>
    %179 = tpu.matmul %177, %178, %cst_64 {dimension_numbers = #tpu.dot_dimension_numbers<[1], [0], [0], [1], [0, 0, 1, 1], [], []>} : vector<73x64xbf16>, vector<64x64xbf16>, vector<73x64xf32> -> vector<73x64xf32>
    %180 = arith.addf %176, %179 : vector<73x64xf32>
    %181 = vector.extract_strided_slice %161 {offsets = [13, 0], sizes = [73, 64], strides = [1, 1]} : vector<97x64xbf16> to vector<73x64xbf16>
    %182 = vector.extract_strided_slice %2 {offsets = [320, 0], sizes = [64, 64], strides = [1, 1]} : vector<576x64xbf16> to vector<64x64xbf16>
    %cst_65 = arith.constant dense<0.000000e+00> : vector<73x64xf32>
    %183 = tpu.matmul %181, %182, %cst_65 {dimension_numbers = #tpu.dot_dimension_numbers<[1], [0], [0], [1], [0, 0, 1, 1], [], []>} : vector<73x64xbf16>, vector<64x64xbf16>, vector<73x64xf32> -> vector<73x64xf32>
    %184 = arith.addf %180, %183 : vector<73x64xf32>
    %185 = vector.extract_strided_slice %161 {offsets = [22, 0], sizes = [73, 64], strides = [1, 1]} : vector<97x64xbf16> to vector<73x64xbf16>
    %186 = vector.extract_strided_slice %2 {offsets = [384, 0], sizes = [64, 64], strides = [1, 1]} : vector<576x64xbf16> to vector<64x64xbf16>
    %cst_66 = arith.constant dense<0.000000e+00> : vector<73x64xf32>
    %187 = tpu.matmul %185, %186, %cst_66 {dimension_numbers = #tpu.dot_dimension_numbers<[1], [0], [0], [1], [0, 0, 1, 1], [], []>} : vector<73x64xbf16>, vector<64x64xbf16>, vector<73x64xf32> -> vector<73x64xf32>
    %188 = arith.addf %184, %187 : vector<73x64xf32>
    %189 = vector.extract_strided_slice %161 {offsets = [23, 0], sizes = [73, 64], strides = [1, 1]} : vector<97x64xbf16> to vector<73x64xbf16>
    %190 = vector.extract_strided_slice %2 {offsets = [448, 0], sizes = [64, 64], strides = [1, 1]} : vector<576x64xbf16> to vector<64x64xbf16>
    %cst_67 = arith.constant dense<0.000000e+00> : vector<73x64xf32>
    %191 = tpu.matmul %189, %190, %cst_67 {dimension_numbers = #tpu.dot_dimension_numbers<[1], [0], [0], [1], [0, 0, 1, 1], [], []>} : vector<73x64xbf16>, vector<64x64xbf16>, vector<73x64xf32> -> vector<73x64xf32>
    %192 = arith.addf %188, %191 : vector<73x64xf32>
    %193 = vector.extract_strided_slice %161 {offsets = [24, 0], sizes = [73, 64], strides = [1, 1]} : vector<97x64xbf16> to vector<73x64xbf16>
    %194 = vector.extract_strided_slice %2 {offsets = [512, 0], sizes = [64, 64], strides = [1, 1]} : vector<576x64xbf16> to vector<64x64xbf16>
    %cst_68 = arith.constant dense<0.000000e+00> : vector<73x64xf32>
    %195 = tpu.matmul %193, %194, %cst_68 {dimension_numbers = #tpu.dot_dimension_numbers<[1], [0], [0], [1], [0, 0, 1, 1], [], []>} : vector<73x64xbf16>, vector<64x64xbf16>, vector<73x64xf32> -> vector<73x64xf32>
    %196 = arith.addf %192, %195 : vector<73x64xf32>
    %197 = vector.broadcast %5 : vector<1x64xf32> to vector<73x64xf32>
    %198 = arith.addf %196, %197 : vector<73x64xf32>
    %cst_69 = arith.constant 0.000000e+00 : f32
    %199 = vector.broadcast %cst_69 : f32 to vector<73x64xf32>
    %200 = arith.maximumf %198, %199 : vector<73x64xf32>
    %201 = vector.extract_strided_slice %200 {offsets = [0, 0], sizes = [7, 64], strides = [1, 1]} : vector<73x64xf32> to vector<7x64xf32>
    %202 = arith.truncf %201 : vector<7x64xf32> to vector<7x64xbf16>
    %c0_70 = arith.constant 0 : index
    %c0_71 = arith.constant 0 : index
    %c0_72 = arith.constant 0 : index
    %203 = vector.load %arg8[%c0_70, %c0_71, %c0_72] : memref<1x49x64xbf16, #tpu.memory_space<vmem>>, vector<1x7x64xbf16>
    %204 = vector.shape_cast %203 : vector<1x7x64xbf16> to vector<7x64xbf16>
    %205 = vector.shape_cast %202 : vector<7x64xbf16> to vector<1x7x64xbf16>
    tpu.vector_store %arg8[%c0_70, %c0_71, %c0_72], %205 {strides = array<i32>} : memref<1x49x64xbf16, #tpu.memory_space<vmem>>, vector<1x7x64xbf16>,
    %206 = vector.extract_strided_slice %200 {offsets = [11, 0], sizes = [7, 64], strides = [1, 1]} : vector<73x64xf32> to vector<7x64xf32>
    %207 = arith.truncf %206 : vector<7x64xf32> to vector<7x64xbf16>
    %c0_73 = arith.constant 0 : index
    %c7 = arith.constant 7 : index
    %c0_74 = arith.constant 0 : index
    %208 = vector.load %arg8[%c0_73, %c7, %c0_74] : memref<1x49x64xbf16, #tpu.memory_space<vmem>>, vector<1x7x64xbf16>
    %209 = vector.shape_cast %208 : vector<1x7x64xbf16> to vector<7x64xbf16>
    %210 = vector.shape_cast %207 : vector<7x64xbf16> to vector<1x7x64xbf16>
    tpu.vector_store %arg8[%c0_73, %c7, %c0_74], %210 {strides = array<i32>} : memref<1x49x64xbf16, #tpu.memory_space<vmem>>, vector<1x7x64xbf16>,
    %211 = vector.extract_strided_slice %200 {offsets = [22, 0], sizes = [7, 64], strides = [1, 1]} : vector<73x64xf32> to vector<7x64xf32>
    %212 = arith.truncf %211 : vector<7x64xf32> to vector<7x64xbf16>
    %c0_75 = arith.constant 0 : index
    %c14 = arith.constant 14 : index
    %c0_76 = arith.constant 0 : index
    %213 = vector.load %arg8[%c0_75, %c14, %c0_76] : memref<1x49x64xbf16, #tpu.memory_space<vmem>>, vector<1x7x64xbf16>
    %214 = vector.shape_cast %213 : vector<1x7x64xbf16> to vector<7x64xbf16>
    %215 = vector.shape_cast %212 : vector<7x64xbf16> to vector<1x7x64xbf16>
    tpu.vector_store %arg8[%c0_75, %c14, %c0_76], %215 {strides = array<i32>} : memref<1x49x64xbf16, #tpu.memory_space<vmem>>, vector<1x7x64xbf16>,
    %216 = vector.extract_strided_slice %200 {offsets = [33, 0], sizes = [7, 64], strides = [1, 1]} : vector<73x64xf32> to vector<7x64xf32>
    %217 = arith.truncf %216 : vector<7x64xf32> to vector<7x64xbf16>
    %c0_77 = arith.constant 0 : index
    %c21 = arith.constant 21 : index
    %c0_78 = arith.constant 0 : index
    %218 = vector.load %arg8[%c0_77, %c21, %c0_78] : memref<1x49x64xbf16, #tpu.memory_space<vmem>>, vector<1x7x64xbf16>
    %219 = vector.shape_cast %218 : vector<1x7x64xbf16> to vector<7x64xbf16>
    %220 = vector.shape_cast %217 : vector<7x64xbf16> to vector<1x7x64xbf16>
    tpu.vector_store %arg8[%c0_77, %c21, %c0_78], %220 {strides = array<i32>} : memref<1x49x64xbf16, #tpu.memory_space<vmem>>, vector<1x7x64xbf16>,
    %221 = vector.extract_strided_slice %200 {offsets = [44, 0], sizes = [7, 64], strides = [1, 1]} : vector<73x64xf32> to vector<7x64xf32>
    %222 = arith.truncf %221 : vector<7x64xf32> to vector<7x64xbf16>
    %c0_79 = arith.constant 0 : index
    %c28 = arith.constant 28 : index
    %c0_80 = arith.constant 0 : index
    %223 = vector.load %arg8[%c0_79, %c28, %c0_80] : memref<1x49x64xbf16, #tpu.memory_space<vmem>>, vector<1x7x64xbf16>
    %224 = vector.shape_cast %223 : vector<1x7x64xbf16> to vector<7x64xbf16>
    %225 = vector.shape_cast %222 : vector<7x64xbf16> to vector<1x7x64xbf16>
    tpu.vector_store %arg8[%c0_79, %c28, %c0_80], %225 {strides = array<i32>} : memref<1x49x64xbf16, #tpu.memory_space<vmem>>, vector<1x7x64xbf16>,
    %226 = vector.extract_strided_slice %200 {offsets = [55, 0], sizes = [7, 64], strides = [1, 1]} : vector<73x64xf32> to vector<7x64xf32>
    %227 = arith.truncf %226 : vector<7x64xf32> to vector<7x64xbf16>
    %c0_81 = arith.constant 0 : index
    %c35 = arith.constant 35 : index
    %c0_82 = arith.constant 0 : index
    %228 = vector.load %arg8[%c0_81, %c35, %c0_82] : memref<1x49x64xbf16, #tpu.memory_space<vmem>>, vector<1x7x64xbf16>
    %229 = vector.shape_cast %228 : vector<1x7x64xbf16> to vector<7x64xbf16>
    %230 = vector.shape_cast %227 : vector<7x64xbf16> to vector<1x7x64xbf16>
    tpu.vector_store %arg8[%c0_81, %c35, %c0_82], %230 {strides = array<i32>} : memref<1x49x64xbf16, #tpu.memory_space<vmem>>, vector<1x7x64xbf16>,
    %231 = vector.extract_strided_slice %200 {offsets = [66, 0], sizes = [7, 64], strides = [1, 1]} : vector<73x64xf32> to vector<7x64xf32>
    %232 = arith.truncf %231 : vector<7x64xf32> to vector<7x64xbf16>
    %c0_83 = arith.constant 0 : index
    %c42 = arith.constant 42 : index
    %c0_84 = arith.constant 0 : index
    %233 = vector.load %arg8[%c0_83, %c42, %c0_84] : memref<1x49x64xbf16, #tpu.memory_space<vmem>>, vector<1x7x64xbf16>
    %234 = vector.shape_cast %233 : vector<1x7x64xbf16> to vector<7x64xbf16>
    %235 = vector.shape_cast %232 : vector<7x64xbf16> to vector<1x7x64xbf16>
    tpu.vector_store %arg8[%c0_83, %c42, %c0_84], %235 {strides = array<i32>} : memref<1x49x64xbf16, #tpu.memory_space<vmem>>, vector<1x7x64xbf16>,
    return
  }
  func.func @transform_0(%arg0: i32) -> (i32, i32, i32, i32) {
    %c0_i32 = arith.constant 0 : i32
    %c0_i32_0 = arith.constant 0 : i32
    %c0_i32_1 = arith.constant 0 : i32
    %c0_i32_2 = arith.constant 0 : i32
    return %arg0, %c0_i32, %c0_i32_0, %c0_i32_1 : i32, i32, i32, i32
  }
  func.func @transform_1(%arg0: i32) -> (i32, i32) {
    %c0_i32 = arith.constant 0 : i32
    %c0_i32_0 = arith.constant 0 : i32
    %c0_i32_1 = arith.constant 0 : i32
    return %c0_i32, %c0_i32_0 : i32, i32
  }
  func.func @transform_2(%arg0: i32) -> (i32, i32) {
    %c0_i32 = arith.constant 0 : i32
    %c0_i32_0 = arith.constant 0 : i32
    %c0_i32_1 = arith.constant 0 : i32
    return %c0_i32, %c0_i32_0 : i32, i32
  }
  func.func @transform_3(%arg0: i32) -> (i32, i32) {
    %c0_i32 = arith.constant 0 : i32
    %c0_i32_0 = arith.constant 0 : i32
    %c0_i32_1 = arith.constant 0 : i32
    return %c0_i32, %c0_i32_0 : i32, i32
  }
  func.func @transform_4(%arg0: i32) -> (i32, i32) {
    %c0_i32 = arith.constant 0 : i32
    %c0_i32_0 = arith.constant 0 : i32
    %c0_i32_1 = arith.constant 0 : i32
    return %c0_i32, %c0_i32_0 : i32, i32
  }
  func.func @transform_5(%arg0: i32) -> (i32, i32) {
    %c0_i32 = arith.constant 0 : i32
    %c0_i32_0 = arith.constant 0 : i32
    %c0_i32_1 = arith.constant 0 : i32
    return %c0_i32, %c0_i32_0 : i32, i32
  }
  func.func @transform_6(%arg0: i32) -> (i32, i32) {
    %c0_i32 = arith.constant 0 : i32
    %c0_i32_0 = arith.constant 0 : i32
    %c0_i32_1 = arith.constant 0 : i32
    return %c0_i32, %c0_i32_0 : i32, i32
  }
  func.func @transform_7(%arg0: i32) -> (i32, i32, i32) {
    %c0_i32 = arith.constant 0 : i32
    %c0_i32_0 = arith.constant 0 : i32
    %c0_i32_1 = arith.constant 0 : i32
    return %arg0, %c0_i32, %c0_i32_0 : i32, i32, i32
  }
}

module attributes {stable_mosaic.version = 11 : i64} {
  func.func @_fc_kernel(%arg0: i32, %arg1: memref<2x3136xbf16, #tpu.memory_space<vmem>>, %arg2: memref<3136x512xbf16, #tpu.memory_space<vmem>>, %arg3: memref<1x512xf32, #tpu.memory_space<vmem>>, %arg4: memref<512x128xbf16, #tpu.memory_space<vmem>>, %arg5: memref<1x128xf32, #tpu.memory_space<vmem>>, %arg6: memref<2x128xf32, #tpu.memory_space<vmem>>) attributes {dimension_semantics = [#tpu.dimension_semantics<parallel>], iteration_bounds = array<i64: 1>, scalar_prefetch = 0 : i64, scratch_operands = 0 : i64, tpu.core_type = #tpu.core_type<tc>, window_params = [{transform_indices = @transform_0, window_bounds = array<i64: 2, 3136>}, {pipeline_mode = #tpu.pipeline_mode<synchronous>, transform_indices = @transform_1, window_bounds = array<i64: 3136, 512>}, {pipeline_mode = #tpu.pipeline_mode<synchronous>, transform_indices = @transform_2, window_bounds = array<i64: 1, 512>}, {pipeline_mode = #tpu.pipeline_mode<synchronous>, transform_indices = @transform_3, window_bounds = array<i64: 512, 128>}, {pipeline_mode = #tpu.pipeline_mode<synchronous>, transform_indices = @transform_4, window_bounds = array<i64: 1, 128>}, {transform_indices = @transform_5, window_bounds = array<i64: 2, 128>}]} {
    %c0 = arith.constant 0 : index
    %c0_0 = arith.constant 0 : index
    %0 = vector.load %arg1[%c0, %c0_0] : memref<2x3136xbf16, #tpu.memory_space<vmem>>, vector<2x3136xbf16>
    %c0_1 = arith.constant 0 : index
    %c0_2 = arith.constant 0 : index
    %1 = vector.load %arg2[%c0_1, %c0_2] : memref<3136x512xbf16, #tpu.memory_space<vmem>>, vector<3136x512xbf16>
    %cst = arith.constant dense<0.000000e+00> : vector<2x512xf32>
    %2 = tpu.matmul %0, %1, %cst {dimension_numbers = #tpu.dot_dimension_numbers<[1], [0], [0], [1], [0, 0, 1, 1], [], []>} : vector<2x3136xbf16>, vector<3136x512xbf16>, vector<2x512xf32> -> vector<2x512xf32>
    %c0_3 = arith.constant 0 : index
    %c0_4 = arith.constant 0 : index
    %3 = vector.load %arg3[%c0_3, %c0_4] : memref<1x512xf32, #tpu.memory_space<vmem>>, vector<1x512xf32>
    %4 = vector.broadcast %3 : vector<1x512xf32> to vector<2x512xf32>
    %5 = arith.addf %2, %4 : vector<2x512xf32>
    %6 = math.tanh %5 : vector<2x512xf32>
    %7 = arith.truncf %6 : vector<2x512xf32> to vector<2x512xbf16>
    %c0_5 = arith.constant 0 : index
    %c0_6 = arith.constant 0 : index
    %8 = vector.load %arg4[%c0_5, %c0_6] : memref<512x128xbf16, #tpu.memory_space<vmem>>, vector<512x128xbf16>
    %cst_7 = arith.constant dense<0.000000e+00> : vector<2x128xf32>
    %9 = tpu.matmul %7, %8, %cst_7 {dimension_numbers = #tpu.dot_dimension_numbers<[1], [0], [0], [1], [0, 0, 1, 1], [], []>} : vector<2x512xbf16>, vector<512x128xbf16>, vector<2x128xf32> -> vector<2x128xf32>
    %c0_8 = arith.constant 0 : index
    %c0_9 = arith.constant 0 : index
    %10 = vector.load %arg5[%c0_8, %c0_9] : memref<1x128xf32, #tpu.memory_space<vmem>>, vector<1x128xf32>
    %11 = vector.broadcast %10 : vector<1x128xf32> to vector<2x128xf32>
    %12 = arith.addf %9, %11 : vector<2x128xf32>
    %c0_10 = arith.constant 0 : index
    %c0_11 = arith.constant 0 : index
    %13 = vector.load %arg6[%c0_10, %c0_11] : memref<2x128xf32, #tpu.memory_space<vmem>>, vector<2x128xf32>
    tpu.vector_store %arg6[%c0_10, %c0_11], %12 {strides = array<i32>} : memref<2x128xf32, #tpu.memory_space<vmem>>, vector<2x128xf32>,
    return
  }
  func.func @transform_0(%arg0: i32) -> (i32, i32) {
    %c0_i32 = arith.constant 0 : i32
    %c0_i32_0 = arith.constant 0 : i32
    return %arg0, %c0_i32 : i32, i32
  }
  func.func @transform_1(%arg0: i32) -> (i32, i32) {
    %c0_i32 = arith.constant 0 : i32
    %c0_i32_0 = arith.constant 0 : i32
    %c0_i32_1 = arith.constant 0 : i32
    return %c0_i32, %c0_i32_0 : i32, i32
  }
  func.func @transform_2(%arg0: i32) -> (i32, i32) {
    %c0_i32 = arith.constant 0 : i32
    %c0_i32_0 = arith.constant 0 : i32
    %c0_i32_1 = arith.constant 0 : i32
    return %c0_i32, %c0_i32_0 : i32, i32
  }
  func.func @transform_3(%arg0: i32) -> (i32, i32) {
    %c0_i32 = arith.constant 0 : i32
    %c0_i32_0 = arith.constant 0 : i32
    %c0_i32_1 = arith.constant 0 : i32
    return %c0_i32, %c0_i32_0 : i32, i32
  }
  func.func @transform_4(%arg0: i32) -> (i32, i32) {
    %c0_i32 = arith.constant 0 : i32
    %c0_i32_0 = arith.constant 0 : i32
    %c0_i32_1 = arith.constant 0 : i32
    return %c0_i32, %c0_i32_0 : i32, i32
  }
  func.func @transform_5(%arg0: i32) -> (i32, i32) {
    %c0_i32 = arith.constant 0 : i32
    %c0_i32_0 = arith.constant 0 : i32
    return %arg0, %c0_i32 : i32, i32
  }
}

</mosaic_0001>

<llo_original>
// kernel: value_net_forward.2
$region0: #{value_net_forward.2}
  #allocation0 [shape = 'u32[]', space=smem, size = 0x4, offset = 0x4, fixed_abs, tag = 'smem constant byte address 0x4 - core index']
  #allocation1 [shape = 'u32[144,128]{1,0:T(1,128)}', space=vmem, size = 0x12000, scoped, tag = 'internal scratch']
  %s0 = inlined_call_operand.vmem [shape: bf16[2,4,121,64], index: 0, kind: input, shape index: {}]
  %s1 = inlined_call_operand.vmem [shape: bf16[256,32], index: 1, kind: input, shape index: {}]
  %s2 = inlined_call_operand.vmem [shape: f32[1,32], index: 2, kind: input, shape index: {}]
  %s3 = inlined_call_operand.vmem [shape: bf16[512,64], index: 3, kind: input, shape index: {}]
  %s4 = inlined_call_operand.vmem [shape: f32[1,64], index: 4, kind: input, shape index: {}]
  %s5 = inlined_call_operand.vmem [shape: bf16[576,64], index: 5, kind: input, shape index: {}]
  %s6 = inlined_call_operand.vmem [shape: f32[1,64], index: 6, kind: input, shape index: {}]
  %s7 = inlined_call_operand.vmem [shape: bf16[2,49,64], index: 7, kind: output, shape index: {}]
  %s8 = sld [smem:[#allocation0]]
  $region61: #{value_net_forward.2} parent=0
    _
  %s10 = ssub.s32 1, %s8
  %s11 = scalar_select 0, %s10, %s8
  loop: start=0, step=1, limit=4
  $region2: #{value_net_forward.2} parent=0 // loop_pre_header
    _
  $region3: #{value_net_forward.2} parent=0 // loop_header
    %s13 = sphi 0, %s17
    %p14 = scmp.ge.s32.totalorder %s13, 4
    %s23 = sphi 0, %s25
    %s26 = sphi 0, %s23
    %s27 = sphi 0, %s26
    %s43 = sphi 0, %s27
    %s47 = sphi 0, %s47
    %s49 = sphi 0, %s47
    %s50 = sphi 0, %s49
    %s64 = sphi 0, %s50
    %s68 = sphi 0, %s68
    %s70 = sphi 0, %s68
    %s71 = sphi 0, %s70
    %s85 = sphi 0, %s71
    %s89 = sphi 0, %s89
    %s91 = sphi 0, %s89
    %s92 = sphi 0, %s91
    %s106 = sphi 0, %s92
    %s110 = sphi 0, %s110
    %s112 = sphi 0, %s110
    %s113 = sphi 0, %s112
    %s127 = sphi 0, %s113
    %s131 = sphi 0, %s131
    %s133 = sphi 0, %s131
    %s134 = sphi 0, %s133
    %s148 = sphi 0, %s134
    %s152 = sphi 0, %s152
    %s154 = sphi 0, %s152
    %s155 = sphi 0, %s154
    %s169 = sphi 0, %s155
    %s175 = sphi 0, %s177
    %s178 = sphi 0, %s175
    %s179 = sphi 0, %s178
    %s195 = sphi 0, %s179
  $region4: #{value_net_forward.2} parent=0 // loop_header_branch
    %16 = sbr.rel (%p14) target = $region8
  $region5: #{value_net_forward.2} parent=0 // loop_body
    %s18 = ssub.s32 %s13, 1
    %s19 = ssub.s32 %s13, 2
    %s20 = sadd.s32 %s13, 1
    %s21 = ssub.s32 %s13, %s20
    %p22 = scmp.eq.s32.totalorder %s21, 0
    %s24 = sadd.s32 %s23, 1
    %s25 = scalar_select %p22, %s23, %s24
    %p28 = pneg %p22
    %p29 = scmp.eq.s32.totalorder %s13, 1
    %p30 = por %p28, %p29
    %p31 = scmp.ne.s32.totalorder %s23, %s26
    %p32 = scmp.eq.s32.totalorder %s13, 0
    %p33 = por %p31, %p32
    %p34 = scmp.ne.s32.totalorder %s23, %s26
    %p35 = scmp.eq.s32.totalorder %s18, 1
    %p36 = por %p34, %p35
    %p37 = scmp.ne.s32.totalorder %s26, %s27
    %p38 = scmp.eq.s32.totalorder %s18, 0
    %p39 = por %p37, %p38
    %p40 = scmp.ne.s32.totalorder %s26, %s27
    %p41 = scmp.eq.s32.totalorder %s19, 1
    %p42 = por %p40, %p41
    %p44 = scmp.ne.s32.totalorder %s27, %s43
    %p45 = scmp.eq.s32.totalorder %s19, 0
    %p46 = por %p44, %p45
    %s48 = sadd.s32 %s47, 1
    %p51 = scmp.eq.s32.totalorder %s13, 1
    %p52 = scmp.ne.s32.totalorder %s47, %s49
    %p53 = scmp.eq.s32.totalorder %s13, 0
    %p54 = por %p52, %p53
    %p55 = scmp.ne.s32.totalorder %s47, %s49
    %p56 = scmp.eq.s32.totalorder %s18, 1
    %p57 = por %p55, %p56
    %p58 = scmp.ne.s32.totalorder %s49, %s50
    %p59 = scmp.eq.s32.totalorder %s18, 0
    %p60 = por %p58, %p59
    %p61 = scmp.ne.s32.totalorder %s49, %s50
    %p62 = scmp.eq.s32.totalorder %s19, 1
    %p63 = por %p61, %p62
    %p65 = scmp.ne.s32.totalorder %s50, %s64
    %p66 = scmp.eq.s32.totalorder %s19, 0
    %p67 = por %p65, %p66
    %s69 = sadd.s32 %s68, 1
    %p72 = scmp.eq.s32.totalorder %s13, 1
    %p73 = scmp.ne.s32.totalorder %s68, %s70
    %p74 = scmp.eq.s32.totalorder %s13, 0
    %p75 = por %p73, %p74
    %p76 = scmp.ne.s32.totalorder %s68, %s70
    %p77 = scmp.eq.s32.totalorder %s18, 1
    %p78 = por %p76, %p77
    %p79 = scmp.ne.s32.totalorder %s70, %s71
    %p80 = scmp.eq.s32.totalorder %s18, 0
    %p81 = por %p79, %p80
    %p82 = scmp.ne.s32.totalorder %s70, %s71
    %p83 = scmp.eq.s32.totalorder %s19, 1
    %p84 = por %p82, %p83
    %p86 = scmp.ne.s32.totalorder %s71, %s85
    %p87 = scmp.eq.s32.totalorder %s19, 0
    %p88 = por %p86, %p87
    %s90 = sadd.s32 %s89, 1
    %p93 = scmp.eq.s32.totalorder %s13, 1
    %p94 = scmp.ne.s32.totalorder %s89, %s91
    %p95 = scmp.eq.s32.totalorder %s13, 0
    %p96 = por %p94, %p95
    %p97 = scmp.ne.s32.totalorder %s89, %s91
    %p98 = scmp.eq.s32.totalorder %s18, 1
    %p99 = por %p97, %p98
    %p100 = scmp.ne.s32.totalorder %s91, %s92
    %p101 = scmp.eq.s32.totalorder %s18, 0
    %p102 = por %p100, %p101
    %p103 = scmp.ne.s32.totalorder %s91, %s92
    %p104 = scmp.eq.s32.totalorder %s19, 1
    %p105 = por %p103, %p104
    %p107 = scmp.ne.s32.totalorder %s92, %s106
    %p108 = scmp.eq.s32.totalorder %s19, 0
    %p109 = por %p107, %p108
    %s111 = sadd.s32 %s110, 1
    %p114 = scmp.eq.s32.totalorder %s13, 1
    %p115 = scmp.ne.s32.totalorder %s110, %s112
    %p116 = scmp.eq.s32.totalorder %s13, 0
    %p117 = por %p115, %p116
    %p118 = scmp.ne.s32.totalorder %s110, %s112
    %p119 = scmp.eq.s32.totalorder %s18, 1
    %p120 = por %p118, %p119
    %p121 = scmp.ne.s32.totalorder %s112, %s113
    %p122 = scmp.eq.s32.totalorder %s18, 0
    %p123 = por %p121, %p122
    %p124 = scmp.ne.s32.totalorder %s112, %s113
    %p125 = scmp.eq.s32.totalorder %s19, 1
    %p126 = por %p124, %p125
    %p128 = scmp.ne.s32.totalorder %s113, %s127
    %p129 = scmp.eq.s32.totalorder %s19, 0
    %p130 = por %p128, %p129
    %s132 = sadd.s32 %s131, 1
    %p135 = scmp.eq.s32.totalorder %s13, 1
    %p136 = scmp.ne.s32.totalorder %s131, %s133
    %p137 = scmp.eq.s32.totalorder %s13, 0
    %p138 = por %p136, %p137
    %p139 = scmp.ne.s32.totalorder %s131, %s133
    %p140 = scmp.eq.s32.totalorder %s18, 1
    %p141 = por %p139, %p140
    %p142 = scmp.ne.s32.totalorder %s133, %s134
    %p143 = scmp.eq.s32.totalorder %s18, 0
    %p144 = por %p142, %p143
    %p145 = scmp.ne.s32.totalorder %s133, %s134
    %p146 = scmp.eq.s32.totalorder %s19, 1
    %p147 = por %p145, %p146
    %p149 = scmp.ne.s32.totalorder %s134, %s148
    %p150 = scmp.eq.s32.totalorder %s19, 0
    %p151 = por %p149, %p150
    %s153 = sadd.s32 %s152, 1
    %p156 = scmp.eq.s32.totalorder %s13, 1
    %p157 = scmp.ne.s32.totalorder %s152, %s154
    %p158 = scmp.eq.s32.totalorder %s13, 0
    %p159 = por %p157, %p158
    %p160 = scmp.ne.s32.totalorder %s152, %s154
    %p161 = scmp.eq.s32.totalorder %s18, 1
    %p162 = por %p160, %p161
    %p163 = scmp.ne.s32.totalorder %s154, %s155
    %p164 = scmp.eq.s32.totalorder %s18, 0
    %p165 = por %p163, %p164
    %p166 = scmp.ne.s32.totalorder %s154, %s155
    %p167 = scmp.eq.s32.totalorder %s19, 1
    %p168 = por %p166, %p167
    %p170 = scmp.ne.s32.totalorder %s155, %s169
    %p171 = scmp.eq.s32.totalorder %s19, 0
    %p172 = por %p170, %p171
    %s173 = ssub.s32 %s13, %s20
    %p174 = scmp.eq.s32.totalorder %s173, 0
    %s176 = sadd.s32 %s175, 1
    %s177 = scalar_select %p174, %s175, %s176
    %p180 = pneg %p174
    %p181 = scmp.eq.s32.totalorder %s13, 1
    %p182 = por %p180, %p181
    %p183 = scmp.ne.s32.totalorder %s175, %s178
    %p184 = scmp.eq.s32.totalorder %s13, 0
    %p185 = por %p183, %p184
    %p186 = scmp.ne.s32.totalorder %s175, %s178
    %p187 = scmp.eq.s32.totalorder %s18, 1
    %p188 = por %p186, %p187
    %p189 = scmp.ne.s32.totalorder %s178, %s179
    %p190 = scmp.eq.s32.totalorder %s18, 0
    %p191 = por %p189, %p190
    %p192 = scmp.ne.s32.totalorder %s178, %s179
    %p193 = scmp.eq.s32.totalorder %s19, 1
    %p194 = por %p192, %p193
    %p196 = scmp.ne.s32.totalorder %s179, %s195
    %p197 = scmp.eq.s32.totalorder %s19, 0
    %p198 = por %p196, %p197
    %p199 = scmp.le.s32.totalorder 1, %s13
    %p200 = scmp.lt.s32.totalorder %s13, 3
    %p201 = pnand %p199, %p200
    %p202 = pneg %p201
    // Predicated region
    $region9: #{value_net_forward.2} parent=5 // pred_check
      _
    $region10: #{value_net_forward.2} parent=5 // pred_check_branch
      %204 = sbr.rel (%p201) target = $region12
    $region11: #{value_net_forward.2} parent=5 // pred_region
      %s205 = ssub.s32 %s13, 1
      // Predicated region
      $region13: #{value_net_forward.2} parent=11 // pred_check
        %p206 = pneg %p60
      $region14: #{value_net_forward.2} parent=11 // pred_check_branch
        %208 = sbr.rel (%p206) target = $region16
      $region15: #{value_net_forward.2} parent=11 // pred_region
        _
      $region16: #{value_net_forward.2} parent=11 // pred_fallthru
        _
      // Predicated region
      $region17: #{value_net_forward.2} parent=11 // pred_check
        %p209 = pneg %p81
      $region18: #{value_net_forward.2} parent=11 // pred_check_branch
        %211 = sbr.rel (%p209) target = $region20
      $region19: #{value_net_forward.2} parent=11 // pred_region
        _
      $region20: #{value_net_forward.2} parent=11 // pred_fallthru
        _
      // Predicated region
      $region21: #{value_net_forward.2} parent=11 // pred_check
        %p212 = pneg %p102
      $region22: #{value_net_forward.2} parent=11 // pred_check_branch
        %214 = sbr.rel (%p212) target = $region24
      $region23: #{value_net_forward.2} parent=11 // pred_region
        _
      $region24: #{value_net_forward.2} parent=11 // pred_fallthru
        _
      // Predicated region
      $region25: #{value_net_forward.2} parent=11 // pred_check
        %p215 = pneg %p123
      $region26: #{value_net_forward.2} parent=11 // pred_check_branch
        %217 = sbr.rel (%p215) target = $region28
      $region27: #{value_net_forward.2} parent=11 // pred_region
        _
      $region28: #{value_net_forward.2} parent=11 // pred_fallthru
        _
      // Predicated region
      $region29: #{value_net_forward.2} parent=11 // pred_check
        %p218 = pneg %p144
      $region30: #{value_net_forward.2} parent=11 // pred_check_branch
        %220 = sbr.rel (%p218) target = $region32
      $region31: #{value_net_forward.2} parent=11 // pred_region
        _
      $region32: #{value_net_forward.2} parent=11 // pred_fallthru
        _
      // Predicated region
      $region33: #{value_net_forward.2} parent=11 // pred_check
        %p221 = pneg %p165
      $region34: #{value_net_forward.2} parent=11 // pred_check_branch
        %223 = sbr.rel (%p221) target = $region36
      $region35: #{value_net_forward.2} parent=11 // pred_region
        _
      $region36: #{value_net_forward.2} parent=11 // pred_fallthru
        _
    $region12: #{value_net_forward.2} parent=5 // pred_fallthru
      _
    %p224 = scmp.lt.s32.totalorder %s13, 2
    // Predicated region
    $region37: #{value_net_forward.2} parent=5 // pred_check
      %p225 = pneg %p224
    $region38: #{value_net_forward.2} parent=5 // pred_check_branch
      %227 = sbr.rel (%p225) target = $region40
    $region39: #{value_net_forward.2} parent=5 // pred_region
      // Predicated region
      $region41: #{value_net_forward.2} parent=39 // pred_check
        %p228 = pneg %p33
      $region42: #{value_net_forward.2} parent=39 // pred_check_branch
        %230 = sbr.rel (%p228) target = $region44
      $region43: #{value_net_forward.2} parent=39 // pred_region
        %p231 = scmp.lt.s32.totalorder %s13, 1
        %s232 = scalar_select %p231, %s13, 1
        %s233 = smul.addr %s232, 64
        %s234 = smul.addr %s233, 4
        %s235 = scalar_lea.vmem %s0, %s234
      $region44: #{value_net_forward.2} parent=39 // pred_fallthru
        _
    $region40: #{value_net_forward.2} parent=5 // pred_fallthru
      _
    %p236 = scmp.le.s32.totalorder 1, %s13
    %p237 = scmp.lt.s32.totalorder %s13, 3
    %p238 = pnand %p236, %p237
    %p239 = pneg %p238
    // Predicated region
    $region45: #{value_net_forward.2} parent=5 // pred_check
      _
    $region46: #{value_net_forward.2} parent=5 // pred_check_branch
      %241 = sbr.rel (%p238) target = $region48
    $region47: #{value_net_forward.2} parent=5 // pred_region
      %s242 = ssub.s32 %s13, 1
      %p243 = scmp.lt.s32.totalorder %s18, 1
      %s244 = scalar_select %p243, %s18, 1
      %s245 = smul.addr %s244, 64
      %s246 = smul.addr %s245, 4
      %s247 = scalar_lea.vmem %s0, %s246
      %p248 = pneg %p39
      %p249 = pneg %p36
      %p250 = pneg %p60
      %p251 = pneg %p57
      %p252 = pneg %p81
      %p253 = pneg %p78
      %p254 = pneg %p102
      %p255 = pneg %p99
      %p256 = pneg %p123
      %p257 = pneg %p120
      %p258 = pneg %p144
      %p259 = pneg %p141
      %p260 = pneg %p165
      %p261 = pneg %p162
      %p262 = pneg %p191
      %p263 = pneg %p188
      %p264 = scmp.lt.s32.totalorder %s18, 1
      %s265 = scalar_select %p264, %s18, 1
      %s266 = smul.addr %s265, 7
      %s267 = smul.addr %s266, 4
      %s268 = scalar_lea.vmem %s7, %s267
      %p269 = scmp.lt.s32.totalorder %s18, 1
      %s270 = scalar_select %p269, %s18, 1
      %s271 = smul.addr %s270, 64
      %s272 = smul.addr %s271, 4
      %s273 = scalar_lea.vmem %s0, %s272
      %p274 = scmp.lt.s32.totalorder %s18, 1
      %s275 = scalar_select %p274, %s18, 1
      %s276 = smul.addr %s275, 7
      %s277 = smul.addr %s276, 4
      %s278 = scalar_lea.vmem %s7, %s277
      %v280 = vld [vmem:[%s1] sm:$0xf]
      %v281 = vld [vmem:[%s1 + $0x4] sm:$0xf]
      %v282 = vld [vmem:[%s1 + $0x8] sm:$0xf]
      %v283 = vld [vmem:[%s1 + $0xc] sm:$0xf]
      %v284 = vld [vmem:[%s1 + $0x10] sm:$0xf]
      %v285 = vld [vmem:[%s1 + $0x14] sm:$0xf]
      %v286 = vld [vmem:[%s1 + $0x18] sm:$0xf]
      %v287 = vld [vmem:[%s1 + $0x1c] sm:$0xf]
      %v288 = vld [vmem:[%s1 + $0x20] sm:$0xf]
      %v289 = vld [vmem:[%s1 + $0x24] sm:$0xf]
      %v290 = vld [vmem:[%s1 + $0x28] sm:$0xf]
      %v291 = vld [vmem:[%s1 + $0x2c] sm:$0xf]
      %v292 = vld [vmem:[%s1 + $0x30] sm:$0xf]
      %v293 = vld [vmem:[%s1 + $0x34] sm:$0xf]
      %v294 = vld [vmem:[%s1 + $0x38] sm:$0xf]
      %v295 = vld [vmem:[%s1 + $0x3c] sm:$0xf]
      %v296 = vld [vmem:[%s1 + $0x40] sm:$0xf]
      %v297 = vld [vmem:[%s1 + $0x44] sm:$0xf]
      %v298 = vld [vmem:[%s1 + $0x48] sm:$0xf]
      %v299 = vld [vmem:[%s1 + $0x4c] sm:$0xf]
      %v300 = vld [vmem:[%s1 + $0x50] sm:$0xf]
      %v301 = vld [vmem:[%s1 + $0x54] sm:$0xf]
      %v302 = vld [vmem:[%s1 + $0x58] sm:$0xf]
      %v303 = vld [vmem:[%s1 + $0x5c] sm:$0xf]
      %v304 = vld [vmem:[%s1 + $0x60] sm:$0xf]
      %v305 = vld [vmem:[%s1 + $0x64] sm:$0xf]
      %v306 = vld [vmem:[%s1 + $0x68] sm:$0xf]
      %v307 = vld [vmem:[%s1 + $0x6c] sm:$0xf]
      %v308 = vld [vmem:[%s1 + $0x70] sm:$0xf]
      %v309 = vld [vmem:[%s1 + $0x74] sm:$0xf]
      %v310 = vld [vmem:[%s1 + $0x78] sm:$0xf]
      %v311 = vld [vmem:[%s1 + $0x7c] sm:$0xf]
      %v312 = vld [vmem:[%s3] sm:$0xf]
      %v313 = vld [vmem:[%s3 + $0x4] sm:$0xf]
      %v314 = vld [vmem:[%s3 + $0x8] sm:$0xf]
      %v315 = vld [vmem:[%s3 + $0xc] sm:$0xf]
      %v316 = vld [vmem:[%s3 + $0x10] sm:$0xf]
      %v317 = vld [vmem:[%s3 + $0x14] sm:$0xf]
      %v318 = vld [vmem:[%s3 + $0x18] sm:$0xf]
      %v319 = vld [vmem:[%s3 + $0x1c] sm:$0xf]
      %v320 = vld [vmem:[%s3 + $0x20] sm:$0xf]
      %v321 = vld [vmem:[%s3 + $0x24] sm:$0xf]
      %v322 = vld [vmem:[%s3 + $0x28] sm:$0xf]
      %v323 = vld [vmem:[%s3 + $0x2c] sm:$0xf]
      %v324 = vld [vmem:[%s3 + $0x30] sm:$0xf]
      %v325 = vld [vmem:[%s3 + $0x34] sm:$0xf]
      %v326 = vld [vmem:[%s3 + $0x38] sm:$0xf]
      %v327 = vld [vmem:[%s3 + $0x3c] sm:$0xf]
      %v328 = vld [vmem:[%s3 + $0x40] sm:$0xf]
      %v329 = vld [vmem:[%s3 + $0x44] sm:$0xf]
      %v330 = vld [vmem:[%s3 + $0x48] sm:$0xf]
      %v331 = vld [vmem:[%s3 + $0x4c] sm:$0xf]
      %v332 = vld [vmem:[%s3 + $0x50] sm:$0xf]
      %v333 = vld [vmem:[%s3 + $0x54] sm:$0xf]
      %v334 = vld [vmem:[%s3 + $0x58] sm:$0xf]
      %v335 = vld [vmem:[%s3 + $0x5c] sm:$0xf]
      %v336 = vld [vmem:[%s3 + $0x60] sm:$0xf]
      %v337 = vld [vmem:[%s3 + $0x64] sm:$0xf]
      %v338 = vld [vmem:[%s3 + $0x68] sm:$0xf]
      %v339 = vld [vmem:[%s3 + $0x6c] sm:$0xf]
      %v340 = vld [vmem:[%s3 + $0x70] sm:$0xf]
      %v341 = vld [vmem:[%s3 + $0x74] sm:$0xf]
      %v342 = vld [vmem:[%s3 + $0x78] sm:$0xf]
      %v343 = vld [vmem:[%s3 + $0x7c] sm:$0xf]
      %v344 = vld [vmem:[%s3 + $0x80] sm:$0xf]
      %v345 = vld [vmem:[%s3 + $0x84] sm:$0xf]
      %v346 = vld [vmem:[%s3 + $0x88] sm:$0xf]
      %v347 = vld [vmem:[%s3 + $0x8c] sm:$0xf]
      %v348 = vld [vmem:[%s3 + $0x90] sm:$0xf]
      %v349 = vld [vmem:[%s3 + $0x94] sm:$0xf]
      %v350 = vld [vmem:[%s3 + $0x98] sm:$0xf]
      %v351 = vld [vmem:[%s3 + $0x9c] sm:$0xf]
      %v352 = vld [vmem:[%s3 + $0xa0] sm:$0xf]
      %v353 = vld [vmem:[%s3 + $0xa4] sm:$0xf]
      %v354 = vld [vmem:[%s3 + $0xa8] sm:$0xf]
      %v355 = vld [vmem:[%s3 + $0xac] sm:$0xf]
      %v356 = vld [vmem:[%s3 + $0xb0] sm:$0xf]
      %v357 = vld [vmem:[%s3 + $0xb4] sm:$0xf]
      %v358 = vld [vmem:[%s3 + $0xb8] sm:$0xf]
      %v359 = vld [vmem:[%s3 + $0xbc] sm:$0xf]
      %v360 = vld [vmem:[%s3 + $0xc0] sm:$0xf]
      %v361 = vld [vmem:[%s3 + $0xc4] sm:$0xf]
      %v362 = vld [vmem:[%s3 + $0xc8] sm:$0xf]
      %v363 = vld [vmem:[%s3 + $0xcc] sm:$0xf]
      %v364 = vld [vmem:[%s3 + $0xd0] sm:$0xf]
      %v365 = vld [vmem:[%s3 + $0xd4] sm:$0xf]
      %v366 = vld [vmem:[%s3 + $0xd8] sm:$0xf]
      %v367 = vld [vmem:[%s3 + $0xdc] sm:$0xf]
      %v368 = vld [vmem:[%s3 + $0xe0] sm:$0xf]
      %v369 = vld [vmem:[%s3 + $0xe4] sm:$0xf]
      %v370 = vld [vmem:[%s3 + $0xe8] sm:$0xf]
      %v371 = vld [vmem:[%s3 + $0xec] sm:$0xf]
      %v372 = vld [vmem:[%s3 + $0xf0] sm:$0xf]
      %v373 = vld [vmem:[%s3 + $0xf4] sm:$0xf]
      %v374 = vld [vmem:[%s3 + $0xf8] sm:$0xf]
      %v375 = vld [vmem:[%s3 + $0xfc] sm:$0xf]
      %v376 = vld [vmem:[%s5] sm:$0xf]
      %v377 = vld [vmem:[%s5 + $0x4] sm:$0xf]
      %v378 = vld [vmem:[%s5 + $0x8] sm:$0xf]
      %v379 = vld [vmem:[%s5 + $0xc] sm:$0xf]
      %v380 = vld [vmem:[%s5 + $0x10] sm:$0xf]
      %v381 = vld [vmem:[%s5 + $0x14] sm:$0xf]
      %v382 = vld [vmem:[%s5 + $0x18] sm:$0xf]
      %v383 = vld [vmem:[%s5 + $0x1c] sm:$0xf]
      %v384 = vld [vmem:[%s5 + $0x20] sm:$0xf]
      %v385 = vld [vmem:[%s5 + $0x24] sm:$0xf]
      %v386 = vld [vmem:[%s5 + $0x28] sm:$0xf]
      %v387 = vld [vmem:[%s5 + $0x2c] sm:$0xf]
      %v388 = vld [vmem:[%s5 + $0x30] sm:$0xf]
      %v389 = vld [vmem:[%s5 + $0x34] sm:$0xf]
      %v390 = vld [vmem:[%s5 + $0x38] sm:$0xf]
      %v391 = vld [vmem:[%s5 + $0x3c] sm:$0xf]
      %v392 = vld [vmem:[%s5 + $0x40] sm:$0xf]
      %v393 = vld [vmem:[%s5 + $0x44] sm:$0xf]
      %v394 = vld [vmem:[%s5 + $0x48] sm:$0xf]
      %v395 = vld [vmem:[%s5 + $0x4c] sm:$0xf]
      %v396 = vld [vmem:[%s5 + $0x50] sm:$0xf]
      %v397 = vld [vmem:[%s5 + $0x54] sm:$0xf]
      %v398 = vld [vmem:[%s5 + $0x58] sm:$0xf]
      %v399 = vld [vmem:[%s5 + $0x5c] sm:$0xf]
      %v400 = vld [vmem:[%s5 + $0x60] sm:$0xf]
      %v401 = vld [vmem:[%s5 + $0x64] sm:$0xf]
      %v402 = vld [vmem:[%s5 + $0x68] sm:$0xf]
      %v403 = vld [vmem:[%s5 + $0x6c] sm:$0xf]
      %v404 = vld [vmem:[%s5 + $0x70] sm:$0xf]
      %v405 = vld [vmem:[%s5 + $0x74] sm:$0xf]
      %v406 = vld [vmem:[%s5 + $0x78] sm:$0xf]
      %v407 = vld [vmem:[%s5 + $0x7c] sm:$0xf]
      %v408 = vld [vmem:[%s5 + $0x80] sm:$0xf]
      %v409 = vld [vmem:[%s5 + $0x84] sm:$0xf]
      %v410 = vld [vmem:[%s5 + $0x88] sm:$0xf]
      %v411 = vld [vmem:[%s5 + $0x8c] sm:$0xf]
      %v412 = vld [vmem:[%s5 + $0x90] sm:$0xf]
      %v413 = vld [vmem:[%s5 + $0x94] sm:$0xf]
      %v414 = vld [vmem:[%s5 + $0x98] sm:$0xf]
      %v415 = vld [vmem:[%s5 + $0x9c] sm:$0xf]
      %v416 = vld [vmem:[%s5 + $0xa0] sm:$0xf]
      %v417 = vld [vmem:[%s5 + $0xa4] sm:$0xf]
      %v418 = vld [vmem:[%s5 + $0xa8] sm:$0xf]
      %v419 = vld [vmem:[%s5 + $0xac] sm:$0xf]
      %v420 = vld [vmem:[%s5 + $0xb0] sm:$0xf]
      %v421 = vld [vmem:[%s5 + $0xb4] sm:$0xf]
      %v422 = vld [vmem:[%s5 + $0xb8] sm:$0xf]
      %v423 = vld [vmem:[%s5 + $0xbc] sm:$0xf]
      %v424 = vld [vmem:[%s5 + $0xc0] sm:$0xf]
      %v425 = vld [vmem:[%s5 + $0xc4] sm:$0xf]
      %v426 = vld [vmem:[%s5 + $0xc8] sm:$0xf]
      %v427 = vld [vmem:[%s5 + $0xcc] sm:$0xf]
      %v428 = vld [vmem:[%s5 + $0xd0] sm:$0xf]
      %v429 = vld [vmem:[%s5 + $0xd4] sm:$0xf]
      %v430 = vld [vmem:[%s5 + $0xd8] sm:$0xf]
      %v431 = vld [vmem:[%s5 + $0xdc] sm:$0xf]
      %v432 = vld [vmem:[%s5 + $0xe0] sm:$0xf]
      %v433 = vld [vmem:[%s5 + $0xe4] sm:$0xf]
      %v434 = vld [vmem:[%s5 + $0xe8] sm:$0xf]
      %v435 = vld [vmem:[%s5 + $0xec] sm:$0xf]
      %v436 = vld [vmem:[%s5 + $0xf0] sm:$0xf]
      %v437 = vld [vmem:[%s5 + $0xf4] sm:$0xf]
      %v438 = vld [vmem:[%s5 + $0xf8] sm:$0xf]
      %v439 = vld [vmem:[%s5 + $0xfc] sm:$0xf]
      %v440 = vld [vmem:[%s5 + $0x100] sm:$0xf]
      %v441 = vld [vmem:[%s5 + $0x104] sm:$0xf]
      %v442 = vld [vmem:[%s5 + $0x108] sm:$0xf]
      %v443 = vld [vmem:[%s5 + $0x10c] sm:$0xf]
      %v444 = vld [vmem:[%s5 + $0x110] sm:$0xf]
      %v445 = vld [vmem:[%s5 + $0x114] sm:$0xf]
      %v446 = vld [vmem:[%s5 + $0x118] sm:$0xf]
      %v447 = vld [vmem:[%s5 + $0x11c] sm:$0xf]
      %v448 = vld [vmem:[%s2] sm:$0x1]
      %v449 = vld [vmem:[%s4] sm:$0x1]
      %v450 = vld [vmem:[%s6] sm:$0x1]
      %v451 = vld [vmem:[%s273] sm:$0xf]
      %v452 = vld [vmem:[%s273 + $0x4] sm:$0xf]
      %v453 = vld [vmem:[%s273 + $0x8] sm:$0xf]
      %v454 = vld [vmem:[%s273 + $0xc] sm:$0xf]
      %v455 = vld [vmem:[%s273 + $0x10] sm:$0xf]
      %v456 = vld [vmem:[%s273 + $0x14] sm:$0xf]
      %v457 = vld [vmem:[%s273 + $0x18] sm:$0xf]
      %v458 = vld [vmem:[%s273 + $0x1c] sm:$0xf]
      %v459 = vld [vmem:[%s273 + $0x20] sm:$0xf]
      %v460 = vld [vmem:[%s273 + $0x24] sm:$0xf]
      %v461 = vld [vmem:[%s273 + $0x28] sm:$0xf]
      %v462 = vld [vmem:[%s273 + $0x2c] sm:$0xf]
      %v463 = vld [vmem:[%s273 + $0x30] sm:$0xf]
      %v464 = vld [vmem:[%s273 + $0x34] sm:$0xf]
      %v465 = vld [vmem:[%s273 + $0x38] sm:$0xf]
      %v466 = vld [vmem:[%s273 + $0x3c] sm:$0x1]
      %s467 = scalar_lea.vmem %s273, 64
      %v468 = vld [vmem:[%s467] sm:$0xf]
      %v469 = vld [vmem:[%s467 + $0x4] sm:$0xf]
      %v470 = vld [vmem:[%s467 + $0x8] sm:$0xf]
      %v471 = vld [vmem:[%s467 + $0xc] sm:$0xf]
      %v472 = vld [vmem:[%s467 + $0x10] sm:$0xf]
      %v473 = vld [vmem:[%s467 + $0x14] sm:$0xf]
      %v474 = vld [vmem:[%s467 + $0x18] sm:$0xf]
      %v475 = vld [vmem:[%s467 + $0x1c] sm:$0xf]
      %v476 = vld [vmem:[%s467 + $0x20] sm:$0xf]
      %v477 = vld [vmem:[%s467 + $0x24] sm:$0xf]
      %v478 = vld [vmem:[%s467 + $0x28] sm:$0xf]
      %v479 = vld [vmem:[%s467 + $0x2c] sm:$0xf]
      %v480 = vld [vmem:[%s467 + $0x30] sm:$0xf]
      %v481 = vld [vmem:[%s467 + $0x34] sm:$0xf]
      %v482 = vld [vmem:[%s467 + $0x38] sm:$0xf]
      %s483 = scalar_lea.vmem %s273, 128
      %v484 = vld [vmem:[%s483] sm:$0xf]
      %v485 = vld [vmem:[%s483 + $0x4] sm:$0xf]
      %v486 = vld [vmem:[%s483 + $0x8] sm:$0xf]
      %v487 = vld [vmem:[%s483 + $0xc] sm:$0xf]
      %v488 = vld [vmem:[%s483 + $0x10] sm:$0xf]
      %v489 = vld [vmem:[%s483 + $0x14] sm:$0xf]
      %v490 = vld [vmem:[%s483 + $0x18] sm:$0xf]
      %v491 = vld [vmem:[%s483 + $0x1c] sm:$0xf]
      %v492 = vld [vmem:[%s483 + $0x20] sm:$0xf]
      %v493 = vld [vmem:[%s483 + $0x24] sm:$0xf]
      %v494 = vld [vmem:[%s483 + $0x28] sm:$0xf]
      %v495 = vld [vmem:[%s483 + $0x2c] sm:$0xf]
      %v496 = vld [vmem:[%s483 + $0x30] sm:$0xf]
      %v497 = vld [vmem:[%s483 + $0x34] sm:$0xf]
      %s498 = scalar_lea.vmem %s273, 192
      %v499 = vld [vmem:[%s498] sm:$0xf]
      %v500 = vld [vmem:[%s498 + $0x4] sm:$0xf]
      %v501 = vld [vmem:[%s498 + $0x8] sm:$0xf]
      %v502 = vld [vmem:[%s498 + $0xc] sm:$0xf]
      %v503 = vld [vmem:[%s498 + $0x10] sm:$0xf]
      %v504 = vld [vmem:[%s498 + $0x14] sm:$0xf]
      %v505 = vld [vmem:[%s498 + $0x18] sm:$0xf]
      %v506 = vld [vmem:[%s498 + $0x1c] sm:$0xf]
      %v507 = vld [vmem:[%s498 + $0x20] sm:$0xf]
      %v508 = vld [vmem:[%s498 + $0x24] sm:$0xf]
      %v509 = vld [vmem:[%s498 + $0x28] sm:$0xf]
      %v510 = vld [vmem:[%s498 + $0x2c] sm:$0xf]
      %v511 = vld [vmem:[%s498 + $0x30] sm:$0xf]
      %v512 = vld [vmem:[%s498 + $0x34] sm:$0xf]
      %v527 = vunpack.c.l.b16 %v468
      %v528 = vunpack.c.l.b16 %v469
      %v529 = vunpack.c.l.b16 %v470
      %v530 = vunpack.c.l.b16 %v471
      %v531 = vunpack.c.l.b16 %v472
      %v532 = vunpack.c.l.b16 %v473
      %v533 = vunpack.c.l.b16 %v474
      %v534 = vunpack.c.l.b16 %v475
      %v535 = vunpack.c.l.b16 %v476
      %v536 = vunpack.c.l.b16 %v477
      %v537 = vunpack.c.l.b16 %v478
      %v538 = vunpack.c.l.b16 %v479
      %v539 = vunpack.c.l.b16 %v480
      %v540 = vunpack.c.l.b16 %v481
      %v541 = vpack.c.b16 %v528, %v527
      %v542 = vpack.c.b16 %v530, %v529
      %v543 = vpack.c.b16 %v532, %v531
      %v544 = vpack.c.b16 %v534, %v533
      %v545 = vpack.c.b16 %v536, %v535
      %v546 = vpack.c.b16 %v538, %v537
      %v547 = vpack.c.b16 %v540, %v539
      %v556 = vunpack.c.l.b16 %v288
      %v557 = vunpack.c.l.b16 %v289
      %v558 = vunpack.c.l.b16 %v290
      %v559 = vunpack.c.l.b16 %v291
      %v560 = vunpack.c.l.b16 %v292
      %v561 = vunpack.c.l.b16 %v293
      %v562 = vunpack.c.l.b16 %v294
      %v563 = vunpack.c.l.b16 %v295
      %v564 = vpack.c.b16 %v557, %v556
      %v565 = vpack.c.b16 %v559, %v558
      %v566 = vpack.c.b16 %v561, %v560
      %v567 = vpack.c.b16 %v563, %v562
      %vm572 = vcmask 523264
      %v574 = vsel %vm572, %v541, 0
      %v577 = vsel %vm572, %v542, 0
      %v580 = vsel %vm572, %v543, 0
      %v583 = vsel %vm572, %v544, 0
      %v586 = vsel %vm572, %v545, 0
      %v589 = vsel %vm572, %v546, 0
      %v592 = vsel %vm572, %v547, 0
      %594 = vmatprep.subr.bf16.mxu0 0
      %595 = vmatpush1.bf16.msra.mxu0 %v564
      %596 = vmatprep.subr.bf16.mxu0 0
      %597 = vmatpush1.bf16.msra.mxu0 %v565
      %598 = vmatprep.subr.bf16.mxu0 0
      %599 = vmatpush1.bf16.msra.mxu0 %v566
      %600 = vmatprep.subr.bf16.mxu0 0
      %601 = vmatpush1.bf16.msra.mxu0 %v567
      %602 = vmatprep.subr.bf16.mxu0 0
      %603 = vmatpush1.bf16.msra.mxu0 0
      %604 = vmatprep.subr.bf16.mxu0 0
      %605 = vmatpush1.bf16.msra.mxu0 0
      %606 = vmatprep.subr.bf16.mxu0 0
      %607 = vmatpush1.bf16.msra.mxu0 0
      %608 = vmatprep.subr.bf16.mxu0 0
      %609 = vmatpush1.bf16.msra.mxu0 0
      %610 = vmatprep.subr.bf16.mxu0 0
      %611 = vmatpush1.bf16.msra.mxu0 0
      %612 = vmatprep.subr.bf16.mxu0 0
      %613 = vmatpush1.bf16.msra.mxu0 0
      %614 = vmatprep.subr.bf16.mxu0 0
      %615 = vmatpush1.bf16.msra.mxu0 0
      %616 = vmatprep.subr.bf16.mxu0 0
      %617 = vmatpush1.bf16.msra.mxu0 0
      %618 = vmatprep.subr.bf16.mxu0 0
      %619 = vmatpush1.bf16.msra.mxu0 0
      %620 = vmatprep.subr.bf16.mxu0 0
      %621 = vmatpush1.bf16.msra.mxu0 0
      %622 = vmatprep.subr.bf16.mxu0 0
      %623 = vmatpush1.bf16.msra.mxu0 0
      %624 = vmatprep.subr.bf16.mxu0 0
      %625 = vmatpush1.bf16.msra.mxu0 0
      %626 = vmatprep.mubr.bf16.mxu0 0
      %627 = vmatmul.mubr.bf16.gmra.mrb[0].mxu0 %v574
      %v628 = vpop.f32.mrb[0].mxu0
      %v629 = vadd.f32 0.0, %v628
      %v630 = vpop.f32.mrb[0].mxu0
      %v631 = vpop.f32.mrb[0].mxu0
      %v632 = vadd.f32 0.0, %v631
      %v633 = vpop.f32.mrb[0].mxu0
      %634 = vmatprep.mubr.bf16.mxu0 0
      %635 = vmatmul.mubr.bf16.gmra.mrb[0].mxu0 %v577
      %v636 = vpop.f32.mrb[0].mxu0
      %v637 = vadd.f32 0.0, %v636
      %v638 = vpop.f32.mrb[0].mxu0
      %v639 = vpop.f32.mrb[0].mxu0
      %v640 = vadd.f32 0.0, %v639
      %v641 = vpop.f32.mrb[0].mxu0
      %642 = vmatprep.mubr.bf16.mxu0 0
      %643 = vmatmul.mubr.bf16.gmra.mrb[0].mxu0 %v580
      %v644 = vpop.f32.mrb[0].mxu0
      %v645 = vadd.f32 0.0, %v644
      %v646 = vpop.f32.mrb[0].mxu0
      %v647 = vpop.f32.mrb[0].mxu0
      %v648 = vadd.f32 0.0, %v647
      %v649 = vpop.f32.mrb[0].mxu0
      %650 = vmatprep.mubr.bf16.mxu0 0
      %651 = vmatmul.mubr.bf16.gmra.mrb[0].mxu0 %v583
      %v652 = vpop.f32.mrb[0].mxu0
      %v653 = vadd.f32 0.0, %v652
      %v654 = vpop.f32.mrb[0].mxu0
      %v655 = vpop.f32.mrb[0].mxu0
      %v656 = vadd.f32 0.0, %v655
      %v657 = vpop.f32.mrb[0].mxu0
      %658 = vmatprep.mubr.bf16.mxu0 0
      %659 = vmatmul.mubr.bf16.gmra.mrb[0].mxu0 %v586
      %v660 = vpop.f32.mrb[0].mxu0
      %v661 = vadd.f32 0.0, %v660
      %v662 = vpop.f32.mrb[0].mxu0
      %v663 = vpop.f32.mrb[0].mxu0
      %v664 = vadd.f32 0.0, %v663
      %v665 = vpop.f32.mrb[0].mxu0
      %666 = vmatprep.mubr.bf16.mxu0 0
      %667 = vmatmul.mubr.bf16.gmra.mrb[0].mxu0 %v589
      %v668 = vpop.f32.mrb[0].mxu0
      %v669 = vadd.f32 0.0, %v668
      %v670 = vpop.f32.mrb[0].mxu0
      %v671 = vpop.f32.mrb[0].mxu0
      %v672 = vadd.f32 0.0, %v671
      %v673 = vpop.f32.mrb[0].mxu0
      %674 = vmatprep.mubr.bf16.mxu0 0
      %675 = vmatmul.mubr.bf16.gmra.mrb[0].mxu0 %v592
      %v676 = vpop.f32.mrb[0].mxu0
      %v677 = vadd.f32 0.0, %v676
      %v678 = vpop.f32.mrb[0].mxu0
      %v679 = vpop.f32.mrb[0].mxu0
      %v680 = vadd.f32 0.0, %v679
      %v681 = vpop.f32.mrb[0].mxu0
      %682 = vdwg.mxu0
      %v697 = vunpack.c.l.b16 %v451
      %v698 = vunpack.c.l.b16 %v452
      %v699 = vunpack.c.l.b16 %v453
      %v700 = vunpack.c.l.b16 %v454
      %v701 = vunpack.c.l.b16 %v455
      %v702 = vunpack.c.l.b16 %v456
      %v703 = vunpack.c.l.b16 %v457
      %v704 = vunpack.c.l.b16 %v458
      %v705 = vunpack.c.l.b16 %v459
      %v706 = vunpack.c.l.b16 %v460
      %v707 = vunpack.c.l.b16 %v461
      %v708 = vunpack.c.l.b16 %v462
      %v709 = vunpack.c.l.b16 %v463
      %v710 = vunpack.c.l.b16 %v464
      %v711 = vpack.c.b16 %v698, %v697
      %v712 = vpack.c.b16 %v700, %v699
      %v713 = vpack.c.b16 %v702, %v701
      %v714 = vpack.c.b16 %v704, %v703
      %v715 = vpack.c.b16 %v706, %v705
      %v716 = vpack.c.b16 %v708, %v707
      %v717 = vpack.c.b16 %v710, %v709
      %v726 = vunpack.c.l.b16 %v280
      %v727 = vunpack.c.l.b16 %v281
      %v728 = vunpack.c.l.b16 %v282
      %v729 = vunpack.c.l.b16 %v283
      %v730 = vunpack.c.l.b16 %v284
      %v731 = vunpack.c.l.b16 %v285
      %v732 = vunpack.c.l.b16 %v286
      %v733 = vunpack.c.l.b16 %v287
      %v734 = vpack.c.b16 %v727, %v726
      %v735 = vpack.c.b16 %v729, %v728
      %v736 = vpack.c.b16 %v731, %v730
      %v737 = vpack.c.b16 %v733, %v732
      %v743 = vsel %vm572, %v711, 0
      %v746 = vsel %vm572, %v712, 0
      %v749 = vsel %vm572, %v713, 0
      %v752 = vsel %vm572, %v714, 0
      %v755 = vsel %vm572, %v715, 0
      %v758 = vsel %vm572, %v716, 0
      %v761 = vsel %vm572, %v717, 0
      %763 = vmatprep.subr.bf16.mxu0 0
      %764 = vmatpush1.bf16.msra.mxu0 %v734
      %765 = vmatprep.subr.bf16.mxu0 0
      %766 = vmatpush1.bf16.msra.mxu0 %v735
      %767 = vmatprep.subr.bf16.mxu0 0
      %768 = vmatpush1.bf16.msra.mxu0 %v736
      %769 = vmatprep.subr.bf16.mxu0 0
      %770 = vmatpush1.bf16.msra.mxu0 %v737
      %771 = vmatprep.subr.bf16.mxu0 0
      %772 = vmatpush1.bf16.msra.mxu0 0
      %773 = vmatprep.subr.bf16.mxu0 0
      %774 = vmatpush1.bf16.msra.mxu0 0
      %775 = vmatprep.subr.bf16.mxu0 0
      %776 = vmatpush1.bf16.msra.mxu0 0
      %777 = vmatprep.subr.bf16.mxu0 0
      %778 = vmatpush1.bf16.msra.mxu0 0
      %779 = vmatprep.subr.bf16.mxu0 0
      %780 = vmatpush1.bf16.msra.mxu0 0
      %781 = vmatprep.subr.bf16.mxu0 0
      %782 = vmatpush1.bf16.msra.mxu0 0
      %783 = vmatprep.subr.bf16.mxu0 0
      %784 = vmatpush1.bf16.msra.mxu0 0
      %785 = vmatprep.subr.bf16.mxu0 0
      %786 = vmatpush1.bf16.msra.mxu0 0
      %787 = vmatprep.subr.bf16.mxu0 0
      %788 = vmatpush1.bf16.msra.mxu0 0
      %789 = vmatprep.subr.bf16.mxu0 0
      %790 = vmatpush1.bf16.msra.mxu0 0
      %791 = vmatprep.subr.bf16.mxu0 0
      %792 = vmatpush1.bf16.msra.mxu0 0
      %793 = vmatprep.subr.bf16.mxu0 0
      %794 = vmatpush1.bf16.msra.mxu0 0
      %795 = vmatprep.mubr.bf16.mxu0 0
      %796 = vmatmul.mubr.bf16.gmra.mrb[0].mxu0 %v743
      %v797 = vpop.f32.mrb[0].mxu0
      %v798 = vadd.f32 %v629, %v797
      %v799 = vpop.f32.mrb[0].mxu0
      %v800 = vpop.f32.mrb[0].mxu0
      %v801 = vadd.f32 %v632, %v800
      %v802 = vpop.f32.mrb[0].mxu0
      %803 = vmatprep.mubr.bf16.mxu0 0
      %804 = vmatmul.mubr.bf16.gmra.mrb[0].mxu0 %v746
      %v805 = vpop.f32.mrb[0].mxu0
      %v806 = vadd.f32 %v637, %v805
      %v807 = vpop.f32.mrb[0].mxu0
      %v808 = vpop.f32.mrb[0].mxu0
      %v809 = vadd.f32 %v640, %v808
      %v810 = vpop.f32.mrb[0].mxu0
      %811 = vmatprep.mubr.bf16.mxu0 0
      %812 = vmatmul.mubr.bf16.gmra.mrb[0].mxu0 %v749
      %v813 = vpop.f32.mrb[0].mxu0
      %v814 = vadd.f32 %v645, %v813
      %v815 = vpop.f32.mrb[0].mxu0
      %v816 = vpop.f32.mrb[0].mxu0
      %v817 = vadd.f32 %v648, %v816
      %v818 = vpop.f32.mrb[0].mxu0
      %819 = vmatprep.mubr.bf16.mxu0 0
      %820 = vmatmul.mubr.bf16.gmra.mrb[0].mxu0 %v752
      %v821 = vpop.f32.mrb[0].mxu0
      %v822 = vadd.f32 %v653, %v821
      %v823 = vpop.f32.mrb[0].mxu0
      %v824 = vpop.f32.mrb[0].mxu0
      %v825 = vadd.f32 %v656, %v824
      %v826 = vpop.f32.mrb[0].mxu0
      %827 = vmatprep.mubr.bf16.mxu0 0
      %828 = vmatmul.mubr.bf16.gmra.mrb[0].mxu0 %v755
      %v829 = vpop.f32.mrb[0].mxu0
      %v830 = vadd.f32 %v661, %v829
      %v831 = vpop.f32.mrb[0].mxu0
      %v832 = vpop.f32.mrb[0].mxu0
      %v833 = vadd.f32 %v664, %v832
      %v834 = vpop.f32.mrb[0].mxu0
      %835 = vmatprep.mubr.bf16.mxu0 0
      %836 = vmatmul.mubr.bf16.gmra.mrb[0].mxu0 %v758
      %v837 = vpop.f32.mrb[0].mxu0
      %v838 = vadd.f32 %v669, %v837
      %v839 = vpop.f32.mrb[0].mxu0
      %v840 = vpop.f32.mrb[0].mxu0
      %v841 = vadd.f32 %v672, %v840
      %v842 = vpop.f32.mrb[0].mxu0
      %843 = vmatprep.mubr.bf16.mxu0 0
      %844 = vmatmul.mubr.bf16.gmra.mrb[0].mxu0 %v761
      %v845 = vpop.f32.mrb[0].mxu0
      %v846 = vadd.f32 %v677, %v845
      %v847 = vpop.f32.mrb[0].mxu0
      %v848 = vpop.f32.mrb[0].mxu0
      %v849 = vadd.f32 %v680, %v848
      %v850 = vpop.f32.mrb[0].mxu0
      %851 = vdwg.mxu0
      %v866 = vunpack.c.l.b16 %v484
      %v867 = vunpack.c.l.b16 %v485
      %v868 = vunpack.c.l.b16 %v486
      %v869 = vunpack.c.l.b16 %v487
      %v870 = vunpack.c.l.b16 %v488
      %v871 = vunpack.c.l.b16 %v489
      %v872 = vunpack.c.l.b16 %v490
      %v873 = vunpack.c.l.b16 %v491
      %v874 = vunpack.c.l.b16 %v492
      %v875 = vunpack.c.l.b16 %v493
      %v876 = vunpack.c.l.b16 %v494
      %v877 = vunpack.c.l.b16 %v495
      %v878 = vunpack.c.l.b16 %v496
      %v879 = vunpack.c.l.b16 %v497
      %v880 = vpack.c.b16 %v867, %v866
      %v881 = vpack.c.b16 %v869, %v868
      %v882 = vpack.c.b16 %v871, %v870
      %v883 = vpack.c.b16 %v873, %v872
      %v884 = vpack.c.b16 %v875, %v874
      %v885 = vpack.c.b16 %v877, %v876
      %v886 = vpack.c.b16 %v879, %v878
      %v895 = vunpack.c.l.b16 %v296
      %v896 = vunpack.c.l.b16 %v297
      %v897 = vunpack.c.l.b16 %v298
      %v898 = vunpack.c.l.b16 %v299
      %v899 = vunpack.c.l.b16 %v300
      %v900 = vunpack.c.l.b16 %v301
      %v901 = vunpack.c.l.b16 %v302
      %v902 = vunpack.c.l.b16 %v303
      %v903 = vpack.c.b16 %v896, %v895
      %v904 = vpack.c.b16 %v898, %v897
      %v905 = vpack.c.b16 %v900, %v899
      %v906 = vpack.c.b16 %v902, %v901
      %v912 = vsel %vm572, %v880, 0
      %v915 = vsel %vm572, %v881, 0
      %v918 = vsel %vm572, %v882, 0
      %v921 = vsel %vm572, %v883, 0
      %v924 = vsel %vm572, %v884, 0
      %v927 = vsel %vm572, %v885, 0
      %v930 = vsel %vm572, %v886, 0
      %932 = vmatprep.subr.bf16.mxu0 0
      %933 = vmatpush1.bf16.msra.mxu0 %v903
      %934 = vmatprep.subr.bf16.mxu0 0
      %935 = vmatpush1.bf16.msra.mxu0 %v904
      %936 = vmatprep.subr.bf16.mxu0 0
      %937 = vmatpush1.bf16.msra.mxu0 %v905
      %938 = vmatprep.subr.bf16.mxu0 0
      %939 = vmatpush1.bf16.msra.mxu0 %v906
      %940 = vmatprep.subr.bf16.mxu0 0
      %941 = vmatpush1.bf16.msra.mxu0 0
      %942 = vmatprep.subr.bf16.mxu0 0
      %943 = vmatpush1.bf16.msra.mxu0 0
      %944 = vmatprep.subr.bf16.mxu0 0
      %945 = vmatpush1.bf16.msra.mxu0 0
      %946 = vmatprep.subr.bf16.mxu0 0
      %947 = vmatpush1.bf16.msra.mxu0 0
      %948 = vmatprep.subr.bf16.mxu0 0
      %949 = vmatpush1.bf16.msra.mxu0 0
      %950 = vmatprep.subr.bf16.mxu0 0
      %951 = vmatpush1.bf16.msra.mxu0 0
      %952 = vmatprep.subr.bf16.mxu0 0
      %953 = vmatpush1.bf16.msra.mxu0 0
      %954 = vmatprep.subr.bf16.mxu0 0
      %955 = vmatpush1.bf16.msra.mxu0 0
      %956 = vmatprep.subr.bf16.mxu0 0
      %957 = vmatpush1.bf16.msra.mxu0 0
      %958 = vmatprep.subr.bf16.mxu0 0
      %959 = vmatpush1.bf16.msra.mxu0 0
      %960 = vmatprep.subr.bf16.mxu0 0
      %961 = vmatpush1.bf16.msra.mxu0 0
      %962 = vmatprep.subr.bf16.mxu0 0
      %963 = vmatpush1.bf16.msra.mxu0 0
      %964 = vmatprep.mubr.bf16.mxu0 0
      %965 = vmatmul.mubr.bf16.gmra.mrb[0].mxu0 %v912
      %v966 = vpop.f32.mrb[0].mxu0
      %v967 = vadd.f32 0.0, %v966
      %v968 = vpop.f32.mrb[0].mxu0
      %v969 = vpop.f32.mrb[0].mxu0
      %v970 = vadd.f32 0.0, %v969
      %v971 = vpop.f32.mrb[0].mxu0
      %972 = vmatprep.mubr.bf16.mxu0 0
      %973 = vmatmul.mubr.bf16.gmra.mrb[0].mxu0 %v915
      %v974 = vpop.f32.mrb[0].mxu0
      %v975 = vadd.f32 0.0, %v974
      %v976 = vpop.f32.mrb[0].mxu0
      %v977 = vpop.f32.mrb[0].mxu0
      %v978 = vadd.f32 0.0, %v977
      %v979 = vpop.f32.mrb[0].mxu0
      %980 = vmatprep.mubr.bf16.mxu0 0
      %981 = vmatmul.mubr.bf16.gmra.mrb[0].mxu0 %v918
      %v982 = vpop.f32.mrb[0].mxu0
      %v983 = vadd.f32 0.0, %v982
      %v984 = vpop.f32.mrb[0].mxu0
      %v985 = vpop.f32.mrb[0].mxu0
      %v986 = vadd.f32 0.0, %v985
      %v987 = vpop.f32.mrb[0].mxu0
      %988 = vmatprep.mubr.bf16.mxu0 0
      %989 = vmatmul.mubr.bf16.gmra.mrb[0].mxu0 %v921
      %v990 = vpop.f32.mrb[0].mxu0
      %v991 = vadd.f32 0.0, %v990
      %v992 = vpop.f32.mrb[0].mxu0
      %v993 = vpop.f32.mrb[0].mxu0
      %v994 = vadd.f32 0.0, %v993
      %v995 = vpop.f32.mrb[0].mxu0
      %996 = vmatprep.mubr.bf16.mxu0 0
      %997 = vmatmul.mubr.bf16.gmra.mrb[0].mxu0 %v924
      %v998 = vpop.f32.mrb[0].mxu0
      %v999 = vadd.f32 0.0, %v998
      %v1000 = vpop.f32.mrb[0].mxu0
      %v1001 = vpop.f32.mrb[0].mxu0
      %v1002 = vadd.f32 0.0, %v1001
      %v1003 = vpop.f32.mrb[0].mxu0
      %1004 = vmatprep.mubr.bf16.mxu0 0
      %1005 = vmatmul.mubr.bf16.gmra.mrb[0].mxu0 %v927
      %v1006 = vpop.f32.mrb[0].mxu0
      %v1007 = vadd.f32 0.0, %v1006
      %v1008 = vpop.f32.mrb[0].mxu0
      %v1009 = vpop.f32.mrb[0].mxu0
      %v1010 = vadd.f32 0.0, %v1009
      %v1011 = vpop.f32.mrb[0].mxu0
      %1012 = vmatprep.mubr.bf16.mxu0 0
      %1013 = vmatmul.mubr.bf16.gmra.mrb[0].mxu0 %v930
      %v1014 = vpop.f32.mrb[0].mxu0
      %v1015 = vadd.f32 0.0, %v1014
      %v1016 = vpop.f32.mrb[0].mxu0
      %v1017 = vpop.f32.mrb[0].mxu0
      %v1018 = vadd.f32 0.0, %v1017
      %v1019 = vpop.f32.mrb[0].mxu0
      %1020 = vdwg.mxu0
      %v1021 = vadd.f32 %v798, %v967
      %v1022 = vadd.f32 %v801, %v970
      %v1023 = vadd.f32 %v806, %v975
      %v1024 = vadd.f32 %v809, %v978
      %v1025 = vadd.f32 %v814, %v983
      %v1026 = vadd.f32 %v817, %v986
      %v1027 = vadd.f32 %v822, %v991
      %v1028 = vadd.f32 %v825, %v994
      %v1029 = vadd.f32 %v830, %v999
      %v1030 = vadd.f32 %v833, %v1002
      %v1031 = vadd.f32 %v838, %v1007
      %v1032 = vadd.f32 %v841, %v1010
      %v1033 = vadd.f32 %v846, %v1015
      %v1034 = vadd.f32 %v849, %v1018
      %v1049 = vunpack.c.l.b16 %v499
      %v1050 = vunpack.c.l.b16 %v500
      %v1051 = vunpack.c.l.b16 %v501
      %v1052 = vunpack.c.l.b16 %v502
      %v1053 = vunpack.c.l.b16 %v503
      %v1054 = vunpack.c.l.b16 %v504
      %v1055 = vunpack.c.l.b16 %v505
      %v1056 = vunpack.c.l.b16 %v506
      %v1057 = vunpack.c.l.b16 %v507
      %v1058 = vunpack.c.l.b16 %v508
      %v1059 = vunpack.c.l.b16 %v509
      %v1060 = vunpack.c.l.b16 %v510
      %v1061 = vunpack.c.l.b16 %v511
      %v1062 = vunpack.c.l.b16 %v512
      %v1063 = vpack.c.b16 %v1050, %v1049
      %v1064 = vpack.c.b16 %v1052, %v1051
      %v1065 = vpack.c.b16 %v1054, %v1053
      %v1066 = vpack.c.b16 %v1056, %v1055
      %v1067 = vpack.c.b16 %v1058, %v1057
      %v1068 = vpack.c.b16 %v1060, %v1059
      %v1069 = vpack.c.b16 %v1062, %v1061
      %v1078 = vunpack.c.l.b16 %v304
      %v1079 = vunpack.c.l.b16 %v305
      %v1080 = vunpack.c.l.b16 %v306
      %v1081 = vunpack.c.l.b16 %v307
      %v1082 = vunpack.c.l.b16 %v308
      %v1083 = vunpack.c.l.b16 %v309
      %v1084 = vunpack.c.l.b16 %v310
      %v1085 = vunpack.c.l.b16 %v311
      %v1086 = vpack.c.b16 %v1079, %v1078
      %v1087 = vpack.c.b16 %v1081, %v1080
      %v1088 = vpack.c.b16 %v1083, %v1082
      %v1089 = vpack.c.b16 %v1085, %v1084
      %v1095 = vsel %vm572, %v1063, 0
      %v1098 = vsel %vm572, %v1064, 0
      %v1101 = vsel %vm572, %v1065, 0
      %v1104 = vsel %vm572, %v1066, 0
      %v1107 = vsel %vm572, %v1067, 0
      %v1110 = vsel %vm572, %v1068, 0
      %v1113 = vsel %vm572, %v1069, 0
      %1115 = vmatprep.subr.bf16.mxu0 0
      %1116 = vmatpush1.bf16.msra.mxu0 %v1086
      %1117 = vmatprep.subr.bf16.mxu0 0
      %1118 = vmatpush1.bf16.msra.mxu0 %v1087
      %1119 = vmatprep.subr.bf16.mxu0 0
      %1120 = vmatpush1.bf16.msra.mxu0 %v1088
      %1121 = vmatprep.subr.bf16.mxu0 0
      %1122 = vmatpush1.bf16.msra.mxu0 %v1089
      %1123 = vmatprep.subr.bf16.mxu0 0
      %1124 = vmatpush1.bf16.msra.mxu0 0
      %1125 = vmatprep.subr.bf16.mxu0 0
      %1126 = vmatpush1.bf16.msra.mxu0 0
      %1127 = vmatprep.subr.bf16.mxu0 0
      %1128 = vmatpush1.bf16.msra.mxu0 0
      %1129 = vmatprep.subr.bf16.mxu0 0
      %1130 = vmatpush1.bf16.msra.mxu0 0
      %1131 = vmatprep.subr.bf16.mxu0 0
      %1132 = vmatpush1.bf16.msra.mxu0 0
      %1133 = vmatprep.subr.bf16.mxu0 0
      %1134 = vmatpush1.bf16.msra.mxu0 0
      %1135 = vmatprep.subr.bf16.mxu0 0
      %1136 = vmatpush1.bf16.msra.mxu0 0
      %1137 = vmatprep.subr.bf16.mxu0 0
      %1138 = vmatpush1.bf16.msra.mxu0 0
      %1139 = vmatprep.subr.bf16.mxu0 0
      %1140 = vmatpush1.bf16.msra.mxu0 0
      %1141 = vmatprep.subr.bf16.mxu0 0
      %1142 = vmatpush1.bf16.msra.mxu0 0
      %1143 = vmatprep.subr.bf16.mxu0 0
      %1144 = vmatpush1.bf16.msra.mxu0 0
      %1145 = vmatprep.subr.bf16.mxu0 0
      %1146 = vmatpush1.bf16.msra.mxu0 0
      %1147 = vmatprep.mubr.bf16.mxu0 0
      %1148 = vmatmul.mubr.bf16.gmra.mrb[0].mxu0 %v1095
      %v1149 = vpop.f32.mrb[0].mxu0
      %v1150 = vadd.f32 0.0, %v1149
      %v1151 = vpop.f32.mrb[0].mxu0
      %v1152 = vpop.f32.mrb[0].mxu0
      %v1153 = vadd.f32 0.0, %v1152
      %v1154 = vpop.f32.mrb[0].mxu0
      %1155 = vmatprep.mubr.bf16.mxu0 0
      %1156 = vmatmul.mubr.bf16.gmra.mrb[0].mxu0 %v1098
      %v1157 = vpop.f32.mrb[0].mxu0
      %v1158 = vadd.f32 0.0, %v1157
      %v1159 = vpop.f32.mrb[0].mxu0
      %v1160 = vpop.f32.mrb[0].mxu0
      %v1161 = vadd.f32 0.0, %v1160
      %v1162 = vpop.f32.mrb[0].mxu0
      %1163 = vmatprep.mubr.bf16.mxu0 0
      %1164 = vmatmul.mubr.bf16.gmra.mrb[0].mxu0 %v1101
      %v1165 = vpop.f32.mrb[0].mxu0
      %v1166 = vadd.f32 0.0, %v1165
      %v1167 = vpop.f32.mrb[0].mxu0
      %v1168 = vpop.f32.mrb[0].mxu0
      %v1169 = vadd.f32 0.0, %v1168
      %v1170 = vpop.f32.mrb[0].mxu0
      %1171 = vmatprep.mubr.bf16.mxu0 0
      %1172 = vmatmul.mubr.bf16.gmra.mrb[0].mxu0 %v1104
      %v1173 = vpop.f32.mrb[0].mxu0
      %v1174 = vadd.f32 0.0, %v1173
      %v1175 = vpop.f32.mrb[0].mxu0
      %v1176 = vpop.f32.mrb[0].mxu0
      %v1177 = vadd.f32 0.0, %v1176
      %v1178 = vpop.f32.mrb[0].mxu0
      %1179 = vmatprep.mubr.bf16.mxu0 0
      %1180 = vmatmul.mubr.bf16.gmra.mrb[0].mxu0 %v1107
      %v1181 = vpop.f32.mrb[0].mxu0
      %v1182 = vadd.f32 0.0, %v1181
      %v1183 = vpop.f32.mrb[0].mxu0
      %v1184 = vpop.f32.mrb[0].mxu0
      %v1185 = vadd.f32 0.0, %v1184
      %v1186 = vpop.f32.mrb[0].mxu0
      %1187 = vmatprep.mubr.bf16.mxu0 0
      %1188 = vmatmul.mubr.bf16.gmra.mrb[0].mxu0 %v1110
      %v1189 = vpop.f32.mrb[0].mxu0
      %v1190 = vadd.f32 0.0, %v1189
      %v1191 = vpop.f32.mrb[0].mxu0
      %v1192 = vpop.f32.mrb[0].mxu0
      %v1193 = vadd.f32 0.0, %v1192
      %v1194 = vpop.f32.mrb[0].mxu0
      %1195 = vmatprep.mubr.bf16.mxu0 0
      %1196 = vmatmul.mubr.bf16.gmra.mrb[0].mxu0 %v1113
      %v1197 = vpop.f32.mrb[0].mxu0
      %v1198 = vadd.f32 0.0, %v1197
      %v1199 = vpop.f32.mrb[0].mxu0
      %v1200 = vpop.f32.mrb[0].mxu0
      %v1201 = vadd.f32 0.0, %v1200
      %v1202 = vpop.f32.mrb[0].mxu0
      %1203 = vdwg.mxu0
      %v1204 = vadd.f32 %v1021, %v1150
      %v1205 = vadd.f32 %v1022, %v1153
      %v1206 = vadd.f32 %v1023, %v1158
      %v1207 = vadd.f32 %v1024, %v1161
      %v1208 = vadd.f32 %v1025, %v1166
      %v1209 = vadd.f32 %v1026, %v1169
      %v1210 = vadd.f32 %v1027, %v1174
      %v1211 = vadd.f32 %v1028, %v1177
      %v1212 = vadd.f32 %v1029, %v1182
      %v1213 = vadd.f32 %v1030, %v1185
      %v1214 = vadd.f32 %v1031, %v1190
      %v1215 = vadd.f32 %v1032, %v1193
      %v1216 = vadd.f32 %v1033, %v1198
      %v1217 = vadd.f32 %v1034, %v1201
      %v1219 = vlaneseq
      %v1220 = vshrl.u32 %v1219, 7
      %v1221 = vsub.s32 0, %v1220
      %v1222 = vrot.slane %v448, %v1221
      %v1224 = vadd.f32 %v1204, %v1222
      %v1225 = vadd.f32 %v1205, %v1222
      %v1226 = vadd.f32 %v1206, %v1222
      %v1227 = vadd.f32 %v1207, %v1222
      %v1228 = vadd.f32 %v1208, %v1222
      %v1229 = vadd.f32 %v1209, %v1222
      %v1230 = vadd.f32 %v1210, %v1222
      %v1231 = vadd.f32 %v1211, %v1222
      %v1232 = vadd.f32 %v1212, %v1222
      %v1233 = vadd.f32 %v1213, %v1222
      %v1234 = vadd.f32 %v1214, %v1222
      %v1235 = vadd.f32 %v1215, %v1222
      %v1236 = vadd.f32 %v1216, %v1222
      %v1237 = vadd.f32 %v1217, %v1222
      %v1238 = vmax.f32 %v1224, 0.0
      %v1239 = vmax.f32 %v1225, 0.0
      %v1240 = vmax.f32 %v1226, 0.0
      %v1241 = vmax.f32 %v1227, 0.0
      %v1242 = vmax.f32 %v1228, 0.0
      %v1243 = vmax.f32 %v1229, 0.0
      %v1244 = vmax.f32 %v1230, 0.0
      %v1245 = vmax.f32 %v1231, 0.0
      %v1246 = vmax.f32 %v1232, 0.0
      %v1247 = vmax.f32 %v1233, 0.0
      %v1248 = vmax.f32 %v1234, 0.0
      %v1249 = vmax.f32 %v1235, 0.0
      %v1250 = vmax.f32 %v1236, 0.0
      %v1251 = vmax.f32 %v1237, 0.0
      %v1252 = vpack.c.bf16 %v1239, %v1238
      %v1253 = vpack.c.bf16 %v1241, %v1240
      %v1254 = vpack.c.bf16 %v1243, %v1242
      %v1255 = vpack.c.bf16 %v1245, %v1244
      %v1256 = vpack.c.bf16 %v1247, %v1246
      %v1257 = vpack.c.bf16 %v1249, %v1248
      %v1258 = vpack.c.bf16 %v1251, %v1250
      %vm1259 = vsmask.f32 7424
      %v1260 = vshrl.u32 %v711, 16
      %v1262 = vshll.u32 %v711, 16
      %v1264 = vrot.slane %v1262, 1
      %v1265 = vor.u32 %v1260, %v1264
      %v1266 = vshll.u32 %v712, 16
      %v1268 = vrot.slane %v1266, 1
      %v1269 = vsel %vm1259, %v1265, %v1268
      %v1270 = vshrl.u32 %v712, 16
      %v1272 = vor.u32 %v1270, %v1268
      %v1273 = vshll.u32 %v713, 16
      %v1275 = vrot.slane %v1273, 1
      %v1276 = vsel %vm1259, %v1272, %v1275
      %v1277 = vshrl.u32 %v713, 16
      %v1279 = vor.u32 %v1277, %v1275
      %v1280 = vshll.u32 %v714, 16
      %v1282 = vrot.slane %v1280, 1
      %v1283 = vsel %vm1259, %v1279, %v1282
      %v1284 = vshrl.u32 %v714, 16
      %v1286 = vor.u32 %v1284, %v1282
      %v1287 = vshll.u32 %v715, 16
      %v1289 = vrot.slane %v1287, 1
      %v1290 = vsel %vm1259, %v1286, %v1289
      %v1291 = vshrl.u32 %v715, 16
      %v1293 = vor.u32 %v1291, %v1289
      %v1294 = vshll.u32 %v716, 16
      %v1296 = vrot.slane %v1294, 1
      %v1297 = vsel %vm1259, %v1293, %v1296
      %v1298 = vshrl.u32 %v716, 16
      %v1300 = vor.u32 %v1298, %v1296
      %v1301 = vshll.u32 %v717, 16
      %v1303 = vrot.slane %v1301, 1
      %v1304 = vsel %vm1259, %v1300, %v1303
      %v1305 = vshrl.u32 %v717, 16
      %v1307 = vor.u32 %v1305, %v1303
      %v1309 = vsel %vm572, %v1269, 0
      %v1312 = vsel %vm572, %v1276, 0
      %v1315 = vsel %vm572, %v1283, 0
      %v1318 = vsel %vm572, %v1290, 0
      %v1321 = vsel %vm572, %v1297, 0
      %v1324 = vsel %vm572, %v1304, 0
      %v1327 = vsel %vm572, %v1307, 0
      %1329 = vmatprep.subr.bf16.mxu0 0
      %1330 = vmatpush1.bf16.msra.mxu0 %v564
      %1331 = vmatprep.subr.bf16.mxu0 0
      %1332 = vmatpush1.bf16.msra.mxu0 %v565
      %1333 = vmatprep.subr.bf16.mxu0 0
      %1334 = vmatpush1.bf16.msra.mxu0 %v566
      %1335 = vmatprep.subr.bf16.mxu0 0
      %1336 = vmatpush1.bf16.msra.mxu0 %v567
      %1337 = vmatprep.subr.bf16.mxu0 0
      %1338 = vmatpush1.bf16.msra.mxu0 0
      %1339 = vmatprep.subr.bf16.mxu0 0
      %1340 = vmatpush1.bf16.msra.mxu0 0
      %1341 = vmatprep.subr.bf16.mxu0 0
      %1342 = vmatpush1.bf16.msra.mxu0 0
      %1343 = vmatprep.subr.bf16.mxu0 0
      %1344 = vmatpush1.bf16.msra.mxu0 0
      %1345 = vmatprep.subr.bf16.mxu0 0
      %1346 = vmatpush1.bf16.msra.mxu0 0
      %1347 = vmatprep.subr.bf16.mxu0 0
      %1348 = vmatpush1.bf16.msra.mxu0 0
      %1349 = vmatprep.subr.bf16.mxu0 0
      %1350 = vmatpush1.bf16.msra.mxu0 0
      %1351 = vmatprep.subr.bf16.mxu0 0
      %1352 = vmatpush1.bf16.msra.mxu0 0
      %1353 = vmatprep.subr.bf16.mxu0 0
      %1354 = vmatpush1.bf16.msra.mxu0 0
      %1355 = vmatprep.subr.bf16.mxu0 0
      %1356 = vmatpush1.bf16.msra.mxu0 0
      %1357 = vmatprep.subr.bf16.mxu0 0
      %1358 = vmatpush1.bf16.msra.mxu0 0
      %1359 = vmatprep.subr.bf16.mxu0 0
      %1360 = vmatpush1.bf16.msra.mxu0 0
      %1361 = vmatprep.mubr.bf16.mxu0 0
      %1362 = vmatmul.mubr.bf16.gmra.mrb[0].mxu0 %v1309
      %v1363 = vpop.f32.mrb[0].mxu0
      %v1364 = vadd.f32 0.0, %v1363
      %v1365 = vpop.f32.mrb[0].mxu0
      %v1366 = vpop.f32.mrb[0].mxu0
      %v1367 = vadd.f32 0.0, %v1366
      %v1368 = vpop.f32.mrb[0].mxu0
      %1369 = vmatprep.mubr.bf16.mxu0 0
      %1370 = vmatmul.mubr.bf16.gmra.mrb[0].mxu0 %v1312
      %v1371 = vpop.f32.mrb[0].mxu0
      %v1372 = vadd.f32 0.0, %v1371
      %v1373 = vpop.f32.mrb[0].mxu0
      %v1374 = vpop.f32.mrb[0].mxu0
      %v1375 = vadd.f32 0.0, %v1374
      %v1376 = vpop.f32.mrb[0].mxu0
      %1377 = vmatprep.mubr.bf16.mxu0 0
      %1378 = vmatmul.mubr.bf16.gmra.mrb[0].mxu0 %v1315
      %v1379 = vpop.f32.mrb[0].mxu0
      %v1380 = vadd.f32 0.0, %v1379
      %v1381 = vpop.f32.mrb[0].mxu0
      %v1382 = vpop.f32.mrb[0].mxu0
      %v1383 = vadd.f32 0.0, %v1382
      %v1384 = vpop.f32.mrb[0].mxu0
      %1385 = vmatprep.mubr.bf16.mxu0 0
      %1386 = vmatmul.mubr.bf16.gmra.mrb[0].mxu0 %v1318
      %v1387 = vpop.f32.mrb[0].mxu0
      %v1388 = vadd.f32 0.0, %v1387
      %v1389 = vpop.f32.mrb[0].mxu0
      %v1390 = vpop.f32.mrb[0].mxu0
      %v1391 = vadd.f32 0.0, %v1390
      %v1392 = vpop.f32.mrb[0].mxu0
      %1393 = vmatprep.mubr.bf16.mxu0 0
      %1394 = vmatmul.mubr.bf16.gmra.mrb[0].mxu0 %v1321
      %v1395 = vpop.f32.mrb[0].mxu0
      %v1396 = vadd.f32 0.0, %v1395
      %v1397 = vpop.f32.mrb[0].mxu0
      %v1398 = vpop.f32.mrb[0].mxu0
      %v1399 = vadd.f32 0.0, %v1398
      %v1400 = vpop.f32.mrb[0].mxu0
      %1401 = vmatprep.mubr.bf16.mxu0 0
      %1402 = vmatmul.mubr.bf16.gmra.mrb[0].mxu0 %v1324
      %v1403 = vpop.f32.mrb[0].mxu0
      %v1404 = vadd.f32 0.0, %v1403
      %v1405 = vpop.f32.mrb[0].mxu0
      %v1406 = vpop.f32.mrb[0].mxu0
      %v1407 = vadd.f32 0.0, %v1406
      %v1408 = vpop.f32.mrb[0].mxu0
      %1409 = vmatprep.mubr.bf16.mxu0 0
      %1410 = vmatmul.mubr.bf16.gmra.mrb[0].mxu0 %v1327
      %v1411 = vpop.f32.mrb[0].mxu0
      %v1412 = vadd.f32 0.0, %v1411
      %v1413 = vpop.f32.mrb[0].mxu0
      %v1414 = vpop.f32.mrb[0].mxu0
      %v1415 = vadd.f32 0.0, %v1414
      %v1416 = vpop.f32.mrb[0].mxu0
      %1417 = vdwg.mxu0
      %1418 = vmatprep.subr.bf16.mxu0 0
      %1419 = vmatpush1.bf16.msra.mxu0 %v734
      %1420 = vmatprep.subr.bf16.mxu0 0
      %1421 = vmatpush1.bf16.msra.mxu0 %v735
      %1422 = vmatprep.subr.bf16.mxu0 0
      %1423 = vmatpush1.bf16.msra.mxu0 %v736
      %1424 = vmatprep.subr.bf16.mxu0 0
      %1425 = vmatpush1.bf16.msra.mxu0 %v737
      %1426 = vmatprep.subr.bf16.mxu0 0
      %1427 = vmatpush1.bf16.msra.mxu0 0
      %1428 = vmatprep.subr.bf16.mxu0 0
      %1429 = vmatpush1.bf16.msra.mxu0 0
      %1430 = vmatprep.subr.bf16.mxu0 0
      %1431 = vmatpush1.bf16.msra.mxu0 0
      %1432 = vmatprep.subr.bf16.mxu0 0
      %1433 = vmatpush1.bf16.msra.mxu0 0
      %1434 = vmatprep.subr.bf16.mxu0 0
      %1435 = vmatpush1.bf16.msra.mxu0 0
      %1436 = vmatprep.subr.bf16.mxu0 0
      %1437 = vmatpush1.bf16.msra.mxu0 0
      %1438 = vmatprep.subr.bf16.mxu0 0
      %1439 = vmatpush1.bf16.msra.mxu0 0
      %1440 = vmatprep.subr.bf16.mxu0 0
      %1441 = vmatpush1.bf16.msra.mxu0 0
      %1442 = vmatprep.subr.bf16.mxu0 0
      %1443 = vmatpush1.bf16.msra.mxu0 0
      %1444 = vmatprep.subr.bf16.mxu0 0
      %1445 = vmatpush1.bf16.msra.mxu0 0
      %1446 = vmatprep.subr.bf16.mxu0 0
      %1447 = vmatpush1.bf16.msra.mxu0 0
      %1448 = vmatprep.subr.bf16.mxu0 0
      %1449 = vmatpush1.bf16.msra.mxu0 0
      %1450 = vmatprep.mubr.bf16.mxu0 0
      %1451 = vmatmul.mubr.bf16.gmra.mrb[0].mxu0 %v574
      %v1452 = vpop.f32.mrb[0].mxu0
      %v1453 = vadd.f32 %v1364, %v1452
      %v1454 = vpop.f32.mrb[0].mxu0
      %v1455 = vpop.f32.mrb[0].mxu0
      %v1456 = vadd.f32 %v1367, %v1455
      %v1457 = vpop.f32.mrb[0].mxu0
      %1458 = vmatprep.mubr.bf16.mxu0 0
      %1459 = vmatmul.mubr.bf16.gmra.mrb[0].mxu0 %v577
      %v1460 = vpop.f32.mrb[0].mxu0
      %v1461 = vadd.f32 %v1372, %v1460
      %v1462 = vpop.f32.mrb[0].mxu0
      %v1463 = vpop.f32.mrb[0].mxu0
      %v1464 = vadd.f32 %v1375, %v1463
      %v1465 = vpop.f32.mrb[0].mxu0
      %1466 = vmatprep.mubr.bf16.mxu0 0
      %1467 = vmatmul.mubr.bf16.gmra.mrb[0].mxu0 %v580
      %v1468 = vpop.f32.mrb[0].mxu0
      %v1469 = vadd.f32 %v1380, %v1468
      %v1470 = vpop.f32.mrb[0].mxu0
      %v1471 = vpop.f32.mrb[0].mxu0
      %v1472 = vadd.f32 %v1383, %v1471
      %v1473 = vpop.f32.mrb[0].mxu0
      %1474 = vmatprep.mubr.bf16.mxu0 0
      %1475 = vmatmul.mubr.bf16.gmra.mrb[0].mxu0 %v583
      %v1476 = vpop.f32.mrb[0].mxu0
      %v1477 = vadd.f32 %v1388, %v1476
      %v1478 = vpop.f32.mrb[0].mxu0
      %v1479 = vpop.f32.mrb[0].mxu0
      %v1480 = vadd.f32 %v1391, %v1479
      %v1481 = vpop.f32.mrb[0].mxu0
      %1482 = vmatprep.mubr.bf16.mxu0 0
      %1483 = vmatmul.mubr.bf16.gmra.mrb[0].mxu0 %v586
      %v1484 = vpop.f32.mrb[0].mxu0
      %v1485 = vadd.f32 %v1396, %v1484
      %v1486 = vpop.f32.mrb[0].mxu0
      %v1487 = vpop.f32.mrb[0].mxu0
      %v1488 = vadd.f32 %v1399, %v1487
      %v1489 = vpop.f32.mrb[0].mxu0
      %1490 = vmatprep.mubr.bf16.mxu0 0
      %1491 = vmatmul.mubr.bf16.gmra.mrb[0].mxu0 %v589
      %v1492 = vpop.f32.mrb[0].mxu0
      %v1493 = vadd.f32 %v1404, %v1492
      %v1494 = vpop.f32.mrb[0].mxu0
      %v1495 = vpop.f32.mrb[0].mxu0
      %v1496 = vadd.f32 %v1407, %v1495
      %v1497 = vpop.f32.mrb[0].mxu0
      %1498 = vmatprep.mubr.bf16.mxu0 0
      %1499 = vmatmul.mubr.bf16.gmra.mrb[0].mxu0 %v592
      %v1500 = vpop.f32.mrb[0].mxu0
      %v1501 = vadd.f32 %v1412, %v1500
      %v1502 = vpop.f32.mrb[0].mxu0
      %v1503 = vpop.f32.mrb[0].mxu0
      %v1504 = vadd.f32 %v1415, %v1503
      %v1505 = vpop.f32.mrb[0].mxu0
      %1506 = vdwg.mxu0
      %1507 = vmatprep.subr.bf16.mxu0 0
      %1508 = vmatpush1.bf16.msra.mxu0 %v903
      %1509 = vmatprep.subr.bf16.mxu0 0
      %1510 = vmatpush1.bf16.msra.mxu0 %v904
      %1511 = vmatprep.subr.bf16.mxu0 0
      %1512 = vmatpush1.bf16.msra.mxu0 %v905
      %1513 = vmatprep.subr.bf16.mxu0 0
      %1514 = vmatpush1.bf16.msra.mxu0 %v906
      %1515 = vmatprep.subr.bf16.mxu0 0
      %1516 = vmatpush1.bf16.msra.mxu0 0
      %1517 = vmatprep.subr.bf16.mxu0 0
      %1518 = vmatpush1.bf16.msra.mxu0 0
      %1519 = vmatprep.subr.bf16.mxu0 0
      %1520 = vmatpush1.bf16.msra.mxu0 0
      %1521 = vmatprep.subr.bf16.mxu0 0
      %1522 = vmatpush1.bf16.msra.mxu0 0
      %1523 = vmatprep.subr.bf16.mxu0 0
      %1524 = vmatpush1.bf16.msra.mxu0 0
      %1525 = vmatprep.subr.bf16.mxu0 0
      %1526 = vmatpush1.bf16.msra.mxu0 0
      %1527 = vmatprep.subr.bf16.mxu0 0
      %1528 = vmatpush1.bf16.msra.mxu0 0
      %1529 = vmatprep.subr.bf16.mxu0 0
      %1530 = vmatpush1.bf16.msra.mxu0 0
      %1531 = vmatprep.subr.bf16.mxu0 0
      %1532 = vmatpush1.bf16.msra.mxu0 0
      %1533 = vmatprep.subr.bf16.mxu0 0
      %1534 = vmatpush1.bf16.msra.mxu0 0
      %1535 = vmatprep.subr.bf16.mxu0 0
      %1536 = vmatpush1.bf16.msra.mxu0 0
      %1537 = vmatprep.subr.bf16.mxu0 0
      %1538 = vmatpush1.bf16.msra.mxu0 0
      %1539 = vmatprep.mubr.bf16.mxu0 0
      %1540 = vmatmul.mubr.bf16.gmra.mrb[0].mxu0 %v1095
      %v1541 = vpop.f32.mrb[0].mxu0
      %v1542 = vadd.f32 0.0, %v1541
      %v1543 = vpop.f32.mrb[0].mxu0
      %v1544 = vpop.f32.mrb[0].mxu0
      %v1545 = vadd.f32 0.0, %v1544
      %v1546 = vpop.f32.mrb[0].mxu0
      %1547 = vmatprep.mubr.bf16.mxu0 0
      %1548 = vmatmul.mubr.bf16.gmra.mrb[0].mxu0 %v1098
      %v1549 = vpop.f32.mrb[0].mxu0
      %v1550 = vadd.f32 0.0, %v1549
      %v1551 = vpop.f32.mrb[0].mxu0
      %v1552 = vpop.f32.mrb[0].mxu0
      %v1553 = vadd.f32 0.0, %v1552
      %v1554 = vpop.f32.mrb[0].mxu0
      %1555 = vmatprep.mubr.bf16.mxu0 0
      %1556 = vmatmul.mubr.bf16.gmra.mrb[0].mxu0 %v1101
      %v1557 = vpop.f32.mrb[0].mxu0
      %v1558 = vadd.f32 0.0, %v1557
      %v1559 = vpop.f32.mrb[0].mxu0
      %v1560 = vpop.f32.mrb[0].mxu0
      %v1561 = vadd.f32 0.0, %v1560
      %v1562 = vpop.f32.mrb[0].mxu0
      %1563 = vmatprep.mubr.bf16.mxu0 0
      %1564 = vmatmul.mubr.bf16.gmra.mrb[0].mxu0 %v1104
      %v1565 = vpop.f32.mrb[0].mxu0
      %v1566 = vadd.f32 0.0, %v1565
      %v1567 = vpop.f32.mrb[0].mxu0
      %v1568 = vpop.f32.mrb[0].mxu0
      %v1569 = vadd.f32 0.0, %v1568
      %v1570 = vpop.f32.mrb[0].mxu0
      %1571 = vmatprep.mubr.bf16.mxu0 0
      %1572 = vmatmul.mubr.bf16.gmra.mrb[0].mxu0 %v1107
      %v1573 = vpop.f32.mrb[0].mxu0
      %v1574 = vadd.f32 0.0, %v1573
      %v1575 = vpop.f32.mrb[0].mxu0
      %v1576 = vpop.f32.mrb[0].mxu0
      %v1577 = vadd.f32 0.0, %v1576
      %v1578 = vpop.f32.mrb[0].mxu0
      %1579 = vmatprep.mubr.bf16.mxu0 0
      %1580 = vmatmul.mubr.bf16.gmra.mrb[0].mxu0 %v1110
      %v1581 = vpop.f32.mrb[0].mxu0
      %v1582 = vadd.f32 0.0, %v1581
      %v1583 = vpop.f32.mrb[0].mxu0
      %v1584 = vpop.f32.mrb[0].mxu0
      %v1585 = vadd.f32 0.0, %v1584
      %v1586 = vpop.f32.mrb[0].mxu0
      %1587 = vmatprep.mubr.bf16.mxu0 0
      %1588 = vmatmul.mubr.bf16.gmra.mrb[0].mxu0 %v1113
      %v1589 = vpop.f32.mrb[0].mxu0
      %v1590 = vadd.f32 0.0, %v1589
      %v1591 = vpop.f32.mrb[0].mxu0
      %v1592 = vpop.f32.mrb[0].mxu0
      %v1593 = vadd.f32 0.0, %v1592
      %v1594 = vpop.f32.mrb[0].mxu0
      %1595 = vdwg.mxu0
      %v1596 = vadd.f32 %v1453, %v1542
      %v1597 = vadd.f32 %v1456, %v1545
      %v1598 = vadd.f32 %v1461, %v1550
      %v1599 = vadd.f32 %v1464, %v1553
      %v1600 = vadd.f32 %v1469, %v1558
      %v1601 = vadd.f32 %v1472, %v1561
      %v1602 = vadd.f32 %v1477, %v1566
      %v1603 = vadd.f32 %v1480, %v1569
      %v1604 = vadd.f32 %v1485, %v1574
      %v1605 = vadd.f32 %v1488, %v1577
      %v1606 = vadd.f32 %v1493, %v1582
      %v1607 = vadd.f32 %v1496, %v1585
      %v1608 = vadd.f32 %v1501, %v1590
      %v1609 = vadd.f32 %v1504, %v1593
      %v1610 = vshrl.u32 %v880, 16
      %v1612 = vshll.u32 %v880, 16
      %v1614 = vrot.slane %v1612, 1
      %v1615 = vor.u32 %v1610, %v1614
      %v1616 = vshll.u32 %v881, 16
      %v1618 = vrot.slane %v1616, 1
      %v1619 = vsel %vm1259, %v1615, %v1618
      %v1620 = vshrl.u32 %v881, 16
      %v1622 = vor.u32 %v1620, %v1618
      %v1623 = vshll.u32 %v882, 16
      %v1625 = vrot.slane %v1623, 1
      %v1626 = vsel %vm1259, %v1622, %v1625
      %v1627 = vshrl.u32 %v882, 16
      %v1629 = vor.u32 %v1627, %v1625
      %v1630 = vshll.u32 %v883, 16
      %v1632 = vrot.slane %v1630, 1
      %v1633 = vsel %vm1259, %v1629, %v1632
      %v1634 = vshrl.u32 %v883, 16
      %v1636 = vor.u32 %v1634, %v1632
      %v1637 = vshll.u32 %v884, 16
      %v1639 = vrot.slane %v1637, 1
      %v1640 = vsel %vm1259, %v1636, %v1639
      %v1641 = vshrl.u32 %v884, 16
      %v1643 = vor.u32 %v1641, %v1639
      %v1644 = vshll.u32 %v885, 16
      %v1646 = vrot.slane %v1644, 1
      %v1647 = vsel %vm1259, %v1643, %v1646
      %v1648 = vshrl.u32 %v885, 16
      %v1650 = vor.u32 %v1648, %v1646
      %v1651 = vshll.u32 %v886, 16
      %v1653 = vrot.slane %v1651, 1
      %v1654 = vsel %vm1259, %v1650, %v1653
      %v1655 = vshrl.u32 %v886, 16
      %v1657 = vor.u32 %v1655, %v1653
      %v1659 = vsel %vm572, %v1619, 0
      %v1662 = vsel %vm572, %v1626, 0
      %v1665 = vsel %vm572, %v1633, 0
      %v1668 = vsel %vm572, %v1640, 0
      %v1671 = vsel %vm572, %v1647, 0
      %v1674 = vsel %vm572, %v1654, 0
      %v1677 = vsel %vm572, %v1657, 0
      %1679 = vmatprep.subr.bf16.mxu0 0
      %1680 = vmatpush1.bf16.msra.mxu0 %v1086
      %1681 = vmatprep.subr.bf16.mxu0 0
      %1682 = vmatpush1.bf16.msra.mxu0 %v1087
      %1683 = vmatprep.subr.bf16.mxu0 0
      %1684 = vmatpush1.bf16.msra.mxu0 %v1088
      %1685 = vmatprep.subr.bf16.mxu0 0
      %1686 = vmatpush1.bf16.msra.mxu0 %v1089
      %1687 = vmatprep.subr.bf16.mxu0 0
      %1688 = vmatpush1.bf16.msra.mxu0 0
      %1689 = vmatprep.subr.bf16.mxu0 0
      %1690 = vmatpush1.bf16.msra.mxu0 0
      %1691 = vmatprep.subr.bf16.mxu0 0
      %1692 = vmatpush1.bf16.msra.mxu0 0
      %1693 = vmatprep.subr.bf16.mxu0 0
      %1694 = vmatpush1.bf16.msra.mxu0 0
      %1695 = vmatprep.subr.bf16.mxu0 0
      %1696 = vmatpush1.bf16.msra.mxu0 0
      %1697 = vmatprep.subr.bf16.mxu0 0
      %1698 = vmatpush1.bf16.msra.mxu0 0
      %1699 = vmatprep.subr.bf16.mxu0 0
      %1700 = vmatpush1.bf16.msra.mxu0 0
      %1701 = vmatprep.subr.bf16.mxu0 0
      %1702 = vmatpush1.bf16.msra.mxu0 0
      %1703 = vmatprep.subr.bf16.mxu0 0
      %1704 = vmatpush1.bf16.msra.mxu0 0
      %1705 = vmatprep.subr.bf16.mxu0 0
      %1706 = vmatpush1.bf16.msra.mxu0 0
      %1707 = vmatprep.subr.bf16.mxu0 0
      %1708 = vmatpush1.bf16.msra.mxu0 0
      %1709 = vmatprep.subr.bf16.mxu0 0
      %1710 = vmatpush1.bf16.msra.mxu0 0
      %1711 = vmatprep.mubr.bf16.mxu0 0
      %1712 = vmatmul.mubr.bf16.gmra.mrb[0].mxu0 %v1659
      %v1713 = vpop.f32.mrb[0].mxu0
      %v1714 = vadd.f32 0.0, %v1713
      %v1715 = vpop.f32.mrb[0].mxu0
      %v1716 = vpop.f32.mrb[0].mxu0
      %v1717 = vadd.f32 0.0, %v1716
      %v1718 = vpop.f32.mrb[0].mxu0
      %1719 = vmatprep.mubr.bf16.mxu0 0
      %1720 = vmatmul.mubr.bf16.gmra.mrb[0].mxu0 %v1662
      %v1721 = vpop.f32.mrb[0].mxu0
      %v1722 = vadd.f32 0.0, %v1721
      %v1723 = vpop.f32.mrb[0].mxu0
      %v1724 = vpop.f32.mrb[0].mxu0
      %v1725 = vadd.f32 0.0, %v1724
      %v1726 = vpop.f32.mrb[0].mxu0
      %1727 = vmatprep.mubr.bf16.mxu0 0
      %1728 = vmatmul.mubr.bf16.gmra.mrb[0].mxu0 %v1665
      %v1729 = vpop.f32.mrb[0].mxu0
      %v1730 = vadd.f32 0.0, %v1729
      %v1731 = vpop.f32.mrb[0].mxu0
      %v1732 = vpop.f32.mrb[0].mxu0
      %v1733 = vadd.f32 0.0, %v1732
      %v1734 = vpop.f32.mrb[0].mxu0
      %1735 = vmatprep.mubr.bf16.mxu0 0
      %1736 = vmatmul.mubr.bf16.gmra.mrb[0].mxu0 %v1668
      %v1737 = vpop.f32.mrb[0].mxu0
      %v1738 = vadd.f32 0.0, %v1737
      %v1739 = vpop.f32.mrb[0].mxu0
      %v1740 = vpop.f32.mrb[0].mxu0
      %v1741 = vadd.f32 0.0, %v1740
      %v1742 = vpop.f32.mrb[0].mxu0
      %1743 = vmatprep.mubr.bf16.mxu0 0
      %1744 = vmatmul.mubr.bf16.gmra.mrb[0].mxu0 %v1671
      %v1745 = vpop.f32.mrb[0].mxu0
      %v1746 = vadd.f32 0.0, %v1745
      %v1747 = vpop.f32.mrb[0].mxu0
      %v1748 = vpop.f32.mrb[0].mxu0
      %v1749 = vadd.f32 0.0, %v1748
      %v1750 = vpop.f32.mrb[0].mxu0
      %1751 = vmatprep.mubr.bf16.mxu0 0
      %1752 = vmatmul.mubr.bf16.gmra.mrb[0].mxu0 %v1674
      %v1753 = vpop.f32.mrb[0].mxu0
      %v1754 = vadd.f32 0.0, %v1753
      %v1755 = vpop.f32.mrb[0].mxu0
      %v1756 = vpop.f32.mrb[0].mxu0
      %v1757 = vadd.f32 0.0, %v1756
      %v1758 = vpop.f32.mrb[0].mxu0
      %1759 = vmatprep.mubr.bf16.mxu0 0
      %1760 = vmatmul.mubr.bf16.gmra.mrb[0].mxu0 %v1677
      %v1761 = vpop.f32.mrb[0].mxu0
      %v1762 = vadd.f32 0.0, %v1761
      %v1763 = vpop.f32.mrb[0].mxu0
      %v1764 = vpop.f32.mrb[0].mxu0
      %v1765 = vadd.f32 0.0, %v1764
      %v1766 = vpop.f32.mrb[0].mxu0
      %1767 = vdwg.mxu0
      %v1768 = vadd.f32 %v1596, %v1714
      %v1769 = vadd.f32 %v1597, %v1717
      %v1770 = vadd.f32 %v1598, %v1722
      %v1771 = vadd.f32 %v1599, %v1725
      %v1772 = vadd.f32 %v1600, %v1730
      %v1773 = vadd.f32 %v1601, %v1733
      %v1774 = vadd.f32 %v1602, %v1738
      %v1775 = vadd.f32 %v1603, %v1741
      %v1776 = vadd.f32 %v1604, %v1746
      %v1777 = vadd.f32 %v1605, %v1749
      %v1778 = vadd.f32 %v1606, %v1754
      %v1779 = vadd.f32 %v1607, %v1757
      %v1780 = vadd.f32 %v1608, %v1762
      %v1781 = vadd.f32 %v1609, %v1765
      %v1782 = vadd.f32 %v1768, %v1222
      %v1783 = vadd.f32 %v1769, %v1222
      %v1784 = vadd.f32 %v1770, %v1222
      %v1785 = vadd.f32 %v1771, %v1222
      %v1786 = vadd.f32 %v1772, %v1222
      %v1787 = vadd.f32 %v1773, %v1222
      %v1788 = vadd.f32 %v1774, %v1222
      %v1789 = vadd.f32 %v1775, %v1222
      %v1790 = vadd.f32 %v1776, %v1222
      %v1791 = vadd.f32 %v1777, %v1222
      %v1792 = vadd.f32 %v1778, %v1222
      %v1793 = vadd.f32 %v1779, %v1222
      %v1794 = vadd.f32 %v1780, %v1222
      %v1795 = vadd.f32 %v1781, %v1222
      %v1796 = vmax.f32 %v1782, 0.0
      %v1797 = vmax.f32 %v1783, 0.0
      %v1798 = vmax.f32 %v1784, 0.0
      %v1799 = vmax.f32 %v1785, 0.0
      %v1800 = vmax.f32 %v1786, 0.0
      %v1801 = vmax.f32 %v1787, 0.0
      %v1802 = vmax.f32 %v1788, 0.0
      %v1803 = vmax.f32 %v1789, 0.0
      %v1804 = vmax.f32 %v1790, 0.0
      %v1805 = vmax.f32 %v1791, 0.0
      %v1806 = vmax.f32 %v1792, 0.0
      %v1807 = vmax.f32 %v1793, 0.0
      %v1808 = vmax.f32 %v1794, 0.0
      %v1809 = vmax.f32 %v1795, 0.0
      %v1810 = vpack.c.bf16 %v1797, %v1796
      %v1811 = vpack.c.bf16 %v1799, %v1798
      %v1812 = vpack.c.bf16 %v1801, %v1800
      %v1813 = vpack.c.bf16 %v1803, %v1802
      %v1814 = vpack.c.bf16 %v1805, %v1804
      %v1815 = vpack.c.bf16 %v1807, %v1806
      %v1816 = vpack.c.bf16 %v1809, %v1808
      %1817 = vmatprep.subr.bf16.mxu0 0
      %1818 = vmatpush1.bf16.msra.mxu0 %v564
      %1819 = vmatprep.subr.bf16.mxu0 0
      %1820 = vmatpush1.bf16.msra.mxu0 %v565
      %1821 = vmatprep.subr.bf16.mxu0 0
      %1822 = vmatpush1.bf16.msra.mxu0 %v566
      %1823 = vmatprep.subr.bf16.mxu0 0
      %1824 = vmatpush1.bf16.msra.mxu0 %v567
      %1825 = vmatprep.subr.bf16.mxu0 0
      %1826 = vmatpush1.bf16.msra.mxu0 0
      %1827 = vmatprep.subr.bf16.mxu0 0
      %1828 = vmatpush1.bf16.msra.mxu0 0
      %1829 = vmatprep.subr.bf16.mxu0 0
      %1830 = vmatpush1.bf16.msra.mxu0 0
      %1831 = vmatprep.subr.bf16.mxu0 0
      %1832 = vmatpush1.bf16.msra.mxu0 0
      %1833 = vmatprep.subr.bf16.mxu0 0
      %1834 = vmatpush1.bf16.msra.mxu0 0
      %1835 = vmatprep.subr.bf16.mxu0 0
      %1836 = vmatpush1.bf16.msra.mxu0 0
      %1837 = vmatprep.subr.bf16.mxu0 0
      %1838 = vmatpush1.bf16.msra.mxu0 0
      %1839 = vmatprep.subr.bf16.mxu0 0
      %1840 = vmatpush1.bf16.msra.mxu0 0
      %1841 = vmatprep.subr.bf16.mxu0 0
      %1842 = vmatpush1.bf16.msra.mxu0 0
      %1843 = vmatprep.subr.bf16.mxu0 0
      %1844 = vmatpush1.bf16.msra.mxu0 0
      %1845 = vmatprep.subr.bf16.mxu0 0
      %1846 = vmatpush1.bf16.msra.mxu0 0
      %1847 = vmatprep.subr.bf16.mxu0 0
      %1848 = vmatpush1.bf16.msra.mxu0 0
      %1849 = vmatprep.mubr.bf16.mxu0 0
      %1850 = vmatmul.mubr.bf16.gmra.mrb[0].mxu0 %v1095
      %v1851 = vpop.f32.mrb[0].mxu0
      %v1852 = vadd.f32 0.0, %v1851
      %v1853 = vpop.f32.mrb[0].mxu0
      %v1854 = vpop.f32.mrb[0].mxu0
      %v1855 = vadd.f32 0.0, %v1854
      %v1856 = vpop.f32.mrb[0].mxu0
      %1857 = vmatprep.mubr.bf16.mxu0 0
      %1858 = vmatmul.mubr.bf16.gmra.mrb[0].mxu0 %v1098
      %v1859 = vpop.f32.mrb[0].mxu0
      %v1860 = vadd.f32 0.0, %v1859
      %v1861 = vpop.f32.mrb[0].mxu0
      %v1862 = vpop.f32.mrb[0].mxu0
      %v1863 = vadd.f32 0.0, %v1862
      %v1864 = vpop.f32.mrb[0].mxu0
      %1865 = vmatprep.mubr.bf16.mxu0 0
      %1866 = vmatmul.mubr.bf16.gmra.mrb[0].mxu0 %v1101
      %v1867 = vpop.f32.mrb[0].mxu0
      %v1868 = vadd.f32 0.0, %v1867
      %v1869 = vpop.f32.mrb[0].mxu0
      %v1870 = vpop.f32.mrb[0].mxu0
      %v1871 = vadd.f32 0.0, %v1870
      %v1872 = vpop.f32.mrb[0].mxu0
      %1873 = vmatprep.mubr.bf16.mxu0 0
      %1874 = vmatmul.mubr.bf16.gmra.mrb[0].mxu0 %v1104
      %v1875 = vpop.f32.mrb[0].mxu0
      %v1876 = vadd.f32 0.0, %v1875
      %v1877 = vpop.f32.mrb[0].mxu0
      %v1878 = vpop.f32.mrb[0].mxu0
      %v1879 = vadd.f32 0.0, %v1878
      %v1880 = vpop.f32.mrb[0].mxu0
      %1881 = vmatprep.mubr.bf16.mxu0 0
      %1882 = vmatmul.mubr.bf16.gmra.mrb[0].mxu0 %v1107
      %v1883 = vpop.f32.mrb[0].mxu0
      %v1884 = vadd.f32 0.0, %v1883
      %v1885 = vpop.f32.mrb[0].mxu0
      %v1886 = vpop.f32.mrb[0].mxu0
      %v1887 = vadd.f32 0.0, %v1886
      %v1888 = vpop.f32.mrb[0].mxu0
      %1889 = vmatprep.mubr.bf16.mxu0 0
      %1890 = vmatmul.mubr.bf16.gmra.mrb[0].mxu0 %v1110
      %v1891 = vpop.f32.mrb[0].mxu0
      %v1892 = vadd.f32 0.0, %v1891
      %v1893 = vpop.f32.mrb[0].mxu0
      %v1894 = vpop.f32.mrb[0].mxu0
      %v1895 = vadd.f32 0.0, %v1894
      %v1896 = vpop.f32.mrb[0].mxu0
      %1897 = vmatprep.mubr.bf16.mxu0 0
      %1898 = vmatmul.mubr.bf16.gmra.mrb[0].mxu0 %v1113
      %v1899 = vpop.f32.mrb[0].mxu0
      %v1900 = vadd.f32 0.0, %v1899
      %v1901 = vpop.f32.mrb[0].mxu0
      %v1902 = vpop.f32.mrb[0].mxu0
      %v1903 = vadd.f32 0.0, %v1902
      %v1904 = vpop.f32.mrb[0].mxu0
      %1905 = vdwg.mxu0
      %1906 = vmatprep.subr.bf16.mxu0 0
      %1907 = vmatpush1.bf16.msra.mxu0 %v734
      %1908 = vmatprep.subr.bf16.mxu0 0
      %1909 = vmatpush1.bf16.msra.mxu0 %v735
      %1910 = vmatprep.subr.bf16.mxu0 0
      %1911 = vmatpush1.bf16.msra.mxu0 %v736
      %1912 = vmatprep.subr.bf16.mxu0 0
      %1913 = vmatpush1.bf16.msra.mxu0 %v737
      %1914 = vmatprep.subr.bf16.mxu0 0
      %1915 = vmatpush1.bf16.msra.mxu0 0
      %1916 = vmatprep.subr.bf16.mxu0 0
      %1917 = vmatpush1.bf16.msra.mxu0 0
      %1918 = vmatprep.subr.bf16.mxu0 0
      %1919 = vmatpush1.bf16.msra.mxu0 0
      %1920 = vmatprep.subr.bf16.mxu0 0
      %1921 = vmatpush1.bf16.msra.mxu0 0
      %1922 = vmatprep.subr.bf16.mxu0 0
      %1923 = vmatpush1.bf16.msra.mxu0 0
      %1924 = vmatprep.subr.bf16.mxu0 0
      %1925 = vmatpush1.bf16.msra.mxu0 0
      %1926 = vmatprep.subr.bf16.mxu0 0
      %1927 = vmatpush1.bf16.msra.mxu0 0
      %1928 = vmatprep.subr.bf16.mxu0 0
      %1929 = vmatpush1.bf16.msra.mxu0 0
      %1930 = vmatprep.subr.bf16.mxu0 0
      %1931 = vmatpush1.bf16.msra.mxu0 0
      %1932 = vmatprep.subr.bf16.mxu0 0
      %1933 = vmatpush1.bf16.msra.mxu0 0
      %1934 = vmatprep.subr.bf16.mxu0 0
      %1935 = vmatpush1.bf16.msra.mxu0 0
      %1936 = vmatprep.subr.bf16.mxu0 0
      %1937 = vmatpush1.bf16.msra.mxu0 0
      %1938 = vmatprep.mubr.bf16.mxu0 0
      %1939 = vmatmul.mubr.bf16.gmra.mrb[0].mxu0 %v912
      %v1940 = vpop.f32.mrb[0].mxu0
      %v1941 = vadd.f32 %v1852, %v1940
      %v1942 = vpop.f32.mrb[0].mxu0
      %v1943 = vpop.f32.mrb[0].mxu0
      %v1944 = vadd.f32 %v1855, %v1943
      %v1945 = vpop.f32.mrb[0].mxu0
      %1946 = vmatprep.mubr.bf16.mxu0 0
      %1947 = vmatmul.mubr.bf16.gmra.mrb[0].mxu0 %v915
      %v1948 = vpop.f32.mrb[0].mxu0
      %v1949 = vadd.f32 %v1860, %v1948
      %v1950 = vpop.f32.mrb[0].mxu0
      %v1951 = vpop.f32.mrb[0].mxu0
      %v1952 = vadd.f32 %v1863, %v1951
      %v1953 = vpop.f32.mrb[0].mxu0
      %1954 = vmatprep.mubr.bf16.mxu0 0
      %1955 = vmatmul.mubr.bf16.gmra.mrb[0].mxu0 %v918
      %v1956 = vpop.f32.mrb[0].mxu0
      %v1957 = vadd.f32 %v1868, %v1956
      %v1958 = vpop.f32.mrb[0].mxu0
      %v1959 = vpop.f32.mrb[0].mxu0
      %v1960 = vadd.f32 %v1871, %v1959
      %v1961 = vpop.f32.mrb[0].mxu0
      %1962 = vmatprep.mubr.bf16.mxu0 0
      %1963 = vmatmul.mubr.bf16.gmra.mrb[0].mxu0 %v921
      %v1964 = vpop.f32.mrb[0].mxu0
      %v1965 = vadd.f32 %v1876, %v1964
      %v1966 = vpop.f32.mrb[0].mxu0
      %v1967 = vpop.f32.mrb[0].mxu0
      %v1968 = vadd.f32 %v1879, %v1967
      %v1969 = vpop.f32.mrb[0].mxu0
      %1970 = vmatprep.mubr.bf16.mxu0 0
      %1971 = vmatmul.mubr.bf16.gmra.mrb[0].mxu0 %v924
      %v1972 = vpop.f32.mrb[0].mxu0
      %v1973 = vadd.f32 %v1884, %v1972
      %v1974 = vpop.f32.mrb[0].mxu0
      %v1975 = vpop.f32.mrb[0].mxu0
      %v1976 = vadd.f32 %v1887, %v1975
      %v1977 = vpop.f32.mrb[0].mxu0
      %1978 = vmatprep.mubr.bf16.mxu0 0
      %1979 = vmatmul.mubr.bf16.gmra.mrb[0].mxu0 %v927
      %v1980 = vpop.f32.mrb[0].mxu0
      %v1981 = vadd.f32 %v1892, %v1980
      %v1982 = vpop.f32.mrb[0].mxu0
      %v1983 = vpop.f32.mrb[0].mxu0
      %v1984 = vadd.f32 %v1895, %v1983
      %v1985 = vpop.f32.mrb[0].mxu0
      %1986 = vmatprep.mubr.bf16.mxu0 0
      %1987 = vmatmul.mubr.bf16.gmra.mrb[0].mxu0 %v930
      %v1988 = vpop.f32.mrb[0].mxu0
      %v1989 = vadd.f32 %v1900, %v1988
      %v1990 = vpop.f32.mrb[0].mxu0
      %v1991 = vpop.f32.mrb[0].mxu0
      %v1992 = vadd.f32 %v1903, %v1991
      %v1993 = vpop.f32.mrb[0].mxu0
      %1994 = vdwg.mxu0
      %v1996 = vunpack.c.l.b16 %v465
      %v1997 = vpack.c.b16 %v699, %v698
      %v1998 = vpack.c.b16 %v701, %v700
      %v1999 = vpack.c.b16 %v703, %v702
      %v2000 = vpack.c.b16 %v705, %v704
      %v2001 = vpack.c.b16 %v707, %v706
      %v2002 = vpack.c.b16 %v709, %v708
      %v2003 = vpack.c.b16 %v1996, %v710
      %vm2004 = vsmask.f32 6400
      %v2006 = vshrl.u32 %v1997, 16
      %v2008 = vrot.slane %v2006, 1
      %v2009 = vshll.u32 %v1997, 16
      %v2011 = vrot.slane %v2009, 2
      %v2012 = vor.u32 %v2008, %v2011
      %v2014 = vshrl.u32 %v1998, 16
      %v2016 = vrot.slane %v2014, 1
      %v2017 = vshll.u32 %v1998, 16
      %v2019 = vrot.slane %v2017, 2
      %v2020 = vor.u32 %v2016, %v2019
      %v2021 = vsel %vm2004, %v2012, %v2020
      %v2023 = vshrl.u32 %v1999, 16
      %v2025 = vrot.slane %v2023, 1
      %v2026 = vshll.u32 %v1999, 16
      %v2028 = vrot.slane %v2026, 2
      %v2029 = vor.u32 %v2025, %v2028
      %v2030 = vsel %vm2004, %v2020, %v2029
      %v2032 = vshrl.u32 %v2000, 16
      %v2034 = vrot.slane %v2032, 1
      %v2035 = vshll.u32 %v2000, 16
      %v2037 = vrot.slane %v2035, 2
      %v2038 = vor.u32 %v2034, %v2037
      %v2039 = vsel %vm2004, %v2029, %v2038
      %v2041 = vshrl.u32 %v2001, 16
      %v2043 = vrot.slane %v2041, 1
      %v2044 = vshll.u32 %v2001, 16
      %v2046 = vrot.slane %v2044, 2
      %v2047 = vor.u32 %v2043, %v2046
      %v2048 = vsel %vm2004, %v2038, %v2047
      %v2050 = vshrl.u32 %v2002, 16
      %v2052 = vrot.slane %v2050, 1
      %v2053 = vshll.u32 %v2002, 16
      %v2055 = vrot.slane %v2053, 2
      %v2056 = vor.u32 %v2052, %v2055
      %v2057 = vsel %vm2004, %v2047, %v2056
      %v2059 = vshrl.u32 %v2003, 16
      %v2061 = vrot.slane %v2059, 1
      %v2062 = vshll.u32 %v2003, 16
      %v2064 = vrot.slane %v2062, 2
      %v2065 = vor.u32 %v2061, %v2064
      %v2066 = vsel %vm2004, %v2056, %v2065
      %v2068 = vsel %vm572, %v2021, 0
      %v2071 = vsel %vm572, %v2030, 0
      %v2074 = vsel %vm572, %v2039, 0
      %v2077 = vsel %vm572, %v2048, 0
      %v2080 = vsel %vm572, %v2057, 0
      %v2083 = vsel %vm572, %v2066, 0
      %v2086 = vsel %vm572, %v2065, 0
      %2088 = vmatprep.subr.bf16.mxu0 0
      %2089 = vmatpush1.bf16.msra.mxu0 %v903
      %2090 = vmatprep.subr.bf16.mxu0 0
      %2091 = vmatpush1.bf16.msra.mxu0 %v904
      %2092 = vmatprep.subr.bf16.mxu0 0
      %2093 = vmatpush1.bf16.msra.mxu0 %v905
      %2094 = vmatprep.subr.bf16.mxu0 0
      %2095 = vmatpush1.bf16.msra.mxu0 %v906
      %2096 = vmatprep.subr.bf16.mxu0 0
      %2097 = vmatpush1.bf16.msra.mxu0 0
      %2098 = vmatprep.subr.bf16.mxu0 0
      %2099 = vmatpush1.bf16.msra.mxu0 0
      %2100 = vmatprep.subr.bf16.mxu0 0
      %2101 = vmatpush1.bf16.msra.mxu0 0
      %2102 = vmatprep.subr.bf16.mxu0 0
      %2103 = vmatpush1.bf16.msra.mxu0 0
      %2104 = vmatprep.subr.bf16.mxu0 0
      %2105 = vmatpush1.bf16.msra.mxu0 0
      %2106 = vmatprep.subr.bf16.mxu0 0
      %2107 = vmatpush1.bf16.msra.mxu0 0
      %2108 = vmatprep.subr.bf16.mxu0 0
      %2109 = vmatpush1.bf16.msra.mxu0 0
      %2110 = vmatprep.subr.bf16.mxu0 0
      %2111 = vmatpush1.bf16.msra.mxu0 0
      %2112 = vmatprep.subr.bf16.mxu0 0
      %2113 = vmatpush1.bf16.msra.mxu0 0
      %2114 = vmatprep.subr.bf16.mxu0 0
      %2115 = vmatpush1.bf16.msra.mxu0 0
      %2116 = vmatprep.subr.bf16.mxu0 0
      %2117 = vmatpush1.bf16.msra.mxu0 0
      %2118 = vmatprep.subr.bf16.mxu0 0
      %2119 = vmatpush1.bf16.msra.mxu0 0
      %2120 = vmatprep.mubr.bf16.mxu0 0
      %2121 = vmatmul.mubr.bf16.gmra.mrb[0].mxu0 %v2068
      %v2122 = vpop.f32.mrb[0].mxu0
      %v2123 = vadd.f32 0.0, %v2122
      %v2124 = vpop.f32.mrb[0].mxu0
      %v2125 = vpop.f32.mrb[0].mxu0
      %v2126 = vadd.f32 0.0, %v2125
      %v2127 = vpop.f32.mrb[0].mxu0
      %2128 = vmatprep.mubr.bf16.mxu0 0
      %2129 = vmatmul.mubr.bf16.gmra.mrb[0].mxu0 %v2071
      %v2130 = vpop.f32.mrb[0].mxu0
      %v2131 = vadd.f32 0.0, %v2130
      %v2132 = vpop.f32.mrb[0].mxu0
      %v2133 = vpop.f32.mrb[0].mxu0
      %v2134 = vadd.f32 0.0, %v2133
      %v2135 = vpop.f32.mrb[0].mxu0
      %2136 = vmatprep.mubr.bf16.mxu0 0
      %2137 = vmatmul.mubr.bf16.gmra.mrb[0].mxu0 %v2074
      %v2138 = vpop.f32.mrb[0].mxu0
      %v2139 = vadd.f32 0.0, %v2138
      %v2140 = vpop.f32.mrb[0].mxu0
      %v2141 = vpop.f32.mrb[0].mxu0
      %v2142 = vadd.f32 0.0, %v2141
      %v2143 = vpop.f32.mrb[0].mxu0
      %2144 = vmatprep.mubr.bf16.mxu0 0
      %2145 = vmatmul.mubr.bf16.gmra.mrb[0].mxu0 %v2077
      %v2146 = vpop.f32.mrb[0].mxu0
      %v2147 = vadd.f32 0.0, %v2146
      %v2148 = vpop.f32.mrb[0].mxu0
      %v2149 = vpop.f32.mrb[0].mxu0
      %v2150 = vadd.f32 0.0, %v2149
      %v2151 = vpop.f32.mrb[0].mxu0
      %2152 = vmatprep.mubr.bf16.mxu0 0
      %2153 = vmatmul.mubr.bf16.gmra.mrb[0].mxu0 %v2080
      %v2154 = vpop.f32.mrb[0].mxu0
      %v2155 = vadd.f32 0.0, %v2154
      %v2156 = vpop.f32.mrb[0].mxu0
      %v2157 = vpop.f32.mrb[0].mxu0
      %v2158 = vadd.f32 0.0, %v2157
      %v2159 = vpop.f32.mrb[0].mxu0
      %2160 = vmatprep.mubr.bf16.mxu0 0
      %2161 = vmatmul.mubr.bf16.gmra.mrb[0].mxu0 %v2083
      %v2162 = vpop.f32.mrb[0].mxu0
      %v2163 = vadd.f32 0.0, %v2162
      %v2164 = vpop.f32.mrb[0].mxu0
      %v2165 = vpop.f32.mrb[0].mxu0
      %v2166 = vadd.f32 0.0, %v2165
      %v2167 = vpop.f32.mrb[0].mxu0
      %2168 = vmatprep.mubr.bf16.mxu0 0
      %2169 = vmatmul.mubr.bf16.gmra.mrb[0].mxu0 %v2086
      %v2170 = vpop.f32.mrb[0].mxu0
      %v2171 = vadd.f32 0.0, %v2170
      %v2172 = vpop.f32.mrb[0].mxu0
      %v2173 = vpop.f32.mrb[0].mxu0
      %v2174 = vadd.f32 0.0, %v2173
      %v2175 = vpop.f32.mrb[0].mxu0
      %2176 = vdwg.mxu0
      %v2177 = vadd.f32 %v1941, %v2123
      %v2178 = vadd.f32 %v1944, %v2126
      %v2179 = vadd.f32 %v1949, %v2131
      %v2180 = vadd.f32 %v1952, %v2134
      %v2181 = vadd.f32 %v1957, %v2139
      %v2182 = vadd.f32 %v1960, %v2142
      %v2183 = vadd.f32 %v1965, %v2147
      %v2184 = vadd.f32 %v1968, %v2150
      %v2185 = vadd.f32 %v1973, %v2155
      %v2186 = vadd.f32 %v1976, %v2158
      %v2187 = vadd.f32 %v1981, %v2163
      %v2188 = vadd.f32 %v1984, %v2166
      %v2189 = vadd.f32 %v1989, %v2171
      %v2190 = vadd.f32 %v1992, %v2174
      %v2192 = vunpack.c.l.b16 %v482
      %v2193 = vpack.c.b16 %v529, %v528
      %v2194 = vpack.c.b16 %v531, %v530
      %v2195 = vpack.c.b16 %v533, %v532
      %v2196 = vpack.c.b16 %v535, %v534
      %v2197 = vpack.c.b16 %v537, %v536
      %v2198 = vpack.c.b16 %v539, %v538
      %v2199 = vpack.c.b16 %v2192, %v540
      %v2201 = vshrl.u32 %v2193, 16
      %v2203 = vrot.slane %v2201, 1
      %v2204 = vshll.u32 %v2193, 16
      %v2206 = vrot.slane %v2204, 2
      %v2207 = vor.u32 %v2203, %v2206
      %v2209 = vshrl.u32 %v2194, 16
      %v2211 = vrot.slane %v2209, 1
      %v2212 = vshll.u32 %v2194, 16
      %v2214 = vrot.slane %v2212, 2
      %v2215 = vor.u32 %v2211, %v2214
      %v2216 = vsel %vm2004, %v2207, %v2215
      %v2218 = vshrl.u32 %v2195, 16
      %v2220 = vrot.slane %v2218, 1
      %v2221 = vshll.u32 %v2195, 16
      %v2223 = vrot.slane %v2221, 2
      %v2224 = vor.u32 %v2220, %v2223
      %v2225 = vsel %vm2004, %v2215, %v2224
      %v2227 = vshrl.u32 %v2196, 16
      %v2229 = vrot.slane %v2227, 1
      %v2230 = vshll.u32 %v2196, 16
      %v2232 = vrot.slane %v2230, 2
      %v2233 = vor.u32 %v2229, %v2232
      %v2234 = vsel %vm2004, %v2224, %v2233
      %v2236 = vshrl.u32 %v2197, 16
      %v2238 = vrot.slane %v2236, 1
      %v2239 = vshll.u32 %v2197, 16
      %v2241 = vrot.slane %v2239, 2
      %v2242 = vor.u32 %v2238, %v2241
      %v2243 = vsel %vm2004, %v2233, %v2242
      %v2245 = vshrl.u32 %v2198, 16
      %v2247 = vrot.slane %v2245, 1
      %v2248 = vshll.u32 %v2198, 16
      %v2250 = vrot.slane %v2248, 2
      %v2251 = vor.u32 %v2247, %v2250
      %v2252 = vsel %vm2004, %v2242, %v2251
      %v2254 = vshrl.u32 %v2199, 16
      %v2256 = vrot.slane %v2254, 1
      %v2257 = vshll.u32 %v2199, 16
      %v2259 = vrot.slane %v2257, 2
      %v2260 = vor.u32 %v2256, %v2259
      %v2261 = vsel %vm2004, %v2251, %v2260
      %v2263 = vsel %vm572, %v2216, 0
      %v2266 = vsel %vm572, %v2225, 0
      %v2269 = vsel %vm572, %v2234, 0
      %v2272 = vsel %vm572, %v2243, 0
      %v2275 = vsel %vm572, %v2252, 0
      %v2278 = vsel %vm572, %v2261, 0
      %v2281 = vsel %vm572, %v2260, 0
      %2283 = vmatprep.subr.bf16.mxu0 0
      %2284 = vmatpush1.bf16.msra.mxu0 %v1086
      %2285 = vmatprep.subr.bf16.mxu0 0
      %2286 = vmatpush1.bf16.msra.mxu0 %v1087
      %2287 = vmatprep.subr.bf16.mxu0 0
      %2288 = vmatpush1.bf16.msra.mxu0 %v1088
      %2289 = vmatprep.subr.bf16.mxu0 0
      %2290 = vmatpush1.bf16.msra.mxu0 %v1089
      %2291 = vmatprep.subr.bf16.mxu0 0
      %2292 = vmatpush1.bf16.msra.mxu0 0
      %2293 = vmatprep.subr.bf16.mxu0 0
      %2294 = vmatpush1.bf16.msra.mxu0 0
      %2295 = vmatprep.subr.bf16.mxu0 0
      %2296 = vmatpush1.bf16.msra.mxu0 0
      %2297 = vmatprep.subr.bf16.mxu0 0
      %2298 = vmatpush1.bf16.msra.mxu0 0
      %2299 = vmatprep.subr.bf16.mxu0 0
      %2300 = vmatpush1.bf16.msra.mxu0 0
      %2301 = vmatprep.subr.bf16.mxu0 0
      %2302 = vmatpush1.bf16.msra.mxu0 0
      %2303 = vmatprep.subr.bf16.mxu0 0
      %2304 = vmatpush1.bf16.msra.mxu0 0
      %2305 = vmatprep.subr.bf16.mxu0 0
      %2306 = vmatpush1.bf16.msra.mxu0 0
      %2307 = vmatprep.subr.bf16.mxu0 0
      %2308 = vmatpush1.bf16.msra.mxu0 0
      %2309 = vmatprep.subr.bf16.mxu0 0
      %2310 = vmatpush1.bf16.msra.mxu0 0
      %2311 = vmatprep.subr.bf16.mxu0 0
      %2312 = vmatpush1.bf16.msra.mxu0 0
      %2313 = vmatprep.subr.bf16.mxu0 0
      %2314 = vmatpush1.bf16.msra.mxu0 0
      %2315 = vmatprep.mubr.bf16.mxu0 0
      %2316 = vmatmul.mubr.bf16.gmra.mrb[0].mxu0 %v2263
      %v2317 = vpop.f32.mrb[0].mxu0
      %v2318 = vadd.f32 0.0, %v2317
      %v2319 = vpop.f32.mrb[0].mxu0
      %v2320 = vpop.f32.mrb[0].mxu0
      %v2321 = vadd.f32 0.0, %v2320
      %v2322 = vpop.f32.mrb[0].mxu0
      %2323 = vmatprep.mubr.bf16.mxu0 0
      %2324 = vmatmul.mubr.bf16.gmra.mrb[0].mxu0 %v2266
      %v2325 = vpop.f32.mrb[0].mxu0
      %v2326 = vadd.f32 0.0, %v2325
      %v2327 = vpop.f32.mrb[0].mxu0
      %v2328 = vpop.f32.mrb[0].mxu0
      %v2329 = vadd.f32 0.0, %v2328
      %v2330 = vpop.f32.mrb[0].mxu0
      %2331 = vmatprep.mubr.bf16.mxu0 0
      %2332 = vmatmul.mubr.bf16.gmra.mrb[0].mxu0 %v2269
      %v2333 = vpop.f32.mrb[0].mxu0
      %v2334 = vadd.f32 0.0, %v2333
      %v2335 = vpop.f32.mrb[0].mxu0
      %v2336 = vpop.f32.mrb[0].mxu0
      %v2337 = vadd.f32 0.0, %v2336
      %v2338 = vpop.f32.mrb[0].mxu0
      %2339 = vmatprep.mubr.bf16.mxu0 0
      %2340 = vmatmul.mubr.bf16.gmra.mrb[0].mxu0 %v2272
      %v2341 = vpop.f32.mrb[0].mxu0
      %v2342 = vadd.f32 0.0, %v2341
      %v2343 = vpop.f32.mrb[0].mxu0
      %v2344 = vpop.f32.mrb[0].mxu0
      %v2345 = vadd.f32 0.0, %v2344
      %v2346 = vpop.f32.mrb[0].mxu0
      %2347 = vmatprep.mubr.bf16.mxu0 0
      %2348 = vmatmul.mubr.bf16.gmra.mrb[0].mxu0 %v2275
      %v2349 = vpop.f32.mrb[0].mxu0
      %v2350 = vadd.f32 0.0, %v2349
      %v2351 = vpop.f32.mrb[0].mxu0
      %v2352 = vpop.f32.mrb[0].mxu0
      %v2353 = vadd.f32 0.0, %v2352
      %v2354 = vpop.f32.mrb[0].mxu0
      %2355 = vmatprep.mubr.bf16.mxu0 0
      %2356 = vmatmul.mubr.bf16.gmra.mrb[0].mxu0 %v2278
      %v2357 = vpop.f32.mrb[0].mxu0
      %v2358 = vadd.f32 0.0, %v2357
      %v2359 = vpop.f32.mrb[0].mxu0
      %v2360 = vpop.f32.mrb[0].mxu0
      %v2361 = vadd.f32 0.0, %v2360
      %v2362 = vpop.f32.mrb[0].mxu0
      %2363 = vmatprep.mubr.bf16.mxu0 0
      %2364 = vmatmul.mubr.bf16.gmra.mrb[0].mxu0 %v2281
      %v2365 = vpop.f32.mrb[0].mxu0
      %v2366 = vadd.f32 0.0, %v2365
      %v2367 = vpop.f32.mrb[0].mxu0
      %v2368 = vpop.f32.mrb[0].mxu0
      %v2369 = vadd.f32 0.0, %v2368
      %v2370 = vpop.f32.mrb[0].mxu0
      %2371 = vdwg.mxu0
      %v2372 = vadd.f32 %v2177, %v2318
      %v2373 = vadd.f32 %v2178, %v2321
      %v2374 = vadd.f32 %v2179, %v2326
      %v2375 = vadd.f32 %v2180, %v2329
      %v2376 = vadd.f32 %v2181, %v2334
      %v2377 = vadd.f32 %v2182, %v2337
      %v2378 = vadd.f32 %v2183, %v2342
      %v2379 = vadd.f32 %v2184, %v2345
      %v2380 = vadd.f32 %v2185, %v2350
      %v2381 = vadd.f32 %v2186, %v2353
      %v2382 = vadd.f32 %v2187, %v2358
      %v2383 = vadd.f32 %v2188, %v2361
      %v2384 = vadd.f32 %v2189, %v2366
      %v2385 = vadd.f32 %v2190, %v2369
      %v2386 = vadd.f32 %v2372, %v1222
      %v2387 = vadd.f32 %v2373, %v1222
      %v2388 = vadd.f32 %v2374, %v1222
      %v2389 = vadd.f32 %v2375, %v1222
      %v2390 = vadd.f32 %v2376, %v1222
      %v2391 = vadd.f32 %v2377, %v1222
      %v2392 = vadd.f32 %v2378, %v1222
      %v2393 = vadd.f32 %v2379, %v1222
      %v2394 = vadd.f32 %v2380, %v1222
      %v2395 = vadd.f32 %v2381, %v1222
      %v2396 = vadd.f32 %v2382, %v1222
      %v2397 = vadd.f32 %v2383, %v1222
      %v2398 = vadd.f32 %v2384, %v1222
      %v2399 = vadd.f32 %v2385, %v1222
      %v2400 = vmax.f32 %v2386, 0.0
      %v2401 = vmax.f32 %v2387, 0.0
      %v2402 = vmax.f32 %v2388, 0.0
      %v2403 = vmax.f32 %v2389, 0.0
      %v2404 = vmax.f32 %v2390, 0.0
      %v2405 = vmax.f32 %v2391, 0.0
      %v2406 = vmax.f32 %v2392, 0.0
      %v2407 = vmax.f32 %v2393, 0.0
      %v2408 = vmax.f32 %v2394, 0.0
      %v2409 = vmax.f32 %v2395, 0.0
      %v2410 = vmax.f32 %v2396, 0.0
      %v2411 = vmax.f32 %v2397, 0.0
      %v2412 = vmax.f32 %v2398, 0.0
      %v2413 = vmax.f32 %v2399, 0.0
      %v2414 = vpack.c.bf16 %v2401, %v2400
      %v2415 = vpack.c.bf16 %v2403, %v2402
      %v2416 = vpack.c.bf16 %v2405, %v2404
      %v2417 = vpack.c.bf16 %v2407, %v2406
      %v2418 = vpack.c.bf16 %v2409, %v2408
      %v2419 = vpack.c.bf16 %v2411, %v2410
      %v2420 = vpack.c.bf16 %v2413, %v2412
      %2421 = vmatprep.subr.bf16.mxu0 0
      %2422 = vmatpush1.bf16.msra.mxu0 %v564
      %2423 = vmatprep.subr.bf16.mxu0 0
      %2424 = vmatpush1.bf16.msra.mxu0 %v565
      %2425 = vmatprep.subr.bf16.mxu0 0
      %2426 = vmatpush1.bf16.msra.mxu0 %v566
      %2427 = vmatprep.subr.bf16.mxu0 0
      %2428 = vmatpush1.bf16.msra.mxu0 %v567
      %2429 = vmatprep.subr.bf16.mxu0 0
      %2430 = vmatpush1.bf16.msra.mxu0 0
      %2431 = vmatprep.subr.bf16.mxu0 0
      %2432 = vmatpush1.bf16.msra.mxu0 0
      %2433 = vmatprep.subr.bf16.mxu0 0
      %2434 = vmatpush1.bf16.msra.mxu0 0
      %2435 = vmatprep.subr.bf16.mxu0 0
      %2436 = vmatpush1.bf16.msra.mxu0 0
      %2437 = vmatprep.subr.bf16.mxu0 0
      %2438 = vmatpush1.bf16.msra.mxu0 0
      %2439 = vmatprep.subr.bf16.mxu0 0
      %2440 = vmatpush1.bf16.msra.mxu0 0
      %2441 = vmatprep.subr.bf16.mxu0 0
      %2442 = vmatpush1.bf16.msra.mxu0 0
      %2443 = vmatprep.subr.bf16.mxu0 0
      %2444 = vmatpush1.bf16.msra.mxu0 0
      %2445 = vmatprep.subr.bf16.mxu0 0
      %2446 = vmatpush1.bf16.msra.mxu0 0
      %2447 = vmatprep.subr.bf16.mxu0 0
      %2448 = vmatpush1.bf16.msra.mxu0 0
      %2449 = vmatprep.subr.bf16.mxu0 0
      %2450 = vmatpush1.bf16.msra.mxu0 0
      %2451 = vmatprep.subr.bf16.mxu0 0
      %2452 = vmatpush1.bf16.msra.mxu0 0
      %2453 = vmatprep.mubr.bf16.mxu0 0
      %2454 = vmatmul.mubr.bf16.gmra.mrb[0].mxu0 %v1659
      %v2455 = vpop.f32.mrb[0].mxu0
      %v2456 = vadd.f32 0.0, %v2455
      %v2457 = vpop.f32.mrb[0].mxu0
      %v2458 = vpop.f32.mrb[0].mxu0
      %v2459 = vadd.f32 0.0, %v2458
      %v2460 = vpop.f32.mrb[0].mxu0
      %2461 = vmatprep.mubr.bf16.mxu0 0
      %2462 = vmatmul.mubr.bf16.gmra.mrb[0].mxu0 %v1662
      %v2463 = vpop.f32.mrb[0].mxu0
      %v2464 = vadd.f32 0.0, %v2463
      %v2465 = vpop.f32.mrb[0].mxu0
      %v2466 = vpop.f32.mrb[0].mxu0
      %v2467 = vadd.f32 0.0, %v2466
      %v2468 = vpop.f32.mrb[0].mxu0
      %2469 = vmatprep.mubr.bf16.mxu0 0
      %2470 = vmatmul.mubr.bf16.gmra.mrb[0].mxu0 %v1665
      %v2471 = vpop.f32.mrb[0].mxu0
      %v2472 = vadd.f32 0.0, %v2471
      %v2473 = vpop.f32.mrb[0].mxu0
      %v2474 = vpop.f32.mrb[0].mxu0
      %v2475 = vadd.f32 0.0, %v2474
      %v2476 = vpop.f32.mrb[0].mxu0
      %2477 = vmatprep.mubr.bf16.mxu0 0
      %2478 = vmatmul.mubr.bf16.gmra.mrb[0].mxu0 %v1668
      %v2479 = vpop.f32.mrb[0].mxu0
      %v2480 = vadd.f32 0.0, %v2479
      %v2481 = vpop.f32.mrb[0].mxu0
      %v2482 = vpop.f32.mrb[0].mxu0
      %v2483 = vadd.f32 0.0, %v2482
      %v2484 = vpop.f32.mrb[0].mxu0
      %2485 = vmatprep.mubr.bf16.mxu0 0
      %2486 = vmatmul.mubr.bf16.gmra.mrb[0].mxu0 %v1671
      %v2487 = vpop.f32.mrb[0].mxu0
      %v2488 = vadd.f32 0.0, %v2487
      %v2489 = vpop.f32.mrb[0].mxu0
      %v2490 = vpop.f32.mrb[0].mxu0
      %v2491 = vadd.f32 0.0, %v2490
      %v2492 = vpop.f32.mrb[0].mxu0
      %2493 = vmatprep.mubr.bf16.mxu0 0
      %2494 = vmatmul.mubr.bf16.gmra.mrb[0].mxu0 %v1674
      %v2495 = vpop.f32.mrb[0].mxu0
      %v2496 = vadd.f32 0.0, %v2495
      %v2497 = vpop.f32.mrb[0].mxu0
      %v2498 = vpop.f32.mrb[0].mxu0
      %v2499 = vadd.f32 0.0, %v2498
      %v2500 = vpop.f32.mrb[0].mxu0
      %2501 = vmatprep.mubr.bf16.mxu0 0
      %2502 = vmatmul.mubr.bf16.gmra.mrb[0].mxu0 %v1677
      %v2503 = vpop.f32.mrb[0].mxu0
      %v2504 = vadd.f32 0.0, %v2503
      %v2505 = vpop.f32.mrb[0].mxu0
      %v2506 = vpop.f32.mrb[0].mxu0
      %v2507 = vadd.f32 0.0, %v2506
      %v2508 = vpop.f32.mrb[0].mxu0
      %2509 = vdwg.mxu0
      %2510 = vmatprep.subr.bf16.mxu0 0
      %2511 = vmatpush1.bf16.msra.mxu0 %v734
      %2512 = vmatprep.subr.bf16.mxu0 0
      %2513 = vmatpush1.bf16.msra.mxu0 %v735
      %2514 = vmatprep.subr.bf16.mxu0 0
      %2515 = vmatpush1.bf16.msra.mxu0 %v736
      %2516 = vmatprep.subr.bf16.mxu0 0
      %2517 = vmatpush1.bf16.msra.mxu0 %v737
      %2518 = vmatprep.subr.bf16.mxu0 0
      %2519 = vmatpush1.bf16.msra.mxu0 0
      %2520 = vmatprep.subr.bf16.mxu0 0
      %2521 = vmatpush1.bf16.msra.mxu0 0
      %2522 = vmatprep.subr.bf16.mxu0 0
      %2523 = vmatpush1.bf16.msra.mxu0 0
      %2524 = vmatprep.subr.bf16.mxu0 0
      %2525 = vmatpush1.bf16.msra.mxu0 0
      %2526 = vmatprep.subr.bf16.mxu0 0
      %2527 = vmatpush1.bf16.msra.mxu0 0
      %2528 = vmatprep.subr.bf16.mxu0 0
      %2529 = vmatpush1.bf16.msra.mxu0 0
      %2530 = vmatprep.subr.bf16.mxu0 0
      %2531 = vmatpush1.bf16.msra.mxu0 0
      %2532 = vmatprep.subr.bf16.mxu0 0
      %2533 = vmatpush1.bf16.msra.mxu0 0
      %2534 = vmatprep.subr.bf16.mxu0 0
      %2535 = vmatpush1.bf16.msra.mxu0 0
      %2536 = vmatprep.subr.bf16.mxu0 0
      %2537 = vmatpush1.bf16.msra.mxu0 0
      %2538 = vmatprep.subr.bf16.mxu0 0
      %2539 = vmatpush1.bf16.msra.mxu0 0
      %2540 = vmatprep.subr.bf16.mxu0 0
      %2541 = vmatpush1.bf16.msra.mxu0 0
      %2542 = vmatprep.mubr.bf16.mxu0 0
      %2543 = vmatmul.mubr.bf16.gmra.mrb[0].mxu0 %v1095
      %v2544 = vpop.f32.mrb[0].mxu0
      %v2545 = vadd.f32 %v2456, %v2544
      %v2546 = vpop.f32.mrb[0].mxu0
      %v2547 = vpop.f32.mrb[0].mxu0
      %v2548 = vadd.f32 %v2459, %v2547
      %v2549 = vpop.f32.mrb[0].mxu0
      %2550 = vmatprep.mubr.bf16.mxu0 0
      %2551 = vmatmul.mubr.bf16.gmra.mrb[0].mxu0 %v1098
      %v2552 = vpop.f32.mrb[0].mxu0
      %v2553 = vadd.f32 %v2464, %v2552
      %v2554 = vpop.f32.mrb[0].mxu0
      %v2555 = vpop.f32.mrb[0].mxu0
      %v2556 = vadd.f32 %v2467, %v2555
      %v2557 = vpop.f32.mrb[0].mxu0
      %2558 = vmatprep.mubr.bf16.mxu0 0
      %2559 = vmatmul.mubr.bf16.gmra.mrb[0].mxu0 %v1101
      %v2560 = vpop.f32.mrb[0].mxu0
      %v2561 = vadd.f32 %v2472, %v2560
      %v2562 = vpop.f32.mrb[0].mxu0
      %v2563 = vpop.f32.mrb[0].mxu0
      %v2564 = vadd.f32 %v2475, %v2563
      %v2565 = vpop.f32.mrb[0].mxu0
      %2566 = vmatprep.mubr.bf16.mxu0 0
      %2567 = vmatmul.mubr.bf16.gmra.mrb[0].mxu0 %v1104
      %v2568 = vpop.f32.mrb[0].mxu0
      %v2569 = vadd.f32 %v2480, %v2568
      %v2570 = vpop.f32.mrb[0].mxu0
      %v2571 = vpop.f32.mrb[0].mxu0
      %v2572 = vadd.f32 %v2483, %v2571
      %v2573 = vpop.f32.mrb[0].mxu0
      %2574 = vmatprep.mubr.bf16.mxu0 0
      %2575 = vmatmul.mubr.bf16.gmra.mrb[0].mxu0 %v1107
      %v2576 = vpop.f32.mrb[0].mxu0
      %v2577 = vadd.f32 %v2488, %v2576
      %v2578 = vpop.f32.mrb[0].mxu0
      %v2579 = vpop.f32.mrb[0].mxu0
      %v2580 = vadd.f32 %v2491, %v2579
      %v2581 = vpop.f32.mrb[0].mxu0
      %2582 = vmatprep.mubr.bf16.mxu0 0
      %2583 = vmatmul.mubr.bf16.gmra.mrb[0].mxu0 %v1110
      %v2584 = vpop.f32.mrb[0].mxu0
      %v2585 = vadd.f32 %v2496, %v2584
      %v2586 = vpop.f32.mrb[0].mxu0
      %v2587 = vpop.f32.mrb[0].mxu0
      %v2588 = vadd.f32 %v2499, %v2587
      %v2589 = vpop.f32.mrb[0].mxu0
      %2590 = vmatprep.mubr.bf16.mxu0 0
      %2591 = vmatmul.mubr.bf16.gmra.mrb[0].mxu0 %v1113
      %v2592 = vpop.f32.mrb[0].mxu0
      %v2593 = vadd.f32 %v2504, %v2592
      %v2594 = vpop.f32.mrb[0].mxu0
      %v2595 = vpop.f32.mrb[0].mxu0
      %v2596 = vadd.f32 %v2507, %v2595
      %v2597 = vpop.f32.mrb[0].mxu0
      %2598 = vdwg.mxu0
      %2599 = vmatprep.subr.bf16.mxu0 0
      %2600 = vmatpush1.bf16.msra.mxu0 %v903
      %2601 = vmatprep.subr.bf16.mxu0 0
      %2602 = vmatpush1.bf16.msra.mxu0 %v904
      %2603 = vmatprep.subr.bf16.mxu0 0
      %2604 = vmatpush1.bf16.msra.mxu0 %v905
      %2605 = vmatprep.subr.bf16.mxu0 0
      %2606 = vmatpush1.bf16.msra.mxu0 %v906
      %2607 = vmatprep.subr.bf16.mxu0 0
      %2608 = vmatpush1.bf16.msra.mxu0 0
      %2609 = vmatprep.subr.bf16.mxu0 0
      %2610 = vmatpush1.bf16.msra.mxu0 0
      %2611 = vmatprep.subr.bf16.mxu0 0
      %2612 = vmatpush1.bf16.msra.mxu0 0
      %2613 = vmatprep.subr.bf16.mxu0 0
      %2614 = vmatpush1.bf16.msra.mxu0 0
      %2615 = vmatprep.subr.bf16.mxu0 0
      %2616 = vmatpush1.bf16.msra.mxu0 0
      %2617 = vmatprep.subr.bf16.mxu0 0
      %2618 = vmatpush1.bf16.msra.mxu0 0
      %2619 = vmatprep.subr.bf16.mxu0 0
      %2620 = vmatpush1.bf16.msra.mxu0 0
      %2621 = vmatprep.subr.bf16.mxu0 0
      %2622 = vmatpush1.bf16.msra.mxu0 0
      %2623 = vmatprep.subr.bf16.mxu0 0
      %2624 = vmatpush1.bf16.msra.mxu0 0
      %2625 = vmatprep.subr.bf16.mxu0 0
      %2626 = vmatpush1.bf16.msra.mxu0 0
      %2627 = vmatprep.subr.bf16.mxu0 0
      %2628 = vmatpush1.bf16.msra.mxu0 0
      %2629 = vmatprep.subr.bf16.mxu0 0
      %2630 = vmatpush1.bf16.msra.mxu0 0
      %2631 = vmatprep.mubr.bf16.mxu0 0
      %2632 = vmatmul.mubr.bf16.gmra.mrb[0].mxu0 %v2263
      %v2633 = vpop.f32.mrb[0].mxu0
      %v2634 = vadd.f32 0.0, %v2633
      %v2635 = vpop.f32.mrb[0].mxu0
      %v2636 = vpop.f32.mrb[0].mxu0
      %v2637 = vadd.f32 0.0, %v2636
      %v2638 = vpop.f32.mrb[0].mxu0
      %2639 = vmatprep.mubr.bf16.mxu0 0
      %2640 = vmatmul.mubr.bf16.gmra.mrb[0].mxu0 %v2266
      %v2641 = vpop.f32.mrb[0].mxu0
      %v2642 = vadd.f32 0.0, %v2641
      %v2643 = vpop.f32.mrb[0].mxu0
      %v2644 = vpop.f32.mrb[0].mxu0
      %v2645 = vadd.f32 0.0, %v2644
      %v2646 = vpop.f32.mrb[0].mxu0
      %2647 = vmatprep.mubr.bf16.mxu0 0
      %2648 = vmatmul.mubr.bf16.gmra.mrb[0].mxu0 %v2269
      %v2649 = vpop.f32.mrb[0].mxu0
      %v2650 = vadd.f32 0.0, %v2649
      %v2651 = vpop.f32.mrb[0].mxu0
      %v2652 = vpop.f32.mrb[0].mxu0
      %v2653 = vadd.f32 0.0, %v2652
      %v2654 = vpop.f32.mrb[0].mxu0
      %2655 = vmatprep.mubr.bf16.mxu0 0
      %2656 = vmatmul.mubr.bf16.gmra.mrb[0].mxu0 %v2272
      %v2657 = vpop.f32.mrb[0].mxu0
      %v2658 = vadd.f32 0.0, %v2657
      %v2659 = vpop.f32.mrb[0].mxu0
      %v2660 = vpop.f32.mrb[0].mxu0
      %v2661 = vadd.f32 0.0, %v2660
      %v2662 = vpop.f32.mrb[0].mxu0
      %2663 = vmatprep.mubr.bf16.mxu0 0
      %2664 = vmatmul.mubr.bf16.gmra.mrb[0].mxu0 %v2275
      %v2665 = vpop.f32.mrb[0].mxu0
      %v2666 = vadd.f32 0.0, %v2665
      %v2667 = vpop.f32.mrb[0].mxu0
      %v2668 = vpop.f32.mrb[0].mxu0
      %v2669 = vadd.f32 0.0, %v2668
      %v2670 = vpop.f32.mrb[0].mxu0
      %2671 = vmatprep.mubr.bf16.mxu0 0
      %2672 = vmatmul.mubr.bf16.gmra.mrb[0].mxu0 %v2278
      %v2673 = vpop.f32.mrb[0].mxu0
      %v2674 = vadd.f32 0.0, %v2673
      %v2675 = vpop.f32.mrb[0].mxu0
      %v2676 = vpop.f32.mrb[0].mxu0
      %v2677 = vadd.f32 0.0, %v2676
      %v2678 = vpop.f32.mrb[0].mxu0
      %2679 = vmatprep.mubr.bf16.mxu0 0
      %2680 = vmatmul.mubr.bf16.gmra.mrb[0].mxu0 %v2281
      %v2681 = vpop.f32.mrb[0].mxu0
      %v2682 = vadd.f32 0.0, %v2681
      %v2683 = vpop.f32.mrb[0].mxu0
      %v2684 = vpop.f32.mrb[0].mxu0
      %v2685 = vadd.f32 0.0, %v2684
      %v2686 = vpop.f32.mrb[0].mxu0
      %2687 = vdwg.mxu0
      %v2688 = vadd.f32 %v2545, %v2634
      %v2689 = vadd.f32 %v2548, %v2637
      %v2690 = vadd.f32 %v2553, %v2642
      %v2691 = vadd.f32 %v2556, %v2645
      %v2692 = vadd.f32 %v2561, %v2650
      %v2693 = vadd.f32 %v2564, %v2653
      %v2694 = vadd.f32 %v2569, %v2658
      %v2695 = vadd.f32 %v2572, %v2661
      %v2696 = vadd.f32 %v2577, %v2666
      %v2697 = vadd.f32 %v2580, %v2669
      %v2698 = vadd.f32 %v2585, %v2674
      %v2699 = vadd.f32 %v2588, %v2677
      %v2700 = vadd.f32 %v2593, %v2682
      %v2701 = vadd.f32 %v2596, %v2685
      %v2703 = vunpack.c.l.b16 %v466
      %v2704 = vpack.c.b16 %v2703, %v2703
      %vm2705 = vcmask 1045504
      %v2706 = vrot.slane %v1997, 2
      %v2707 = vrot.slane %v1998, 2
      %v2708 = vsel %vm2705, %v2706, %v2707
      %v2709 = vrot.slane %v1999, 2
      %v2710 = vsel %vm2705, %v2707, %v2709
      %v2711 = vrot.slane %v2000, 2
      %v2712 = vsel %vm2705, %v2709, %v2711
      %v2713 = vrot.slane %v2001, 2
      %v2714 = vsel %vm2705, %v2711, %v2713
      %v2715 = vrot.slane %v2002, 2
      %v2716 = vsel %vm2705, %v2713, %v2715
      %v2717 = vrot.slane %v2003, 2
      %v2718 = vsel %vm2705, %v2715, %v2717
      %v2719 = vrot.slane %v2704, 2
      %v2720 = vsel %vm2705, %v2717, %v2719
      %v2722 = vsel %vm572, %v2708, 0
      %v2725 = vsel %vm572, %v2710, 0
      %v2728 = vsel %vm572, %v2712, 0
      %v2731 = vsel %vm572, %v2714, 0
      %v2734 = vsel %vm572, %v2716, 0
      %v2737 = vsel %vm572, %v2718, 0
      %v2740 = vsel %vm572, %v2720, 0
      %2742 = vmatprep.subr.bf16.mxu0 0
      %2743 = vmatpush1.bf16.msra.mxu0 %v1086
      %2744 = vmatprep.subr.bf16.mxu0 0
      %2745 = vmatpush1.bf16.msra.mxu0 %v1087
      %2746 = vmatprep.subr.bf16.mxu0 0
      %2747 = vmatpush1.bf16.msra.mxu0 %v1088
      %2748 = vmatprep.subr.bf16.mxu0 0
      %2749 = vmatpush1.bf16.msra.mxu0 %v1089
      %2750 = vmatprep.subr.bf16.mxu0 0
      %2751 = vmatpush1.bf16.msra.mxu0 0
      %2752 = vmatprep.subr.bf16.mxu0 0
      %2753 = vmatpush1.bf16.msra.mxu0 0
      %2754 = vmatprep.subr.bf16.mxu0 0
      %2755 = vmatpush1.bf16.msra.mxu0 0
      %2756 = vmatprep.subr.bf16.mxu0 0
      %2757 = vmatpush1.bf16.msra.mxu0 0
      %2758 = vmatprep.subr.bf16.mxu0 0
      %2759 = vmatpush1.bf16.msra.mxu0 0
      %2760 = vmatprep.subr.bf16.mxu0 0
      %2761 = vmatpush1.bf16.msra.mxu0 0
      %2762 = vmatprep.subr.bf16.mxu0 0
      %2763 = vmatpush1.bf16.msra.mxu0 0
      %2764 = vmatprep.subr.bf16.mxu0 0
      %2765 = vmatpush1.bf16.msra.mxu0 0
      %2766 = vmatprep.subr.bf16.mxu0 0
      %2767 = vmatpush1.bf16.msra.mxu0 0
      %2768 = vmatprep.subr.bf16.mxu0 0
      %2769 = vmatpush1.bf16.msra.mxu0 0
      %2770 = vmatprep.subr.bf16.mxu0 0
      %2771 = vmatpush1.bf16.msra.mxu0 0
      %2772 = vmatprep.subr.bf16.mxu0 0
      %2773 = vmatpush1.bf16.msra.mxu0 0
      %2774 = vmatprep.mubr.bf16.mxu0 0
      %2775 = vmatmul.mubr.bf16.gmra.mrb[0].mxu0 %v2722
      %v2776 = vpop.f32.mrb[0].mxu0
      %v2777 = vadd.f32 0.0, %v2776
      %v2778 = vpop.f32.mrb[0].mxu0
      %v2779 = vpop.f32.mrb[0].mxu0
      %v2780 = vadd.f32 0.0, %v2779
      %v2781 = vpop.f32.mrb[0].mxu0
      %2782 = vmatprep.mubr.bf16.mxu0 0
      %2783 = vmatmul.mubr.bf16.gmra.mrb[0].mxu0 %v2725
      %v2784 = vpop.f32.mrb[0].mxu0
      %v2785 = vadd.f32 0.0, %v2784
      %v2786 = vpop.f32.mrb[0].mxu0
      %v2787 = vpop.f32.mrb[0].mxu0
      %v2788 = vadd.f32 0.0, %v2787
      %v2789 = vpop.f32.mrb[0].mxu0
      %2790 = vmatprep.mubr.bf16.mxu0 0
      %2791 = vmatmul.mubr.bf16.gmra.mrb[0].mxu0 %v2728
      %v2792 = vpop.f32.mrb[0].mxu0
      %v2793 = vadd.f32 0.0, %v2792
      %v2794 = vpop.f32.mrb[0].mxu0
      %v2795 = vpop.f32.mrb[0].mxu0
      %v2796 = vadd.f32 0.0, %v2795
      %v2797 = vpop.f32.mrb[0].mxu0
      %2798 = vmatprep.mubr.bf16.mxu0 0
      %2799 = vmatmul.mubr.bf16.gmra.mrb[0].mxu0 %v2731
      %v2800 = vpop.f32.mrb[0].mxu0
      %v2801 = vadd.f32 0.0, %v2800
      %v2802 = vpop.f32.mrb[0].mxu0
      %v2803 = vpop.f32.mrb[0].mxu0
      %v2804 = vadd.f32 0.0, %v2803
      %v2805 = vpop.f32.mrb[0].mxu0
      %2806 = vmatprep.mubr.bf16.mxu0 0
      %2807 = vmatmul.mubr.bf16.gmra.mrb[0].mxu0 %v2734
      %v2808 = vpop.f32.mrb[0].mxu0
      %v2809 = vadd.f32 0.0, %v2808
      %v2810 = vpop.f32.mrb[0].mxu0
      %v2811 = vpop.f32.mrb[0].mxu0
      %v2812 = vadd.f32 0.0, %v2811
      %v2813 = vpop.f32.mrb[0].mxu0
      %2814 = vmatprep.mubr.bf16.mxu0 0
      %2815 = vmatmul.mubr.bf16.gmra.mrb[0].mxu0 %v2737
      %v2816 = vpop.f32.mrb[0].mxu0
      %v2817 = vadd.f32 0.0, %v2816
      %v2818 = vpop.f32.mrb[0].mxu0
      %v2819 = vpop.f32.mrb[0].mxu0
      %v2820 = vadd.f32 0.0, %v2819
      %v2821 = vpop.f32.mrb[0].mxu0
      %2822 = vmatprep.mubr.bf16.mxu0 0
      %2823 = vmatmul.mubr.bf16.gmra.mrb[0].mxu0 %v2740
      %v2824 = vpop.f32.mrb[0].mxu0
      %v2825 = vadd.f32 0.0, %v2824
      %v2826 = vpop.f32.mrb[0].mxu0
      %v2827 = vpop.f32.mrb[0].mxu0
      %v2828 = vadd.f32 0.0, %v2827
      %v2829 = vpop.f32.mrb[0].mxu0
      %2830 = vdwg.mxu0
      %v2831 = vadd.f32 %v2688, %v2777
      %v2832 = vadd.f32 %v2689, %v2780
      %v2833 = vadd.f32 %v2690, %v2785
      %v2834 = vadd.f32 %v2691, %v2788
      %v2835 = vadd.f32 %v2692, %v2793
      %v2836 = vadd.f32 %v2693, %v2796
      %v2837 = vadd.f32 %v2694, %v2801
      %v2838 = vadd.f32 %v2695, %v2804
      %v2839 = vadd.f32 %v2696, %v2809
      %v2840 = vadd.f32 %v2697, %v2812
      %v2841 = vadd.f32 %v2698, %v2817
      %v2842 = vadd.f32 %v2699, %v2820
      %v2843 = vadd.f32 %v2700, %v2825
      %v2844 = vadd.f32 %v2701, %v2828
      %v2845 = vadd.f32 %v2831, %v1222
      %v2846 = vadd.f32 %v2832, %v1222
      %v2847 = vadd.f32 %v2833, %v1222
      %v2848 = vadd.f32 %v2834, %v1222
      %v2849 = vadd.f32 %v2835, %v1222
      %v2850 = vadd.f32 %v2836, %v1222
      %v2851 = vadd.f32 %v2837, %v1222
      %v2852 = vadd.f32 %v2838, %v1222
      %v2853 = vadd.f32 %v2839, %v1222
      %v2854 = vadd.f32 %v2840, %v1222
      %v2855 = vadd.f32 %v2841, %v1222
      %v2856 = vadd.f32 %v2842, %v1222
      %v2857 = vadd.f32 %v2843, %v1222
      %v2858 = vadd.f32 %v2844, %v1222
      %v2859 = vmax.f32 %v2845, 0.0
      %v2860 = vmax.f32 %v2846, 0.0
      %v2861 = vmax.f32 %v2847, 0.0
      %v2862 = vmax.f32 %v2848, 0.0
      %v2863 = vmax.f32 %v2849, 0.0
      %v2864 = vmax.f32 %v2850, 0.0
      %v2865 = vmax.f32 %v2851, 0.0
      %v2866 = vmax.f32 %v2852, 0.0
      %v2867 = vmax.f32 %v2853, 0.0
      %v2868 = vmax.f32 %v2854, 0.0
      %v2869 = vmax.f32 %v2855, 0.0
      %v2870 = vmax.f32 %v2856, 0.0
      %v2871 = vmax.f32 %v2857, 0.0
      %v2872 = vmax.f32 %v2858, 0.0
      %v2873 = vpack.c.bf16 %v2860, %v2859
      %v2874 = vpack.c.bf16 %v2862, %v2861
      %v2875 = vpack.c.bf16 %v2864, %v2863
      %v2876 = vpack.c.bf16 %v2866, %v2865
      %v2877 = vpack.c.bf16 %v2868, %v2867
      %v2878 = vpack.c.bf16 %v2870, %v2869
      %v2879 = vpack.c.bf16 %v2872, %v2871
      %v2884 = vunpack.c.l.b16 %v316
      %v2885 = vunpack.c.l.b16 %v317
      %v2886 = vunpack.c.l.b16 %v318
      %v2887 = vunpack.c.l.b16 %v319
      %v2888 = vpack.c.b16 %v2885, %v2884
      %v2889 = vpack.c.b16 %v2887, %v2886
      %vm2892 = vcmask 261120
      %v2894 = vsel %vm2892, %v1810, 0
      %v2897 = vsel %vm2892, %v1811, 0
      %v2900 = vsel %vm2892, %v1812, 0
      %v2903 = vsel %vm2892, %v1813, 0
      %v2906 = vsel %vm2892, %v1814, 0
      %v2909 = vsel %vm2892, %v1815, 0
      %v2912 = vsel %vm2892, %v1816, 0
      %2914 = vmatprep.subr.bf16.mxu0 0
      %2915 = vmatpush1.bf16.msra.mxu0 %v2888
      %2916 = vmatprep.subr.bf16.mxu0 0
      %2917 = vmatpush1.bf16.msra.mxu0 %v2889
      %2918 = vmatprep.subr.bf16.mxu0 0
      %2919 = vmatpush1.bf16.msra.mxu0 0
      %2920 = vmatprep.subr.bf16.mxu0 0
      %2921 = vmatpush1.bf16.msra.mxu0 0
      %2922 = vmatprep.subr.bf16.mxu0 0
      %2923 = vmatpush1.bf16.msra.mxu0 0
      %2924 = vmatprep.subr.bf16.mxu0 0
      %2925 = vmatpush1.bf16.msra.mxu0 0
      %2926 = vmatprep.subr.bf16.mxu0 0
      %2927 = vmatpush1.bf16.msra.mxu0 0
      %2928 = vmatprep.subr.bf16.mxu0 0
      %2929 = vmatpush1.bf16.msra.mxu0 0
      %2930 = vmatprep.subr.bf16.mxu0 0
      %2931 = vmatpush1.bf16.msra.mxu0 0
      %2932 = vmatprep.subr.bf16.mxu0 0
      %2933 = vmatpush1.bf16.msra.mxu0 0
      %2934 = vmatprep.subr.bf16.mxu0 0
      %2935 = vmatpush1.bf16.msra.mxu0 0
      %2936 = vmatprep.subr.bf16.mxu0 0
      %2937 = vmatpush1.bf16.msra.mxu0 0
      %2938 = vmatprep.subr.bf16.mxu0 0
      %2939 = vmatpush1.bf16.msra.mxu0 0
      %2940 = vmatprep.subr.bf16.mxu0 0
      %2941 = vmatpush1.bf16.msra.mxu0 0
      %2942 = vmatprep.subr.bf16.mxu0 0
      %2943 = vmatpush1.bf16.msra.mxu0 0
      %2944 = vmatprep.subr.bf16.mxu0 0
      %2945 = vmatpush1.bf16.msra.mxu0 0
      %2946 = vmatprep.mubr.bf16.mxu0 0
      %2947 = vmatmul.mubr.bf16.gmra.mrb[0].mxu0 %v2894
      %v2948 = vpop.f32.mrb[0].mxu0
      %v2949 = vadd.f32 0.0, %v2948
      %v2950 = vpop.f32.mrb[0].mxu0
      %v2951 = vpop.f32.mrb[0].mxu0
      %v2952 = vadd.f32 0.0, %v2951
      %v2953 = vpop.f32.mrb[0].mxu0
      %2954 = vmatprep.mubr.bf16.mxu0 0
      %2955 = vmatmul.mubr.bf16.gmra.mrb[0].mxu0 %v2897
      %v2956 = vpop.f32.mrb[0].mxu0
      %v2957 = vadd.f32 0.0, %v2956
      %v2958 = vpop.f32.mrb[0].mxu0
      %v2959 = vpop.f32.mrb[0].mxu0
      %v2960 = vadd.f32 0.0, %v2959
      %v2961 = vpop.f32.mrb[0].mxu0
      %2962 = vmatprep.mubr.bf16.mxu0 0
      %2963 = vmatmul.mubr.bf16.gmra.mrb[0].mxu0 %v2900
      %v2964 = vpop.f32.mrb[0].mxu0
      %v2965 = vadd.f32 0.0, %v2964
      %v2966 = vpop.f32.mrb[0].mxu0
      %v2967 = vpop.f32.mrb[0].mxu0
      %v2968 = vadd.f32 0.0, %v2967
      %v2969 = vpop.f32.mrb[0].mxu0
      %2970 = vmatprep.mubr.bf16.mxu0 0
      %2971 = vmatmul.mubr.bf16.gmra.mrb[0].mxu0 %v2903
      %v2972 = vpop.f32.mrb[0].mxu0
      %v2973 = vadd.f32 0.0, %v2972
      %v2974 = vpop.f32.mrb[0].mxu0
      %v2975 = vpop.f32.mrb[0].mxu0
      %v2976 = vadd.f32 0.0, %v2975
      %v2977 = vpop.f32.mrb[0].mxu0
      %2978 = vmatprep.mubr.bf16.mxu0 0
      %2979 = vmatmul.mubr.bf16.gmra.mrb[0].mxu0 %v2906
      %v2980 = vpop.f32.mrb[0].mxu0
      %v2981 = vadd.f32 0.0, %v2980
      %v2982 = vpop.f32.mrb[0].mxu0
      %v2983 = vpop.f32.mrb[0].mxu0
      %v2984 = vadd.f32 0.0, %v2983
      %v2985 = vpop.f32.mrb[0].mxu0
      %2986 = vmatprep.mubr.bf16.mxu0 0
      %2987 = vmatmul.mubr.bf16.gmra.mrb[0].mxu0 %v2909
      %v2988 = vpop.f32.mrb[0].mxu0
      %v2989 = vadd.f32 0.0, %v2988
      %v2990 = vpop.f32.mrb[0].mxu0
      %v2991 = vpop.f32.mrb[0].mxu0
      %v2992 = vadd.f32 0.0, %v2991
      %v2993 = vpop.f32.mrb[0].mxu0
      %2994 = vmatprep.mubr.bf16.mxu0 0
      %2995 = vmatmul.mubr.bf16.gmra.mrb[0].mxu0 %v2912
      %v2996 = vpop.f32.mrb[0].mxu0
      %v2997 = vadd.f32 0.0, %v2996
      %v2998 = vpop.f32.mrb[0].mxu0
      %v2999 = vpop.f32.mrb[0].mxu0
      %v3000 = vpop.f32.mrb[0].mxu0
      %3001 = vdwg.mxu0
      %v3006 = vunpack.c.l.b16 %v312
      %v3007 = vunpack.c.l.b16 %v313
      %v3008 = vunpack.c.l.b16 %v314
      %v3009 = vunpack.c.l.b16 %v315
      %v3010 = vpack.c.b16 %v3007, %v3006
      %v3011 = vpack.c.b16 %v3009, %v3008
      %v3015 = vsel %vm2892, %v1252, 0
      %v3018 = vsel %vm2892, %v1253, 0
      %v3021 = vsel %vm2892, %v1254, 0
      %v3024 = vsel %vm2892, %v1255, 0
      %v3027 = vsel %vm2892, %v1256, 0
      %v3030 = vsel %vm2892, %v1257, 0
      %v3033 = vsel %vm2892, %v1258, 0
      %3035 = vmatprep.subr.bf16.mxu0 0
      %3036 = vmatpush1.bf16.msra.mxu0 %v3010
      %3037 = vmatprep.subr.bf16.mxu0 0
      %3038 = vmatpush1.bf16.msra.mxu0 %v3011
      %3039 = vmatprep.subr.bf16.mxu0 0
      %3040 = vmatpush1.bf16.msra.mxu0 0
      %3041 = vmatprep.subr.bf16.mxu0 0
      %3042 = vmatpush1.bf16.msra.mxu0 0
      %3043 = vmatprep.subr.bf16.mxu0 0
      %3044 = vmatpush1.bf16.msra.mxu0 0
      %3045 = vmatprep.subr.bf16.mxu0 0
      %3046 = vmatpush1.bf16.msra.mxu0 0
      %3047 = vmatprep.subr.bf16.mxu0 0
      %3048 = vmatpush1.bf16.msra.mxu0 0
      %3049 = vmatprep.subr.bf16.mxu0 0
      %3050 = vmatpush1.bf16.msra.mxu0 0
      %3051 = vmatprep.subr.bf16.mxu0 0
      %3052 = vmatpush1.bf16.msra.mxu0 0
      %3053 = vmatprep.subr.bf16.mxu0 0
      %3054 = vmatpush1.bf16.msra.mxu0 0
      %3055 = vmatprep.subr.bf16.mxu0 0
      %3056 = vmatpush1.bf16.msra.mxu0 0
      %3057 = vmatprep.subr.bf16.mxu0 0
      %3058 = vmatpush1.bf16.msra.mxu0 0
      %3059 = vmatprep.subr.bf16.mxu0 0
      %3060 = vmatpush1.bf16.msra.mxu0 0
      %3061 = vmatprep.subr.bf16.mxu0 0
      %3062 = vmatpush1.bf16.msra.mxu0 0
      %3063 = vmatprep.subr.bf16.mxu0 0
      %3064 = vmatpush1.bf16.msra.mxu0 0
      %3065 = vmatprep.subr.bf16.mxu0 0
      %3066 = vmatpush1.bf16.msra.mxu0 0
      %3067 = vmatprep.mubr.bf16.mxu0 0
      %3068 = vmatmul.mubr.bf16.gmra.mrb[0].mxu0 %v3015
      %v3069 = vpop.f32.mrb[0].mxu0
      %v3070 = vadd.f32 %v2949, %v3069
      %v3071 = vpop.f32.mrb[0].mxu0
      %v3072 = vpop.f32.mrb[0].mxu0
      %v3073 = vadd.f32 %v2952, %v3072
      %v3074 = vpop.f32.mrb[0].mxu0
      %3075 = vmatprep.mubr.bf16.mxu0 0
      %3076 = vmatmul.mubr.bf16.gmra.mrb[0].mxu0 %v3018
      %v3077 = vpop.f32.mrb[0].mxu0
      %v3078 = vadd.f32 %v2957, %v3077
      %v3079 = vpop.f32.mrb[0].mxu0
      %v3080 = vpop.f32.mrb[0].mxu0
      %v3081 = vadd.f32 %v2960, %v3080
      %v3082 = vpop.f32.mrb[0].mxu0
      %3083 = vmatprep.mubr.bf16.mxu0 0
      %3084 = vmatmul.mubr.bf16.gmra.mrb[0].mxu0 %v3021
      %v3085 = vpop.f32.mrb[0].mxu0
      %v3086 = vadd.f32 %v2965, %v3085
      %v3087 = vpop.f32.mrb[0].mxu0
      %v3088 = vpop.f32.mrb[0].mxu0
      %v3089 = vadd.f32 %v2968, %v3088
      %v3090 = vpop.f32.mrb[0].mxu0
      %3091 = vmatprep.mubr.bf16.mxu0 0
      %3092 = vmatmul.mubr.bf16.gmra.mrb[0].mxu0 %v3024
      %v3093 = vpop.f32.mrb[0].mxu0
      %v3094 = vadd.f32 %v2973, %v3093
      %v3095 = vpop.f32.mrb[0].mxu0
      %v3096 = vpop.f32.mrb[0].mxu0
      %v3097 = vadd.f32 %v2976, %v3096
      %v3098 = vpop.f32.mrb[0].mxu0
      %3099 = vmatprep.mubr.bf16.mxu0 0
      %3100 = vmatmul.mubr.bf16.gmra.mrb[0].mxu0 %v3027
      %v3101 = vpop.f32.mrb[0].mxu0
      %v3102 = vadd.f32 %v2981, %v3101
      %v3103 = vpop.f32.mrb[0].mxu0
      %v3104 = vpop.f32.mrb[0].mxu0
      %v3105 = vadd.f32 %v2984, %v3104
      %v3106 = vpop.f32.mrb[0].mxu0
      %3107 = vmatprep.mubr.bf16.mxu0 0
      %3108 = vmatmul.mubr.bf16.gmra.mrb[0].mxu0 %v3030
      %v3109 = vpop.f32.mrb[0].mxu0
      %v3110 = vadd.f32 %v2989, %v3109
      %v3111 = vpop.f32.mrb[0].mxu0
      %v3112 = vpop.f32.mrb[0].mxu0
      %v3113 = vadd.f32 %v2992, %v3112
      %v3114 = vpop.f32.mrb[0].mxu0
      %3115 = vmatprep.mubr.bf16.mxu0 0
      %3116 = vmatmul.mubr.bf16.gmra.mrb[0].mxu0 %v3033
      %v3117 = vpop.f32.mrb[0].mxu0
      %v3118 = vadd.f32 %v2997, %v3117
      %v3119 = vpop.f32.mrb[0].mxu0
      %v3120 = vpop.f32.mrb[0].mxu0
      %v3121 = vpop.f32.mrb[0].mxu0
      %3122 = vdwg.mxu0
      %v3127 = vunpack.c.l.b16 %v320
      %v3128 = vunpack.c.l.b16 %v321
      %v3129 = vunpack.c.l.b16 %v322
      %v3130 = vunpack.c.l.b16 %v323
      %v3131 = vpack.c.b16 %v3128, %v3127
      %v3132 = vpack.c.b16 %v3130, %v3129
      %v3136 = vsel %vm2892, %v2414, 0
      %v3139 = vsel %vm2892, %v2415, 0
      %v3142 = vsel %vm2892, %v2416, 0
      %v3145 = vsel %vm2892, %v2417, 0
      %v3148 = vsel %vm2892, %v2418, 0
      %v3151 = vsel %vm2892, %v2419, 0
      %v3154 = vsel %vm2892, %v2420, 0
      %3156 = vmatprep.subr.bf16.mxu0 0
      %3157 = vmatpush1.bf16.msra.mxu0 %v3131
      %3158 = vmatprep.subr.bf16.mxu0 0
      %3159 = vmatpush1.bf16.msra.mxu0 %v3132
      %3160 = vmatprep.subr.bf16.mxu0 0
      %3161 = vmatpush1.bf16.msra.mxu0 0
      %3162 = vmatprep.subr.bf16.mxu0 0
      %3163 = vmatpush1.bf16.msra.mxu0 0
      %3164 = vmatprep.subr.bf16.mxu0 0
      %3165 = vmatpush1.bf16.msra.mxu0 0
      %3166 = vmatprep.subr.bf16.mxu0 0
      %3167 = vmatpush1.bf16.msra.mxu0 0
      %3168 = vmatprep.subr.bf16.mxu0 0
      %3169 = vmatpush1.bf16.msra.mxu0 0
      %3170 = vmatprep.subr.bf16.mxu0 0
      %3171 = vmatpush1.bf16.msra.mxu0 0
      %3172 = vmatprep.subr.bf16.mxu0 0
      %3173 = vmatpush1.bf16.msra.mxu0 0
      %3174 = vmatprep.subr.bf16.mxu0 0
      %3175 = vmatpush1.bf16.msra.mxu0 0
      %3176 = vmatprep.subr.bf16.mxu0 0
      %3177 = vmatpush1.bf16.msra.mxu0 0
      %3178 = vmatprep.subr.bf16.mxu0 0
      %3179 = vmatpush1.bf16.msra.mxu0 0
      %3180 = vmatprep.subr.bf16.mxu0 0
      %3181 = vmatpush1.bf16.msra.mxu0 0
      %3182 = vmatprep.subr.bf16.mxu0 0
      %3183 = vmatpush1.bf16.msra.mxu0 0
      %3184 = vmatprep.subr.bf16.mxu0 0
      %3185 = vmatpush1.bf16.msra.mxu0 0
      %3186 = vmatprep.subr.bf16.mxu0 0
      %3187 = vmatpush1.bf16.msra.mxu0 0
      %3188 = vmatprep.mubr.bf16.mxu0 0
      %3189 = vmatmul.mubr.bf16.gmra.mrb[0].mxu0 %v3136
      %v3190 = vpop.f32.mrb[0].mxu0
      %v3191 = vadd.f32 0.0, %v3190
      %v3192 = vpop.f32.mrb[0].mxu0
      %v3193 = vpop.f32.mrb[0].mxu0
      %v3194 = vadd.f32 0.0, %v3193
      %v3195 = vpop.f32.mrb[0].mxu0
      %3196 = vmatprep.mubr.bf16.mxu0 0
      %3197 = vmatmul.mubr.bf16.gmra.mrb[0].mxu0 %v3139
      %v3198 = vpop.f32.mrb[0].mxu0
      %v3199 = vadd.f32 0.0, %v3198
      %v3200 = vpop.f32.mrb[0].mxu0
      %v3201 = vpop.f32.mrb[0].mxu0
      %v3202 = vadd.f32 0.0, %v3201
      %v3203 = vpop.f32.mrb[0].mxu0
      %3204 = vmatprep.mubr.bf16.mxu0 0
      %3205 = vmatmul.mubr.bf16.gmra.mrb[0].mxu0 %v3142
      %v3206 = vpop.f32.mrb[0].mxu0
      %v3207 = vadd.f32 0.0, %v3206
      %v3208 = vpop.f32.mrb[0].mxu0
      %v3209 = vpop.f32.mrb[0].mxu0
      %v3210 = vadd.f32 0.0, %v3209
      %v3211 = vpop.f32.mrb[0].mxu0
      %3212 = vmatprep.mubr.bf16.mxu0 0
      %3213 = vmatmul.mubr.bf16.gmra.mrb[0].mxu0 %v3145
      %v3214 = vpop.f32.mrb[0].mxu0
      %v3215 = vadd.f32 0.0, %v3214
      %v3216 = vpop.f32.mrb[0].mxu0
      %v3217 = vpop.f32.mrb[0].mxu0
      %v3218 = vadd.f32 0.0, %v3217
      %v3219 = vpop.f32.mrb[0].mxu0
      %3220 = vmatprep.mubr.bf16.mxu0 0
      %3221 = vmatmul.mubr.bf16.gmra.mrb[0].mxu0 %v3148
      %v3222 = vpop.f32.mrb[0].mxu0
      %v3223 = vadd.f32 0.0, %v3222
      %v3224 = vpop.f32.mrb[0].mxu0
      %v3225 = vpop.f32.mrb[0].mxu0
      %v3226 = vadd.f32 0.0, %v3225
      %v3227 = vpop.f32.mrb[0].mxu0
      %3228 = vmatprep.mubr.bf16.mxu0 0
      %3229 = vmatmul.mubr.bf16.gmra.mrb[0].mxu0 %v3151
      %v3230 = vpop.f32.mrb[0].mxu0
      %v3231 = vadd.f32 0.0, %v3230
      %v3232 = vpop.f32.mrb[0].mxu0
      %v3233 = vpop.f32.mrb[0].mxu0
      %v3234 = vadd.f32 0.0, %v3233
      %v3235 = vpop.f32.mrb[0].mxu0
      %3236 = vmatprep.mubr.bf16.mxu0 0
      %3237 = vmatmul.mubr.bf16.gmra.mrb[0].mxu0 %v3154
      %v3238 = vpop.f32.mrb[0].mxu0
      %v3239 = vadd.f32 0.0, %v3238
      %v3240 = vpop.f32.mrb[0].mxu0
      %v3241 = vpop.f32.mrb[0].mxu0
      %v3242 = vpop.f32.mrb[0].mxu0
      %3243 = vdwg.mxu0
      %v3244 = vadd.f32 %v3070, %v3191
      %v3245 = vadd.f32 %v3073, %v3194
      %v3246 = vadd.f32 %v3078, %v3199
      %v3247 = vadd.f32 %v3081, %v3202
      %v3248 = vadd.f32 %v3086, %v3207
      %v3249 = vadd.f32 %v3089, %v3210
      %v3250 = vadd.f32 %v3094, %v3215
      %v3251 = vadd.f32 %v3097, %v3218
      %v3252 = vadd.f32 %v3102, %v3223
      %v3253 = vadd.f32 %v3105, %v3226
      %v3254 = vadd.f32 %v3110, %v3231
      %v3255 = vadd.f32 %v3113, %v3234
      %v3256 = vadd.f32 %v3118, %v3239
      %v3261 = vunpack.c.l.b16 %v324
      %v3262 = vunpack.c.l.b16 %v325
      %v3263 = vunpack.c.l.b16 %v326
      %v3264 = vunpack.c.l.b16 %v327
      %v3265 = vpack.c.b16 %v3262, %v3261
      %v3266 = vpack.c.b16 %v3264, %v3263
      %v3270 = vsel %vm2892, %v2873, 0
      %v3273 = vsel %vm2892, %v2874, 0
      %v3276 = vsel %vm2892, %v2875, 0
      %v3279 = vsel %vm2892, %v2876, 0
      %v3282 = vsel %vm2892, %v2877, 0
      %v3285 = vsel %vm2892, %v2878, 0
      %v3288 = vsel %vm2892, %v2879, 0
      %3290 = vmatprep.subr.bf16.mxu0 0
      %3291 = vmatpush1.bf16.msra.mxu0 %v3265
      %3292 = vmatprep.subr.bf16.mxu0 0
      %3293 = vmatpush1.bf16.msra.mxu0 %v3266
      %3294 = vmatprep.subr.bf16.mxu0 0
      %3295 = vmatpush1.bf16.msra.mxu0 0
      %3296 = vmatprep.subr.bf16.mxu0 0
      %3297 = vmatpush1.bf16.msra.mxu0 0
      %3298 = vmatprep.subr.bf16.mxu0 0
      %3299 = vmatpush1.bf16.msra.mxu0 0
      %3300 = vmatprep.subr.bf16.mxu0 0
      %3301 = vmatpush1.bf16.msra.mxu0 0
      %3302 = vmatprep.subr.bf16.mxu0 0
      %3303 = vmatpush1.bf16.msra.mxu0 0
      %3304 = vmatprep.subr.bf16.mxu0 0
      %3305 = vmatpush1.bf16.msra.mxu0 0
      %3306 = vmatprep.subr.bf16.mxu0 0
      %3307 = vmatpush1.bf16.msra.mxu0 0
      %3308 = vmatprep.subr.bf16.mxu0 0
      %3309 = vmatpush1.bf16.msra.mxu0 0
      %3310 = vmatprep.subr.bf16.mxu0 0
      %3311 = vmatpush1.bf16.msra.mxu0 0
      %3312 = vmatprep.subr.bf16.mxu0 0
      %3313 = vmatpush1.bf16.msra.mxu0 0
      %3314 = vmatprep.subr.bf16.mxu0 0
      %3315 = vmatpush1.bf16.msra.mxu0 0
      %3316 = vmatprep.subr.bf16.mxu0 0
      %3317 = vmatpush1.bf16.msra.mxu0 0
      %3318 = vmatprep.subr.bf16.mxu0 0
      %3319 = vmatpush1.bf16.msra.mxu0 0
      %3320 = vmatprep.subr.bf16.mxu0 0
      %3321 = vmatpush1.bf16.msra.mxu0 0
      %3322 = vmatprep.mubr.bf16.mxu0 0
      %3323 = vmatmul.mubr.bf16.gmra.mrb[0].mxu0 %v3270
      %v3324 = vpop.f32.mrb[0].mxu0
      %v3325 = vadd.f32 0.0, %v3324
      %v3326 = vpop.f32.mrb[0].mxu0
      %v3327 = vpop.f32.mrb[0].mxu0
      %v3328 = vadd.f32 0.0, %v3327
      %v3329 = vpop.f32.mrb[0].mxu0
      %3330 = vmatprep.mubr.bf16.mxu0 0
      %3331 = vmatmul.mubr.bf16.gmra.mrb[0].mxu0 %v3273
      %v3332 = vpop.f32.mrb[0].mxu0
      %v3333 = vadd.f32 0.0, %v3332
      %v3334 = vpop.f32.mrb[0].mxu0
      %v3335 = vpop.f32.mrb[0].mxu0
      %v3336 = vadd.f32 0.0, %v3335
      %v3337 = vpop.f32.mrb[0].mxu0
      %3338 = vmatprep.mubr.bf16.mxu0 0
      %3339 = vmatmul.mubr.bf16.gmra.mrb[0].mxu0 %v3276
      %v3340 = vpop.f32.mrb[0].mxu0
      %v3341 = vadd.f32 0.0, %v3340
      %v3342 = vpop.f32.mrb[0].mxu0
      %v3343 = vpop.f32.mrb[0].mxu0
      %v3344 = vadd.f32 0.0, %v3343
      %v3345 = vpop.f32.mrb[0].mxu0
      %3346 = vmatprep.mubr.bf16.mxu0 0
      %3347 = vmatmul.mubr.bf16.gmra.mrb[0].mxu0 %v3279
      %v3348 = vpop.f32.mrb[0].mxu0
      %v3349 = vadd.f32 0.0, %v3348
      %v3350 = vpop.f32.mrb[0].mxu0
      %v3351 = vpop.f32.mrb[0].mxu0
      %v3352 = vadd.f32 0.0, %v3351
      %v3353 = vpop.f32.mrb[0].mxu0
      %3354 = vmatprep.mubr.bf16.mxu0 0
      %3355 = vmatmul.mubr.bf16.gmra.mrb[0].mxu0 %v3282
      %v3356 = vpop.f32.mrb[0].mxu0
      %v3357 = vadd.f32 0.0, %v3356
      %v3358 = vpop.f32.mrb[0].mxu0
      %v3359 = vpop.f32.mrb[0].mxu0
      %v3360 = vadd.f32 0.0, %v3359
      %v3361 = vpop.f32.mrb[0].mxu0
      %3362 = vmatprep.mubr.bf16.mxu0 0
      %3363 = vmatmul.mubr.bf16.gmra.mrb[0].mxu0 %v3285
      %v3364 = vpop.f32.mrb[0].mxu0
      %v3365 = vadd.f32 0.0, %v3364
      %v3366 = vpop.f32.mrb[0].mxu0
      %v3367 = vpop.f32.mrb[0].mxu0
      %v3368 = vadd.f32 0.0, %v3367
      %v3369 = vpop.f32.mrb[0].mxu0
      %3370 = vmatprep.mubr.bf16.mxu0 0
      %3371 = vmatmul.mubr.bf16.gmra.mrb[0].mxu0 %v3288
      %v3372 = vpop.f32.mrb[0].mxu0
      %v3373 = vadd.f32 0.0, %v3372
      %v3374 = vpop.f32.mrb[0].mxu0
      %v3375 = vpop.f32.mrb[0].mxu0
      %v3376 = vpop.f32.mrb[0].mxu0
      %3377 = vdwg.mxu0
      %v3378 = vadd.f32 %v3244, %v3325
      %v3379 = vadd.f32 %v3245, %v3328
      %v3380 = vadd.f32 %v3246, %v3333
      %v3381 = vadd.f32 %v3247, %v3336
      %v3382 = vadd.f32 %v3248, %v3341
      %v3383 = vadd.f32 %v3249, %v3344
      %v3384 = vadd.f32 %v3250, %v3349
      %v3385 = vadd.f32 %v3251, %v3352
      %v3386 = vadd.f32 %v3252, %v3357
      %v3387 = vadd.f32 %v3253, %v3360
      %v3388 = vadd.f32 %v3254, %v3365
      %v3389 = vadd.f32 %v3255, %v3368
      %v3390 = vadd.f32 %v3256, %v3373
      %v3391 = vshrl.u32 %v1252, 16
      %v3393 = vshll.u32 %v1252, 16
      %v3395 = vrot.slane %v3393, 1
      %v3396 = vor.u32 %v3391, %v3395
      %v3397 = vshll.u32 %v1253, 16
      %v3399 = vrot.slane %v3397, 1
      %v3400 = vsel %vm1259, %v3396, %v3399
      %v3401 = vshrl.u32 %v1253, 16
      %v3403 = vor.u32 %v3401, %v3399
      %v3404 = vshll.u32 %v1254, 16
      %v3406 = vrot.slane %v3404, 1
      %v3407 = vsel %vm1259, %v3403, %v3406
      %v3408 = vshrl.u32 %v1254, 16
      %v3410 = vor.u32 %v3408, %v3406
      %v3411 = vshll.u32 %v1255, 16
      %v3413 = vrot.slane %v3411, 1
      %v3414 = vsel %vm1259, %v3410, %v3413
      %v3415 = vshrl.u32 %v1255, 16
      %v3417 = vor.u32 %v3415, %v3413
      %v3418 = vshll.u32 %v1256, 16
      %v3420 = vrot.slane %v3418, 1
      %v3421 = vsel %vm1259, %v3417, %v3420
      %v3422 = vshrl.u32 %v1256, 16
      %v3424 = vor.u32 %v3422, %v3420
      %v3425 = vshll.u32 %v1257, 16
      %v3427 = vrot.slane %v3425, 1
      %v3428 = vsel %vm1259, %v3424, %v3427
      %v3429 = vshrl.u32 %v1257, 16
      %v3431 = vor.u32 %v3429, %v3427
      %v3432 = vshll.u32 %v1258, 16
      %v3434 = vrot.slane %v3432, 1
      %v3435 = vsel %vm1259, %v3431, %v3434
      %v3436 = vshrl.u32 %v1258, 16
      %v3442 = vunpack.c.l.b16 %v328
      %v3443 = vunpack.c.l.b16 %v329
      %v3444 = vunpack.c.l.b16 %v330
      %v3445 = vunpack.c.l.b16 %v331
      %v3446 = vpack.c.b16 %v3443, %v3442
      %v3447 = vpack.c.b16 %v3445, %v3444
      %v3451 = vsel %vm2892, %v3400, 0
      %v3454 = vsel %vm2892, %v3407, 0
      %v3457 = vsel %vm2892, %v3414, 0
      %v3460 = vsel %vm2892, %v3421, 0
      %v3463 = vsel %vm2892, %v3428, 0
      %v3466 = vsel %vm2892, %v3435, 0
      %v3469 = vsel %vm2892, %v3436, 0
      %3471 = vmatprep.subr.bf16.mxu0 0
      %3472 = vmatpush1.bf16.msra.mxu0 %v3446
      %3473 = vmatprep.subr.bf16.mxu0 0
      %3474 = vmatpush1.bf16.msra.mxu0 %v3447
      %3475 = vmatprep.subr.bf16.mxu0 0
      %3476 = vmatpush1.bf16.msra.mxu0 0
      %3477 = vmatprep.subr.bf16.mxu0 0
      %3478 = vmatpush1.bf16.msra.mxu0 0
      %3479 = vmatprep.subr.bf16.mxu0 0
      %3480 = vmatpush1.bf16.msra.mxu0 0
      %3481 = vmatprep.subr.bf16.mxu0 0
      %3482 = vmatpush1.bf16.msra.mxu0 0
      %3483 = vmatprep.subr.bf16.mxu0 0
      %3484 = vmatpush1.bf16.msra.mxu0 0
      %3485 = vmatprep.subr.bf16.mxu0 0
      %3486 = vmatpush1.bf16.msra.mxu0 0
      %3487 = vmatprep.subr.bf16.mxu0 0
      %3488 = vmatpush1.bf16.msra.mxu0 0
      %3489 = vmatprep.subr.bf16.mxu0 0
      %3490 = vmatpush1.bf16.msra.mxu0 0
      %3491 = vmatprep.subr.bf16.mxu0 0
      %3492 = vmatpush1.bf16.msra.mxu0 0
      %3493 = vmatprep.subr.bf16.mxu0 0
      %3494 = vmatpush1.bf16.msra.mxu0 0
      %3495 = vmatprep.subr.bf16.mxu0 0
      %3496 = vmatpush1.bf16.msra.mxu0 0
      %3497 = vmatprep.subr.bf16.mxu0 0
      %3498 = vmatpush1.bf16.msra.mxu0 0
      %3499 = vmatprep.subr.bf16.mxu0 0
      %3500 = vmatpush1.bf16.msra.mxu0 0
      %3501 = vmatprep.subr.bf16.mxu0 0
      %3502 = vmatpush1.bf16.msra.mxu0 0
      %3503 = vmatprep.mubr.bf16.mxu0 0
      %3504 = vmatmul.mubr.bf16.gmra.mrb[0].mxu0 %v3451
      %v3505 = vpop.f32.mrb[0].mxu0
      %v3506 = vadd.f32 0.0, %v3505
      %v3507 = vpop.f32.mrb[0].mxu0
      %v3508 = vpop.f32.mrb[0].mxu0
      %v3509 = vadd.f32 0.0, %v3508
      %v3510 = vpop.f32.mrb[0].mxu0
      %3511 = vmatprep.mubr.bf16.mxu0 0
      %3512 = vmatmul.mubr.bf16.gmra.mrb[0].mxu0 %v3454
      %v3513 = vpop.f32.mrb[0].mxu0
      %v3514 = vadd.f32 0.0, %v3513
      %v3515 = vpop.f32.mrb[0].mxu0
      %v3516 = vpop.f32.mrb[0].mxu0
      %v3517 = vadd.f32 0.0, %v3516
      %v3518 = vpop.f32.mrb[0].mxu0
      %3519 = vmatprep.mubr.bf16.mxu0 0
      %3520 = vmatmul.mubr.bf16.gmra.mrb[0].mxu0 %v3457
      %v3521 = vpop.f32.mrb[0].mxu0
      %v3522 = vadd.f32 0.0, %v3521
      %v3523 = vpop.f32.mrb[0].mxu0
      %v3524 = vpop.f32.mrb[0].mxu0
      %v3525 = vadd.f32 0.0, %v3524
      %v3526 = vpop.f32.mrb[0].mxu0
      %3527 = vmatprep.mubr.bf16.mxu0 0
      %3528 = vmatmul.mubr.bf16.gmra.mrb[0].mxu0 %v3460
      %v3529 = vpop.f32.mrb[0].mxu0
      %v3530 = vadd.f32 0.0, %v3529
      %v3531 = vpop.f32.mrb[0].mxu0
      %v3532 = vpop.f32.mrb[0].mxu0
      %v3533 = vadd.f32 0.0, %v3532
      %v3534 = vpop.f32.mrb[0].mxu0
      %3535 = vmatprep.mubr.bf16.mxu0 0
      %3536 = vmatmul.mubr.bf16.gmra.mrb[0].mxu0 %v3463
      %v3537 = vpop.f32.mrb[0].mxu0
      %v3538 = vadd.f32 0.0, %v3537
      %v3539 = vpop.f32.mrb[0].mxu0
      %v3540 = vpop.f32.mrb[0].mxu0
      %v3541 = vadd.f32 0.0, %v3540
      %v3542 = vpop.f32.mrb[0].mxu0
      %3543 = vmatprep.mubr.bf16.mxu0 0
      %3544 = vmatmul.mubr.bf16.gmra.mrb[0].mxu0 %v3466
      %v3545 = vpop.f32.mrb[0].mxu0
      %v3546 = vadd.f32 0.0, %v3545
      %v3547 = vpop.f32.mrb[0].mxu0
      %v3548 = vpop.f32.mrb[0].mxu0
      %v3549 = vadd.f32 0.0, %v3548
      %v3550 = vpop.f32.mrb[0].mxu0
      %3551 = vmatprep.mubr.bf16.mxu0 0
      %3552 = vmatmul.mubr.bf16.gmra.mrb[0].mxu0 %v3469
      %v3553 = vpop.f32.mrb[0].mxu0
      %v3554 = vadd.f32 0.0, %v3553
      %v3555 = vpop.f32.mrb[0].mxu0
      %v3556 = vpop.f32.mrb[0].mxu0
      %v3557 = vpop.f32.mrb[0].mxu0
      %3558 = vdwg.mxu0
      %v3559 = vadd.f32 %v3378, %v3506
      %v3560 = vadd.f32 %v3379, %v3509
      %v3561 = vadd.f32 %v3380, %v3514
      %v3562 = vadd.f32 %v3381, %v3517
      %v3563 = vadd.f32 %v3382, %v3522
      %v3564 = vadd.f32 %v3383, %v3525
      %v3565 = vadd.f32 %v3384, %v3530
      %v3566 = vadd.f32 %v3385, %v3533
      %v3567 = vadd.f32 %v3386, %v3538
      %v3568 = vadd.f32 %v3387, %v3541
      %v3569 = vadd.f32 %v3388, %v3546
      %v3570 = vadd.f32 %v3389, %v3549
      %v3571 = vadd.f32 %v3390, %v3554
      %v3572 = vshrl.u32 %v1810, 16
      %v3574 = vshll.u32 %v1810, 16
      %v3576 = vrot.slane %v3574, 1
      %v3577 = vor.u32 %v3572, %v3576
      %v3578 = vshll.u32 %v1811, 16
      %v3580 = vrot.slane %v3578, 1
      %v3581 = vsel %vm1259, %v3577, %v3580
      %v3582 = vshrl.u32 %v1811, 16
      %v3584 = vor.u32 %v3582, %v3580
      %v3585 = vshll.u32 %v1812, 16
      %v3587 = vrot.slane %v3585, 1
      %v3588 = vsel %vm1259, %v3584, %v3587
      %v3589 = vshrl.u32 %v1812, 16
      %v3591 = vor.u32 %v3589, %v3587
      %v3592 = vshll.u32 %v1813, 16
      %v3594 = vrot.slane %v3592, 1
      %v3595 = vsel %vm1259, %v3591, %v3594
      %v3596 = vshrl.u32 %v1813, 16
      %v3598 = vor.u32 %v3596, %v3594
      %v3599 = vshll.u32 %v1814, 16
      %v3601 = vrot.slane %v3599, 1
      %v3602 = vsel %vm1259, %v3598, %v3601
      %v3603 = vshrl.u32 %v1814, 16
      %v3605 = vor.u32 %v3603, %v3601
      %v3606 = vshll.u32 %v1815, 16
      %v3608 = vrot.slane %v3606, 1
      %v3609 = vsel %vm1259, %v3605, %v3608
      %v3610 = vshrl.u32 %v1815, 16
      %v3612 = vor.u32 %v3610, %v3608
      %v3613 = vshll.u32 %v1816, 16
      %v3615 = vrot.slane %v3613, 1
      %v3616 = vsel %vm1259, %v3612, %v3615
      %v3617 = vshrl.u32 %v1816, 16
      %v3623 = vunpack.c.l.b16 %v332
      %v3624 = vunpack.c.l.b16 %v333
      %v3625 = vunpack.c.l.b16 %v334
      %v3626 = vunpack.c.l.b16 %v335
      %v3627 = vpack.c.b16 %v3624, %v3623
      %v3628 = vpack.c.b16 %v3626, %v3625
      %v3632 = vsel %vm2892, %v3581, 0
      %v3635 = vsel %vm2892, %v3588, 0
      %v3638 = vsel %vm2892, %v3595, 0
      %v3641 = vsel %vm2892, %v3602, 0
      %v3644 = vsel %vm2892, %v3609, 0
      %v3647 = vsel %vm2892, %v3616, 0
      %v3650 = vsel %vm2892, %v3617, 0
      %3652 = vmatprep.subr.bf16.mxu0 0
      %3653 = vmatpush1.bf16.msra.mxu0 %v3627
      %3654 = vmatprep.subr.bf16.mxu0 0
      %3655 = vmatpush1.bf16.msra.mxu0 %v3628
      %3656 = vmatprep.subr.bf16.mxu0 0
      %3657 = vmatpush1.bf16.msra.mxu0 0
      %3658 = vmatprep.subr.bf16.mxu0 0
      %3659 = vmatpush1.bf16.msra.mxu0 0
      %3660 = vmatprep.subr.bf16.mxu0 0
      %3661 = vmatpush1.bf16.msra.mxu0 0
      %3662 = vmatprep.subr.bf16.mxu0 0
      %3663 = vmatpush1.bf16.msra.mxu0 0
      %3664 = vmatprep.subr.bf16.mxu0 0
      %3665 = vmatpush1.bf16.msra.mxu0 0
      %3666 = vmatprep.subr.bf16.mxu0 0
      %3667 = vmatpush1.bf16.msra.mxu0 0
      %3668 = vmatprep.subr.bf16.mxu0 0
      %3669 = vmatpush1.bf16.msra.mxu0 0
      %3670 = vmatprep.subr.bf16.mxu0 0
      %3671 = vmatpush1.bf16.msra.mxu0 0
      %3672 = vmatprep.subr.bf16.mxu0 0
      %3673 = vmatpush1.bf16.msra.mxu0 0
      %3674 = vmatprep.subr.bf16.mxu0 0
      %3675 = vmatpush1.bf16.msra.mxu0 0
      %3676 = vmatprep.subr.bf16.mxu0 0
      %3677 = vmatpush1.bf16.msra.mxu0 0
      %3678 = vmatprep.subr.bf16.mxu0 0
      %3679 = vmatpush1.bf16.msra.mxu0 0
      %3680 = vmatprep.subr.bf16.mxu0 0
      %3681 = vmatpush1.bf16.msra.mxu0 0
      %3682 = vmatprep.subr.bf16.mxu0 0
      %3683 = vmatpush1.bf16.msra.mxu0 0
      %3684 = vmatprep.mubr.bf16.mxu0 0
      %3685 = vmatmul.mubr.bf16.gmra.mrb[0].mxu0 %v3632
      %v3686 = vpop.f32.mrb[0].mxu0
      %v3687 = vadd.f32 0.0, %v3686
      %v3688 = vpop.f32.mrb[0].mxu0
      %v3689 = vpop.f32.mrb[0].mxu0
      %v3690 = vadd.f32 0.0, %v3689
      %v3691 = vpop.f32.mrb[0].mxu0
      %3692 = vmatprep.mubr.bf16.mxu0 0
      %3693 = vmatmul.mubr.bf16.gmra.mrb[0].mxu0 %v3635
      %v3694 = vpop.f32.mrb[0].mxu0
      %v3695 = vadd.f32 0.0, %v3694
      %v3696 = vpop.f32.mrb[0].mxu0
      %v3697 = vpop.f32.mrb[0].mxu0
      %v3698 = vadd.f32 0.0, %v3697
      %v3699 = vpop.f32.mrb[0].mxu0
      %3700 = vmatprep.mubr.bf16.mxu0 0
      %3701 = vmatmul.mubr.bf16.gmra.mrb[0].mxu0 %v3638
      %v3702 = vpop.f32.mrb[0].mxu0
      %v3703 = vadd.f32 0.0, %v3702
      %v3704 = vpop.f32.mrb[0].mxu0
      %v3705 = vpop.f32.mrb[0].mxu0
      %v3706 = vadd.f32 0.0, %v3705
      %v3707 = vpop.f32.mrb[0].mxu0
      %3708 = vmatprep.mubr.bf16.mxu0 0
      %3709 = vmatmul.mubr.bf16.gmra.mrb[0].mxu0 %v3641
      %v3710 = vpop.f32.mrb[0].mxu0
      %v3711 = vadd.f32 0.0, %v3710
      %v3712 = vpop.f32.mrb[0].mxu0
      %v3713 = vpop.f32.mrb[0].mxu0
      %v3714 = vadd.f32 0.0, %v3713
      %v3715 = vpop.f32.mrb[0].mxu0
      %3716 = vmatprep.mubr.bf16.mxu0 0
      %3717 = vmatmul.mubr.bf16.gmra.mrb[0].mxu0 %v3644
      %v3718 = vpop.f32.mrb[0].mxu0
      %v3719 = vadd.f32 0.0, %v3718
      %v3720 = vpop.f32.mrb[0].mxu0
      %v3721 = vpop.f32.mrb[0].mxu0
      %v3722 = vadd.f32 0.0, %v3721
      %v3723 = vpop.f32.mrb[0].mxu0
      %3724 = vmatprep.mubr.bf16.mxu0 0
      %3725 = vmatmul.mubr.bf16.gmra.mrb[0].mxu0 %v3647
      %v3726 = vpop.f32.mrb[0].mxu0
      %v3727 = vadd.f32 0.0, %v3726
      %v3728 = vpop.f32.mrb[0].mxu0
      %v3729 = vpop.f32.mrb[0].mxu0
      %v3730 = vadd.f32 0.0, %v3729
      %v3731 = vpop.f32.mrb[0].mxu0
      %3732 = vmatprep.mubr.bf16.mxu0 0
      %3733 = vmatmul.mubr.bf16.gmra.mrb[0].mxu0 %v3650
      %v3734 = vpop.f32.mrb[0].mxu0
      %v3735 = vadd.f32 0.0, %v3734
      %v3736 = vpop.f32.mrb[0].mxu0
      %v3737 = vpop.f32.mrb[0].mxu0
      %v3738 = vpop.f32.mrb[0].mxu0
      %3739 = vdwg.mxu0
      %v3740 = vadd.f32 %v3559, %v3687
      %v3741 = vadd.f32 %v3560, %v3690
      %v3742 = vadd.f32 %v3561, %v3695
      %v3743 = vadd.f32 %v3562, %v3698
      %v3744 = vadd.f32 %v3563, %v3703
      %v3745 = vadd.f32 %v3564, %v3706
      %v3746 = vadd.f32 %v3565, %v3711
      %v3747 = vadd.f32 %v3566, %v3714
      %v3748 = vadd.f32 %v3567, %v3719
      %v3749 = vadd.f32 %v3568, %v3722
      %v3750 = vadd.f32 %v3569, %v3727
      %v3751 = vadd.f32 %v3570, %v3730
      %v3752 = vadd.f32 %v3571, %v3735
      %v3753 = vshrl.u32 %v2414, 16
      %v3755 = vshll.u32 %v2414, 16
      %v3757 = vrot.slane %v3755, 1
      %v3758 = vor.u32 %v3753, %v3757
      %v3759 = vshll.u32 %v2415, 16
      %v3761 = vrot.slane %v3759, 1
      %v3762 = vsel %vm1259, %v3758, %v3761
      %v3763 = vshrl.u32 %v2415, 16
      %v3765 = vor.u32 %v3763, %v3761
      %v3766 = vshll.u32 %v2416, 16
      %v3768 = vrot.slane %v3766, 1
      %v3769 = vsel %vm1259, %v3765, %v3768
      %v3770 = vshrl.u32 %v2416, 16
      %v3772 = vor.u32 %v3770, %v3768
      %v3773 = vshll.u32 %v2417, 16
      %v3775 = vrot.slane %v3773, 1
      %v3776 = vsel %vm1259, %v3772, %v3775
      %v3777 = vshrl.u32 %v2417, 16
      %v3779 = vor.u32 %v3777, %v3775
      %v3780 = vshll.u32 %v2418, 16
      %v3782 = vrot.slane %v3780, 1
      %v3783 = vsel %vm1259, %v3779, %v3782
      %v3784 = vshrl.u32 %v2418, 16
      %v3786 = vor.u32 %v3784, %v3782
      %v3787 = vshll.u32 %v2419, 16
      %v3789 = vrot.slane %v3787, 1
      %v3790 = vsel %vm1259, %v3786, %v3789
      %v3791 = vshrl.u32 %v2419, 16
      %v3793 = vor.u32 %v3791, %v3789
      %v3794 = vshll.u32 %v2420, 16
      %v3796 = vrot.slane %v3794, 1
      %v3797 = vsel %vm1259, %v3793, %v3796
      %v3798 = vshrl.u32 %v2420, 16
      %v3804 = vunpack.c.l.b16 %v336
      %v3805 = vunpack.c.l.b16 %v337
      %v3806 = vunpack.c.l.b16 %v338
      %v3807 = vunpack.c.l.b16 %v339
      %v3808 = vpack.c.b16 %v3805, %v3804
      %v3809 = vpack.c.b16 %v3807, %v3806
      %v3813 = vsel %vm2892, %v3762, 0
      %v3816 = vsel %vm2892, %v3769, 0
      %v3819 = vsel %vm2892, %v3776, 0
      %v3822 = vsel %vm2892, %v3783, 0
      %v3825 = vsel %vm2892, %v3790, 0
      %v3828 = vsel %vm2892, %v3797, 0
      %v3831 = vsel %vm2892, %v3798, 0
      %3833 = vmatprep.subr.bf16.mxu0 0
      %3834 = vmatpush1.bf16.msra.mxu0 %v3808
      %3835 = vmatprep.subr.bf16.mxu0 0
      %3836 = vmatpush1.bf16.msra.mxu0 %v3809
      %3837 = vmatprep.subr.bf16.mxu0 0
      %3838 = vmatpush1.bf16.msra.mxu0 0
      %3839 = vmatprep.subr.bf16.mxu0 0
      %3840 = vmatpush1.bf16.msra.mxu0 0
      %3841 = vmatprep.subr.bf16.mxu0 0
      %3842 = vmatpush1.bf16.msra.mxu0 0
      %3843 = vmatprep.subr.bf16.mxu0 0
      %3844 = vmatpush1.bf16.msra.mxu0 0
      %3845 = vmatprep.subr.bf16.mxu0 0
      %3846 = vmatpush1.bf16.msra.mxu0 0
      %3847 = vmatprep.subr.bf16.mxu0 0
      %3848 = vmatpush1.bf16.msra.mxu0 0
      %3849 = vmatprep.subr.bf16.mxu0 0
      %3850 = vmatpush1.bf16.msra.mxu0 0
      %3851 = vmatprep.subr.bf16.mxu0 0
      %3852 = vmatpush1.bf16.msra.mxu0 0
      %3853 = vmatprep.subr.bf16.mxu0 0
      %3854 = vmatpush1.bf16.msra.mxu0 0
      %3855 = vmatprep.subr.bf16.mxu0 0
      %3856 = vmatpush1.bf16.msra.mxu0 0
      %3857 = vmatprep.subr.bf16.mxu0 0
      %3858 = vmatpush1.bf16.msra.mxu0 0
      %3859 = vmatprep.subr.bf16.mxu0 0
      %3860 = vmatpush1.bf16.msra.mxu0 0
      %3861 = vmatprep.subr.bf16.mxu0 0
      %3862 = vmatpush1.bf16.msra.mxu0 0
      %3863 = vmatprep.subr.bf16.mxu0 0
      %3864 = vmatpush1.bf16.msra.mxu0 0
      %3865 = vmatprep.mubr.bf16.mxu0 0
      %3866 = vmatmul.mubr.bf16.gmra.mrb[0].mxu0 %v3813
      %v3867 = vpop.f32.mrb[0].mxu0
      %v3868 = vadd.f32 0.0, %v3867
      %v3869 = vpop.f32.mrb[0].mxu0
      %v3870 = vpop.f32.mrb[0].mxu0
      %v3871 = vadd.f32 0.0, %v3870
      %v3872 = vpop.f32.mrb[0].mxu0
      %3873 = vmatprep.mubr.bf16.mxu0 0
      %3874 = vmatmul.mubr.bf16.gmra.mrb[0].mxu0 %v3816
      %v3875 = vpop.f32.mrb[0].mxu0
      %v3876 = vadd.f32 0.0, %v3875
      %v3877 = vpop.f32.mrb[0].mxu0
      %v3878 = vpop.f32.mrb[0].mxu0
      %v3879 = vadd.f32 0.0, %v3878
      %v3880 = vpop.f32.mrb[0].mxu0
      %3881 = vmatprep.mubr.bf16.mxu0 0
      %3882 = vmatmul.mubr.bf16.gmra.mrb[0].mxu0 %v3819
      %v3883 = vpop.f32.mrb[0].mxu0
      %v3884 = vadd.f32 0.0, %v3883
      %v3885 = vpop.f32.mrb[0].mxu0
      %v3886 = vpop.f32.mrb[0].mxu0
      %v3887 = vadd.f32 0.0, %v3886
      %v3888 = vpop.f32.mrb[0].mxu0
      %3889 = vmatprep.mubr.bf16.mxu0 0
      %3890 = vmatmul.mubr.bf16.gmra.mrb[0].mxu0 %v3822
      %v3891 = vpop.f32.mrb[0].mxu0
      %v3892 = vadd.f32 0.0, %v3891
      %v3893 = vpop.f32.mrb[0].mxu0
      %v3894 = vpop.f32.mrb[0].mxu0
      %v3895 = vadd.f32 0.0, %v3894
      %v3896 = vpop.f32.mrb[0].mxu0
      %3897 = vmatprep.mubr.bf16.mxu0 0
      %3898 = vmatmul.mubr.bf16.gmra.mrb[0].mxu0 %v3825
      %v3899 = vpop.f32.mrb[0].mxu0
      %v3900 = vadd.f32 0.0, %v3899
      %v3901 = vpop.f32.mrb[0].mxu0
      %v3902 = vpop.f32.mrb[0].mxu0
      %v3903 = vadd.f32 0.0, %v3902
      %v3904 = vpop.f32.mrb[0].mxu0
      %3905 = vmatprep.mubr.bf16.mxu0 0
      %3906 = vmatmul.mubr.bf16.gmra.mrb[0].mxu0 %v3828
      %v3907 = vpop.f32.mrb[0].mxu0
      %v3908 = vadd.f32 0.0, %v3907
      %v3909 = vpop.f32.mrb[0].mxu0
      %v3910 = vpop.f32.mrb[0].mxu0
      %v3911 = vadd.f32 0.0, %v3910
      %v3912 = vpop.f32.mrb[0].mxu0
      %3913 = vmatprep.mubr.bf16.mxu0 0
      %3914 = vmatmul.mubr.bf16.gmra.mrb[0].mxu0 %v3831
      %v3915 = vpop.f32.mrb[0].mxu0
      %v3916 = vadd.f32 0.0, %v3915
      %v3917 = vpop.f32.mrb[0].mxu0
      %v3918 = vpop.f32.mrb[0].mxu0
      %v3919 = vpop.f32.mrb[0].mxu0
      %3920 = vdwg.mxu0
      %v3921 = vadd.f32 %v3740, %v3868
      %v3922 = vadd.f32 %v3741, %v3871
      %v3923 = vadd.f32 %v3742, %v3876
      %v3924 = vadd.f32 %v3743, %v3879
      %v3925 = vadd.f32 %v3744, %v3884
      %v3926 = vadd.f32 %v3745, %v3887
      %v3927 = vadd.f32 %v3746, %v3892
      %v3928 = vadd.f32 %v3747, %v3895
      %v3929 = vadd.f32 %v3748, %v3900
      %v3930 = vadd.f32 %v3749, %v3903
      %v3931 = vadd.f32 %v3750, %v3908
      %v3932 = vadd.f32 %v3751, %v3911
      %v3933 = vadd.f32 %v3752, %v3916
      %v3934 = vshrl.u32 %v2873, 16
      %v3936 = vshll.u32 %v2873, 16
      %v3938 = vrot.slane %v3936, 1
      %v3939 = vor.u32 %v3934, %v3938
      %v3940 = vshll.u32 %v2874, 16
      %v3942 = vrot.slane %v3940, 1
      %v3943 = vsel %vm1259, %v3939, %v3942
      %v3944 = vshrl.u32 %v2874, 16
      %v3946 = vor.u32 %v3944, %v3942
      %v3947 = vshll.u32 %v2875, 16
      %v3949 = vrot.slane %v3947, 1
      %v3950 = vsel %vm1259, %v3946, %v3949
      %v3951 = vshrl.u32 %v2875, 16
      %v3953 = vor.u32 %v3951, %v3949
      %v3954 = vshll.u32 %v2876, 16
      %v3956 = vrot.slane %v3954, 1
      %v3957 = vsel %vm1259, %v3953, %v3956
      %v3958 = vshrl.u32 %v2876, 16
      %v3960 = vor.u32 %v3958, %v3956
      %v3961 = vshll.u32 %v2877, 16
      %v3963 = vrot.slane %v3961, 1
      %v3964 = vsel %vm1259, %v3960, %v3963
      %v3965 = vshrl.u32 %v2877, 16
      %v3967 = vor.u32 %v3965, %v3963
      %v3968 = vshll.u32 %v2878, 16
      %v3970 = vrot.slane %v3968, 1
      %v3971 = vsel %vm1259, %v3967, %v3970
      %v3972 = vshrl.u32 %v2878, 16
      %v3974 = vor.u32 %v3972, %v3970
      %v3975 = vshll.u32 %v2879, 16
      %v3977 = vrot.slane %v3975, 1
      %v3978 = vsel %vm1259, %v3974, %v3977
      %v3979 = vshrl.u32 %v2879, 16
      %v3985 = vunpack.c.l.b16 %v340
      %v3986 = vunpack.c.l.b16 %v341
      %v3987 = vunpack.c.l.b16 %v342
      %v3988 = vunpack.c.l.b16 %v343
      %v3989 = vpack.c.b16 %v3986, %v3985
      %v3990 = vpack.c.b16 %v3988, %v3987
      %v3994 = vsel %vm2892, %v3943, 0
      %v3997 = vsel %vm2892, %v3950, 0
      %v4000 = vsel %vm2892, %v3957, 0
      %v4003 = vsel %vm2892, %v3964, 0
      %v4006 = vsel %vm2892, %v3971, 0
      %v4009 = vsel %vm2892, %v3978, 0
      %v4012 = vsel %vm2892, %v3979, 0
      %4014 = vmatprep.subr.bf16.mxu0 0
      %4015 = vmatpush1.bf16.msra.mxu0 %v3989
      %4016 = vmatprep.subr.bf16.mxu0 0
      %4017 = vmatpush1.bf16.msra.mxu0 %v3990
      %4018 = vmatprep.subr.bf16.mxu0 0
      %4019 = vmatpush1.bf16.msra.mxu0 0
      %4020 = vmatprep.subr.bf16.mxu0 0
      %4021 = vmatpush1.bf16.msra.mxu0 0
      %4022 = vmatprep.subr.bf16.mxu0 0
      %4023 = vmatpush1.bf16.msra.mxu0 0
      %4024 = vmatprep.subr.bf16.mxu0 0
      %4025 = vmatpush1.bf16.msra.mxu0 0
      %4026 = vmatprep.subr.bf16.mxu0 0
      %4027 = vmatpush1.bf16.msra.mxu0 0
      %4028 = vmatprep.subr.bf16.mxu0 0
      %4029 = vmatpush1.bf16.msra.mxu0 0
      %4030 = vmatprep.subr.bf16.mxu0 0
      %4031 = vmatpush1.bf16.msra.mxu0 0
      %4032 = vmatprep.subr.bf16.mxu0 0
      %4033 = vmatpush1.bf16.msra.mxu0 0
      %4034 = vmatprep.subr.bf16.mxu0 0
      %4035 = vmatpush1.bf16.msra.mxu0 0
      %4036 = vmatprep.subr.bf16.mxu0 0
      %4037 = vmatpush1.bf16.msra.mxu0 0
      %4038 = vmatprep.subr.bf16.mxu0 0
      %4039 = vmatpush1.bf16.msra.mxu0 0
      %4040 = vmatprep.subr.bf16.mxu0 0
      %4041 = vmatpush1.bf16.msra.mxu0 0
      %4042 = vmatprep.subr.bf16.mxu0 0
      %4043 = vmatpush1.bf16.msra.mxu0 0
      %4044 = vmatprep.subr.bf16.mxu0 0
      %4045 = vmatpush1.bf16.msra.mxu0 0
      %4046 = vmatprep.mubr.bf16.mxu0 0
      %4047 = vmatmul.mubr.bf16.gmra.mrb[0].mxu0 %v3994
      %v4048 = vpop.f32.mrb[0].mxu0
      %v4049 = vadd.f32 0.0, %v4048
      %v4050 = vpop.f32.mrb[0].mxu0
      %v4051 = vpop.f32.mrb[0].mxu0
      %v4052 = vadd.f32 0.0, %v4051
      %v4053 = vpop.f32.mrb[0].mxu0
      %4054 = vmatprep.mubr.bf16.mxu0 0
      %4055 = vmatmul.mubr.bf16.gmra.mrb[0].mxu0 %v3997
      %v4056 = vpop.f32.mrb[0].mxu0
      %v4057 = vadd.f32 0.0, %v4056
      %v4058 = vpop.f32.mrb[0].mxu0
      %v4059 = vpop.f32.mrb[0].mxu0
      %v4060 = vadd.f32 0.0, %v4059
      %v4061 = vpop.f32.mrb[0].mxu0
      %4062 = vmatprep.mubr.bf16.mxu0 0
      %4063 = vmatmul.mubr.bf16.gmra.mrb[0].mxu0 %v4000
      %v4064 = vpop.f32.mrb[0].mxu0
      %v4065 = vadd.f32 0.0, %v4064
      %v4066 = vpop.f32.mrb[0].mxu0
      %v4067 = vpop.f32.mrb[0].mxu0
      %v4068 = vadd.f32 0.0, %v4067
      %v4069 = vpop.f32.mrb[0].mxu0
      %4070 = vmatprep.mubr.bf16.mxu0 0
      %4071 = vmatmul.mubr.bf16.gmra.mrb[0].mxu0 %v4003
      %v4072 = vpop.f32.mrb[0].mxu0
      %v4073 = vadd.f32 0.0, %v4072
      %v4074 = vpop.f32.mrb[0].mxu0
      %v4075 = vpop.f32.mrb[0].mxu0
      %v4076 = vadd.f32 0.0, %v4075
      %v4077 = vpop.f32.mrb[0].mxu0
      %4078 = vmatprep.mubr.bf16.mxu0 0
      %4079 = vmatmul.mubr.bf16.gmra.mrb[0].mxu0 %v4006
      %v4080 = vpop.f32.mrb[0].mxu0
      %v4081 = vadd.f32 0.0, %v4080
      %v4082 = vpop.f32.mrb[0].mxu0
      %v4083 = vpop.f32.mrb[0].mxu0
      %v4084 = vadd.f32 0.0, %v4083
      %v4085 = vpop.f32.mrb[0].mxu0
      %4086 = vmatprep.mubr.bf16.mxu0 0
      %4087 = vmatmul.mubr.bf16.gmra.mrb[0].mxu0 %v4009
      %v4088 = vpop.f32.mrb[0].mxu0
      %v4089 = vadd.f32 0.0, %v4088
      %v4090 = vpop.f32.mrb[0].mxu0
      %v4091 = vpop.f32.mrb[0].mxu0
      %v4092 = vadd.f32 0.0, %v4091
      %v4093 = vpop.f32.mrb[0].mxu0
      %4094 = vmatprep.mubr.bf16.mxu0 0
      %4095 = vmatmul.mubr.bf16.gmra.mrb[0].mxu0 %v4012
      %v4096 = vpop.f32.mrb[0].mxu0
      %v4097 = vadd.f32 0.0, %v4096
      %v4098 = vpop.f32.mrb[0].mxu0
      %v4099 = vpop.f32.mrb[0].mxu0
      %v4100 = vpop.f32.mrb[0].mxu0
      %4101 = vdwg.mxu0
      %v4102 = vadd.f32 %v3921, %v4049
      %v4103 = vadd.f32 %v3922, %v4052
      %v4104 = vadd.f32 %v3923, %v4057
      %v4105 = vadd.f32 %v3924, %v4060
      %v4106 = vadd.f32 %v3925, %v4065
      %v4107 = vadd.f32 %v3926, %v4068
      %v4108 = vadd.f32 %v3927, %v4073
      %v4109 = vadd.f32 %v3928, %v4076
      %v4110 = vadd.f32 %v3929, %v4081
      %v4111 = vadd.f32 %v3930, %v4084
      %v4112 = vadd.f32 %v3931, %v4089
      %v4113 = vadd.f32 %v3932, %v4092
      %v4114 = vadd.f32 %v3933, %v4097
      %vm4115 = vsmask.f32 2304
      %v4116 = vrot.slane %v3391, 5
      %v4117 = vrot.slane %v3393, 6
      %v4118 = vor.u32 %v4116, %v4117
      %v4119 = vrot.slane %v3401, 5
      %v4120 = vrot.slane %v3397, 6
      %v4121 = vor.u32 %v4119, %v4120
      %v4122 = vsel %vm4115, %v4118, %v4121
      %v4123 = vrot.slane %v3408, 5
      %v4124 = vrot.slane %v3404, 6
      %v4125 = vor.u32 %v4123, %v4124
      %v4126 = vsel %vm4115, %v4121, %v4125
      %v4127 = vrot.slane %v3415, 5
      %v4128 = vrot.slane %v3411, 6
      %v4129 = vor.u32 %v4127, %v4128
      %v4130 = vsel %vm4115, %v4125, %v4129
      %v4131 = vrot.slane %v3422, 5
      %v4132 = vrot.slane %v3418, 6
      %v4133 = vor.u32 %v4131, %v4132
      %v4134 = vsel %vm4115, %v4129, %v4133
      %v4135 = vrot.slane %v3429, 5
      %v4136 = vrot.slane %v3425, 6
      %v4137 = vor.u32 %v4135, %v4136
      %v4138 = vsel %vm4115, %v4133, %v4137
      %v4139 = vrot.slane %v3436, 5
      %v4140 = vrot.slane %v3432, 6
      %v4141 = vor.u32 %v4139, %v4140
      %v4142 = vsel %vm4115, %v4137, %v4141
      %v4147 = vunpack.c.l.b16 %v344
      %v4148 = vunpack.c.l.b16 %v345
      %v4149 = vunpack.c.l.b16 %v346
      %v4150 = vunpack.c.l.b16 %v347
      %v4151 = vpack.c.b16 %v4148, %v4147
      %v4152 = vpack.c.b16 %v4150, %v4149
      %v4156 = vsel %vm2892, %v4122, 0
      %v4159 = vsel %vm2892, %v4126, 0
      %v4162 = vsel %vm2892, %v4130, 0
      %v4165 = vsel %vm2892, %v4134, 0
      %v4168 = vsel %vm2892, %v4138, 0
      %v4171 = vsel %vm2892, %v4142, 0
      %v4174 = vsel %vm2892, %v4139, 0
      %4176 = vmatprep.subr.bf16.mxu0 0
      %4177 = vmatpush1.bf16.msra.mxu0 %v4151
      %4178 = vmatprep.subr.bf16.mxu0 0
      %4179 = vmatpush1.bf16.msra.mxu0 %v4152
      %4180 = vmatprep.subr.bf16.mxu0 0
      %4181 = vmatpush1.bf16.msra.mxu0 0
      %4182 = vmatprep.subr.bf16.mxu0 0
      %4183 = vmatpush1.bf16.msra.mxu0 0
      %4184 = vmatprep.subr.bf16.mxu0 0
      %4185 = vmatpush1.bf16.msra.mxu0 0
      %4186 = vmatprep.subr.bf16.mxu0 0
      %4187 = vmatpush1.bf16.msra.mxu0 0
      %4188 = vmatprep.subr.bf16.mxu0 0
      %4189 = vmatpush1.bf16.msra.mxu0 0
      %4190 = vmatprep.subr.bf16.mxu0 0
      %4191 = vmatpush1.bf16.msra.mxu0 0
      %4192 = vmatprep.subr.bf16.mxu0 0
      %4193 = vmatpush1.bf16.msra.mxu0 0
      %4194 = vmatprep.subr.bf16.mxu0 0
      %4195 = vmatpush1.bf16.msra.mxu0 0
      %4196 = vmatprep.subr.bf16.mxu0 0
      %4197 = vmatpush1.bf16.msra.mxu0 0
      %4198 = vmatprep.subr.bf16.mxu0 0
      %4199 = vmatpush1.bf16.msra.mxu0 0
      %4200 = vmatprep.subr.bf16.mxu0 0
      %4201 = vmatpush1.bf16.msra.mxu0 0
      %4202 = vmatprep.subr.bf16.mxu0 0
      %4203 = vmatpush1.bf16.msra.mxu0 0
      %4204 = vmatprep.subr.bf16.mxu0 0
      %4205 = vmatpush1.bf16.msra.mxu0 0
      %4206 = vmatprep.subr.bf16.mxu0 0
      %4207 = vmatpush1.bf16.msra.mxu0 0
      %4208 = vmatprep.mubr.bf16.mxu0 0
      %4209 = vmatmul.mubr.bf16.gmra.mrb[0].mxu0 %v4156
      %v4210 = vpop.f32.mrb[0].mxu0
      %v4211 = vadd.f32 0.0, %v4210
      %v4212 = vpop.f32.mrb[0].mxu0
      %v4213 = vpop.f32.mrb[0].mxu0
      %v4214 = vadd.f32 0.0, %v4213
      %v4215 = vpop.f32.mrb[0].mxu0
      %4216 = vmatprep.mubr.bf16.mxu0 0
      %4217 = vmatmul.mubr.bf16.gmra.mrb[0].mxu0 %v4159
      %v4218 = vpop.f32.mrb[0].mxu0
      %v4219 = vadd.f32 0.0, %v4218
      %v4220 = vpop.f32.mrb[0].mxu0
      %v4221 = vpop.f32.mrb[0].mxu0
      %v4222 = vadd.f32 0.0, %v4221
      %v4223 = vpop.f32.mrb[0].mxu0
      %4224 = vmatprep.mubr.bf16.mxu0 0
      %4225 = vmatmul.mubr.bf16.gmra.mrb[0].mxu0 %v4162
      %v4226 = vpop.f32.mrb[0].mxu0
      %v4227 = vadd.f32 0.0, %v4226
      %v4228 = vpop.f32.mrb[0].mxu0
      %v4229 = vpop.f32.mrb[0].mxu0
      %v4230 = vadd.f32 0.0, %v4229
      %v4231 = vpop.f32.mrb[0].mxu0
      %4232 = vmatprep.mubr.bf16.mxu0 0
      %4233 = vmatmul.mubr.bf16.gmra.mrb[0].mxu0 %v4165
      %v4234 = vpop.f32.mrb[0].mxu0
      %v4235 = vadd.f32 0.0, %v4234
      %v4236 = vpop.f32.mrb[0].mxu0
      %v4237 = vpop.f32.mrb[0].mxu0
      %v4238 = vadd.f32 0.0, %v4237
      %v4239 = vpop.f32.mrb[0].mxu0
      %4240 = vmatprep.mubr.bf16.mxu0 0
      %4241 = vmatmul.mubr.bf16.gmra.mrb[0].mxu0 %v4168
      %v4242 = vpop.f32.mrb[0].mxu0
      %v4243 = vadd.f32 0.0, %v4242
      %v4244 = vpop.f32.mrb[0].mxu0
      %v4245 = vpop.f32.mrb[0].mxu0
      %v4246 = vadd.f32 0.0, %v4245
      %v4247 = vpop.f32.mrb[0].mxu0
      %4248 = vmatprep.mubr.bf16.mxu0 0
      %4249 = vmatmul.mubr.bf16.gmra.mrb[0].mxu0 %v4171
      %v4250 = vpop.f32.mrb[0].mxu0
      %v4251 = vadd.f32 0.0, %v4250
      %v4252 = vpop.f32.mrb[0].mxu0
      %v4253 = vpop.f32.mrb[0].mxu0
      %v4254 = vadd.f32 0.0, %v4253
      %v4255 = vpop.f32.mrb[0].mxu0
      %4256 = vmatprep.mubr.bf16.mxu0 0
      %4257 = vmatmul.mubr.bf16.gmra.mrb[0].mxu0 %v4174
      %v4258 = vpop.f32.mrb[0].mxu0
      %v4259 = vadd.f32 0.0, %v4258
      %v4260 = vpop.f32.mrb[0].mxu0
      %v4261 = vpop.f32.mrb[0].mxu0
      %v4262 = vpop.f32.mrb[0].mxu0
      %4263 = vdwg.mxu0
      %v4264 = vadd.f32 %v4102, %v4211
      %v4265 = vadd.f32 %v4103, %v4214
      %v4266 = vadd.f32 %v4104, %v4219
      %v4267 = vadd.f32 %v4105, %v4222
      %v4268 = vadd.f32 %v4106, %v4227
      %v4269 = vadd.f32 %v4107, %v4230
      %v4270 = vadd.f32 %v4108, %v4235
      %v4271 = vadd.f32 %v4109, %v4238
      %v4272 = vadd.f32 %v4110, %v4243
      %v4273 = vadd.f32 %v4111, %v4246
      %v4274 = vadd.f32 %v4112, %v4251
      %v4275 = vadd.f32 %v4113, %v4254
      %v4276 = vadd.f32 %v4114, %v4259
      %v4277 = vrot.slane %v3572, 5
      %v4278 = vrot.slane %v3574, 6
      %v4279 = vor.u32 %v4277, %v4278
      %v4280 = vrot.slane %v3582, 5
      %v4281 = vrot.slane %v3578, 6
      %v4282 = vor.u32 %v4280, %v4281
      %v4283 = vsel %vm4115, %v4279, %v4282
      %v4284 = vrot.slane %v3589, 5
      %v4285 = vrot.slane %v3585, 6
      %v4286 = vor.u32 %v4284, %v4285
      %v4287 = vsel %vm4115, %v4282, %v4286
      %v4288 = vrot.slane %v3596, 5
      %v4289 = vrot.slane %v3592, 6
      %v4290 = vor.u32 %v4288, %v4289
      %v4291 = vsel %vm4115, %v4286, %v4290
      %v4292 = vrot.slane %v3603, 5
      %v4293 = vrot.slane %v3599, 6
      %v4294 = vor.u32 %v4292, %v4293
      %v4295 = vsel %vm4115, %v4290, %v4294
      %v4296 = vrot.slane %v3610, 5
      %v4297 = vrot.slane %v3606, 6
      %v4298 = vor.u32 %v4296, %v4297
      %v4299 = vsel %vm4115, %v4294, %v4298
      %v4300 = vrot.slane %v3617, 5
      %v4301 = vrot.slane %v3613, 6
      %v4302 = vor.u32 %v4300, %v4301
      %v4303 = vsel %vm4115, %v4298, %v4302
      %v4308 = vunpack.c.l.b16 %v348
      %v4309 = vunpack.c.l.b16 %v349
      %v4310 = vunpack.c.l.b16 %v350
      %v4311 = vunpack.c.l.b16 %v351
      %v4312 = vpack.c.b16 %v4309, %v4308
      %v4313 = vpack.c.b16 %v4311, %v4310
      %v4317 = vsel %vm2892, %v4283, 0
      %v4320 = vsel %vm2892, %v4287, 0
      %v4323 = vsel %vm2892, %v4291, 0
      %v4326 = vsel %vm2892, %v4295, 0
      %v4329 = vsel %vm2892, %v4299, 0
      %v4332 = vsel %vm2892, %v4303, 0
      %v4335 = vsel %vm2892, %v4300, 0
      %4337 = vmatprep.subr.bf16.mxu0 0
      %4338 = vmatpush1.bf16.msra.mxu0 %v4312
      %4339 = vmatprep.subr.bf16.mxu0 0
      %4340 = vmatpush1.bf16.msra.mxu0 %v4313
      %4341 = vmatprep.subr.bf16.mxu0 0
      %4342 = vmatpush1.bf16.msra.mxu0 0
      %4343 = vmatprep.subr.bf16.mxu0 0
      %4344 = vmatpush1.bf16.msra.mxu0 0
      %4345 = vmatprep.subr.bf16.mxu0 0
      %4346 = vmatpush1.bf16.msra.mxu0 0
      %4347 = vmatprep.subr.bf16.mxu0 0
      %4348 = vmatpush1.bf16.msra.mxu0 0
      %4349 = vmatprep.subr.bf16.mxu0 0
      %4350 = vmatpush1.bf16.msra.mxu0 0
      %4351 = vmatprep.subr.bf16.mxu0 0
      %4352 = vmatpush1.bf16.msra.mxu0 0
      %4353 = vmatprep.subr.bf16.mxu0 0
      %4354 = vmatpush1.bf16.msra.mxu0 0
      %4355 = vmatprep.subr.bf16.mxu0 0
      %4356 = vmatpush1.bf16.msra.mxu0 0
      %4357 = vmatprep.subr.bf16.mxu0 0
      %4358 = vmatpush1.bf16.msra.mxu0 0
      %4359 = vmatprep.subr.bf16.mxu0 0
      %4360 = vmatpush1.bf16.msra.mxu0 0
      %4361 = vmatprep.subr.bf16.mxu0 0
      %4362 = vmatpush1.bf16.msra.mxu0 0
      %4363 = vmatprep.subr.bf16.mxu0 0
      %4364 = vmatpush1.bf16.msra.mxu0 0
      %4365 = vmatprep.subr.bf16.mxu0 0
      %4366 = vmatpush1.bf16.msra.mxu0 0
      %4367 = vmatprep.subr.bf16.mxu0 0
      %4368 = vmatpush1.bf16.msra.mxu0 0
      %4369 = vmatprep.mubr.bf16.mxu0 0
      %4370 = vmatmul.mubr.bf16.gmra.mrb[0].mxu0 %v4317
      %v4371 = vpop.f32.mrb[0].mxu0
      %v4372 = vadd.f32 0.0, %v4371
      %v4373 = vpop.f32.mrb[0].mxu0
      %v4374 = vpop.f32.mrb[0].mxu0
      %v4375 = vadd.f32 0.0, %v4374
      %v4376 = vpop.f32.mrb[0].mxu0
      %4377 = vmatprep.mubr.bf16.mxu0 0
      %4378 = vmatmul.mubr.bf16.gmra.mrb[0].mxu0 %v4320
      %v4379 = vpop.f32.mrb[0].mxu0
      %v4380 = vadd.f32 0.0, %v4379
      %v4381 = vpop.f32.mrb[0].mxu0
      %v4382 = vpop.f32.mrb[0].mxu0
      %v4383 = vadd.f32 0.0, %v4382
      %v4384 = vpop.f32.mrb[0].mxu0
      %4385 = vmatprep.mubr.bf16.mxu0 0
      %4386 = vmatmul.mubr.bf16.gmra.mrb[0].mxu0 %v4323
      %v4387 = vpop.f32.mrb[0].mxu0
      %v4388 = vadd.f32 0.0, %v4387
      %v4389 = vpop.f32.mrb[0].mxu0
      %v4390 = vpop.f32.mrb[0].mxu0
      %v4391 = vadd.f32 0.0, %v4390
      %v4392 = vpop.f32.mrb[0].mxu0
      %4393 = vmatprep.mubr.bf16.mxu0 0
      %4394 = vmatmul.mubr.bf16.gmra.mrb[0].mxu0 %v4326
      %v4395 = vpop.f32.mrb[0].mxu0
      %v4396 = vadd.f32 0.0, %v4395
      %v4397 = vpop.f32.mrb[0].mxu0
      %v4398 = vpop.f32.mrb[0].mxu0
      %v4399 = vadd.f32 0.0, %v4398
      %v4400 = vpop.f32.mrb[0].mxu0
      %4401 = vmatprep.mubr.bf16.mxu0 0
      %4402 = vmatmul.mubr.bf16.gmra.mrb[0].mxu0 %v4329
      %v4403 = vpop.f32.mrb[0].mxu0
      %v4404 = vadd.f32 0.0, %v4403
      %v4405 = vpop.f32.mrb[0].mxu0
      %v4406 = vpop.f32.mrb[0].mxu0
      %v4407 = vadd.f32 0.0, %v4406
      %v4408 = vpop.f32.mrb[0].mxu0
      %4409 = vmatprep.mubr.bf16.mxu0 0
      %4410 = vmatmul.mubr.bf16.gmra.mrb[0].mxu0 %v4332
      %v4411 = vpop.f32.mrb[0].mxu0
      %v4412 = vadd.f32 0.0, %v4411
      %v4413 = vpop.f32.mrb[0].mxu0
      %v4414 = vpop.f32.mrb[0].mxu0
      %v4415 = vadd.f32 0.0, %v4414
      %v4416 = vpop.f32.mrb[0].mxu0
      %4417 = vmatprep.mubr.bf16.mxu0 0
      %4418 = vmatmul.mubr.bf16.gmra.mrb[0].mxu0 %v4335
      %v4419 = vpop.f32.mrb[0].mxu0
      %v4420 = vadd.f32 0.0, %v4419
      %v4421 = vpop.f32.mrb[0].mxu0
      %v4422 = vpop.f32.mrb[0].mxu0
      %v4423 = vpop.f32.mrb[0].mxu0
      %4424 = vdwg.mxu0
      %v4425 = vadd.f32 %v4264, %v4372
      %v4426 = vadd.f32 %v4265, %v4375
      %v4427 = vadd.f32 %v4266, %v4380
      %v4428 = vadd.f32 %v4267, %v4383
      %v4429 = vadd.f32 %v4268, %v4388
      %v4430 = vadd.f32 %v4269, %v4391
      %v4431 = vadd.f32 %v4270, %v4396
      %v4432 = vadd.f32 %v4271, %v4399
      %v4433 = vadd.f32 %v4272, %v4404
      %v4434 = vadd.f32 %v4273, %v4407
      %v4435 = vadd.f32 %v4274, %v4412
      %v4436 = vadd.f32 %v4275, %v4415
      %v4437 = vadd.f32 %v4276, %v4420
      %v4438 = vrot.slane %v3753, 5
      %v4439 = vrot.slane %v3755, 6
      %v4440 = vor.u32 %v4438, %v4439
      %v4441 = vrot.slane %v3763, 5
      %v4442 = vrot.slane %v3759, 6
      %v4443 = vor.u32 %v4441, %v4442
      %v4444 = vsel %vm4115, %v4440, %v4443
      %v4445 = vrot.slane %v3770, 5
      %v4446 = vrot.slane %v3766, 6
      %v4447 = vor.u32 %v4445, %v4446
      %v4448 = vsel %vm4115, %v4443, %v4447
      %v4449 = vrot.slane %v3777, 5
      %v4450 = vrot.slane %v3773, 6
      %v4451 = vor.u32 %v4449, %v4450
      %v4452 = vsel %vm4115, %v4447, %v4451
      %v4453 = vrot.slane %v3784, 5
      %v4454 = vrot.slane %v3780, 6
      %v4455 = vor.u32 %v4453, %v4454
      %v4456 = vsel %vm4115, %v4451, %v4455
      %v4457 = vrot.slane %v3791, 5
      %v4458 = vrot.slane %v3787, 6
      %v4459 = vor.u32 %v4457, %v4458
      %v4460 = vsel %vm4115, %v4455, %v4459
      %v4461 = vrot.slane %v3798, 5
      %v4462 = vrot.slane %v3794, 6
      %v4463 = vor.u32 %v4461, %v4462
      %v4464 = vsel %vm4115, %v4459, %v4463
      %v4469 = vunpack.c.l.b16 %v352
      %v4470 = vunpack.c.l.b16 %v353
      %v4471 = vunpack.c.l.b16 %v354
      %v4472 = vunpack.c.l.b16 %v355
      %v4473 = vpack.c.b16 %v4470, %v4469
      %v4474 = vpack.c.b16 %v4472, %v4471
      %v4478 = vsel %vm2892, %v4444, 0
      %v4481 = vsel %vm2892, %v4448, 0
      %v4484 = vsel %vm2892, %v4452, 0
      %v4487 = vsel %vm2892, %v4456, 0
      %v4490 = vsel %vm2892, %v4460, 0
      %v4493 = vsel %vm2892, %v4464, 0
      %v4496 = vsel %vm2892, %v4461, 0
      %4498 = vmatprep.subr.bf16.mxu0 0
      %4499 = vmatpush1.bf16.msra.mxu0 %v4473
      %4500 = vmatprep.subr.bf16.mxu0 0
      %4501 = vmatpush1.bf16.msra.mxu0 %v4474
      %4502 = vmatprep.subr.bf16.mxu0 0
      %4503 = vmatpush1.bf16.msra.mxu0 0
      %4504 = vmatprep.subr.bf16.mxu0 0
      %4505 = vmatpush1.bf16.msra.mxu0 0
      %4506 = vmatprep.subr.bf16.mxu0 0
      %4507 = vmatpush1.bf16.msra.mxu0 0
      %4508 = vmatprep.subr.bf16.mxu0 0
      %4509 = vmatpush1.bf16.msra.mxu0 0
      %4510 = vmatprep.subr.bf16.mxu0 0
      %4511 = vmatpush1.bf16.msra.mxu0 0
      %4512 = vmatprep.subr.bf16.mxu0 0
      %4513 = vmatpush1.bf16.msra.mxu0 0
      %4514 = vmatprep.subr.bf16.mxu0 0
      %4515 = vmatpush1.bf16.msra.mxu0 0
      %4516 = vmatprep.subr.bf16.mxu0 0
      %4517 = vmatpush1.bf16.msra.mxu0 0
      %4518 = vmatprep.subr.bf16.mxu0 0
      %4519 = vmatpush1.bf16.msra.mxu0 0
      %4520 = vmatprep.subr.bf16.mxu0 0
      %4521 = vmatpush1.bf16.msra.mxu0 0
      %4522 = vmatprep.subr.bf16.mxu0 0
      %4523 = vmatpush1.bf16.msra.mxu0 0
      %4524 = vmatprep.subr.bf16.mxu0 0
      %4525 = vmatpush1.bf16.msra.mxu0 0
      %4526 = vmatprep.subr.bf16.mxu0 0
      %4527 = vmatpush1.bf16.msra.mxu0 0
      %4528 = vmatprep.subr.bf16.mxu0 0
      %4529 = vmatpush1.bf16.msra.mxu0 0
      %4530 = vmatprep.mubr.bf16.mxu0 0
      %4531 = vmatmul.mubr.bf16.gmra.mrb[0].mxu0 %v4478
      %v4532 = vpop.f32.mrb[0].mxu0
      %v4533 = vadd.f32 0.0, %v4532
      %v4534 = vpop.f32.mrb[0].mxu0
      %v4535 = vpop.f32.mrb[0].mxu0
      %v4536 = vadd.f32 0.0, %v4535
      %v4537 = vpop.f32.mrb[0].mxu0
      %4538 = vmatprep.mubr.bf16.mxu0 0
      %4539 = vmatmul.mubr.bf16.gmra.mrb[0].mxu0 %v4481
      %v4540 = vpop.f32.mrb[0].mxu0
      %v4541 = vadd.f32 0.0, %v4540
      %v4542 = vpop.f32.mrb[0].mxu0
      %v4543 = vpop.f32.mrb[0].mxu0
      %v4544 = vadd.f32 0.0, %v4543
      %v4545 = vpop.f32.mrb[0].mxu0
      %4546 = vmatprep.mubr.bf16.mxu0 0
      %4547 = vmatmul.mubr.bf16.gmra.mrb[0].mxu0 %v4484
      %v4548 = vpop.f32.mrb[0].mxu0
      %v4549 = vadd.f32 0.0, %v4548
      %v4550 = vpop.f32.mrb[0].mxu0
      %v4551 = vpop.f32.mrb[0].mxu0
      %v4552 = vadd.f32 0.0, %v4551
      %v4553 = vpop.f32.mrb[0].mxu0
      %4554 = vmatprep.mubr.bf16.mxu0 0
      %4555 = vmatmul.mubr.bf16.gmra.mrb[0].mxu0 %v4487
      %v4556 = vpop.f32.mrb[0].mxu0
      %v4557 = vadd.f32 0.0, %v4556
      %v4558 = vpop.f32.mrb[0].mxu0
      %v4559 = vpop.f32.mrb[0].mxu0
      %v4560 = vadd.f32 0.0, %v4559
      %v4561 = vpop.f32.mrb[0].mxu0
      %4562 = vmatprep.mubr.bf16.mxu0 0
      %4563 = vmatmul.mubr.bf16.gmra.mrb[0].mxu0 %v4490
      %v4564 = vpop.f32.mrb[0].mxu0
      %v4565 = vadd.f32 0.0, %v4564
      %v4566 = vpop.f32.mrb[0].mxu0
      %v4567 = vpop.f32.mrb[0].mxu0
      %v4568 = vadd.f32 0.0, %v4567
      %v4569 = vpop.f32.mrb[0].mxu0
      %4570 = vmatprep.mubr.bf16.mxu0 0
      %4571 = vmatmul.mubr.bf16.gmra.mrb[0].mxu0 %v4493
      %v4572 = vpop.f32.mrb[0].mxu0
      %v4573 = vadd.f32 0.0, %v4572
      %v4574 = vpop.f32.mrb[0].mxu0
      %v4575 = vpop.f32.mrb[0].mxu0
      %v4576 = vadd.f32 0.0, %v4575
      %v4577 = vpop.f32.mrb[0].mxu0
      %4578 = vmatprep.mubr.bf16.mxu0 0
      %4579 = vmatmul.mubr.bf16.gmra.mrb[0].mxu0 %v4496
      %v4580 = vpop.f32.mrb[0].mxu0
      %v4581 = vadd.f32 0.0, %v4580
      %v4582 = vpop.f32.mrb[0].mxu0
      %v4583 = vpop.f32.mrb[0].mxu0
      %v4584 = vpop.f32.mrb[0].mxu0
      %4585 = vdwg.mxu0
      %v4586 = vadd.f32 %v4425, %v4533
      %v4587 = vadd.f32 %v4426, %v4536
      %v4588 = vadd.f32 %v4427, %v4541
      %v4589 = vadd.f32 %v4428, %v4544
      %v4590 = vadd.f32 %v4429, %v4549
      %v4591 = vadd.f32 %v4430, %v4552
      %v4592 = vadd.f32 %v4431, %v4557
      %v4593 = vadd.f32 %v4432, %v4560
      %v4594 = vadd.f32 %v4433, %v4565
      %v4595 = vadd.f32 %v4434, %v4568
      %v4596 = vadd.f32 %v4435, %v4573
      %v4597 = vadd.f32 %v4436, %v4576
      %v4598 = vadd.f32 %v4437, %v4581
      %v4599 = vrot.slane %v3934, 5
      %v4600 = vrot.slane %v3936, 6
      %v4601 = vor.u32 %v4599, %v4600
      %v4602 = vrot.slane %v3944, 5
      %v4603 = vrot.slane %v3940, 6
      %v4604 = vor.u32 %v4602, %v4603
      %v4605 = vsel %vm4115, %v4601, %v4604
      %v4606 = vrot.slane %v3951, 5
      %v4607 = vrot.slane %v3947, 6
      %v4608 = vor.u32 %v4606, %v4607
      %v4609 = vsel %vm4115, %v4604, %v4608
      %v4610 = vrot.slane %v3958, 5
      %v4611 = vrot.slane %v3954, 6
      %v4612 = vor.u32 %v4610, %v4611
      %v4613 = vsel %vm4115, %v4608, %v4612
      %v4614 = vrot.slane %v3965, 5
      %v4615 = vrot.slane %v3961, 6
      %v4616 = vor.u32 %v4614, %v4615
      %v4617 = vsel %vm4115, %v4612, %v4616
      %v4618 = vrot.slane %v3972, 5
      %v4619 = vrot.slane %v3968, 6
      %v4620 = vor.u32 %v4618, %v4619
      %v4621 = vsel %vm4115, %v4616, %v4620
      %v4622 = vrot.slane %v3979, 5
      %v4623 = vrot.slane %v3975, 6
      %v4624 = vor.u32 %v4622, %v4623
      %v4625 = vsel %vm4115, %v4620, %v4624
      %v4630 = vunpack.c.l.b16 %v356
      %v4631 = vunpack.c.l.b16 %v357
      %v4632 = vunpack.c.l.b16 %v358
      %v4633 = vunpack.c.l.b16 %v359
      %v4634 = vpack.c.b16 %v4631, %v4630
      %v4635 = vpack.c.b16 %v4633, %v4632
      %v4639 = vsel %vm2892, %v4605, 0
      %v4642 = vsel %vm2892, %v4609, 0
      %v4645 = vsel %vm2892, %v4613, 0
      %v4648 = vsel %vm2892, %v4617, 0
      %v4651 = vsel %vm2892, %v4621, 0
      %v4654 = vsel %vm2892, %v4625, 0
      %v4657 = vsel %vm2892, %v4622, 0
      %4659 = vmatprep.subr.bf16.mxu0 0
      %4660 = vmatpush1.bf16.msra.mxu0 %v4634
      %4661 = vmatprep.subr.bf16.mxu0 0
      %4662 = vmatpush1.bf16.msra.mxu0 %v4635
      %4663 = vmatprep.subr.bf16.mxu0 0
      %4664 = vmatpush1.bf16.msra.mxu0 0
      %4665 = vmatprep.subr.bf16.mxu0 0
      %4666 = vmatpush1.bf16.msra.mxu0 0
      %4667 = vmatprep.subr.bf16.mxu0 0
      %4668 = vmatpush1.bf16.msra.mxu0 0
      %4669 = vmatprep.subr.bf16.mxu0 0
      %4670 = vmatpush1.bf16.msra.mxu0 0
      %4671 = vmatprep.subr.bf16.mxu0 0
      %4672 = vmatpush1.bf16.msra.mxu0 0
      %4673 = vmatprep.subr.bf16.mxu0 0
      %4674 = vmatpush1.bf16.msra.mxu0 0
      %4675 = vmatprep.subr.bf16.mxu0 0
      %4676 = vmatpush1.bf16.msra.mxu0 0
      %4677 = vmatprep.subr.bf16.mxu0 0
      %4678 = vmatpush1.bf16.msra.mxu0 0
      %4679 = vmatprep.subr.bf16.mxu0 0
      %4680 = vmatpush1.bf16.msra.mxu0 0
      %4681 = vmatprep.subr.bf16.mxu0 0
      %4682 = vmatpush1.bf16.msra.mxu0 0
      %4683 = vmatprep.subr.bf16.mxu0 0
      %4684 = vmatpush1.bf16.msra.mxu0 0
      %4685 = vmatprep.subr.bf16.mxu0 0
      %4686 = vmatpush1.bf16.msra.mxu0 0
      %4687 = vmatprep.subr.bf16.mxu0 0
      %4688 = vmatpush1.bf16.msra.mxu0 0
      %4689 = vmatprep.subr.bf16.mxu0 0
      %4690 = vmatpush1.bf16.msra.mxu0 0
      %4691 = vmatprep.mubr.bf16.mxu0 0
      %4692 = vmatmul.mubr.bf16.gmra.mrb[0].mxu0 %v4639
      %v4693 = vpop.f32.mrb[0].mxu0
      %v4694 = vadd.f32 0.0, %v4693
      %v4695 = vpop.f32.mrb[0].mxu0
      %v4696 = vpop.f32.mrb[0].mxu0
      %v4697 = vadd.f32 0.0, %v4696
      %v4698 = vpop.f32.mrb[0].mxu0
      %4699 = vmatprep.mubr.bf16.mxu0 0
      %4700 = vmatmul.mubr.bf16.gmra.mrb[0].mxu0 %v4642
      %v4701 = vpop.f32.mrb[0].mxu0
      %v4702 = vadd.f32 0.0, %v4701
      %v4703 = vpop.f32.mrb[0].mxu0
      %v4704 = vpop.f32.mrb[0].mxu0
      %v4705 = vadd.f32 0.0, %v4704
      %v4706 = vpop.f32.mrb[0].mxu0
      %4707 = vmatprep.mubr.bf16.mxu0 0
      %4708 = vmatmul.mubr.bf16.gmra.mrb[0].mxu0 %v4645
      %v4709 = vpop.f32.mrb[0].mxu0
      %v4710 = vadd.f32 0.0, %v4709
      %v4711 = vpop.f32.mrb[0].mxu0
      %v4712 = vpop.f32.mrb[0].mxu0
      %v4713 = vadd.f32 0.0, %v4712
      %v4714 = vpop.f32.mrb[0].mxu0
      %4715 = vmatprep.mubr.bf16.mxu0 0
      %4716 = vmatmul.mubr.bf16.gmra.mrb[0].mxu0 %v4648
      %v4717 = vpop.f32.mrb[0].mxu0
      %v4718 = vadd.f32 0.0, %v4717
      %v4719 = vpop.f32.mrb[0].mxu0
      %v4720 = vpop.f32.mrb[0].mxu0
      %v4721 = vadd.f32 0.0, %v4720
      %v4722 = vpop.f32.mrb[0].mxu0
      %4723 = vmatprep.mubr.bf16.mxu0 0
      %4724 = vmatmul.mubr.bf16.gmra.mrb[0].mxu0 %v4651
      %v4725 = vpop.f32.mrb[0].mxu0
      %v4726 = vadd.f32 0.0, %v4725
      %v4727 = vpop.f32.mrb[0].mxu0
      %v4728 = vpop.f32.mrb[0].mxu0
      %v4729 = vadd.f32 0.0, %v4728
      %v4730 = vpop.f32.mrb[0].mxu0
      %4731 = vmatprep.mubr.bf16.mxu0 0
      %4732 = vmatmul.mubr.bf16.gmra.mrb[0].mxu0 %v4654
      %v4733 = vpop.f32.mrb[0].mxu0
      %v4734 = vadd.f32 0.0, %v4733
      %v4735 = vpop.f32.mrb[0].mxu0
      %v4736 = vpop.f32.mrb[0].mxu0
      %v4737 = vadd.f32 0.0, %v4736
      %v4738 = vpop.f32.mrb[0].mxu0
      %4739 = vmatprep.mubr.bf16.mxu0 0
      %4740 = vmatmul.mubr.bf16.gmra.mrb[0].mxu0 %v4657
      %v4741 = vpop.f32.mrb[0].mxu0
      %v4742 = vadd.f32 0.0, %v4741
      %v4743 = vpop.f32.mrb[0].mxu0
      %v4744 = vpop.f32.mrb[0].mxu0
      %v4745 = vpop.f32.mrb[0].mxu0
      %4746 = vdwg.mxu0
      %v4747 = vadd.f32 %v4586, %v4694
      %v4748 = vadd.f32 %v4587, %v4697
      %v4749 = vadd.f32 %v4588, %v4702
      %v4750 = vadd.f32 %v4589, %v4705
      %v4751 = vadd.f32 %v4590, %v4710
      %v4752 = vadd.f32 %v4591, %v4713
      %v4753 = vadd.f32 %v4592, %v4718
      %v4754 = vadd.f32 %v4593, %v4721
      %v4755 = vadd.f32 %v4594, %v4726
      %v4756 = vadd.f32 %v4595, %v4729
      %v4757 = vadd.f32 %v4596, %v4734
      %v4758 = vadd.f32 %v4597, %v4737
      %v4759 = vadd.f32 %v4598, %v4742
      %vm4767 = vcmask 1041408
      %v4768 = vrot.slane %v1252, 6
      %v4769 = vrot.slane %v1253, 6
      %v4770 = vsel %vm4767, %v4768, %v4769
      %v4771 = vrot.slane %v1254, 6
      %v4772 = vsel %vm4767, %v4769, %v4771
      %v4773 = vrot.slane %v1255, 6
      %v4774 = vsel %vm4767, %v4771, %v4773
      %v4775 = vrot.slane %v1256, 6
      %v4776 = vsel %vm4767, %v4773, %v4775
      %v4777 = vrot.slane %v1257, 6
      %v4778 = vsel %vm4767, %v4775, %v4777
      %v4779 = vrot.slane %v1258, 6
      %v4780 = vsel %vm4767, %v4777, %v4779
      %v4785 = vunpack.c.l.b16 %v360
      %v4786 = vunpack.c.l.b16 %v361
      %v4787 = vunpack.c.l.b16 %v362
      %v4788 = vunpack.c.l.b16 %v363
      %v4789 = vpack.c.b16 %v4786, %v4785
      %v4790 = vpack.c.b16 %v4788, %v4787
      %v4794 = vsel %vm2892, %v4770, 0
      %v4797 = vsel %vm2892, %v4772, 0
      %v4800 = vsel %vm2892, %v4774, 0
      %v4803 = vsel %vm2892, %v4776, 0
      %v4806 = vsel %vm2892, %v4778, 0
      %v4809 = vsel %vm2892, %v4780, 0
      %v4812 = vsel %vm2892, %v4779, 0
      %4814 = vmatprep.subr.bf16.mxu0 0
      %4815 = vmatpush1.bf16.msra.mxu0 %v4789
      %4816 = vmatprep.subr.bf16.mxu0 0
      %4817 = vmatpush1.bf16.msra.mxu0 %v4790
      %4818 = vmatprep.subr.bf16.mxu0 0
      %4819 = vmatpush1.bf16.msra.mxu0 0
      %4820 = vmatprep.subr.bf16.mxu0 0
      %4821 = vmatpush1.bf16.msra.mxu0 0
      %4822 = vmatprep.subr.bf16.mxu0 0
      %4823 = vmatpush1.bf16.msra.mxu0 0
      %4824 = vmatprep.subr.bf16.mxu0 0
      %4825 = vmatpush1.bf16.msra.mxu0 0
      %4826 = vmatprep.subr.bf16.mxu0 0
      %4827 = vmatpush1.bf16.msra.mxu0 0
      %4828 = vmatprep.subr.bf16.mxu0 0
      %4829 = vmatpush1.bf16.msra.mxu0 0
      %4830 = vmatprep.subr.bf16.mxu0 0
      %4831 = vmatpush1.bf16.msra.mxu0 0
      %4832 = vmatprep.subr.bf16.mxu0 0
      %4833 = vmatpush1.bf16.msra.mxu0 0
      %4834 = vmatprep.subr.bf16.mxu0 0
      %4835 = vmatpush1.bf16.msra.mxu0 0
      %4836 = vmatprep.subr.bf16.mxu0 0
      %4837 = vmatpush1.bf16.msra.mxu0 0
      %4838 = vmatprep.subr.bf16.mxu0 0
      %4839 = vmatpush1.bf16.msra.mxu0 0
      %4840 = vmatprep.subr.bf16.mxu0 0
      %4841 = vmatpush1.bf16.msra.mxu0 0
      %4842 = vmatprep.subr.bf16.mxu0 0
      %4843 = vmatpush1.bf16.msra.mxu0 0
      %4844 = vmatprep.subr.bf16.mxu0 0
      %4845 = vmatpush1.bf16.msra.mxu0 0
      %4846 = vmatprep.mubr.bf16.mxu0 0
      %4847 = vmatmul.mubr.bf16.gmra.mrb[0].mxu0 %v4794
      %v4848 = vpop.f32.mrb[0].mxu0
      %v4849 = vadd.f32 0.0, %v4848
      %v4850 = vpop.f32.mrb[0].mxu0
      %v4851 = vpop.f32.mrb[0].mxu0
      %v4852 = vadd.f32 0.0, %v4851
      %v4853 = vpop.f32.mrb[0].mxu0
      %4854 = vmatprep.mubr.bf16.mxu0 0
      %4855 = vmatmul.mubr.bf16.gmra.mrb[0].mxu0 %v4797
      %v4856 = vpop.f32.mrb[0].mxu0
      %v4857 = vadd.f32 0.0, %v4856
      %v4858 = vpop.f32.mrb[0].mxu0
      %v4859 = vpop.f32.mrb[0].mxu0
      %v4860 = vadd.f32 0.0, %v4859
      %v4861 = vpop.f32.mrb[0].mxu0
      %4862 = vmatprep.mubr.bf16.mxu0 0
      %4863 = vmatmul.mubr.bf16.gmra.mrb[0].mxu0 %v4800
      %v4864 = vpop.f32.mrb[0].mxu0
      %v4865 = vadd.f32 0.0, %v4864
      %v4866 = vpop.f32.mrb[0].mxu0
      %v4867 = vpop.f32.mrb[0].mxu0
      %v4868 = vadd.f32 0.0, %v4867
      %v4869 = vpop.f32.mrb[0].mxu0
      %4870 = vmatprep.mubr.bf16.mxu0 0
      %4871 = vmatmul.mubr.bf16.gmra.mrb[0].mxu0 %v4803
      %v4872 = vpop.f32.mrb[0].mxu0
      %v4873 = vadd.f32 0.0, %v4872
      %v4874 = vpop.f32.mrb[0].mxu0
      %v4875 = vpop.f32.mrb[0].mxu0
      %v4876 = vadd.f32 0.0, %v4875
      %v4877 = vpop.f32.mrb[0].mxu0
      %4878 = vmatprep.mubr.bf16.mxu0 0
      %4879 = vmatmul.mubr.bf16.gmra.mrb[0].mxu0 %v4806
      %v4880 = vpop.f32.mrb[0].mxu0
      %v4881 = vadd.f32 0.0, %v4880
      %v4882 = vpop.f32.mrb[0].mxu0
      %v4883 = vpop.f32.mrb[0].mxu0
      %v4884 = vadd.f32 0.0, %v4883
      %v4885 = vpop.f32.mrb[0].mxu0
      %4886 = vmatprep.mubr.bf16.mxu0 0
      %4887 = vmatmul.mubr.bf16.gmra.mrb[0].mxu0 %v4809
      %v4888 = vpop.f32.mrb[0].mxu0
      %v4889 = vadd.f32 0.0, %v4888
      %v4890 = vpop.f32.mrb[0].mxu0
      %v4891 = vpop.f32.mrb[0].mxu0
      %v4892 = vadd.f32 0.0, %v4891
      %v4893 = vpop.f32.mrb[0].mxu0
      %4894 = vmatprep.mubr.bf16.mxu0 0
      %4895 = vmatmul.mubr.bf16.gmra.mrb[0].mxu0 %v4812
      %v4896 = vpop.f32.mrb[0].mxu0
      %v4897 = vadd.f32 0.0, %v4896
      %v4898 = vpop.f32.mrb[0].mxu0
      %v4899 = vpop.f32.mrb[0].mxu0
      %v4900 = vpop.f32.mrb[0].mxu0
      %4901 = vdwg.mxu0
      %v4902 = vadd.f32 %v4747, %v4849
      %v4903 = vadd.f32 %v4748, %v4852
      %v4904 = vadd.f32 %v4749, %v4857
      %v4905 = vadd.f32 %v4750, %v4860
      %v4906 = vadd.f32 %v4751, %v4865
      %v4907 = vadd.f32 %v4752, %v4868
      %v4908 = vadd.f32 %v4753, %v4873
      %v4909 = vadd.f32 %v4754, %v4876
      %v4910 = vadd.f32 %v4755, %v4881
      %v4911 = vadd.f32 %v4756, %v4884
      %v4912 = vadd.f32 %v4757, %v4889
      %v4913 = vadd.f32 %v4758, %v4892
      %v4914 = vadd.f32 %v4759, %v4897
      %v4922 = vrot.slane %v1810, 6
      %v4923 = vrot.slane %v1811, 6
      %v4924 = vsel %vm4767, %v4922, %v4923
      %v4925 = vrot.slane %v1812, 6
      %v4926 = vsel %vm4767, %v4923, %v4925
      %v4927 = vrot.slane %v1813, 6
      %v4928 = vsel %vm4767, %v4925, %v4927
      %v4929 = vrot.slane %v1814, 6
      %v4930 = vsel %vm4767, %v4927, %v4929
      %v4931 = vrot.slane %v1815, 6
      %v4932 = vsel %vm4767, %v4929, %v4931
      %v4933 = vrot.slane %v1816, 6
      %v4934 = vsel %vm4767, %v4931, %v4933
      %v4939 = vunpack.c.l.b16 %v364
      %v4940 = vunpack.c.l.b16 %v365
      %v4941 = vunpack.c.l.b16 %v366
      %v4942 = vunpack.c.l.b16 %v367
      %v4943 = vpack.c.b16 %v4940, %v4939
      %v4944 = vpack.c.b16 %v4942, %v4941
      %v4948 = vsel %vm2892, %v4924, 0
      %v4951 = vsel %vm2892, %v4926, 0
      %v4954 = vsel %vm2892, %v4928, 0
      %v4957 = vsel %vm2892, %v4930, 0
      %v4960 = vsel %vm2892, %v4932, 0
      %v4963 = vsel %vm2892, %v4934, 0
      %v4966 = vsel %vm2892, %v4933, 0
      %4968 = vmatprep.subr.bf16.mxu0 0
      %4969 = vmatpush1.bf16.msra.mxu0 %v4943
      %4970 = vmatprep.subr.bf16.mxu0 0
      %4971 = vmatpush1.bf16.msra.mxu0 %v4944
      %4972 = vmatprep.subr.bf16.mxu0 0
      %4973 = vmatpush1.bf16.msra.mxu0 0
      %4974 = vmatprep.subr.bf16.mxu0 0
      %4975 = vmatpush1.bf16.msra.mxu0 0
      %4976 = vmatprep.subr.bf16.mxu0 0
      %4977 = vmatpush1.bf16.msra.mxu0 0
      %4978 = vmatprep.subr.bf16.mxu0 0
      %4979 = vmatpush1.bf16.msra.mxu0 0
      %4980 = vmatprep.subr.bf16.mxu0 0
      %4981 = vmatpush1.bf16.msra.mxu0 0
      %4982 = vmatprep.subr.bf16.mxu0 0
      %4983 = vmatpush1.bf16.msra.mxu0 0
      %4984 = vmatprep.subr.bf16.mxu0 0
      %4985 = vmatpush1.bf16.msra.mxu0 0
      %4986 = vmatprep.subr.bf16.mxu0 0
      %4987 = vmatpush1.bf16.msra.mxu0 0
      %4988 = vmatprep.subr.bf16.mxu0 0
      %4989 = vmatpush1.bf16.msra.mxu0 0
      %4990 = vmatprep.subr.bf16.mxu0 0
      %4991 = vmatpush1.bf16.msra.mxu0 0
      %4992 = vmatprep.subr.bf16.mxu0 0
      %4993 = vmatpush1.bf16.msra.mxu0 0
      %4994 = vmatprep.subr.bf16.mxu0 0
      %4995 = vmatpush1.bf16.msra.mxu0 0
      %4996 = vmatprep.subr.bf16.mxu0 0
      %4997 = vmatpush1.bf16.msra.mxu0 0
      %4998 = vmatprep.subr.bf16.mxu0 0
      %4999 = vmatpush1.bf16.msra.mxu0 0
      %5000 = vmatprep.mubr.bf16.mxu0 0
      %5001 = vmatmul.mubr.bf16.gmra.mrb[0].mxu0 %v4948
      %v5002 = vpop.f32.mrb[0].mxu0
      %v5003 = vadd.f32 0.0, %v5002
      %v5004 = vpop.f32.mrb[0].mxu0
      %v5005 = vpop.f32.mrb[0].mxu0
      %v5006 = vadd.f32 0.0, %v5005
      %v5007 = vpop.f32.mrb[0].mxu0
      %5008 = vmatprep.mubr.bf16.mxu0 0
      %5009 = vmatmul.mubr.bf16.gmra.mrb[0].mxu0 %v4951
      %v5010 = vpop.f32.mrb[0].mxu0
      %v5011 = vadd.f32 0.0, %v5010
      %v5012 = vpop.f32.mrb[0].mxu0
      %v5013 = vpop.f32.mrb[0].mxu0
      %v5014 = vadd.f32 0.0, %v5013
      %v5015 = vpop.f32.mrb[0].mxu0
      %5016 = vmatprep.mubr.bf16.mxu0 0
      %5017 = vmatmul.mubr.bf16.gmra.mrb[0].mxu0 %v4954
      %v5018 = vpop.f32.mrb[0].mxu0
      %v5019 = vadd.f32 0.0, %v5018
      %v5020 = vpop.f32.mrb[0].mxu0
      %v5021 = vpop.f32.mrb[0].mxu0
      %v5022 = vadd.f32 0.0, %v5021
      %v5023 = vpop.f32.mrb[0].mxu0
      %5024 = vmatprep.mubr.bf16.mxu0 0
      %5025 = vmatmul.mubr.bf16.gmra.mrb[0].mxu0 %v4957
      %v5026 = vpop.f32.mrb[0].mxu0
      %v5027 = vadd.f32 0.0, %v5026
      %v5028 = vpop.f32.mrb[0].mxu0
      %v5029 = vpop.f32.mrb[0].mxu0
      %v5030 = vadd.f32 0.0, %v5029
      %v5031 = vpop.f32.mrb[0].mxu0
      %5032 = vmatprep.mubr.bf16.mxu0 0
      %5033 = vmatmul.mubr.bf16.gmra.mrb[0].mxu0 %v4960
      %v5034 = vpop.f32.mrb[0].mxu0
      %v5035 = vadd.f32 0.0, %v5034
      %v5036 = vpop.f32.mrb[0].mxu0
      %v5037 = vpop.f32.mrb[0].mxu0
      %v5038 = vadd.f32 0.0, %v5037
      %v5039 = vpop.f32.mrb[0].mxu0
      %5040 = vmatprep.mubr.bf16.mxu0 0
      %5041 = vmatmul.mubr.bf16.gmra.mrb[0].mxu0 %v4963
      %v5042 = vpop.f32.mrb[0].mxu0
      %v5043 = vadd.f32 0.0, %v5042
      %v5044 = vpop.f32.mrb[0].mxu0
      %v5045 = vpop.f32.mrb[0].mxu0
      %v5046 = vadd.f32 0.0, %v5045
      %v5047 = vpop.f32.mrb[0].mxu0
      %5048 = vmatprep.mubr.bf16.mxu0 0
      %5049 = vmatmul.mubr.bf16.gmra.mrb[0].mxu0 %v4966
      %v5050 = vpop.f32.mrb[0].mxu0
      %v5051 = vadd.f32 0.0, %v5050
      %v5052 = vpop.f32.mrb[0].mxu0
      %v5053 = vpop.f32.mrb[0].mxu0
      %v5054 = vpop.f32.mrb[0].mxu0
      %5055 = vdwg.mxu0
      %v5056 = vadd.f32 %v4902, %v5003
      %v5057 = vadd.f32 %v4903, %v5006
      %v5058 = vadd.f32 %v4904, %v5011
      %v5059 = vadd.f32 %v4905, %v5014
      %v5060 = vadd.f32 %v4906, %v5019
      %v5061 = vadd.f32 %v4907, %v5022
      %v5062 = vadd.f32 %v4908, %v5027
      %v5063 = vadd.f32 %v4909, %v5030
      %v5064 = vadd.f32 %v4910, %v5035
      %v5065 = vadd.f32 %v4911, %v5038
      %v5066 = vadd.f32 %v4912, %v5043
      %v5067 = vadd.f32 %v4913, %v5046
      %v5068 = vadd.f32 %v4914, %v5051
      %v5076 = vrot.slane %v2414, 6
      %v5077 = vrot.slane %v2415, 6
      %v5078 = vsel %vm4767, %v5076, %v5077
      %v5079 = vrot.slane %v2416, 6
      %v5080 = vsel %vm4767, %v5077, %v5079
      %v5081 = vrot.slane %v2417, 6
      %v5082 = vsel %vm4767, %v5079, %v5081
      %v5083 = vrot.slane %v2418, 6
      %v5084 = vsel %vm4767, %v5081, %v5083
      %v5085 = vrot.slane %v2419, 6
      %v5086 = vsel %vm4767, %v5083, %v5085
      %v5087 = vrot.slane %v2420, 6
      %v5088 = vsel %vm4767, %v5085, %v5087
      %v5093 = vunpack.c.l.b16 %v368
      %v5094 = vunpack.c.l.b16 %v369
      %v5095 = vunpack.c.l.b16 %v370
      %v5096 = vunpack.c.l.b16 %v371
      %v5097 = vpack.c.b16 %v5094, %v5093
      %v5098 = vpack.c.b16 %v5096, %v5095
      %v5102 = vsel %vm2892, %v5078, 0
      %v5105 = vsel %vm2892, %v5080, 0
      %v5108 = vsel %vm2892, %v5082, 0
      %v5111 = vsel %vm2892, %v5084, 0
      %v5114 = vsel %vm2892, %v5086, 0
      %v5117 = vsel %vm2892, %v5088, 0
      %v5120 = vsel %vm2892, %v5087, 0
      %5122 = vmatprep.subr.bf16.mxu0 0
      %5123 = vmatpush1.bf16.msra.mxu0 %v5097
      %5124 = vmatprep.subr.bf16.mxu0 0
      %5125 = vmatpush1.bf16.msra.mxu0 %v5098
      %5126 = vmatprep.subr.bf16.mxu0 0
      %5127 = vmatpush1.bf16.msra.mxu0 0
      %5128 = vmatprep.subr.bf16.mxu0 0
      %5129 = vmatpush1.bf16.msra.mxu0 0
      %5130 = vmatprep.subr.bf16.mxu0 0
      %5131 = vmatpush1.bf16.msra.mxu0 0
      %5132 = vmatprep.subr.bf16.mxu0 0
      %5133 = vmatpush1.bf16.msra.mxu0 0
      %5134 = vmatprep.subr.bf16.mxu0 0
      %5135 = vmatpush1.bf16.msra.mxu0 0
      %5136 = vmatprep.subr.bf16.mxu0 0
      %5137 = vmatpush1.bf16.msra.mxu0 0
      %5138 = vmatprep.subr.bf16.mxu0 0
      %5139 = vmatpush1.bf16.msra.mxu0 0
      %5140 = vmatprep.subr.bf16.mxu0 0
      %5141 = vmatpush1.bf16.msra.mxu0 0
      %5142 = vmatprep.subr.bf16.mxu0 0
      %5143 = vmatpush1.bf16.msra.mxu0 0
      %5144 = vmatprep.subr.bf16.mxu0 0
      %5145 = vmatpush1.bf16.msra.mxu0 0
      %5146 = vmatprep.subr.bf16.mxu0 0
      %5147 = vmatpush1.bf16.msra.mxu0 0
      %5148 = vmatprep.subr.bf16.mxu0 0
      %5149 = vmatpush1.bf16.msra.mxu0 0
      %5150 = vmatprep.subr.bf16.mxu0 0
      %5151 = vmatpush1.bf16.msra.mxu0 0
      %5152 = vmatprep.subr.bf16.mxu0 0
      %5153 = vmatpush1.bf16.msra.mxu0 0
      %5154 = vmatprep.mubr.bf16.mxu0 0
      %5155 = vmatmul.mubr.bf16.gmra.mrb[0].mxu0 %v5102
      %v5156 = vpop.f32.mrb[0].mxu0
      %v5157 = vadd.f32 0.0, %v5156
      %v5158 = vpop.f32.mrb[0].mxu0
      %v5159 = vpop.f32.mrb[0].mxu0
      %v5160 = vadd.f32 0.0, %v5159
      %v5161 = vpop.f32.mrb[0].mxu0
      %5162 = vmatprep.mubr.bf16.mxu0 0
      %5163 = vmatmul.mubr.bf16.gmra.mrb[0].mxu0 %v5105
      %v5164 = vpop.f32.mrb[0].mxu0
      %v5165 = vadd.f32 0.0, %v5164
      %v5166 = vpop.f32.mrb[0].mxu0
      %v5167 = vpop.f32.mrb[0].mxu0
      %v5168 = vadd.f32 0.0, %v5167
      %v5169 = vpop.f32.mrb[0].mxu0
      %5170 = vmatprep.mubr.bf16.mxu0 0
      %5171 = vmatmul.mubr.bf16.gmra.mrb[0].mxu0 %v5108
      %v5172 = vpop.f32.mrb[0].mxu0
      %v5173 = vadd.f32 0.0, %v5172
      %v5174 = vpop.f32.mrb[0].mxu0
      %v5175 = vpop.f32.mrb[0].mxu0
      %v5176 = vadd.f32 0.0, %v5175
      %v5177 = vpop.f32.mrb[0].mxu0
      %5178 = vmatprep.mubr.bf16.mxu0 0
      %5179 = vmatmul.mubr.bf16.gmra.mrb[0].mxu0 %v5111
      %v5180 = vpop.f32.mrb[0].mxu0
      %v5181 = vadd.f32 0.0, %v5180
      %v5182 = vpop.f32.mrb[0].mxu0
      %v5183 = vpop.f32.mrb[0].mxu0
      %v5184 = vadd.f32 0.0, %v5183
      %v5185 = vpop.f32.mrb[0].mxu0
      %5186 = vmatprep.mubr.bf16.mxu0 0
      %5187 = vmatmul.mubr.bf16.gmra.mrb[0].mxu0 %v5114
      %v5188 = vpop.f32.mrb[0].mxu0
      %v5189 = vadd.f32 0.0, %v5188
      %v5190 = vpop.f32.mrb[0].mxu0
      %v5191 = vpop.f32.mrb[0].mxu0
      %v5192 = vadd.f32 0.0, %v5191
      %v5193 = vpop.f32.mrb[0].mxu0
      %5194 = vmatprep.mubr.bf16.mxu0 0
      %5195 = vmatmul.mubr.bf16.gmra.mrb[0].mxu0 %v5117
      %v5196 = vpop.f32.mrb[0].mxu0
      %v5197 = vadd.f32 0.0, %v5196
      %v5198 = vpop.f32.mrb[0].mxu0
      %v5199 = vpop.f32.mrb[0].mxu0
      %v5200 = vadd.f32 0.0, %v5199
      %v5201 = vpop.f32.mrb[0].mxu0
      %5202 = vmatprep.mubr.bf16.mxu0 0
      %5203 = vmatmul.mubr.bf16.gmra.mrb[0].mxu0 %v5120
      %v5204 = vpop.f32.mrb[0].mxu0
      %v5205 = vadd.f32 0.0, %v5204
      %v5206 = vpop.f32.mrb[0].mxu0
      %v5207 = vpop.f32.mrb[0].mxu0
      %v5208 = vpop.f32.mrb[0].mxu0
      %5209 = vdwg.mxu0
      %v5210 = vadd.f32 %v5056, %v5157
      %v5211 = vadd.f32 %v5057, %v5160
      %v5212 = vadd.f32 %v5058, %v5165
      %v5213 = vadd.f32 %v5059, %v5168
      %v5214 = vadd.f32 %v5060, %v5173
      %v5215 = vadd.f32 %v5061, %v5176
      %v5216 = vadd.f32 %v5062, %v5181
      %v5217 = vadd.f32 %v5063, %v5184
      %v5218 = vadd.f32 %v5064, %v5189
      %v5219 = vadd.f32 %v5065, %v5192
      %v5220 = vadd.f32 %v5066, %v5197
      %v5221 = vadd.f32 %v5067, %v5200
      %v5222 = vadd.f32 %v5068, %v5205
      %v5230 = vrot.slane %v2873, 6
      %v5231 = vrot.slane %v2874, 6
      %v5232 = vsel %vm4767, %v5230, %v5231
      %v5233 = vrot.slane %v2875, 6
      %v5234 = vsel %vm4767, %v5231, %v5233
      %v5235 = vrot.slane %v2876, 6
      %v5236 = vsel %vm4767, %v5233, %v5235
      %v5237 = vrot.slane %v2877, 6
      %v5238 = vsel %vm4767, %v5235, %v5237
      %v5239 = vrot.slane %v2878, 6
      %v5240 = vsel %vm4767, %v5237, %v5239
      %v5241 = vrot.slane %v2879, 6
      %v5242 = vsel %vm4767, %v5239, %v5241
      %v5247 = vunpack.c.l.b16 %v372
      %v5248 = vunpack.c.l.b16 %v373
      %v5249 = vunpack.c.l.b16 %v374
      %v5250 = vunpack.c.l.b16 %v375
      %v5251 = vpack.c.b16 %v5248, %v5247
      %v5252 = vpack.c.b16 %v5250, %v5249
      %v5256 = vsel %vm2892, %v5232, 0
      %v5259 = vsel %vm2892, %v5234, 0
      %v5262 = vsel %vm2892, %v5236, 0
      %v5265 = vsel %vm2892, %v5238, 0
      %v5268 = vsel %vm2892, %v5240, 0
      %v5271 = vsel %vm2892, %v5242, 0
      %v5274 = vsel %vm2892, %v5241, 0
      %5276 = vmatprep.subr.bf16.mxu0 0
      %5277 = vmatpush1.bf16.msra.mxu0 %v5251
      %5278 = vmatprep.subr.bf16.mxu0 0
      %5279 = vmatpush1.bf16.msra.mxu0 %v5252
      %5280 = vmatprep.subr.bf16.mxu0 0
      %5281 = vmatpush1.bf16.msra.mxu0 0
      %5282 = vmatprep.subr.bf16.mxu0 0
      %5283 = vmatpush1.bf16.msra.mxu0 0
      %5284 = vmatprep.subr.bf16.mxu0 0
      %5285 = vmatpush1.bf16.msra.mxu0 0
      %5286 = vmatprep.subr.bf16.mxu0 0
      %5287 = vmatpush1.bf16.msra.mxu0 0
      %5288 = vmatprep.subr.bf16.mxu0 0
      %5289 = vmatpush1.bf16.msra.mxu0 0
      %5290 = vmatprep.subr.bf16.mxu0 0
      %5291 = vmatpush1.bf16.msra.mxu0 0
      %5292 = vmatprep.subr.bf16.mxu0 0
      %5293 = vmatpush1.bf16.msra.mxu0 0
      %5294 = vmatprep.subr.bf16.mxu0 0
      %5295 = vmatpush1.bf16.msra.mxu0 0
      %5296 = vmatprep.subr.bf16.mxu0 0
      %5297 = vmatpush1.bf16.msra.mxu0 0
      %5298 = vmatprep.subr.bf16.mxu0 0
      %5299 = vmatpush1.bf16.msra.mxu0 0
      %5300 = vmatprep.subr.bf16.mxu0 0
      %5301 = vmatpush1.bf16.msra.mxu0 0
      %5302 = vmatprep.subr.bf16.mxu0 0
      %5303 = vmatpush1.bf16.msra.mxu0 0
      %5304 = vmatprep.subr.bf16.mxu0 0
      %5305 = vmatpush1.bf16.msra.mxu0 0
      %5306 = vmatprep.subr.bf16.mxu0 0
      %5307 = vmatpush1.bf16.msra.mxu0 0
      %5308 = vmatprep.mubr.bf16.mxu0 0
      %5309 = vmatmul.mubr.bf16.gmra.mrb[0].mxu0 %v5256
      %v5310 = vpop.f32.mrb[0].mxu0
      %v5311 = vadd.f32 0.0, %v5310
      %v5312 = vpop.f32.mrb[0].mxu0
      %v5313 = vpop.f32.mrb[0].mxu0
      %v5314 = vadd.f32 0.0, %v5313
      %v5315 = vpop.f32.mrb[0].mxu0
      %5316 = vmatprep.mubr.bf16.mxu0 0
      %5317 = vmatmul.mubr.bf16.gmra.mrb[0].mxu0 %v5259
      %v5318 = vpop.f32.mrb[0].mxu0
      %v5319 = vadd.f32 0.0, %v5318
      %v5320 = vpop.f32.mrb[0].mxu0
      %v5321 = vpop.f32.mrb[0].mxu0
      %v5322 = vadd.f32 0.0, %v5321
      %v5323 = vpop.f32.mrb[0].mxu0
      %5324 = vmatprep.mubr.bf16.mxu0 0
      %5325 = vmatmul.mubr.bf16.gmra.mrb[0].mxu0 %v5262
      %v5326 = vpop.f32.mrb[0].mxu0
      %v5327 = vadd.f32 0.0, %v5326
      %v5328 = vpop.f32.mrb[0].mxu0
      %v5329 = vpop.f32.mrb[0].mxu0
      %v5330 = vadd.f32 0.0, %v5329
      %v5331 = vpop.f32.mrb[0].mxu0
      %5332 = vmatprep.mubr.bf16.mxu0 0
      %5333 = vmatmul.mubr.bf16.gmra.mrb[0].mxu0 %v5265
      %v5334 = vpop.f32.mrb[0].mxu0
      %v5335 = vadd.f32 0.0, %v5334
      %v5336 = vpop.f32.mrb[0].mxu0
      %v5337 = vpop.f32.mrb[0].mxu0
      %v5338 = vadd.f32 0.0, %v5337
      %v5339 = vpop.f32.mrb[0].mxu0
      %5340 = vmatprep.mubr.bf16.mxu0 0
      %5341 = vmatmul.mubr.bf16.gmra.mrb[0].mxu0 %v5268
      %v5342 = vpop.f32.mrb[0].mxu0
      %v5343 = vadd.f32 0.0, %v5342
      %v5344 = vpop.f32.mrb[0].mxu0
      %v5345 = vpop.f32.mrb[0].mxu0
      %v5346 = vadd.f32 0.0, %v5345
      %v5347 = vpop.f32.mrb[0].mxu0
      %5348 = vmatprep.mubr.bf16.mxu0 0
      %5349 = vmatmul.mubr.bf16.gmra.mrb[0].mxu0 %v5271
      %v5350 = vpop.f32.mrb[0].mxu0
      %v5351 = vadd.f32 0.0, %v5350
      %v5352 = vpop.f32.mrb[0].mxu0
      %v5353 = vpop.f32.mrb[0].mxu0
      %v5354 = vadd.f32 0.0, %v5353
      %v5355 = vpop.f32.mrb[0].mxu0
      %5356 = vmatprep.mubr.bf16.mxu0 0
      %5357 = vmatmul.mubr.bf16.gmra.mrb[0].mxu0 %v5274
      %v5358 = vpop.f32.mrb[0].mxu0
      %v5359 = vadd.f32 0.0, %v5358
      %v5360 = vpop.f32.mrb[0].mxu0
      %v5361 = vpop.f32.mrb[0].mxu0
      %v5362 = vpop.f32.mrb[0].mxu0
      %5363 = vdwg.mxu0
      %v5364 = vadd.f32 %v5210, %v5311
      %v5365 = vadd.f32 %v5211, %v5314
      %v5366 = vadd.f32 %v5212, %v5319
      %v5367 = vadd.f32 %v5213, %v5322
      %v5368 = vadd.f32 %v5214, %v5327
      %v5369 = vadd.f32 %v5215, %v5330
      %v5370 = vadd.f32 %v5216, %v5335
      %v5371 = vadd.f32 %v5217, %v5338
      %v5372 = vadd.f32 %v5218, %v5343
      %v5373 = vadd.f32 %v5219, %v5346
      %v5374 = vadd.f32 %v5220, %v5351
      %v5375 = vadd.f32 %v5221, %v5354
      %v5376 = vadd.f32 %v5222, %v5359
      %v5378 = vlaneseq
      %v5379 = vshrl.u32 %v5378, 7
      %v5380 = vsub.s32 0, %v5379
      %v5381 = vrot.slane %v449, %v5380
      %v5383 = vadd.f32 %v5364, %v5381
      %v5384 = vadd.f32 %v5365, %v5381
      %v5385 = vadd.f32 %v5366, %v5381
      %v5386 = vadd.f32 %v5367, %v5381
      %v5387 = vadd.f32 %v5368, %v5381
      %v5388 = vadd.f32 %v5369, %v5381
      %v5389 = vadd.f32 %v5370, %v5381
      %v5390 = vadd.f32 %v5371, %v5381
      %v5391 = vadd.f32 %v5372, %v5381
      %v5392 = vadd.f32 %v5373, %v5381
      %v5393 = vadd.f32 %v5374, %v5381
      %v5394 = vadd.f32 %v5375, %v5381
      %v5395 = vadd.f32 %v5376, %v5381
      %v5396 = vmax.f32 %v5383, 0.0
      %v5397 = vmax.f32 %v5384, 0.0
      %v5398 = vmax.f32 %v5385, 0.0
      %v5399 = vmax.f32 %v5386, 0.0
      %v5400 = vmax.f32 %v5387, 0.0
      %v5401 = vmax.f32 %v5388, 0.0
      %v5402 = vmax.f32 %v5389, 0.0
      %v5403 = vmax.f32 %v5390, 0.0
      %v5404 = vmax.f32 %v5391, 0.0
      %v5405 = vmax.f32 %v5392, 0.0
      %v5406 = vmax.f32 %v5393, 0.0
      %v5407 = vmax.f32 %v5394, 0.0
      %v5408 = vmax.f32 %v5395, 0.0
      %v5409 = vpack.c.bf16 %v5397, %v5396
      %v5410 = vpack.c.bf16 %v5399, %v5398
      %v5411 = vpack.c.bf16 %v5401, %v5400
      %v5412 = vpack.c.bf16 %v5403, %v5402
      %v5413 = vpack.c.bf16 %v5405, %v5404
      %v5414 = vpack.c.bf16 %v5407, %v5406
      %v5415 = vpack.c.bf16 %v5408, %v5408
      %v5417 = vshrl.u32 %v5409, 16
      %v5419 = vshll.u32 %v5409, 16
      %v5421 = vrot.slane %v5419, 1
      %v5422 = vor.u32 %v5417, %v5421
      %v5424 = vshll.u32 %v5410, 16
      %v5426 = vrot.slane %v5424, 1
      %v5427 = vsel %vm1259, %v5422, %v5426
      %v5428 = vshrl.u32 %v5410, 16
      %v5430 = vor.u32 %v5428, %v5426
      %v5432 = vshll.u32 %v5411, 16
      %v5434 = vrot.slane %v5432, 1
      %v5435 = vsel %vm1259, %v5430, %v5434
      %v5436 = vshrl.u32 %v5411, 16
      %v5438 = vor.u32 %v5436, %v5434
      %v5440 = vshll.u32 %v5412, 16
      %v5442 = vrot.slane %v5440, 1
      %v5443 = vsel %vm1259, %v5438, %v5442
      %v5444 = vshrl.u32 %v5412, 16
      %v5446 = vor.u32 %v5444, %v5442
      %v5448 = vshll.u32 %v5413, 16
      %v5450 = vrot.slane %v5448, 1
      %v5451 = vsel %vm1259, %v5446, %v5450
      %v5452 = vshrl.u32 %v5413, 16
      %v5454 = vor.u32 %v5452, %v5450
      %v5463 = vunpack.c.l.b16 %v384
      %v5464 = vunpack.c.l.b16 %v385
      %v5465 = vunpack.c.l.b16 %v386
      %v5466 = vunpack.c.l.b16 %v387
      %v5467 = vunpack.c.l.b16 %v388
      %v5468 = vunpack.c.l.b16 %v389
      %v5469 = vunpack.c.l.b16 %v390
      %v5470 = vunpack.c.l.b16 %v391
      %v5471 = vpack.c.b16 %v5464, %v5463
      %v5472 = vpack.c.b16 %v5466, %v5465
      %v5473 = vpack.c.b16 %v5468, %v5467
      %v5474 = vpack.c.b16 %v5470, %v5469
      %v5480 = vsel %vm572, %v5427, 0
      %v5483 = vsel %vm572, %v5435, 0
      %v5486 = vsel %vm572, %v5443, 0
      %v5489 = vsel %vm572, %v5451, 0
      %v5492 = vsel %vm572, %v5454, 0
      %5494 = vmatprep.subr.bf16.mxu0 0
      %5495 = vmatpush1.bf16.msra.mxu0 %v5471
      %5496 = vmatprep.subr.bf16.mxu0 0
      %5497 = vmatpush1.bf16.msra.mxu0 %v5472
      %5498 = vmatprep.subr.bf16.mxu0 0
      %5499 = vmatpush1.bf16.msra.mxu0 %v5473
      %5500 = vmatprep.subr.bf16.mxu0 0
      %5501 = vmatpush1.bf16.msra.mxu0 %v5474
      %5502 = vmatprep.subr.bf16.mxu0 0
      %5503 = vmatpush1.bf16.msra.mxu0 0
      %5504 = vmatprep.subr.bf16.mxu0 0
      %5505 = vmatpush1.bf16.msra.mxu0 0
      %5506 = vmatprep.subr.bf16.mxu0 0
      %5507 = vmatpush1.bf16.msra.mxu0 0
      %5508 = vmatprep.subr.bf16.mxu0 0
      %5509 = vmatpush1.bf16.msra.mxu0 0
      %5510 = vmatprep.subr.bf16.mxu0 0
      %5511 = vmatpush1.bf16.msra.mxu0 0
      %5512 = vmatprep.subr.bf16.mxu0 0
      %5513 = vmatpush1.bf16.msra.mxu0 0
      %5514 = vmatprep.subr.bf16.mxu0 0
      %5515 = vmatpush1.bf16.msra.mxu0 0
      %5516 = vmatprep.subr.bf16.mxu0 0
      %5517 = vmatpush1.bf16.msra.mxu0 0
      %5518 = vmatprep.subr.bf16.mxu0 0
      %5519 = vmatpush1.bf16.msra.mxu0 0
      %5520 = vmatprep.subr.bf16.mxu0 0
      %5521 = vmatpush1.bf16.msra.mxu0 0
      %5522 = vmatprep.subr.bf16.mxu0 0
      %5523 = vmatpush1.bf16.msra.mxu0 0
      %5524 = vmatprep.subr.bf16.mxu0 0
      %5525 = vmatpush1.bf16.msra.mxu0 0
      %5526 = vmatprep.mubr.bf16.mxu0 0
      %5527 = vmatmul.mubr.bf16.gmra.mrb[0].mxu0 %v5480
      %v5528 = vpop.f32.mrb[0].mxu0
      %v5529 = vadd.f32 0.0, %v5528
      %v5530 = vpop.f32.mrb[0].mxu0
      %v5531 = vpop.f32.mrb[0].mxu0
      %v5532 = vadd.f32 0.0, %v5531
      %v5533 = vpop.f32.mrb[0].mxu0
      %5534 = vmatprep.mubr.bf16.mxu0 0
      %5535 = vmatmul.mubr.bf16.gmra.mrb[0].mxu0 %v5483
      %v5536 = vpop.f32.mrb[0].mxu0
      %v5537 = vadd.f32 0.0, %v5536
      %v5538 = vpop.f32.mrb[0].mxu0
      %v5539 = vpop.f32.mrb[0].mxu0
      %v5540 = vadd.f32 0.0, %v5539
      %v5541 = vpop.f32.mrb[0].mxu0
      %5542 = vmatprep.mubr.bf16.mxu0 0
      %5543 = vmatmul.mubr.bf16.gmra.mrb[0].mxu0 %v5486
      %v5544 = vpop.f32.mrb[0].mxu0
      %v5545 = vadd.f32 0.0, %v5544
      %v5546 = vpop.f32.mrb[0].mxu0
      %v5547 = vpop.f32.mrb[0].mxu0
      %v5548 = vadd.f32 0.0, %v5547
      %v5549 = vpop.f32.mrb[0].mxu0
      %5550 = vmatprep.mubr.bf16.mxu0 0
      %5551 = vmatmul.mubr.bf16.gmra.mrb[0].mxu0 %v5489
      %v5552 = vpop.f32.mrb[0].mxu0
      %v5553 = vadd.f32 0.0, %v5552
      %v5554 = vpop.f32.mrb[0].mxu0
      %v5555 = vpop.f32.mrb[0].mxu0
      %v5556 = vadd.f32 0.0, %v5555
      %v5557 = vpop.f32.mrb[0].mxu0
      %5558 = vmatprep.mubr.bf16.mxu0 0
      %5559 = vmatmul.mubr.bf16.gmra.mrb[0].mxu0 %v5492
      %v5560 = vpop.f32.mrb[0].mxu0
      %v5561 = vadd.f32 0.0, %v5560
      %v5562 = vpop.f32.mrb[0].mxu0
      %v5563 = vpop.f32.mrb[0].mxu0
      %v5564 = vadd.f32 0.0, %v5563
      %v5565 = vpop.f32.mrb[0].mxu0
      %5566 = vdwg.mxu0
      %v5575 = vunpack.c.l.b16 %v376
      %v5576 = vunpack.c.l.b16 %v377
      %v5577 = vunpack.c.l.b16 %v378
      %v5578 = vunpack.c.l.b16 %v379
      %v5579 = vunpack.c.l.b16 %v380
      %v5580 = vunpack.c.l.b16 %v381
      %v5581 = vunpack.c.l.b16 %v382
      %v5582 = vunpack.c.l.b16 %v383
      %v5583 = vpack.c.b16 %v5576, %v5575
      %v5584 = vpack.c.b16 %v5578, %v5577
      %v5585 = vpack.c.b16 %v5580, %v5579
      %v5586 = vpack.c.b16 %v5582, %v5581
      %v5591 = vsel %vm572, %v5409, 0
      %v5593 = vsel %vm572, %v5410, 0
      %v5595 = vsel %vm572, %v5411, 0
      %v5597 = vsel %vm572, %v5412, 0
      %v5599 = vsel %vm572, %v5413, 0
      %5601 = vmatprep.subr.bf16.mxu0 0
      %5602 = vmatpush1.bf16.msra.mxu0 %v5583
      %5603 = vmatprep.subr.bf16.mxu0 0
      %5604 = vmatpush1.bf16.msra.mxu0 %v5584
      %5605 = vmatprep.subr.bf16.mxu0 0
      %5606 = vmatpush1.bf16.msra.mxu0 %v5585
      %5607 = vmatprep.subr.bf16.mxu0 0
      %5608 = vmatpush1.bf16.msra.mxu0 %v5586
      %5609 = vmatprep.subr.bf16.mxu0 0
      %5610 = vmatpush1.bf16.msra.mxu0 0
      %5611 = vmatprep.subr.bf16.mxu0 0
      %5612 = vmatpush1.bf16.msra.mxu0 0
      %5613 = vmatprep.subr.bf16.mxu0 0
      %5614 = vmatpush1.bf16.msra.mxu0 0
      %5615 = vmatprep.subr.bf16.mxu0 0
      %5616 = vmatpush1.bf16.msra.mxu0 0
      %5617 = vmatprep.subr.bf16.mxu0 0
      %5618 = vmatpush1.bf16.msra.mxu0 0
      %5619 = vmatprep.subr.bf16.mxu0 0
      %5620 = vmatpush1.bf16.msra.mxu0 0
      %5621 = vmatprep.subr.bf16.mxu0 0
      %5622 = vmatpush1.bf16.msra.mxu0 0
      %5623 = vmatprep.subr.bf16.mxu0 0
      %5624 = vmatpush1.bf16.msra.mxu0 0
      %5625 = vmatprep.subr.bf16.mxu0 0
      %5626 = vmatpush1.bf16.msra.mxu0 0
      %5627 = vmatprep.subr.bf16.mxu0 0
      %5628 = vmatpush1.bf16.msra.mxu0 0
      %5629 = vmatprep.subr.bf16.mxu0 0
      %5630 = vmatpush1.bf16.msra.mxu0 0
      %5631 = vmatprep.subr.bf16.mxu0 0
      %5632 = vmatpush1.bf16.msra.mxu0 0
      %5633 = vmatprep.mubr.bf16.mxu0 0
      %5634 = vmatmul.mubr.bf16.gmra.mrb[0].mxu0 %v5591
      %v5635 = vpop.f32.mrb[0].mxu0
      %v5636 = vadd.f32 %v5529, %v5635
      %v5637 = vpop.f32.mrb[0].mxu0
      %v5638 = vpop.f32.mrb[0].mxu0
      %v5639 = vadd.f32 %v5532, %v5638
      %v5640 = vpop.f32.mrb[0].mxu0
      %5641 = vmatprep.mubr.bf16.mxu0 0
      %5642 = vmatmul.mubr.bf16.gmra.mrb[0].mxu0 %v5593
      %v5643 = vpop.f32.mrb[0].mxu0
      %v5644 = vadd.f32 %v5537, %v5643
      %v5645 = vpop.f32.mrb[0].mxu0
      %v5646 = vpop.f32.mrb[0].mxu0
      %v5647 = vadd.f32 %v5540, %v5646
      %v5648 = vpop.f32.mrb[0].mxu0
      %5649 = vmatprep.mubr.bf16.mxu0 0
      %5650 = vmatmul.mubr.bf16.gmra.mrb[0].mxu0 %v5595
      %v5651 = vpop.f32.mrb[0].mxu0
      %v5652 = vadd.f32 %v5545, %v5651
      %v5653 = vpop.f32.mrb[0].mxu0
      %v5654 = vpop.f32.mrb[0].mxu0
      %v5655 = vadd.f32 %v5548, %v5654
      %v5656 = vpop.f32.mrb[0].mxu0
      %5657 = vmatprep.mubr.bf16.mxu0 0
      %5658 = vmatmul.mubr.bf16.gmra.mrb[0].mxu0 %v5597
      %v5659 = vpop.f32.mrb[0].mxu0
      %v5660 = vadd.f32 %v5553, %v5659
      %v5661 = vpop.f32.mrb[0].mxu0
      %v5662 = vpop.f32.mrb[0].mxu0
      %v5663 = vadd.f32 %v5556, %v5662
      %v5664 = vpop.f32.mrb[0].mxu0
      %5665 = vmatprep.mubr.bf16.mxu0 0
      %5666 = vmatmul.mubr.bf16.gmra.mrb[0].mxu0 %v5599
      %v5667 = vpop.f32.mrb[0].mxu0
      %v5668 = vadd.f32 %v5561, %v5667
      %v5669 = vpop.f32.mrb[0].mxu0
      %v5670 = vpop.f32.mrb[0].mxu0
      %v5671 = vadd.f32 %v5564, %v5670
      %v5672 = vpop.f32.mrb[0].mxu0
      %5673 = vdwg.mxu0
      %vm5679 = vcmask 1046528
      %v5680 = vrot.slane %v5409, 1
      %v5681 = vrot.slane %v5410, 1
      %v5682 = vsel %vm5679, %v5680, %v5681
      %v5683 = vrot.slane %v5411, 1
      %v5684 = vsel %vm5679, %v5681, %v5683
      %v5685 = vrot.slane %v5412, 1
      %v5686 = vsel %vm5679, %v5683, %v5685
      %v5687 = vrot.slane %v5413, 1
      %v5688 = vsel %vm5679, %v5685, %v5687
      %v5697 = vunpack.c.l.b16 %v392
      %v5698 = vunpack.c.l.b16 %v393
      %v5699 = vunpack.c.l.b16 %v394
      %v5700 = vunpack.c.l.b16 %v395
      %v5701 = vunpack.c.l.b16 %v396
      %v5702 = vunpack.c.l.b16 %v397
      %v5703 = vunpack.c.l.b16 %v398
      %v5704 = vunpack.c.l.b16 %v399
      %v5705 = vpack.c.b16 %v5698, %v5697
      %v5706 = vpack.c.b16 %v5700, %v5699
      %v5707 = vpack.c.b16 %v5702, %v5701
      %v5708 = vpack.c.b16 %v5704, %v5703
      %v5714 = vsel %vm572, %v5682, 0
      %v5717 = vsel %vm572, %v5684, 0
      %v5720 = vsel %vm572, %v5686, 0
      %v5723 = vsel %vm572, %v5688, 0
      %v5726 = vsel %vm572, %v5687, 0
      %5728 = vmatprep.subr.bf16.mxu0 0
      %5729 = vmatpush1.bf16.msra.mxu0 %v5705
      %5730 = vmatprep.subr.bf16.mxu0 0
      %5731 = vmatpush1.bf16.msra.mxu0 %v5706
      %5732 = vmatprep.subr.bf16.mxu0 0
      %5733 = vmatpush1.bf16.msra.mxu0 %v5707
      %5734 = vmatprep.subr.bf16.mxu0 0
      %5735 = vmatpush1.bf16.msra.mxu0 %v5708
      %5736 = vmatprep.subr.bf16.mxu0 0
      %5737 = vmatpush1.bf16.msra.mxu0 0
      %5738 = vmatprep.subr.bf16.mxu0 0
      %5739 = vmatpush1.bf16.msra.mxu0 0
      %5740 = vmatprep.subr.bf16.mxu0 0
      %5741 = vmatpush1.bf16.msra.mxu0 0
      %5742 = vmatprep.subr.bf16.mxu0 0
      %5743 = vmatpush1.bf16.msra.mxu0 0
      %5744 = vmatprep.subr.bf16.mxu0 0
      %5745 = vmatpush1.bf16.msra.mxu0 0
      %5746 = vmatprep.subr.bf16.mxu0 0
      %5747 = vmatpush1.bf16.msra.mxu0 0
      %5748 = vmatprep.subr.bf16.mxu0 0
      %5749 = vmatpush1.bf16.msra.mxu0 0
      %5750 = vmatprep.subr.bf16.mxu0 0
      %5751 = vmatpush1.bf16.msra.mxu0 0
      %5752 = vmatprep.subr.bf16.mxu0 0
      %5753 = vmatpush1.bf16.msra.mxu0 0
      %5754 = vmatprep.subr.bf16.mxu0 0
      %5755 = vmatpush1.bf16.msra.mxu0 0
      %5756 = vmatprep.subr.bf16.mxu0 0
      %5757 = vmatpush1.bf16.msra.mxu0 0
      %5758 = vmatprep.subr.bf16.mxu0 0
      %5759 = vmatpush1.bf16.msra.mxu0 0
      %5760 = vmatprep.mubr.bf16.mxu0 0
      %5761 = vmatmul.mubr.bf16.gmra.mrb[0].mxu0 %v5714
      %v5762 = vpop.f32.mrb[0].mxu0
      %v5763 = vadd.f32 0.0, %v5762
      %v5764 = vpop.f32.mrb[0].mxu0
      %v5765 = vpop.f32.mrb[0].mxu0
      %v5766 = vadd.f32 0.0, %v5765
      %v5767 = vpop.f32.mrb[0].mxu0
      %5768 = vmatprep.mubr.bf16.mxu0 0
      %5769 = vmatmul.mubr.bf16.gmra.mrb[0].mxu0 %v5717
      %v5770 = vpop.f32.mrb[0].mxu0
      %v5771 = vadd.f32 0.0, %v5770
      %v5772 = vpop.f32.mrb[0].mxu0
      %v5773 = vpop.f32.mrb[0].mxu0
      %v5774 = vadd.f32 0.0, %v5773
      %v5775 = vpop.f32.mrb[0].mxu0
      %5776 = vmatprep.mubr.bf16.mxu0 0
      %5777 = vmatmul.mubr.bf16.gmra.mrb[0].mxu0 %v5720
      %v5778 = vpop.f32.mrb[0].mxu0
      %v5779 = vadd.f32 0.0, %v5778
      %v5780 = vpop.f32.mrb[0].mxu0
      %v5781 = vpop.f32.mrb[0].mxu0
      %v5782 = vadd.f32 0.0, %v5781
      %v5783 = vpop.f32.mrb[0].mxu0
      %5784 = vmatprep.mubr.bf16.mxu0 0
      %5785 = vmatmul.mubr.bf16.gmra.mrb[0].mxu0 %v5723
      %v5786 = vpop.f32.mrb[0].mxu0
      %v5787 = vadd.f32 0.0, %v5786
      %v5788 = vpop.f32.mrb[0].mxu0
      %v5789 = vpop.f32.mrb[0].mxu0
      %v5790 = vadd.f32 0.0, %v5789
      %v5791 = vpop.f32.mrb[0].mxu0
      %5792 = vmatprep.mubr.bf16.mxu0 0
      %5793 = vmatmul.mubr.bf16.gmra.mrb[0].mxu0 %v5726
      %v5794 = vpop.f32.mrb[0].mxu0
      %v5795 = vadd.f32 0.0, %v5794
      %v5796 = vpop.f32.mrb[0].mxu0
      %v5797 = vpop.f32.mrb[0].mxu0
      %v5798 = vadd.f32 0.0, %v5797
      %v5799 = vpop.f32.mrb[0].mxu0
      %5800 = vdwg.mxu0
      %v5801 = vadd.f32 %v5636, %v5763
      %v5802 = vadd.f32 %v5639, %v5766
      %v5803 = vadd.f32 %v5644, %v5771
      %v5804 = vadd.f32 %v5647, %v5774
      %v5805 = vadd.f32 %v5652, %v5779
      %v5806 = vadd.f32 %v5655, %v5782
      %v5807 = vadd.f32 %v5660, %v5787
      %v5808 = vadd.f32 %v5663, %v5790
      %v5809 = vadd.f32 %v5668, %v5795
      %v5810 = vadd.f32 %v5671, %v5798
      %v5811 = vrot.slane %v5417, 5
      %v5812 = vrot.slane %v5419, 6
      %v5813 = vor.u32 %v5811, %v5812
      %v5814 = vrot.slane %v5428, 5
      %v5815 = vrot.slane %v5424, 6
      %v5816 = vor.u32 %v5814, %v5815
      %v5817 = vsel %vm4115, %v5813, %v5816
      %v5818 = vrot.slane %v5436, 5
      %v5819 = vrot.slane %v5432, 6
      %v5820 = vor.u32 %v5818, %v5819
      %v5821 = vsel %vm4115, %v5816, %v5820
      %v5822 = vrot.slane %v5444, 5
      %v5823 = vrot.slane %v5440, 6
      %v5824 = vor.u32 %v5822, %v5823
      %v5825 = vsel %vm4115, %v5820, %v5824
      %v5826 = vrot.slane %v5452, 5
      %v5827 = vrot.slane %v5448, 6
      %v5828 = vor.u32 %v5826, %v5827
      %v5829 = vsel %vm4115, %v5824, %v5828
      %v5831 = vshrl.u32 %v5414, 16
      %v5833 = vrot.slane %v5831, 5
      %v5834 = vshll.u32 %v5414, 16
      %v5836 = vrot.slane %v5834, 6
      %v5837 = vor.u32 %v5833, %v5836
      %v5838 = vsel %vm4115, %v5828, %v5837
      %v5847 = vunpack.c.l.b16 %v400
      %v5848 = vunpack.c.l.b16 %v401
      %v5849 = vunpack.c.l.b16 %v402
      %v5850 = vunpack.c.l.b16 %v403
      %v5851 = vunpack.c.l.b16 %v404
      %v5852 = vunpack.c.l.b16 %v405
      %v5853 = vunpack.c.l.b16 %v406
      %v5854 = vunpack.c.l.b16 %v407
      %v5855 = vpack.c.b16 %v5848, %v5847
      %v5856 = vpack.c.b16 %v5850, %v5849
      %v5857 = vpack.c.b16 %v5852, %v5851
      %v5858 = vpack.c.b16 %v5854, %v5853
      %v5864 = vsel %vm572, %v5817, 0
      %v5867 = vsel %vm572, %v5821, 0
      %v5870 = vsel %vm572, %v5825, 0
      %v5873 = vsel %vm572, %v5829, 0
      %v5876 = vsel %vm572, %v5838, 0
      %5878 = vmatprep.subr.bf16.mxu0 0
      %5879 = vmatpush1.bf16.msra.mxu0 %v5855
      %5880 = vmatprep.subr.bf16.mxu0 0
      %5881 = vmatpush1.bf16.msra.mxu0 %v5856
      %5882 = vmatprep.subr.bf16.mxu0 0
      %5883 = vmatpush1.bf16.msra.mxu0 %v5857
      %5884 = vmatprep.subr.bf16.mxu0 0
      %5885 = vmatpush1.bf16.msra.mxu0 %v5858
      %5886 = vmatprep.subr.bf16.mxu0 0
      %5887 = vmatpush1.bf16.msra.mxu0 0
      %5888 = vmatprep.subr.bf16.mxu0 0
      %5889 = vmatpush1.bf16.msra.mxu0 0
      %5890 = vmatprep.subr.bf16.mxu0 0
      %5891 = vmatpush1.bf16.msra.mxu0 0
      %5892 = vmatprep.subr.bf16.mxu0 0
      %5893 = vmatpush1.bf16.msra.mxu0 0
      %5894 = vmatprep.subr.bf16.mxu0 0
      %5895 = vmatpush1.bf16.msra.mxu0 0
      %5896 = vmatprep.subr.bf16.mxu0 0
      %5897 = vmatpush1.bf16.msra.mxu0 0
      %5898 = vmatprep.subr.bf16.mxu0 0
      %5899 = vmatpush1.bf16.msra.mxu0 0
      %5900 = vmatprep.subr.bf16.mxu0 0
      %5901 = vmatpush1.bf16.msra.mxu0 0
      %5902 = vmatprep.subr.bf16.mxu0 0
      %5903 = vmatpush1.bf16.msra.mxu0 0
      %5904 = vmatprep.subr.bf16.mxu0 0
      %5905 = vmatpush1.bf16.msra.mxu0 0
      %5906 = vmatprep.subr.bf16.mxu0 0
      %5907 = vmatpush1.bf16.msra.mxu0 0
      %5908 = vmatprep.subr.bf16.mxu0 0
      %5909 = vmatpush1.bf16.msra.mxu0 0
      %5910 = vmatprep.mubr.bf16.mxu0 0
      %5911 = vmatmul.mubr.bf16.gmra.mrb[0].mxu0 %v5864
      %v5912 = vpop.f32.mrb[0].mxu0
      %v5913 = vadd.f32 0.0, %v5912
      %v5914 = vpop.f32.mrb[0].mxu0
      %v5915 = vpop.f32.mrb[0].mxu0
      %v5916 = vadd.f32 0.0, %v5915
      %v5917 = vpop.f32.mrb[0].mxu0
      %5918 = vmatprep.mubr.bf16.mxu0 0
      %5919 = vmatmul.mubr.bf16.gmra.mrb[0].mxu0 %v5867
      %v5920 = vpop.f32.mrb[0].mxu0
      %v5921 = vadd.f32 0.0, %v5920
      %v5922 = vpop.f32.mrb[0].mxu0
      %v5923 = vpop.f32.mrb[0].mxu0
      %v5924 = vadd.f32 0.0, %v5923
      %v5925 = vpop.f32.mrb[0].mxu0
      %5926 = vmatprep.mubr.bf16.mxu0 0
      %5927 = vmatmul.mubr.bf16.gmra.mrb[0].mxu0 %v5870
      %v5928 = vpop.f32.mrb[0].mxu0
      %v5929 = vadd.f32 0.0, %v5928
      %v5930 = vpop.f32.mrb[0].mxu0
      %v5931 = vpop.f32.mrb[0].mxu0
      %v5932 = vadd.f32 0.0, %v5931
      %v5933 = vpop.f32.mrb[0].mxu0
      %5934 = vmatprep.mubr.bf16.mxu0 0
      %5935 = vmatmul.mubr.bf16.gmra.mrb[0].mxu0 %v5873
      %v5936 = vpop.f32.mrb[0].mxu0
      %v5937 = vadd.f32 0.0, %v5936
      %v5938 = vpop.f32.mrb[0].mxu0
      %v5939 = vpop.f32.mrb[0].mxu0
      %v5940 = vadd.f32 0.0, %v5939
      %v5941 = vpop.f32.mrb[0].mxu0
      %5942 = vmatprep.mubr.bf16.mxu0 0
      %5943 = vmatmul.mubr.bf16.gmra.mrb[0].mxu0 %v5876
      %v5944 = vpop.f32.mrb[0].mxu0
      %v5945 = vadd.f32 0.0, %v5944
      %v5946 = vpop.f32.mrb[0].mxu0
      %v5947 = vpop.f32.mrb[0].mxu0
      %v5948 = vadd.f32 0.0, %v5947
      %v5949 = vpop.f32.mrb[0].mxu0
      %5950 = vdwg.mxu0
      %v5951 = vadd.f32 %v5801, %v5913
      %v5952 = vadd.f32 %v5802, %v5916
      %v5953 = vadd.f32 %v5803, %v5921
      %v5954 = vadd.f32 %v5804, %v5924
      %v5955 = vadd.f32 %v5805, %v5929
      %v5956 = vadd.f32 %v5806, %v5932
      %v5957 = vadd.f32 %v5807, %v5937
      %v5958 = vadd.f32 %v5808, %v5940
      %v5959 = vadd.f32 %v5809, %v5945
      %v5960 = vadd.f32 %v5810, %v5948
      %v5962 = vrot.slane %v5409, 6
      %v5963 = vrot.slane %v5410, 6
      %v5964 = vsel %vm4767, %v5962, %v5963
      %v5965 = vrot.slane %v5411, 6
      %v5966 = vsel %vm4767, %v5963, %v5965
      %v5967 = vrot.slane %v5412, 6
      %v5968 = vsel %vm4767, %v5965, %v5967
      %v5969 = vrot.slane %v5413, 6
      %v5970 = vsel %vm4767, %v5967, %v5969
      %v5971 = vrot.slane %v5414, 6
      %v5972 = vsel %vm4767, %v5969, %v5971
      %v5981 = vunpack.c.l.b16 %v408
      %v5982 = vunpack.c.l.b16 %v409
      %v5983 = vunpack.c.l.b16 %v410
      %v5984 = vunpack.c.l.b16 %v411
      %v5985 = vunpack.c.l.b16 %v412
      %v5986 = vunpack.c.l.b16 %v413
      %v5987 = vunpack.c.l.b16 %v414
      %v5988 = vunpack.c.l.b16 %v415
      %v5989 = vpack.c.b16 %v5982, %v5981
      %v5990 = vpack.c.b16 %v5984, %v5983
      %v5991 = vpack.c.b16 %v5986, %v5985
      %v5992 = vpack.c.b16 %v5988, %v5987
      %v5998 = vsel %vm572, %v5964, 0
      %v6001 = vsel %vm572, %v5966, 0
      %v6004 = vsel %vm572, %v5968, 0
      %v6007 = vsel %vm572, %v5970, 0
      %v6010 = vsel %vm572, %v5972, 0
      %6012 = vmatprep.subr.bf16.mxu0 0
      %6013 = vmatpush1.bf16.msra.mxu0 %v5989
      %6014 = vmatprep.subr.bf16.mxu0 0
      %6015 = vmatpush1.bf16.msra.mxu0 %v5990
      %6016 = vmatprep.subr.bf16.mxu0 0
      %6017 = vmatpush1.bf16.msra.mxu0 %v5991
      %6018 = vmatprep.subr.bf16.mxu0 0
      %6019 = vmatpush1.bf16.msra.mxu0 %v5992
      %6020 = vmatprep.subr.bf16.mxu0 0
      %6021 = vmatpush1.bf16.msra.mxu0 0
      %6022 = vmatprep.subr.bf16.mxu0 0
      %6023 = vmatpush1.bf16.msra.mxu0 0
      %6024 = vmatprep.subr.bf16.mxu0 0
      %6025 = vmatpush1.bf16.msra.mxu0 0
      %6026 = vmatprep.subr.bf16.mxu0 0
      %6027 = vmatpush1.bf16.msra.mxu0 0
      %6028 = vmatprep.subr.bf16.mxu0 0
      %6029 = vmatpush1.bf16.msra.mxu0 0
      %6030 = vmatprep.subr.bf16.mxu0 0
      %6031 = vmatpush1.bf16.msra.mxu0 0
      %6032 = vmatprep.subr.bf16.mxu0 0
      %6033 = vmatpush1.bf16.msra.mxu0 0
      %6034 = vmatprep.subr.bf16.mxu0 0
      %6035 = vmatpush1.bf16.msra.mxu0 0
      %6036 = vmatprep.subr.bf16.mxu0 0
      %6037 = vmatpush1.bf16.msra.mxu0 0
      %6038 = vmatprep.subr.bf16.mxu0 0
      %6039 = vmatpush1.bf16.msra.mxu0 0
      %6040 = vmatprep.subr.bf16.mxu0 0
      %6041 = vmatpush1.bf16.msra.mxu0 0
      %6042 = vmatprep.subr.bf16.mxu0 0
      %6043 = vmatpush1.bf16.msra.mxu0 0
      %6044 = vmatprep.mubr.bf16.mxu0 0
      %6045 = vmatmul.mubr.bf16.gmra.mrb[0].mxu0 %v5998
      %v6046 = vpop.f32.mrb[0].mxu0
      %v6047 = vadd.f32 0.0, %v6046
      %v6048 = vpop.f32.mrb[0].mxu0
      %v6049 = vpop.f32.mrb[0].mxu0
      %v6050 = vadd.f32 0.0, %v6049
      %v6051 = vpop.f32.mrb[0].mxu0
      %6052 = vmatprep.mubr.bf16.mxu0 0
      %6053 = vmatmul.mubr.bf16.gmra.mrb[0].mxu0 %v6001
      %v6054 = vpop.f32.mrb[0].mxu0
      %v6055 = vadd.f32 0.0, %v6054
      %v6056 = vpop.f32.mrb[0].mxu0
      %v6057 = vpop.f32.mrb[0].mxu0
      %v6058 = vadd.f32 0.0, %v6057
      %v6059 = vpop.f32.mrb[0].mxu0
      %6060 = vmatprep.mubr.bf16.mxu0 0
      %6061 = vmatmul.mubr.bf16.gmra.mrb[0].mxu0 %v6004
      %v6062 = vpop.f32.mrb[0].mxu0
      %v6063 = vadd.f32 0.0, %v6062
      %v6064 = vpop.f32.mrb[0].mxu0
      %v6065 = vpop.f32.mrb[0].mxu0
      %v6066 = vadd.f32 0.0, %v6065
      %v6067 = vpop.f32.mrb[0].mxu0
      %6068 = vmatprep.mubr.bf16.mxu0 0
      %6069 = vmatmul.mubr.bf16.gmra.mrb[0].mxu0 %v6007
      %v6070 = vpop.f32.mrb[0].mxu0
      %v6071 = vadd.f32 0.0, %v6070
      %v6072 = vpop.f32.mrb[0].mxu0
      %v6073 = vpop.f32.mrb[0].mxu0
      %v6074 = vadd.f32 0.0, %v6073
      %v6075 = vpop.f32.mrb[0].mxu0
      %6076 = vmatprep.mubr.bf16.mxu0 0
      %6077 = vmatmul.mubr.bf16.gmra.mrb[0].mxu0 %v6010
      %v6078 = vpop.f32.mrb[0].mxu0
      %v6079 = vadd.f32 0.0, %v6078
      %v6080 = vpop.f32.mrb[0].mxu0
      %v6081 = vpop.f32.mrb[0].mxu0
      %v6082 = vadd.f32 0.0, %v6081
      %v6083 = vpop.f32.mrb[0].mxu0
      %6084 = vdwg.mxu0
      %v6085 = vadd.f32 %v5951, %v6047
      %v6086 = vadd.f32 %v5952, %v6050
      %v6087 = vadd.f32 %v5953, %v6055
      %v6088 = vadd.f32 %v5954, %v6058
      %v6089 = vadd.f32 %v5955, %v6063
      %v6090 = vadd.f32 %v5956, %v6066
      %v6091 = vadd.f32 %v5957, %v6071
      %v6092 = vadd.f32 %v5958, %v6074
      %v6093 = vadd.f32 %v5959, %v6079
      %v6094 = vadd.f32 %v5960, %v6082
      %vm6095 = vsmask.f32 1280
      %v6096 = vrot.slane %v5417, 6
      %v6097 = vrot.slane %v5419, 7
      %v6098 = vor.u32 %v6096, %v6097
      %v6099 = vrot.slane %v5428, 6
      %v6100 = vrot.slane %v5424, 7
      %v6101 = vor.u32 %v6099, %v6100
      %v6102 = vsel %vm6095, %v6098, %v6101
      %v6103 = vrot.slane %v5436, 6
      %v6104 = vrot.slane %v5432, 7
      %v6105 = vor.u32 %v6103, %v6104
      %v6106 = vsel %vm6095, %v6101, %v6105
      %v6107 = vrot.slane %v5444, 6
      %v6108 = vrot.slane %v5440, 7
      %v6109 = vor.u32 %v6107, %v6108
      %v6110 = vsel %vm6095, %v6105, %v6109
      %v6111 = vrot.slane %v5452, 6
      %v6112 = vrot.slane %v5448, 7
      %v6113 = vor.u32 %v6111, %v6112
      %v6114 = vsel %vm6095, %v6109, %v6113
      %v6115 = vrot.slane %v5831, 6
      %v6116 = vrot.slane %v5834, 7
      %v6117 = vor.u32 %v6115, %v6116
      %v6118 = vsel %vm6095, %v6113, %v6117
      %v6127 = vunpack.c.l.b16 %v416
      %v6128 = vunpack.c.l.b16 %v417
      %v6129 = vunpack.c.l.b16 %v418
      %v6130 = vunpack.c.l.b16 %v419
      %v6131 = vunpack.c.l.b16 %v420
      %v6132 = vunpack.c.l.b16 %v421
      %v6133 = vunpack.c.l.b16 %v422
      %v6134 = vunpack.c.l.b16 %v423
      %v6135 = vpack.c.b16 %v6128, %v6127
      %v6136 = vpack.c.b16 %v6130, %v6129
      %v6137 = vpack.c.b16 %v6132, %v6131
      %v6138 = vpack.c.b16 %v6134, %v6133
      %v6144 = vsel %vm572, %v6102, 0
      %v6147 = vsel %vm572, %v6106, 0
      %v6150 = vsel %vm572, %v6110, 0
      %v6153 = vsel %vm572, %v6114, 0
      %v6156 = vsel %vm572, %v6118, 0
      %6158 = vmatprep.subr.bf16.mxu0 0
      %6159 = vmatpush1.bf16.msra.mxu0 %v6135
      %6160 = vmatprep.subr.bf16.mxu0 0
      %6161 = vmatpush1.bf16.msra.mxu0 %v6136
      %6162 = vmatprep.subr.bf16.mxu0 0
      %6163 = vmatpush1.bf16.msra.mxu0 %v6137
      %6164 = vmatprep.subr.bf16.mxu0 0
      %6165 = vmatpush1.bf16.msra.mxu0 %v6138
      %6166 = vmatprep.subr.bf16.mxu0 0
      %6167 = vmatpush1.bf16.msra.mxu0 0
      %6168 = vmatprep.subr.bf16.mxu0 0
      %6169 = vmatpush1.bf16.msra.mxu0 0
      %6170 = vmatprep.subr.bf16.mxu0 0
      %6171 = vmatpush1.bf16.msra.mxu0 0
      %6172 = vmatprep.subr.bf16.mxu0 0
      %6173 = vmatpush1.bf16.msra.mxu0 0
      %6174 = vmatprep.subr.bf16.mxu0 0
      %6175 = vmatpush1.bf16.msra.mxu0 0
      %6176 = vmatprep.subr.bf16.mxu0 0
      %6177 = vmatpush1.bf16.msra.mxu0 0
      %6178 = vmatprep.subr.bf16.mxu0 0
      %6179 = vmatpush1.bf16.msra.mxu0 0
      %6180 = vmatprep.subr.bf16.mxu0 0
      %6181 = vmatpush1.bf16.msra.mxu0 0
      %6182 = vmatprep.subr.bf16.mxu0 0
      %6183 = vmatpush1.bf16.msra.mxu0 0
      %6184 = vmatprep.subr.bf16.mxu0 0
      %6185 = vmatpush1.bf16.msra.mxu0 0
      %6186 = vmatprep.subr.bf16.mxu0 0
      %6187 = vmatpush1.bf16.msra.mxu0 0
      %6188 = vmatprep.subr.bf16.mxu0 0
      %6189 = vmatpush1.bf16.msra.mxu0 0
      %6190 = vmatprep.mubr.bf16.mxu0 0
      %6191 = vmatmul.mubr.bf16.gmra.mrb[0].mxu0 %v6144
      %v6192 = vpop.f32.mrb[0].mxu0
      %v6193 = vadd.f32 0.0, %v6192
      %v6194 = vpop.f32.mrb[0].mxu0
      %v6195 = vpop.f32.mrb[0].mxu0
      %v6196 = vadd.f32 0.0, %v6195
      %v6197 = vpop.f32.mrb[0].mxu0
      %6198 = vmatprep.mubr.bf16.mxu0 0
      %6199 = vmatmul.mubr.bf16.gmra.mrb[0].mxu0 %v6147
      %v6200 = vpop.f32.mrb[0].mxu0
      %v6201 = vadd.f32 0.0, %v6200
      %v6202 = vpop.f32.mrb[0].mxu0
      %v6203 = vpop.f32.mrb[0].mxu0
      %v6204 = vadd.f32 0.0, %v6203
      %v6205 = vpop.f32.mrb[0].mxu0
      %6206 = vmatprep.mubr.bf16.mxu0 0
      %6207 = vmatmul.mubr.bf16.gmra.mrb[0].mxu0 %v6150
      %v6208 = vpop.f32.mrb[0].mxu0
      %v6209 = vadd.f32 0.0, %v6208
      %v6210 = vpop.f32.mrb[0].mxu0
      %v6211 = vpop.f32.mrb[0].mxu0
      %v6212 = vadd.f32 0.0, %v6211
      %v6213 = vpop.f32.mrb[0].mxu0
      %6214 = vmatprep.mubr.bf16.mxu0 0
      %6215 = vmatmul.mubr.bf16.gmra.mrb[0].mxu0 %v6153
      %v6216 = vpop.f32.mrb[0].mxu0
      %v6217 = vadd.f32 0.0, %v6216
      %v6218 = vpop.f32.mrb[0].mxu0
      %v6219 = vpop.f32.mrb[0].mxu0
      %v6220 = vadd.f32 0.0, %v6219
      %v6221 = vpop.f32.mrb[0].mxu0
      %6222 = vmatprep.mubr.bf16.mxu0 0
      %6223 = vmatmul.mubr.bf16.gmra.mrb[0].mxu0 %v6156
      %v6224 = vpop.f32.mrb[0].mxu0
      %v6225 = vadd.f32 0.0, %v6224
      %v6226 = vpop.f32.mrb[0].mxu0
      %v6227 = vpop.f32.mrb[0].mxu0
      %v6228 = vadd.f32 0.0, %v6227
      %v6229 = vpop.f32.mrb[0].mxu0
      %6230 = vdwg.mxu0
      %v6231 = vadd.f32 %v6085, %v6193
      %v6232 = vadd.f32 %v6086, %v6196
      %v6233 = vadd.f32 %v6087, %v6201
      %v6234 = vadd.f32 %v6088, %v6204
      %v6235 = vadd.f32 %v6089, %v6209
      %v6236 = vadd.f32 %v6090, %v6212
      %v6237 = vadd.f32 %v6091, %v6217
      %v6238 = vadd.f32 %v6092, %v6220
      %v6239 = vadd.f32 %v6093, %v6225
      %v6240 = vadd.f32 %v6094, %v6228
      %vm6241 = vcmask 1044480
      %v6242 = vrot.slane %v5410, 3
      %v6243 = vrot.slane %v5411, 3
      %v6244 = vsel %vm6241, %v6242, %v6243
      %v6245 = vrot.slane %v5412, 3
      %v6246 = vsel %vm6241, %v6243, %v6245
      %v6247 = vrot.slane %v5413, 3
      %v6248 = vsel %vm6241, %v6245, %v6247
      %v6249 = vrot.slane %v5414, 3
      %v6250 = vsel %vm6241, %v6247, %v6249
      %v6259 = vunpack.c.l.b16 %v424
      %v6260 = vunpack.c.l.b16 %v425
      %v6261 = vunpack.c.l.b16 %v426
      %v6262 = vunpack.c.l.b16 %v427
      %v6263 = vunpack.c.l.b16 %v428
      %v6264 = vunpack.c.l.b16 %v429
      %v6265 = vunpack.c.l.b16 %v430
      %v6266 = vunpack.c.l.b16 %v431
      %v6267 = vpack.c.b16 %v6260, %v6259
      %v6268 = vpack.c.b16 %v6262, %v6261
      %v6269 = vpack.c.b16 %v6264, %v6263
      %v6270 = vpack.c.b16 %v6266, %v6265
      %v6276 = vsel %vm572, %v6244, 0
      %v6279 = vsel %vm572, %v6246, 0
      %v6282 = vsel %vm572, %v6248, 0
      %v6285 = vsel %vm572, %v6250, 0
      %v6288 = vsel %vm572, %v6249, 0
      %6290 = vmatprep.subr.bf16.mxu0 0
      %6291 = vmatpush1.bf16.msra.mxu0 %v6267
      %6292 = vmatprep.subr.bf16.mxu0 0
      %6293 = vmatpush1.bf16.msra.mxu0 %v6268
      %6294 = vmatprep.subr.bf16.mxu0 0
      %6295 = vmatpush1.bf16.msra.mxu0 %v6269
      %6296 = vmatprep.subr.bf16.mxu0 0
      %6297 = vmatpush1.bf16.msra.mxu0 %v6270
      %6298 = vmatprep.subr.bf16.mxu0 0
      %6299 = vmatpush1.bf16.msra.mxu0 0
      %6300 = vmatprep.subr.bf16.mxu0 0
      %6301 = vmatpush1.bf16.msra.mxu0 0
      %6302 = vmatprep.subr.bf16.mxu0 0
      %6303 = vmatpush1.bf16.msra.mxu0 0
      %6304 = vmatprep.subr.bf16.mxu0 0
      %6305 = vmatpush1.bf16.msra.mxu0 0
      %6306 = vmatprep.subr.bf16.mxu0 0
      %6307 = vmatpush1.bf16.msra.mxu0 0
      %6308 = vmatprep.subr.bf16.mxu0 0
      %6309 = vmatpush1.bf16.msra.mxu0 0
      %6310 = vmatprep.subr.bf16.mxu0 0
      %6311 = vmatpush1.bf16.msra.mxu0 0
      %6312 = vmatprep.subr.bf16.mxu0 0
      %6313 = vmatpush1.bf16.msra.mxu0 0
      %6314 = vmatprep.subr.bf16.mxu0 0
      %6315 = vmatpush1.bf16.msra.mxu0 0
      %6316 = vmatprep.subr.bf16.mxu0 0
      %6317 = vmatpush1.bf16.msra.mxu0 0
      %6318 = vmatprep.subr.bf16.mxu0 0
      %6319 = vmatpush1.bf16.msra.mxu0 0
      %6320 = vmatprep.subr.bf16.mxu0 0
      %6321 = vmatpush1.bf16.msra.mxu0 0
      %6322 = vmatprep.mubr.bf16.mxu0 0
      %6323 = vmatmul.mubr.bf16.gmra.mrb[0].mxu0 %v6276
      %v6324 = vpop.f32.mrb[0].mxu0
      %v6325 = vadd.f32 0.0, %v6324
      %v6326 = vpop.f32.mrb[0].mxu0
      %v6327 = vpop.f32.mrb[0].mxu0
      %v6328 = vadd.f32 0.0, %v6327
      %v6329 = vpop.f32.mrb[0].mxu0
      %6330 = vmatprep.mubr.bf16.mxu0 0
      %6331 = vmatmul.mubr.bf16.gmra.mrb[0].mxu0 %v6279
      %v6332 = vpop.f32.mrb[0].mxu0
      %v6333 = vadd.f32 0.0, %v6332
      %v6334 = vpop.f32.mrb[0].mxu0
      %v6335 = vpop.f32.mrb[0].mxu0
      %v6336 = vadd.f32 0.0, %v6335
      %v6337 = vpop.f32.mrb[0].mxu0
      %6338 = vmatprep.mubr.bf16.mxu0 0
      %6339 = vmatmul.mubr.bf16.gmra.mrb[0].mxu0 %v6282
      %v6340 = vpop.f32.mrb[0].mxu0
      %v6341 = vadd.f32 0.0, %v6340
      %v6342 = vpop.f32.mrb[0].mxu0
      %v6343 = vpop.f32.mrb[0].mxu0
      %v6344 = vadd.f32 0.0, %v6343
      %v6345 = vpop.f32.mrb[0].mxu0
      %6346 = vmatprep.mubr.bf16.mxu0 0
      %6347 = vmatmul.mubr.bf16.gmra.mrb[0].mxu0 %v6285
      %v6348 = vpop.f32.mrb[0].mxu0
      %v6349 = vadd.f32 0.0, %v6348
      %v6350 = vpop.f32.mrb[0].mxu0
      %v6351 = vpop.f32.mrb[0].mxu0
      %v6352 = vadd.f32 0.0, %v6351
      %v6353 = vpop.f32.mrb[0].mxu0
      %6354 = vmatprep.mubr.bf16.mxu0 0
      %6355 = vmatmul.mubr.bf16.gmra.mrb[0].mxu0 %v6288
      %v6356 = vpop.f32.mrb[0].mxu0
      %v6357 = vadd.f32 0.0, %v6356
      %v6358 = vpop.f32.mrb[0].mxu0
      %v6359 = vpop.f32.mrb[0].mxu0
      %v6360 = vadd.f32 0.0, %v6359
      %v6361 = vpop.f32.mrb[0].mxu0
      %6362 = vdwg.mxu0
      %v6363 = vadd.f32 %v6231, %v6325
      %v6364 = vadd.f32 %v6232, %v6328
      %v6365 = vadd.f32 %v6233, %v6333
      %v6366 = vadd.f32 %v6234, %v6336
      %v6367 = vadd.f32 %v6235, %v6341
      %v6368 = vadd.f32 %v6236, %v6344
      %v6369 = vadd.f32 %v6237, %v6349
      %v6370 = vadd.f32 %v6238, %v6352
      %v6371 = vadd.f32 %v6239, %v6357
      %v6372 = vadd.f32 %v6240, %v6360
      %vm6373 = vsmask.f32 4352
      %v6374 = vrot.slane %v5428, 3
      %v6375 = vrot.slane %v5424, 4
      %v6376 = vor.u32 %v6374, %v6375
      %v6377 = vrot.slane %v5436, 3
      %v6378 = vrot.slane %v5432, 4
      %v6379 = vor.u32 %v6377, %v6378
      %v6380 = vsel %vm6373, %v6376, %v6379
      %v6381 = vrot.slane %v5444, 3
      %v6382 = vrot.slane %v5440, 4
      %v6383 = vor.u32 %v6381, %v6382
      %v6384 = vsel %vm6373, %v6379, %v6383
      %v6385 = vrot.slane %v5452, 3
      %v6386 = vrot.slane %v5448, 4
      %v6387 = vor.u32 %v6385, %v6386
      %v6388 = vsel %vm6373, %v6383, %v6387
      %v6389 = vrot.slane %v5831, 3
      %v6390 = vrot.slane %v5834, 4
      %v6391 = vor.u32 %v6389, %v6390
      %v6392 = vsel %vm6373, %v6387, %v6391
      %v6401 = vunpack.c.l.b16 %v432
      %v6402 = vunpack.c.l.b16 %v433
      %v6403 = vunpack.c.l.b16 %v434
      %v6404 = vunpack.c.l.b16 %v435
      %v6405 = vunpack.c.l.b16 %v436
      %v6406 = vunpack.c.l.b16 %v437
      %v6407 = vunpack.c.l.b16 %v438
      %v6408 = vunpack.c.l.b16 %v439
      %v6409 = vpack.c.b16 %v6402, %v6401
      %v6410 = vpack.c.b16 %v6404, %v6403
      %v6411 = vpack.c.b16 %v6406, %v6405
      %v6412 = vpack.c.b16 %v6408, %v6407
      %v6418 = vsel %vm572, %v6380, 0
      %v6421 = vsel %vm572, %v6384, 0
      %v6424 = vsel %vm572, %v6388, 0
      %v6427 = vsel %vm572, %v6392, 0
      %v6430 = vsel %vm572, %v6391, 0
      %6432 = vmatprep.subr.bf16.mxu0 0
      %6433 = vmatpush1.bf16.msra.mxu0 %v6409
      %6434 = vmatprep.subr.bf16.mxu0 0
      %6435 = vmatpush1.bf16.msra.mxu0 %v6410
      %6436 = vmatprep.subr.bf16.mxu0 0
      %6437 = vmatpush1.bf16.msra.mxu0 %v6411
      %6438 = vmatprep.subr.bf16.mxu0 0
      %6439 = vmatpush1.bf16.msra.mxu0 %v6412
      %6440 = vmatprep.subr.bf16.mxu0 0
      %6441 = vmatpush1.bf16.msra.mxu0 0
      %6442 = vmatprep.subr.bf16.mxu0 0
      %6443 = vmatpush1.bf16.msra.mxu0 0
      %6444 = vmatprep.subr.bf16.mxu0 0
      %6445 = vmatpush1.bf16.msra.mxu0 0
      %6446 = vmatprep.subr.bf16.mxu0 0
      %6447 = vmatpush1.bf16.msra.mxu0 0
      %6448 = vmatprep.subr.bf16.mxu0 0
      %6449 = vmatpush1.bf16.msra.mxu0 0
      %6450 = vmatprep.subr.bf16.mxu0 0
      %6451 = vmatpush1.bf16.msra.mxu0 0
      %6452 = vmatprep.subr.bf16.mxu0 0
      %6453 = vmatpush1.bf16.msra.mxu0 0
      %6454 = vmatprep.subr.bf16.mxu0 0
      %6455 = vmatpush1.bf16.msra.mxu0 0
      %6456 = vmatprep.subr.bf16.mxu0 0
      %6457 = vmatpush1.bf16.msra.mxu0 0
      %6458 = vmatprep.subr.bf16.mxu0 0
      %6459 = vmatpush1.bf16.msra.mxu0 0
      %6460 = vmatprep.subr.bf16.mxu0 0
      %6461 = vmatpush1.bf16.msra.mxu0 0
      %6462 = vmatprep.subr.bf16.mxu0 0
      %6463 = vmatpush1.bf16.msra.mxu0 0
      %6464 = vmatprep.mubr.bf16.mxu0 0
      %6465 = vmatmul.mubr.bf16.gmra.mrb[0].mxu0 %v6418
      %v6466 = vpop.f32.mrb[0].mxu0
      %v6467 = vadd.f32 0.0, %v6466
      %v6468 = vpop.f32.mrb[0].mxu0
      %v6469 = vpop.f32.mrb[0].mxu0
      %v6470 = vadd.f32 0.0, %v6469
      %v6471 = vpop.f32.mrb[0].mxu0
      %6472 = vmatprep.mubr.bf16.mxu0 0
      %6473 = vmatmul.mubr.bf16.gmra.mrb[0].mxu0 %v6421
      %v6474 = vpop.f32.mrb[0].mxu0
      %v6475 = vadd.f32 0.0, %v6474
      %v6476 = vpop.f32.mrb[0].mxu0
      %v6477 = vpop.f32.mrb[0].mxu0
      %v6478 = vadd.f32 0.0, %v6477
      %v6479 = vpop.f32.mrb[0].mxu0
      %6480 = vmatprep.mubr.bf16.mxu0 0
      %6481 = vmatmul.mubr.bf16.gmra.mrb[0].mxu0 %v6424
      %v6482 = vpop.f32.mrb[0].mxu0
      %v6483 = vadd.f32 0.0, %v6482
      %v6484 = vpop.f32.mrb[0].mxu0
      %v6485 = vpop.f32.mrb[0].mxu0
      %v6486 = vadd.f32 0.0, %v6485
      %v6487 = vpop.f32.mrb[0].mxu0
      %6488 = vmatprep.mubr.bf16.mxu0 0
      %6489 = vmatmul.mubr.bf16.gmra.mrb[0].mxu0 %v6427
      %v6490 = vpop.f32.mrb[0].mxu0
      %v6491 = vadd.f32 0.0, %v6490
      %v6492 = vpop.f32.mrb[0].mxu0
      %v6493 = vpop.f32.mrb[0].mxu0
      %v6494 = vadd.f32 0.0, %v6493
      %v6495 = vpop.f32.mrb[0].mxu0
      %6496 = vmatprep.mubr.bf16.mxu0 0
      %6497 = vmatmul.mubr.bf16.gmra.mrb[0].mxu0 %v6430
      %v6498 = vpop.f32.mrb[0].mxu0
      %v6499 = vadd.f32 0.0, %v6498
      %v6500 = vpop.f32.mrb[0].mxu0
      %v6501 = vpop.f32.mrb[0].mxu0
      %v6502 = vadd.f32 0.0, %v6501
      %v6503 = vpop.f32.mrb[0].mxu0
      %6504 = vdwg.mxu0
      %v6505 = vadd.f32 %v6363, %v6467
      %v6506 = vadd.f32 %v6364, %v6470
      %v6507 = vadd.f32 %v6365, %v6475
      %v6508 = vadd.f32 %v6366, %v6478
      %v6509 = vadd.f32 %v6367, %v6483
      %v6510 = vadd.f32 %v6368, %v6486
      %v6511 = vadd.f32 %v6369, %v6491
      %v6512 = vadd.f32 %v6370, %v6494
      %v6513 = vadd.f32 %v6371, %v6499
      %v6514 = vadd.f32 %v6372, %v6502
      %vm6516 = vcmask 1043456
      %v6517 = vrot.slane %v5410, 4
      %v6518 = vrot.slane %v5411, 4
      %v6519 = vsel %vm6516, %v6517, %v6518
      %v6520 = vrot.slane %v5412, 4
      %v6521 = vsel %vm6516, %v6518, %v6520
      %v6522 = vrot.slane %v5413, 4
      %v6523 = vsel %vm6516, %v6520, %v6522
      %v6524 = vrot.slane %v5414, 4
      %v6525 = vsel %vm6516, %v6522, %v6524
      %v6526 = vrot.slane %v5415, 4
      %v6527 = vsel %vm6516, %v6524, %v6526
      %v6536 = vunpack.c.l.b16 %v440
      %v6537 = vunpack.c.l.b16 %v441
      %v6538 = vunpack.c.l.b16 %v442
      %v6539 = vunpack.c.l.b16 %v443
      %v6540 = vunpack.c.l.b16 %v444
      %v6541 = vunpack.c.l.b16 %v445
      %v6542 = vunpack.c.l.b16 %v446
      %v6543 = vunpack.c.l.b16 %v447
      %v6544 = vpack.c.b16 %v6537, %v6536
      %v6545 = vpack.c.b16 %v6539, %v6538
      %v6546 = vpack.c.b16 %v6541, %v6540
      %v6547 = vpack.c.b16 %v6543, %v6542
      %v6553 = vsel %vm572, %v6519, 0
      %v6556 = vsel %vm572, %v6521, 0
      %v6559 = vsel %vm572, %v6523, 0
      %v6562 = vsel %vm572, %v6525, 0
      %v6565 = vsel %vm572, %v6527, 0
      %6567 = vmatprep.subr.bf16.mxu0 0
      %6568 = vmatpush1.bf16.msra.mxu0 %v6544
      %6569 = vmatprep.subr.bf16.mxu0 0
      %6570 = vmatpush1.bf16.msra.mxu0 %v6545
      %6571 = vmatprep.subr.bf16.mxu0 0
      %6572 = vmatpush1.bf16.msra.mxu0 %v6546
      %6573 = vmatprep.subr.bf16.mxu0 0
      %6574 = vmatpush1.bf16.msra.mxu0 %v6547
      %6575 = vmatprep.subr.bf16.mxu0 0
      %6576 = vmatpush1.bf16.msra.mxu0 0
      %6577 = vmatprep.subr.bf16.mxu0 0
      %6578 = vmatpush1.bf16.msra.mxu0 0
      %6579 = vmatprep.subr.bf16.mxu0 0
      %6580 = vmatpush1.bf16.msra.mxu0 0
      %6581 = vmatprep.subr.bf16.mxu0 0
      %6582 = vmatpush1.bf16.msra.mxu0 0
      %6583 = vmatprep.subr.bf16.mxu0 0
      %6584 = vmatpush1.bf16.msra.mxu0 0
      %6585 = vmatprep.subr.bf16.mxu0 0
      %6586 = vmatpush1.bf16.msra.mxu0 0
      %6587 = vmatprep.subr.bf16.mxu0 0
      %6588 = vmatpush1.bf16.msra.mxu0 0
      %6589 = vmatprep.subr.bf16.mxu0 0
      %6590 = vmatpush1.bf16.msra.mxu0 0
      %6591 = vmatprep.subr.bf16.mxu0 0
      %6592 = vmatpush1.bf16.msra.mxu0 0
      %6593 = vmatprep.subr.bf16.mxu0 0
      %6594 = vmatpush1.bf16.msra.mxu0 0
      %6595 = vmatprep.subr.bf16.mxu0 0
      %6596 = vmatpush1.bf16.msra.mxu0 0
      %6597 = vmatprep.subr.bf16.mxu0 0
      %6598 = vmatpush1.bf16.msra.mxu0 0
      %6599 = vmatprep.mubr.bf16.mxu0 0
      %6600 = vmatmul.mubr.bf16.gmra.mrb[0].mxu0 %v6553
      %v6601 = vpop.f32.mrb[0].mxu0
      %v6602 = vadd.f32 0.0, %v6601
      %v6603 = vpop.f32.mrb[0].mxu0
      %v6604 = vpop.f32.mrb[0].mxu0
      %v6605 = vadd.f32 0.0, %v6604
      %v6606 = vpop.f32.mrb[0].mxu0
      %6607 = vmatprep.mubr.bf16.mxu0 0
      %6608 = vmatmul.mubr.bf16.gmra.mrb[0].mxu0 %v6556
      %v6609 = vpop.f32.mrb[0].mxu0
      %v6610 = vadd.f32 0.0, %v6609
      %v6611 = vpop.f32.mrb[0].mxu0
      %v6612 = vpop.f32.mrb[0].mxu0
      %v6613 = vadd.f32 0.0, %v6612
      %v6614 = vpop.f32.mrb[0].mxu0
      %6615 = vmatprep.mubr.bf16.mxu0 0
      %6616 = vmatmul.mubr.bf16.gmra.mrb[0].mxu0 %v6559
      %v6617 = vpop.f32.mrb[0].mxu0
      %v6618 = vadd.f32 0.0, %v6617
      %v6619 = vpop.f32.mrb[0].mxu0
      %v6620 = vpop.f32.mrb[0].mxu0
      %v6621 = vadd.f32 0.0, %v6620
      %v6622 = vpop.f32.mrb[0].mxu0
      %6623 = vmatprep.mubr.bf16.mxu0 0
      %6624 = vmatmul.mubr.bf16.gmra.mrb[0].mxu0 %v6562
      %v6625 = vpop.f32.mrb[0].mxu0
      %v6626 = vadd.f32 0.0, %v6625
      %v6627 = vpop.f32.mrb[0].mxu0
      %v6628 = vpop.f32.mrb[0].mxu0
      %v6629 = vadd.f32 0.0, %v6628
      %v6630 = vpop.f32.mrb[0].mxu0
      %6631 = vmatprep.mubr.bf16.mxu0 0
      %6632 = vmatmul.mubr.bf16.gmra.mrb[0].mxu0 %v6565
      %v6633 = vpop.f32.mrb[0].mxu0
      %v6634 = vadd.f32 0.0, %v6633
      %v6635 = vpop.f32.mrb[0].mxu0
      %v6636 = vpop.f32.mrb[0].mxu0
      %v6637 = vadd.f32 0.0, %v6636
      %v6638 = vpop.f32.mrb[0].mxu0
      %6639 = vdwg.mxu0
      %v6640 = vadd.f32 %v6505, %v6602
      %v6641 = vadd.f32 %v6506, %v6605
      %v6642 = vadd.f32 %v6507, %v6610
      %v6643 = vadd.f32 %v6508, %v6613
      %v6644 = vadd.f32 %v6509, %v6618
      %v6645 = vadd.f32 %v6510, %v6621
      %v6646 = vadd.f32 %v6511, %v6626
      %v6647 = vadd.f32 %v6512, %v6629
      %v6648 = vadd.f32 %v6513, %v6634
      %v6649 = vadd.f32 %v6514, %v6637
      %v6651 = vlaneseq
      %v6652 = vshrl.u32 %v6651, 7
      %v6653 = vsub.s32 0, %v6652
      %v6654 = vrot.slane %v450, %v6653
      %v6656 = vadd.f32 %v6640, %v6654
      %v6657 = vadd.f32 %v6641, %v6654
      %v6658 = vadd.f32 %v6642, %v6654
      %v6659 = vadd.f32 %v6643, %v6654
      %v6660 = vadd.f32 %v6644, %v6654
      %v6661 = vadd.f32 %v6645, %v6654
      %v6662 = vadd.f32 %v6646, %v6654
      %v6663 = vadd.f32 %v6647, %v6654
      %v6664 = vadd.f32 %v6648, %v6654
      %v6665 = vadd.f32 %v6649, %v6654
      %v6666 = vmax.f32 %v6656, 0.0
      %v6667 = vmax.f32 %v6657, 0.0
      %v6668 = vmax.f32 %v6658, 0.0
      %v6669 = vmax.f32 %v6659, 0.0
      %v6670 = vmax.f32 %v6660, 0.0
      %v6671 = vmax.f32 %v6661, 0.0
      %v6672 = vmax.f32 %v6662, 0.0
      %v6673 = vmax.f32 %v6663, 0.0
      %v6674 = vmax.f32 %v6664, 0.0
      %v6675 = vmax.f32 %v6665, 0.0
      %v6676 = vpack.c.bf16 %v6666, %v6666
      %vm6677 = vcmask 519168
      %vm6678 = vsmask.f32 3328
      %vm6679 = vmand %vm6677, %vm6678
      %v6680 = vld [vmem:[%s278] sm:$0xf]
      %v6681 = vsel %vm6679, %v6676, %v6680
      %6682 = vst [vmem:[%s278] sm:$0xf] %v6681
      %v6683 = vpack.c.bf16 %v6668, %v6667
      %v6685 = vunpack.c.l.b16 %v6683
      %v6686 = vunpack.c.h.b16 %v6683
      %v6687 = vpack.c.b16 %v6685, %v6685
      %v6688 = vpack.c.b16 %v6686, %v6686
      %vm6689 = vcmask 1045508
      %vm6690 = vmor %vm4767, %vm6689
      %v6691 = vrot.slane %v6687, 6
      %v6692 = vrot.slane %v6691, 4
      %v6693 = vrot.slane %v6688, 6
      %v6694 = vsel %vm6690, %v6692, %v6693
      %vm6697 = vcmask 519171
      %vm6698 = vsmask.f32 7950
      %vm6699 = vmand %vm6697, %vm6698
      %v6700 = vld [vmem:[%s278] sm:$0x8]
      %v6701 = vsel %vm6699, %v6691, %v6700
      %6702 = vst [vmem:[%s278] sm:$0x8] %v6701
      %vm6703 = vcmask 518144
      %6704 = vst.msk [vmem:[%s278 + $0x4] sm:$0x7] %vm6703, %v6694
      %v6705 = vpack.c.bf16 %v6669, %v6668
      %v6707 = vunpack.c.l.b16 %v6705
      %v6708 = vunpack.c.h.b16 %v6705
      %v6709 = vpack.c.b16 %v6707, %v6707
      %v6710 = vpack.c.b16 %v6708, %v6708
      %vm6713 = vcmask 519171
      %6714 = vst.msk [vmem:[%s278 + $0x4] sm:$0x8] %vm6713, %v6709
      %vm6715 = vcmask 518144
      %vm6716 = vmand %vm6715, %vm4115
      %v6717 = vld [vmem:[%s278 + $0x8] sm:$0x7]
      %v6718 = vsel %vm6716, %v6710, %v6717
      %6719 = vst [vmem:[%s278 + $0x8] sm:$0x7] %v6718
      %v6720 = vpack.c.bf16 %v6670, %v6670
      %v6722 = vunpack.c.l.b16 %v6720
      %v6723 = vpack.c.b16 %v6722, %v6722
      %v6724 = vrot.slane %v6723, 6
      %v6725 = vrot.slane %v6724, 4
      %vm6728 = vcmask 519170
      %vm6729 = vsmask.f32 7946
      %vm6730 = vmand %vm6728, %vm6729
      %v6731 = vld [vmem:[%s278 + $0x8] sm:$0xc]
      %v6732 = vsel %vm6730, %v6724, %v6731
      %6733 = vst [vmem:[%s278 + $0x8] sm:$0xc] %v6732
      %vm6734 = vcmask 517120
      %6735 = vst.msk [vmem:[%s278 + $0xc] sm:$0x3] %vm6734, %v6725
      %v6736 = vpack.c.bf16 %v6672, %v6671
      %v6738 = vunpack.c.l.b16 %v6736
      %v6739 = vunpack.c.h.b16 %v6736
      %v6740 = vpack.c.b16 %v6738, %v6738
      %v6741 = vpack.c.b16 %v6739, %v6739
      %vm6744 = vcmask 519170
      %6745 = vst.msk [vmem:[%s278 + $0xc] sm:$0xc] %vm6744, %v6740
      %vm6746 = vcmask 517120
      %vm6747 = vmand %vm6746, %vm6095
      %v6748 = vld [vmem:[%s278 + $0x10] sm:$0x3]
      %v6749 = vsel %vm6747, %v6741, %v6748
      %6750 = vst [vmem:[%s278 + $0x10] sm:$0x3] %v6749
      %v6751 = vpack.c.bf16 %v6673, %v6672
      %v6753 = vunpack.c.l.b16 %v6751
      %v6754 = vunpack.c.h.b16 %v6751
      %v6755 = vpack.c.b16 %v6753, %v6753
      %v6756 = vpack.c.b16 %v6754, %v6754
      %v6757 = vrot.slane %v6755, 6
      %v6758 = vrot.slane %v6757, 4
      %v6759 = vrot.slane %v6756, 6
      %v6760 = vsel %vm6690, %v6758, %v6759
      %v6761 = vrot.slane %v6759, 4
      %vm6764 = vcmask 519169
      %vm6765 = vsmask.f32 7942
      %vm6766 = vmand %vm6764, %vm6765
      %v6767 = vld [vmem:[%s278 + $0x10] sm:$0xe]
      %v6768 = vsel %vm6766, %v6760, %v6767
      %6769 = vst [vmem:[%s278 + $0x10] sm:$0xe] %v6768
      %vm6770 = vcmask 516096
      %6771 = vst.msk [vmem:[%s278 + $0x14] sm:$0x1] %vm6770, %v6761
      %v6772 = vpack.c.bf16 %v6675, %v6674
      %v6774 = vunpack.c.l.b16 %v6772
      %v6775 = vunpack.c.h.b16 %v6772
      %v6776 = vpack.c.b16 %v6774, %v6774
      %v6777 = vpack.c.b16 %v6775, %v6775
      %vm6780 = vcmask 519169
      %6781 = vst.msk [vmem:[%s278 + $0x14] sm:$0xe] %vm6780, %v6776
      %vm6782 = vcmask 516096
      %vm6783 = vsmask.f32 256
      %vm6784 = vmand %vm6782, %vm6783
      %v6785 = vld [vmem:[%s278 + $0x18] sm:$0x1]
      %v6786 = vsel %vm6784, %v6777, %v6785
      %6787 = vst [vmem:[%s278 + $0x18] sm:$0x1] %v6786
      %p6788 = scmp.lt.s32.totalorder %s18, 1
      %s6789 = scalar_select %p6788, %s18, 1
      %s6790 = smul.addr %s6789, 7
      %s6791 = smul.addr %s6790, 4
      %s6792 = scalar_lea.vmem %s7, %s6791
      // Predicated region
      $region49: #{value_net_forward.2} parent=47 // pred_check
        %p6793 = pneg %p188
      $region50: #{value_net_forward.2} parent=47 // pred_check_branch
        %6795 = sbr.rel (%p6793) target = $region52
      $region51: #{value_net_forward.2} parent=47 // pred_region
        _
      $region52: #{value_net_forward.2} parent=47 // pred_fallthru
        _
    $region48: #{value_net_forward.2} parent=5 // pred_fallthru
      _
    %p6796 = scmp.le.s32.totalorder 2, %s13
    // Predicated region
    $region53: #{value_net_forward.2} parent=5 // pred_check
      %p6797 = pneg %p6796
    $region54: #{value_net_forward.2} parent=5 // pred_check_branch
      %6799 = sbr.rel (%p6797) target = $region56
    $region55: #{value_net_forward.2} parent=5 // pred_region
      %s6800 = ssub.s32 %s13, 2
      // Predicated region
      $region57: #{value_net_forward.2} parent=55 // pred_check
        %p6801 = pneg %p194
      $region58: #{value_net_forward.2} parent=55 // pred_check_branch
        %6803 = sbr.rel (%p6801) target = $region60
      $region59: #{value_net_forward.2} parent=55 // pred_region
        %p6804 = scmp.lt.s32.totalorder %s19, 1
        %s6805 = scalar_select %p6804, %s19, 1
        %s6806 = smul.addr %s6805, 7
        %s6807 = smul.addr %s6806, 4
        %s6808 = scalar_lea.vmem %s7, %s6807
      $region60: #{value_net_forward.2} parent=55 // pred_fallthru
        _
    $region56: #{value_net_forward.2} parent=5 // pred_fallthru
      _
  $region6: #{value_net_forward.2} parent=0 // loop_footer
    %s17 = sadd.s32 1, %s13
  $region7: #{value_net_forward.2} parent=0 // loop_footer_branch
    %12 = sbr.rel target = $region3
  $region8: #{value_net_forward.2} parent=0 // loop_exit
    _

// kernel: value_net_forward.3
$region0: #{value_net_forward.3}
  #allocation0 [shape = 'u32[]', space=smem, size = 0x4, offset = 0x4, fixed_abs, tag = 'smem constant byte address 0x4 - core index']
  #allocation1 [shape = 'u32[144,128]{1,0:T(1,128)}', space=vmem, size = 0x12000, scoped, tag = 'internal scratch']
  %s0 = inlined_call_operand.vmem [shape: bf16[2,3136], index: 0, kind: input, shape index: {}]
  %s1 = inlined_call_operand.vmem [shape: bf16[3136,512], index: 1, kind: input, shape index: {}]
  %s2 = inlined_call_operand.vmem [shape: f32[1,512], index: 2, kind: input, shape index: {}]
  %s3 = inlined_call_operand.vmem [shape: bf16[512,128], index: 3, kind: input, shape index: {}]
  %s4 = inlined_call_operand.vmem [shape: f32[1,128], index: 4, kind: input, shape index: {}]
  %s5 = inlined_call_operand.vmem [shape: f32[2,128], index: 5, kind: output, shape index: {}]
  %s6 = sld [smem:[#allocation0]]
  $region30: #{value_net_forward.3} parent=0
    _
  %s8 = ssub.s32 1, %s6
  %s9 = scalar_select 0, %s8, %s6
  // Predicated region
  $region2: #{value_net_forward.3} parent=0 // pred_check
    _
  $region3: #{value_net_forward.3} parent=0 // pred_check_branch
    %11 = sbr.rel (0) target = $region5
  $region4: #{value_net_forward.3} parent=0 // pred_region
    _
  $region5: #{value_net_forward.3} parent=0 // pred_fallthru
    _
  // Predicated region
  $region6: #{value_net_forward.3} parent=0 // pred_check
    _
  $region7: #{value_net_forward.3} parent=0 // pred_check_branch
    %13 = sbr.rel (0) target = $region9
  $region8: #{value_net_forward.3} parent=0 // pred_region
    _
  $region9: #{value_net_forward.3} parent=0 // pred_fallthru
    _
  // Predicated region
  $region10: #{value_net_forward.3} parent=0 // pred_check
    _
  $region11: #{value_net_forward.3} parent=0 // pred_check_branch
    %15 = sbr.rel (0) target = $region13
  $region12: #{value_net_forward.3} parent=0 // pred_region
    _
  $region13: #{value_net_forward.3} parent=0 // pred_fallthru
    _
  // Predicated region
  $region14: #{value_net_forward.3} parent=0 // pred_check
    _
  $region15: #{value_net_forward.3} parent=0 // pred_check_branch
    %17 = sbr.rel (0) target = $region17
  $region16: #{value_net_forward.3} parent=0 // pred_region
    _
  $region17: #{value_net_forward.3} parent=0 // pred_fallthru
    _
  // Predicated region
  $region18: #{value_net_forward.3} parent=0 // pred_check
    _
  $region19: #{value_net_forward.3} parent=0 // pred_check_branch
    %19 = sbr.rel (0) target = $region21
  $region20: #{value_net_forward.3} parent=0 // pred_region
    _
  $region21: #{value_net_forward.3} parent=0 // pred_fallthru
    _
  %v21 = vld [vmem:[%s0] sm:$0xff]
  %v22 = vld [vmem:[%s0 + $0x8] sm:$0xff]
  %v23 = vld [vmem:[%s0 + $0x10] sm:$0xff]
  %v24 = vld [vmem:[%s0 + $0x18] sm:$0x1]
  %v25 = vld [vmem:[%s1] sm:$0xff]
  %v26 = vld [vmem:[%s1 + $0x8] sm:$0xff]
  %v27 = vld [vmem:[%s1 + $0x10] sm:$0xff]
  %v28 = vld [vmem:[%s1 + $0x18] sm:$0xff]
  %v29 = vld [vmem:[%s1 + $0x20] sm:$0xff]
  %v30 = vld [vmem:[%s1 + $0x28] sm:$0xff]
  %v31 = vld [vmem:[%s1 + $0x30] sm:$0xff]
  %v32 = vld [vmem:[%s1 + $0x38] sm:$0xff]
  %v33 = vld [vmem:[%s1 + $0x40] sm:$0xff]
  %v34 = vld [vmem:[%s1 + $0x48] sm:$0xff]
  %v35 = vld [vmem:[%s1 + $0x50] sm:$0xff]
  %v36 = vld [vmem:[%s1 + $0x58] sm:$0xff]
  %v37 = vld [vmem:[%s1 + $0x60] sm:$0xff]
  %v38 = vld [vmem:[%s1 + $0x68] sm:$0xff]
  %v39 = vld [vmem:[%s1 + $0x70] sm:$0xff]
  %v40 = vld [vmem:[%s1 + $0x78] sm:$0xff]
  %v41 = vld [vmem:[%s1 + $0x80] sm:$0xff]
  %v42 = vld [vmem:[%s1 + $0x88] sm:$0xff]
  %v43 = vld [vmem:[%s1 + $0x90] sm:$0xff]
  %v44 = vld [vmem:[%s1 + $0x98] sm:$0xff]
  %v45 = vld [vmem:[%s1 + $0xa0] sm:$0xff]
  %v46 = vld [vmem:[%s1 + $0xa8] sm:$0xff]
  %v47 = vld [vmem:[%s1 + $0xb0] sm:$0xff]
  %v48 = vld [vmem:[%s1 + $0xb8] sm:$0xff]
  %v49 = vld [vmem:[%s1 + $0xc0] sm:$0xff]
  %v50 = vld [vmem:[%s1 + $0xc8] sm:$0xff]
  %v51 = vld [vmem:[%s1 + $0xd0] sm:$0xff]
  %v52 = vld [vmem:[%s1 + $0xd8] sm:$0xff]
  %v53 = vld [vmem:[%s1 + $0xe0] sm:$0xff]
  %v54 = vld [vmem:[%s1 + $0xe8] sm:$0xff]
  %v55 = vld [vmem:[%s1 + $0xf0] sm:$0xff]
  %v56 = vld [vmem:[%s1 + $0xf8] sm:$0xff]
  %v57 = vld [vmem:[%s1 + $0x100] sm:$0xff]
  %v58 = vld [vmem:[%s1 + $0x108] sm:$0xff]
  %v59 = vld [vmem:[%s1 + $0x110] sm:$0xff]
  %v60 = vld [vmem:[%s1 + $0x118] sm:$0xff]
  %v61 = vld [vmem:[%s1 + $0x120] sm:$0xff]
  %v62 = vld [vmem:[%s1 + $0x128] sm:$0xff]
  %v63 = vld [vmem:[%s1 + $0x130] sm:$0xff]
  %v64 = vld [vmem:[%s1 + $0x138] sm:$0xff]
  %v65 = vld [vmem:[%s1 + $0x140] sm:$0xff]
  %v66 = vld [vmem:[%s1 + $0x148] sm:$0xff]
  %v67 = vld [vmem:[%s1 + $0x150] sm:$0xff]
  %v68 = vld [vmem:[%s1 + $0x158] sm:$0xff]
  %v69 = vld [vmem:[%s1 + $0x160] sm:$0xff]
  %v70 = vld [vmem:[%s1 + $0x168] sm:$0xff]
  %v71 = vld [vmem:[%s1 + $0x170] sm:$0xff]
  %v72 = vld [vmem:[%s1 + $0x178] sm:$0xff]
  %v73 = vld [vmem:[%s1 + $0x180] sm:$0xff]
  %v74 = vld [vmem:[%s1 + $0x188] sm:$0xff]
  %v75 = vld [vmem:[%s1 + $0x190] sm:$0xff]
  %v76 = vld [vmem:[%s1 + $0x198] sm:$0xff]
  %v77 = vld [vmem:[%s1 + $0x1a0] sm:$0xff]
  %v78 = vld [vmem:[%s1 + $0x1a8] sm:$0xff]
  %v79 = vld [vmem:[%s1 + $0x1b0] sm:$0xff]
  %v80 = vld [vmem:[%s1 + $0x1b8] sm:$0xff]
  %v81 = vld [vmem:[%s1 + $0x1c0] sm:$0xff]
  %v82 = vld [vmem:[%s1 + $0x1c8] sm:$0xff]
  %v83 = vld [vmem:[%s1 + $0x1d0] sm:$0xff]
  %v84 = vld [vmem:[%s1 + $0x1d8] sm:$0xff]
  %v85 = vld [vmem:[%s1 + $0x1e0] sm:$0xff]
  %v86 = vld [vmem:[%s1 + $0x1e8] sm:$0xff]
  %v87 = vld [vmem:[%s1 + $0x1f0] sm:$0xff]
  %v88 = vld [vmem:[%s1 + $0x1f8] sm:$0xff]
  %v89 = vld [vmem:[%s1 + $0x200] sm:$0xff]
  %v90 = vld [vmem:[%s1 + $0x208] sm:$0xff]
  %v91 = vld [vmem:[%s1 + $0x210] sm:$0xff]
  %v92 = vld [vmem:[%s1 + $0x218] sm:$0xff]
  %v93 = vld [vmem:[%s1 + $0x220] sm:$0xff]
  %v94 = vld [vmem:[%s1 + $0x228] sm:$0xff]
  %v95 = vld [vmem:[%s1 + $0x230] sm:$0xff]
  %v96 = vld [vmem:[%s1 + $0x238] sm:$0xff]
  %v97 = vld [vmem:[%s1 + $0x240] sm:$0xff]
  %v98 = vld [vmem:[%s1 + $0x248] sm:$0xff]
  %v99 = vld [vmem:[%s1 + $0x250] sm:$0xff]
  %v100 = vld [vmem:[%s1 + $0x258] sm:$0xff]
  %v101 = vld [vmem:[%s1 + $0x260] sm:$0xff]
  %v102 = vld [vmem:[%s1 + $0x268] sm:$0xff]
  %v103 = vld [vmem:[%s1 + $0x270] sm:$0xff]
  %v104 = vld [vmem:[%s1 + $0x278] sm:$0xff]
  %v105 = vld [vmem:[%s1 + $0x280] sm:$0xff]
  %v106 = vld [vmem:[%s1 + $0x288] sm:$0xff]
  %v107 = vld [vmem:[%s1 + $0x290] sm:$0xff]
  %v108 = vld [vmem:[%s1 + $0x298] sm:$0xff]
  %v109 = vld [vmem:[%s1 + $0x2a0] sm:$0xff]
  %v110 = vld [vmem:[%s1 + $0x2a8] sm:$0xff]
  %v111 = vld [vmem:[%s1 + $0x2b0] sm:$0xff]
  %v112 = vld [vmem:[%s1 + $0x2b8] sm:$0xff]
  %v113 = vld [vmem:[%s1 + $0x2c0] sm:$0xff]
  %v114 = vld [vmem:[%s1 + $0x2c8] sm:$0xff]
  %v115 = vld [vmem:[%s1 + $0x2d0] sm:$0xff]
  %v116 = vld [vmem:[%s1 + $0x2d8] sm:$0xff]
  %v117 = vld [vmem:[%s1 + $0x2e0] sm:$0xff]
  %v118 = vld [vmem:[%s1 + $0x2e8] sm:$0xff]
  %v119 = vld [vmem:[%s1 + $0x2f0] sm:$0xff]
  %v120 = vld [vmem:[%s1 + $0x2f8] sm:$0xff]
  %v121 = vld [vmem:[%s1 + $0x300] sm:$0xff]
  %v122 = vld [vmem:[%s1 + $0x308] sm:$0xff]
  %v123 = vld [vmem:[%s1 + $0x310] sm:$0xff]
  %v124 = vld [vmem:[%s1 + $0x318] sm:$0xff]
  %v125 = vld [vmem:[%s1 + $0x320] sm:$0xff]
  %v126 = vld [vmem:[%s1 + $0x328] sm:$0xff]
  %v127 = vld [vmem:[%s1 + $0x330] sm:$0xff]
  %v128 = vld [vmem:[%s1 + $0x338] sm:$0xff]
  %v129 = vld [vmem:[%s1 + $0x340] sm:$0xff]
  %v130 = vld [vmem:[%s1 + $0x348] sm:$0xff]
  %v131 = vld [vmem:[%s1 + $0x350] sm:$0xff]
  %v132 = vld [vmem:[%s1 + $0x358] sm:$0xff]
  %v133 = vld [vmem:[%s1 + $0x360] sm:$0xff]
  %v134 = vld [vmem:[%s1 + $0x368] sm:$0xff]
  %v135 = vld [vmem:[%s1 + $0x370] sm:$0xff]
  %v136 = vld [vmem:[%s1 + $0x378] sm:$0xff]
  %v137 = vld [vmem:[%s1 + $0x380] sm:$0xff]
  %v138 = vld [vmem:[%s1 + $0x388] sm:$0xff]
  %v139 = vld [vmem:[%s1 + $0x390] sm:$0xff]
  %v140 = vld [vmem:[%s1 + $0x398] sm:$0xff]
  %v141 = vld [vmem:[%s1 + $0x3a0] sm:$0xff]
  %v142 = vld [vmem:[%s1 + $0x3a8] sm:$0xff]
  %v143 = vld [vmem:[%s1 + $0x3b0] sm:$0xff]
  %v144 = vld [vmem:[%s1 + $0x3b8] sm:$0xff]
  %v145 = vld [vmem:[%s1 + $0x3c0] sm:$0xff]
  %v146 = vld [vmem:[%s1 + $0x3c8] sm:$0xff]
  %v147 = vld [vmem:[%s1 + $0x3d0] sm:$0xff]
  %v148 = vld [vmem:[%s1 + $0x3d8] sm:$0xff]
  %v149 = vld [vmem:[%s1 + $0x3e0] sm:$0xff]
  %v150 = vld [vmem:[%s1 + $0x3e8] sm:$0xff]
  %v151 = vld [vmem:[%s1 + $0x3f0] sm:$0xff]
  %v152 = vld [vmem:[%s1 + $0x3f8] sm:$0xff]
  %v153 = vld [vmem:[%s1 + $0x400] sm:$0xff]
  %v154 = vld [vmem:[%s1 + $0x408] sm:$0xff]
  %v155 = vld [vmem:[%s1 + $0x410] sm:$0xff]
  %v156 = vld [vmem:[%s1 + $0x418] sm:$0xff]
  %v157 = vld [vmem:[%s1 + $0x420] sm:$0xff]
  %v158 = vld [vmem:[%s1 + $0x428] sm:$0xff]
  %v159 = vld [vmem:[%s1 + $0x430] sm:$0xff]
  %v160 = vld [vmem:[%s1 + $0x438] sm:$0xff]
  %v161 = vld [vmem:[%s1 + $0x440] sm:$0xff]
  %v162 = vld [vmem:[%s1 + $0x448] sm:$0xff]
  %v163 = vld [vmem:[%s1 + $0x450] sm:$0xff]
  %v164 = vld [vmem:[%s1 + $0x458] sm:$0xff]
  %v165 = vld [vmem:[%s1 + $0x460] sm:$0xff]
  %v166 = vld [vmem:[%s1 + $0x468] sm:$0xff]
  %v167 = vld [vmem:[%s1 + $0x470] sm:$0xff]
  %v168 = vld [vmem:[%s1 + $0x478] sm:$0xff]
  %v169 = vld [vmem:[%s1 + $0x480] sm:$0xff]
  %v170 = vld [vmem:[%s1 + $0x488] sm:$0xff]
  %v171 = vld [vmem:[%s1 + $0x490] sm:$0xff]
  %v172 = vld [vmem:[%s1 + $0x498] sm:$0xff]
  %v173 = vld [vmem:[%s1 + $0x4a0] sm:$0xff]
  %v174 = vld [vmem:[%s1 + $0x4a8] sm:$0xff]
  %v175 = vld [vmem:[%s1 + $0x4b0] sm:$0xff]
  %v176 = vld [vmem:[%s1 + $0x4b8] sm:$0xff]
  %v177 = vld [vmem:[%s1 + $0x4c0] sm:$0xff]
  %v178 = vld [vmem:[%s1 + $0x4c8] sm:$0xff]
  %v179 = vld [vmem:[%s1 + $0x4d0] sm:$0xff]
  %v180 = vld [vmem:[%s1 + $0x4d8] sm:$0xff]
  %v181 = vld [vmem:[%s1 + $0x4e0] sm:$0xff]
  %v182 = vld [vmem:[%s1 + $0x4e8] sm:$0xff]
  %v183 = vld [vmem:[%s1 + $0x4f0] sm:$0xff]
  %v184 = vld [vmem:[%s1 + $0x4f8] sm:$0xff]
  %v185 = vld [vmem:[%s1 + $0x500] sm:$0xff]
  %v186 = vld [vmem:[%s1 + $0x508] sm:$0xff]
  %v187 = vld [vmem:[%s1 + $0x510] sm:$0xff]
  %v188 = vld [vmem:[%s1 + $0x518] sm:$0xff]
  %v189 = vld [vmem:[%s1 + $0x520] sm:$0xff]
  %v190 = vld [vmem:[%s1 + $0x528] sm:$0xff]
  %v191 = vld [vmem:[%s1 + $0x530] sm:$0xff]
  %v192 = vld [vmem:[%s1 + $0x538] sm:$0xff]
  %v193 = vld [vmem:[%s1 + $0x540] sm:$0xff]
  %v194 = vld [vmem:[%s1 + $0x548] sm:$0xff]
  %v195 = vld [vmem:[%s1 + $0x550] sm:$0xff]
  %v196 = vld [vmem:[%s1 + $0x558] sm:$0xff]
  %v197 = vld [vmem:[%s1 + $0x560] sm:$0xff]
  %v198 = vld [vmem:[%s1 + $0x568] sm:$0xff]
  %v199 = vld [vmem:[%s1 + $0x570] sm:$0xff]
  %v200 = vld [vmem:[%s1 + $0x578] sm:$0xff]
  %v201 = vld [vmem:[%s1 + $0x580] sm:$0xff]
  %v202 = vld [vmem:[%s1 + $0x588] sm:$0xff]
  %v203 = vld [vmem:[%s1 + $0x590] sm:$0xff]
  %v204 = vld [vmem:[%s1 + $0x598] sm:$0xff]
  %v205 = vld [vmem:[%s1 + $0x5a0] sm:$0xff]
  %v206 = vld [vmem:[%s1 + $0x5a8] sm:$0xff]
  %v207 = vld [vmem:[%s1 + $0x5b0] sm:$0xff]
  %v208 = vld [vmem:[%s1 + $0x5b8] sm:$0xff]
  %v209 = vld [vmem:[%s1 + $0x5c0] sm:$0xff]
  %v210 = vld [vmem:[%s1 + $0x5c8] sm:$0xff]
  %v211 = vld [vmem:[%s1 + $0x5d0] sm:$0xff]
  %v212 = vld [vmem:[%s1 + $0x5d8] sm:$0xff]
  %v213 = vld [vmem:[%s1 + $0x5e0] sm:$0xff]
  %v214 = vld [vmem:[%s1 + $0x5e8] sm:$0xff]
  %v215 = vld [vmem:[%s1 + $0x5f0] sm:$0xff]
  %v216 = vld [vmem:[%s1 + $0x5f8] sm:$0xff]
  %v217 = vld [vmem:[%s1 + $0x600] sm:$0xff]
  %v218 = vld [vmem:[%s1 + $0x608] sm:$0xff]
  %v219 = vld [vmem:[%s1 + $0x610] sm:$0xff]
  %v220 = vld [vmem:[%s1 + $0x618] sm:$0xff]
  %v221 = vld [vmem:[%s1 + $0x620] sm:$0xff]
  %v222 = vld [vmem:[%s1 + $0x628] sm:$0xff]
  %v223 = vld [vmem:[%s1 + $0x630] sm:$0xff]
  %v224 = vld [vmem:[%s1 + $0x638] sm:$0xff]
  %v225 = vld [vmem:[%s1 + $0x640] sm:$0xff]
  %v226 = vld [vmem:[%s1 + $0x648] sm:$0xff]
  %v227 = vld [vmem:[%s1 + $0x650] sm:$0xff]
  %v228 = vld [vmem:[%s1 + $0x658] sm:$0xff]
  %v229 = vld [vmem:[%s1 + $0x660] sm:$0xff]
  %v230 = vld [vmem:[%s1 + $0x668] sm:$0xff]
  %v231 = vld [vmem:[%s1 + $0x670] sm:$0xff]
  %v232 = vld [vmem:[%s1 + $0x678] sm:$0xff]
  %v233 = vld [vmem:[%s1 + $0x680] sm:$0xff]
  %v234 = vld [vmem:[%s1 + $0x688] sm:$0xff]
  %v235 = vld [vmem:[%s1 + $0x690] sm:$0xff]
  %v236 = vld [vmem:[%s1 + $0x698] sm:$0xff]
  %v237 = vld [vmem:[%s1 + $0x6a0] sm:$0xff]
  %v238 = vld [vmem:[%s1 + $0x6a8] sm:$0xff]
  %v239 = vld [vmem:[%s1 + $0x6b0] sm:$0xff]
  %v240 = vld [vmem:[%s1 + $0x6b8] sm:$0xff]
  %v241 = vld [vmem:[%s1 + $0x6c0] sm:$0xff]
  %v242 = vld [vmem:[%s1 + $0x6c8] sm:$0xff]
  %v243 = vld [vmem:[%s1 + $0x6d0] sm:$0xff]
  %v244 = vld [vmem:[%s1 + $0x6d8] sm:$0xff]
  %v245 = vld [vmem:[%s1 + $0x6e0] sm:$0xff]
  %v246 = vld [vmem:[%s1 + $0x6e8] sm:$0xff]
  %v247 = vld [vmem:[%s1 + $0x6f0] sm:$0xff]
  %v248 = vld [vmem:[%s1 + $0x6f8] sm:$0xff]
  %v249 = vld [vmem:[%s1 + $0x700] sm:$0xff]
  %v250 = vld [vmem:[%s1 + $0x708] sm:$0xff]
  %v251 = vld [vmem:[%s1 + $0x710] sm:$0xff]
  %v252 = vld [vmem:[%s1 + $0x718] sm:$0xff]
  %v253 = vld [vmem:[%s1 + $0x720] sm:$0xff]
  %v254 = vld [vmem:[%s1 + $0x728] sm:$0xff]
  %v255 = vld [vmem:[%s1 + $0x730] sm:$0xff]
  %v256 = vld [vmem:[%s1 + $0x738] sm:$0xff]
  %v257 = vld [vmem:[%s1 + $0x740] sm:$0xff]
  %v258 = vld [vmem:[%s1 + $0x748] sm:$0xff]
  %v259 = vld [vmem:[%s1 + $0x750] sm:$0xff]
  %v260 = vld [vmem:[%s1 + $0x758] sm:$0xff]
  %v261 = vld [vmem:[%s1 + $0x760] sm:$0xff]
  %v262 = vld [vmem:[%s1 + $0x768] sm:$0xff]
  %v263 = vld [vmem:[%s1 + $0x770] sm:$0xff]
  %v264 = vld [vmem:[%s1 + $0x778] sm:$0xff]
  %v265 = vld [vmem:[%s1 + $0x780] sm:$0xff]
  %v266 = vld [vmem:[%s1 + $0x788] sm:$0xff]
  %v267 = vld [vmem:[%s1 + $0x790] sm:$0xff]
  %v268 = vld [vmem:[%s1 + $0x798] sm:$0xff]
  %v269 = vld [vmem:[%s1 + $0x7a0] sm:$0xff]
  %v270 = vld [vmem:[%s1 + $0x7a8] sm:$0xff]
  %v271 = vld [vmem:[%s1 + $0x7b0] sm:$0xff]
  %v272 = vld [vmem:[%s1 + $0x7b8] sm:$0xff]
  %v273 = vld [vmem:[%s1 + $0x7c0] sm:$0xff]
  %v274 = vld [vmem:[%s1 + $0x7c8] sm:$0xff]
  %v275 = vld [vmem:[%s1 + $0x7d0] sm:$0xff]
  %v276 = vld [vmem:[%s1 + $0x7d8] sm:$0xff]
  %v277 = vld [vmem:[%s1 + $0x7e0] sm:$0xff]
  %v278 = vld [vmem:[%s1 + $0x7e8] sm:$0xff]
  %v279 = vld [vmem:[%s1 + $0x7f0] sm:$0xff]
  %v280 = vld [vmem:[%s1 + $0x7f8] sm:$0xff]
  %v281 = vld [vmem:[%s1 + $0x800] sm:$0xff]
  %v282 = vld [vmem:[%s1 + $0x808] sm:$0xff]
  %v283 = vld [vmem:[%s1 + $0x810] sm:$0xff]
  %v284 = vld [vmem:[%s1 + $0x818] sm:$0xff]
  %v285 = vld [vmem:[%s1 + $0x820] sm:$0xff]
  %v286 = vld [vmem:[%s1 + $0x828] sm:$0xff]
  %v287 = vld [vmem:[%s1 + $0x830] sm:$0xff]
  %v288 = vld [vmem:[%s1 + $0x838] sm:$0xff]
  %v289 = vld [vmem:[%s1 + $0x840] sm:$0xff]
  %v290 = vld [vmem:[%s1 + $0x848] sm:$0xff]
  %v291 = vld [vmem:[%s1 + $0x850] sm:$0xff]
  %v292 = vld [vmem:[%s1 + $0x858] sm:$0xff]
  %v293 = vld [vmem:[%s1 + $0x860] sm:$0xff]
  %v294 = vld [vmem:[%s1 + $0x868] sm:$0xff]
  %v295 = vld [vmem:[%s1 + $0x870] sm:$0xff]
  %v296 = vld [vmem:[%s1 + $0x878] sm:$0xff]
  %v297 = vld [vmem:[%s1 + $0x880] sm:$0xff]
  %v298 = vld [vmem:[%s1 + $0x888] sm:$0xff]
  %v299 = vld [vmem:[%s1 + $0x890] sm:$0xff]
  %v300 = vld [vmem:[%s1 + $0x898] sm:$0xff]
  %v301 = vld [vmem:[%s1 + $0x8a0] sm:$0xff]
  %v302 = vld [vmem:[%s1 + $0x8a8] sm:$0xff]
  %v303 = vld [vmem:[%s1 + $0x8b0] sm:$0xff]
  %v304 = vld [vmem:[%s1 + $0x8b8] sm:$0xff]
  %v305 = vld [vmem:[%s1 + $0x8c0] sm:$0xff]
  %v306 = vld [vmem:[%s1 + $0x8c8] sm:$0xff]
  %v307 = vld [vmem:[%s1 + $0x8d0] sm:$0xff]
  %v308 = vld [vmem:[%s1 + $0x8d8] sm:$0xff]
  %v309 = vld [vmem:[%s1 + $0x8e0] sm:$0xff]
  %v310 = vld [vmem:[%s1 + $0x8e8] sm:$0xff]
  %v311 = vld [vmem:[%s1 + $0x8f0] sm:$0xff]
  %v312 = vld [vmem:[%s1 + $0x8f8] sm:$0xff]
  %v313 = vld [vmem:[%s1 + $0x900] sm:$0xff]
  %v314 = vld [vmem:[%s1 + $0x908] sm:$0xff]
  %v315 = vld [vmem:[%s1 + $0x910] sm:$0xff]
  %v316 = vld [vmem:[%s1 + $0x918] sm:$0xff]
  %v317 = vld [vmem:[%s1 + $0x920] sm:$0xff]
  %v318 = vld [vmem:[%s1 + $0x928] sm:$0xff]
  %v319 = vld [vmem:[%s1 + $0x930] sm:$0xff]
  %v320 = vld [vmem:[%s1 + $0x938] sm:$0xff]
  %v321 = vld [vmem:[%s1 + $0x940] sm:$0xff]
  %v322 = vld [vmem:[%s1 + $0x948] sm:$0xff]
  %v323 = vld [vmem:[%s1 + $0x950] sm:$0xff]
  %v324 = vld [vmem:[%s1 + $0x958] sm:$0xff]
  %v325 = vld [vmem:[%s1 + $0x960] sm:$0xff]
  %v326 = vld [vmem:[%s1 + $0x968] sm:$0xff]
  %v327 = vld [vmem:[%s1 + $0x970] sm:$0xff]
  %v328 = vld [vmem:[%s1 + $0x978] sm:$0xff]
  %v329 = vld [vmem:[%s1 + $0x980] sm:$0xff]
  %v330 = vld [vmem:[%s1 + $0x988] sm:$0xff]
  %v331 = vld [vmem:[%s1 + $0x990] sm:$0xff]
  %v332 = vld [vmem:[%s1 + $0x998] sm:$0xff]
  %v333 = vld [vmem:[%s1 + $0x9a0] sm:$0xff]
  %v334 = vld [vmem:[%s1 + $0x9a8] sm:$0xff]
  %v335 = vld [vmem:[%s1 + $0x9b0] sm:$0xff]
  %v336 = vld [vmem:[%s1 + $0x9b8] sm:$0xff]
  %v337 = vld [vmem:[%s1 + $0x9c0] sm:$0xff]
  %v338 = vld [vmem:[%s1 + $0x9c8] sm:$0xff]
  %v339 = vld [vmem:[%s1 + $0x9d0] sm:$0xff]
  %v340 = vld [vmem:[%s1 + $0x9d8] sm:$0xff]
  %v341 = vld [vmem:[%s1 + $0x9e0] sm:$0xff]
  %v342 = vld [vmem:[%s1 + $0x9e8] sm:$0xff]
  %v343 = vld [vmem:[%s1 + $0x9f0] sm:$0xff]
  %v344 = vld [vmem:[%s1 + $0x9f8] sm:$0xff]
  %v345 = vld [vmem:[%s1 + $0xa00] sm:$0xff]
  %v346 = vld [vmem:[%s1 + $0xa08] sm:$0xff]
  %v347 = vld [vmem:[%s1 + $0xa10] sm:$0xff]
  %v348 = vld [vmem:[%s1 + $0xa18] sm:$0xff]
  %v349 = vld [vmem:[%s1 + $0xa20] sm:$0xff]
  %v350 = vld [vmem:[%s1 + $0xa28] sm:$0xff]
  %v351 = vld [vmem:[%s1 + $0xa30] sm:$0xff]
  %v352 = vld [vmem:[%s1 + $0xa38] sm:$0xff]
  %v353 = vld [vmem:[%s1 + $0xa40] sm:$0xff]
  %v354 = vld [vmem:[%s1 + $0xa48] sm:$0xff]
  %v355 = vld [vmem:[%s1 + $0xa50] sm:$0xff]
  %v356 = vld [vmem:[%s1 + $0xa58] sm:$0xff]
  %v357 = vld [vmem:[%s1 + $0xa60] sm:$0xff]
  %v358 = vld [vmem:[%s1 + $0xa68] sm:$0xff]
  %v359 = vld [vmem:[%s1 + $0xa70] sm:$0xff]
  %v360 = vld [vmem:[%s1 + $0xa78] sm:$0xff]
  %v361 = vld [vmem:[%s1 + $0xa80] sm:$0xff]
  %v362 = vld [vmem:[%s1 + $0xa88] sm:$0xff]
  %v363 = vld [vmem:[%s1 + $0xa90] sm:$0xff]
  %v364 = vld [vmem:[%s1 + $0xa98] sm:$0xff]
  %v365 = vld [vmem:[%s1 + $0xaa0] sm:$0xff]
  %v366 = vld [vmem:[%s1 + $0xaa8] sm:$0xff]
  %v367 = vld [vmem:[%s1 + $0xab0] sm:$0xff]
  %v368 = vld [vmem:[%s1 + $0xab8] sm:$0xff]
  %v369 = vld [vmem:[%s1 + $0xac0] sm:$0xff]
  %v370 = vld [vmem:[%s1 + $0xac8] sm:$0xff]
  %v371 = vld [vmem:[%s1 + $0xad0] sm:$0xff]
  %v372 = vld [vmem:[%s1 + $0xad8] sm:$0xff]
  %v373 = vld [vmem:[%s1 + $0xae0] sm:$0xff]
  %v374 = vld [vmem:[%s1 + $0xae8] sm:$0xff]
  %v375 = vld [vmem:[%s1 + $0xaf0] sm:$0xff]
  %v376 = vld [vmem:[%s1 + $0xaf8] sm:$0xff]
  %v377 = vld [vmem:[%s1 + $0xb00] sm:$0xff]
  %v378 = vld [vmem:[%s1 + $0xb08] sm:$0xff]
  %v379 = vld [vmem:[%s1 + $0xb10] sm:$0xff]
  %v380 = vld [vmem:[%s1 + $0xb18] sm:$0xff]
  %v381 = vld [vmem:[%s1 + $0xb20] sm:$0xff]
  %v382 = vld [vmem:[%s1 + $0xb28] sm:$0xff]
  %v383 = vld [vmem:[%s1 + $0xb30] sm:$0xff]
  %v384 = vld [vmem:[%s1 + $0xb38] sm:$0xff]
  %v385 = vld [vmem:[%s1 + $0xb40] sm:$0xff]
  %v386 = vld [vmem:[%s1 + $0xb48] sm:$0xff]
  %v387 = vld [vmem:[%s1 + $0xb50] sm:$0xff]
  %v388 = vld [vmem:[%s1 + $0xb58] sm:$0xff]
  %v389 = vld [vmem:[%s1 + $0xb60] sm:$0xff]
  %v390 = vld [vmem:[%s1 + $0xb68] sm:$0xff]
  %v391 = vld [vmem:[%s1 + $0xb70] sm:$0xff]
  %v392 = vld [vmem:[%s1 + $0xb78] sm:$0xff]
  %v393 = vld [vmem:[%s1 + $0xb80] sm:$0xff]
  %v394 = vld [vmem:[%s1 + $0xb88] sm:$0xff]
  %v395 = vld [vmem:[%s1 + $0xb90] sm:$0xff]
  %v396 = vld [vmem:[%s1 + $0xb98] sm:$0xff]
  %v397 = vld [vmem:[%s1 + $0xba0] sm:$0xff]
  %v398 = vld [vmem:[%s1 + $0xba8] sm:$0xff]
  %v399 = vld [vmem:[%s1 + $0xbb0] sm:$0xff]
  %v400 = vld [vmem:[%s1 + $0xbb8] sm:$0xff]
  %v401 = vld [vmem:[%s1 + $0xbc0] sm:$0xff]
  %v402 = vld [vmem:[%s1 + $0xbc8] sm:$0xff]
  %v403 = vld [vmem:[%s1 + $0xbd0] sm:$0xff]
  %v404 = vld [vmem:[%s1 + $0xbd8] sm:$0xff]
  %v405 = vld [vmem:[%s1 + $0xbe0] sm:$0xff]
  %v406 = vld [vmem:[%s1 + $0xbe8] sm:$0xff]
  %v407 = vld [vmem:[%s1 + $0xbf0] sm:$0xff]
  %v408 = vld [vmem:[%s1 + $0xbf8] sm:$0xff]
  %v409 = vld [vmem:[%s1 + $0xc00] sm:$0xff]
  %v410 = vld [vmem:[%s1 + $0xc08] sm:$0xff]
  %v411 = vld [vmem:[%s1 + $0xc10] sm:$0xff]
  %v412 = vld [vmem:[%s1 + $0xc18] sm:$0xff]
  %v413 = vld [vmem:[%s1 + $0xc20] sm:$0xff]
  %v414 = vld [vmem:[%s1 + $0xc28] sm:$0xff]
  %v415 = vld [vmem:[%s1 + $0xc30] sm:$0xff]
  %v416 = vld [vmem:[%s1 + $0xc38] sm:$0xff]
  %v417 = vld [vmem:[%s1 + $0xc40] sm:$0xff]
  %v418 = vld [vmem:[%s1 + $0xc48] sm:$0xff]
  %v419 = vld [vmem:[%s1 + $0xc50] sm:$0xff]
  %v420 = vld [vmem:[%s1 + $0xc58] sm:$0xff]
  %v421 = vld [vmem:[%s1 + $0xc60] sm:$0xff]
  %v422 = vld [vmem:[%s1 + $0xc68] sm:$0xff]
  %v423 = vld [vmem:[%s1 + $0xc70] sm:$0xff]
  %v424 = vld [vmem:[%s1 + $0xc78] sm:$0xff]
  %v425 = vld [vmem:[%s1 + $0xc80] sm:$0xff]
  %v426 = vld [vmem:[%s1 + $0xc88] sm:$0xff]
  %v427 = vld [vmem:[%s1 + $0xc90] sm:$0xff]
  %v428 = vld [vmem:[%s1 + $0xc98] sm:$0xff]
  %v429 = vld [vmem:[%s1 + $0xca0] sm:$0xff]
  %v430 = vld [vmem:[%s1 + $0xca8] sm:$0xff]
  %v431 = vld [vmem:[%s1 + $0xcb0] sm:$0xff]
  %v432 = vld [vmem:[%s1 + $0xcb8] sm:$0xff]
  %v433 = vld [vmem:[%s1 + $0xcc0] sm:$0xff]
  %v434 = vld [vmem:[%s1 + $0xcc8] sm:$0xff]
  %v435 = vld [vmem:[%s1 + $0xcd0] sm:$0xff]
  %v436 = vld [vmem:[%s1 + $0xcd8] sm:$0xff]
  %v437 = vld [vmem:[%s1 + $0xce0] sm:$0xff]
  %v438 = vld [vmem:[%s1 + $0xce8] sm:$0xff]
  %v439 = vld [vmem:[%s1 + $0xcf0] sm:$0xff]
  %v440 = vld [vmem:[%s1 + $0xcf8] sm:$0xff]
  %v441 = vld [vmem:[%s1 + $0xd00] sm:$0xff]
  %v442 = vld [vmem:[%s1 + $0xd08] sm:$0xff]
  %v443 = vld [vmem:[%s1 + $0xd10] sm:$0xff]
  %v444 = vld [vmem:[%s1 + $0xd18] sm:$0xff]
  %v445 = vld [vmem:[%s1 + $0xd20] sm:$0xff]
  %v446 = vld [vmem:[%s1 + $0xd28] sm:$0xff]
  %v447 = vld [vmem:[%s1 + $0xd30] sm:$0xff]
  %v448 = vld [vmem:[%s1 + $0xd38] sm:$0xff]
  %v449 = vld [vmem:[%s1 + $0xd40] sm:$0xff]
  %v450 = vld [vmem:[%s1 + $0xd48] sm:$0xff]
  %v451 = vld [vmem:[%s1 + $0xd50] sm:$0xff]
  %v452 = vld [vmem:[%s1 + $0xd58] sm:$0xff]
  %v453 = vld [vmem:[%s1 + $0xd60] sm:$0xff]
  %v454 = vld [vmem:[%s1 + $0xd68] sm:$0xff]
  %v455 = vld [vmem:[%s1 + $0xd70] sm:$0xff]
  %v456 = vld [vmem:[%s1 + $0xd78] sm:$0xff]
  %v457 = vld [vmem:[%s1 + $0xd80] sm:$0xff]
  %v458 = vld [vmem:[%s1 + $0xd88] sm:$0xff]
  %v459 = vld [vmem:[%s1 + $0xd90] sm:$0xff]
  %v460 = vld [vmem:[%s1 + $0xd98] sm:$0xff]
  %v461 = vld [vmem:[%s1 + $0xda0] sm:$0xff]
  %v462 = vld [vmem:[%s1 + $0xda8] sm:$0xff]
  %v463 = vld [vmem:[%s1 + $0xdb0] sm:$0xff]
  %v464 = vld [vmem:[%s1 + $0xdb8] sm:$0xff]
  %v465 = vld [vmem:[%s1 + $0xdc0] sm:$0xff]
  %v466 = vld [vmem:[%s1 + $0xdc8] sm:$0xff]
  %v467 = vld [vmem:[%s1 + $0xdd0] sm:$0xff]
  %v468 = vld [vmem:[%s1 + $0xdd8] sm:$0xff]
  %v469 = vld [vmem:[%s1 + $0xde0] sm:$0xff]
  %v470 = vld [vmem:[%s1 + $0xde8] sm:$0xff]
  %v471 = vld [vmem:[%s1 + $0xdf0] sm:$0xff]
  %v472 = vld [vmem:[%s1 + $0xdf8] sm:$0xff]
  %v473 = vld [vmem:[%s1 + $0xe00] sm:$0xff]
  %v474 = vld [vmem:[%s1 + $0xe08] sm:$0xff]
  %v475 = vld [vmem:[%s1 + $0xe10] sm:$0xff]
  %v476 = vld [vmem:[%s1 + $0xe18] sm:$0xff]
  %v477 = vld [vmem:[%s1 + $0xe20] sm:$0xff]
  %v478 = vld [vmem:[%s1 + $0xe28] sm:$0xff]
  %v479 = vld [vmem:[%s1 + $0xe30] sm:$0xff]
  %v480 = vld [vmem:[%s1 + $0xe38] sm:$0xff]
  %v481 = vld [vmem:[%s1 + $0xe40] sm:$0xff]
  %v482 = vld [vmem:[%s1 + $0xe48] sm:$0xff]
  %v483 = vld [vmem:[%s1 + $0xe50] sm:$0xff]
  %v484 = vld [vmem:[%s1 + $0xe58] sm:$0xff]
  %v485 = vld [vmem:[%s1 + $0xe60] sm:$0xff]
  %v486 = vld [vmem:[%s1 + $0xe68] sm:$0xff]
  %v487 = vld [vmem:[%s1 + $0xe70] sm:$0xff]
  %v488 = vld [vmem:[%s1 + $0xe78] sm:$0xff]
  %v489 = vld [vmem:[%s1 + $0xe80] sm:$0xff]
  %v490 = vld [vmem:[%s1 + $0xe88] sm:$0xff]
  %v491 = vld [vmem:[%s1 + $0xe90] sm:$0xff]
  %v492 = vld [vmem:[%s1 + $0xe98] sm:$0xff]
  %v493 = vld [vmem:[%s1 + $0xea0] sm:$0xff]
  %v494 = vld [vmem:[%s1 + $0xea8] sm:$0xff]
  %v495 = vld [vmem:[%s1 + $0xeb0] sm:$0xff]
  %v496 = vld [vmem:[%s1 + $0xeb8] sm:$0xff]
  %v497 = vld [vmem:[%s1 + $0xec0] sm:$0xff]
  %v498 = vld [vmem:[%s1 + $0xec8] sm:$0xff]
  %v499 = vld [vmem:[%s1 + $0xed0] sm:$0xff]
  %v500 = vld [vmem:[%s1 + $0xed8] sm:$0xff]
  %v501 = vld [vmem:[%s1 + $0xee0] sm:$0xff]
  %v502 = vld [vmem:[%s1 + $0xee8] sm:$0xff]
  %v503 = vld [vmem:[%s1 + $0xef0] sm:$0xff]
  %v504 = vld [vmem:[%s1 + $0xef8] sm:$0xff]
  %v505 = vld [vmem:[%s1 + $0xf00] sm:$0xff]
  %v506 = vld [vmem:[%s1 + $0xf08] sm:$0xff]
  %v507 = vld [vmem:[%s1 + $0xf10] sm:$0xff]
  %v508 = vld [vmem:[%s1 + $0xf18] sm:$0xff]
  %v509 = vld [vmem:[%s1 + $0xf20] sm:$0xff]
  %v510 = vld [vmem:[%s1 + $0xf28] sm:$0xff]
  %v511 = vld [vmem:[%s1 + $0xf30] sm:$0xff]
  %v512 = vld [vmem:[%s1 + $0xf38] sm:$0xff]
  %v513 = vld [vmem:[%s1 + $0xf40] sm:$0xff]
  %v514 = vld [vmem:[%s1 + $0xf48] sm:$0xff]
  %v515 = vld [vmem:[%s1 + $0xf50] sm:$0xff]
  %v516 = vld [vmem:[%s1 + $0xf58] sm:$0xff]
  %v517 = vld [vmem:[%s1 + $0xf60] sm:$0xff]
  %v518 = vld [vmem:[%s1 + $0xf68] sm:$0xff]
  %v519 = vld [vmem:[%s1 + $0xf70] sm:$0xff]
  %v520 = vld [vmem:[%s1 + $0xf78] sm:$0xff]
  %v521 = vld [vmem:[%s1 + $0xf80] sm:$0xff]
  %v522 = vld [vmem:[%s1 + $0xf88] sm:$0xff]
  %v523 = vld [vmem:[%s1 + $0xf90] sm:$0xff]
  %v524 = vld [vmem:[%s1 + $0xf98] sm:$0xff]
  %v525 = vld [vmem:[%s1 + $0xfa0] sm:$0xff]
  %v526 = vld [vmem:[%s1 + $0xfa8] sm:$0xff]
  %v527 = vld [vmem:[%s1 + $0xfb0] sm:$0xff]
  %v528 = vld [vmem:[%s1 + $0xfb8] sm:$0xff]
  %v529 = vld [vmem:[%s1 + $0xfc0] sm:$0xff]
  %v530 = vld [vmem:[%s1 + $0xfc8] sm:$0xff]
  %v531 = vld [vmem:[%s1 + $0xfd0] sm:$0xff]
  %v532 = vld [vmem:[%s1 + $0xfd8] sm:$0xff]
  %v533 = vld [vmem:[%s1 + $0xfe0] sm:$0xff]
  %v534 = vld [vmem:[%s1 + $0xfe8] sm:$0xff]
  %v535 = vld [vmem:[%s1 + $0xff0] sm:$0xff]
  %v536 = vld [vmem:[%s1 + $0xff8] sm:$0xff]
  %v537 = vld [vmem:[%s1 + $0x1000] sm:$0xff]
  %v538 = vld [vmem:[%s1 + $0x1008] sm:$0xff]
  %v539 = vld [vmem:[%s1 + $0x1010] sm:$0xff]
  %v540 = vld [vmem:[%s1 + $0x1018] sm:$0xff]
  %v541 = vld [vmem:[%s1 + $0x1020] sm:$0xff]
  %v542 = vld [vmem:[%s1 + $0x1028] sm:$0xff]
  %v543 = vld [vmem:[%s1 + $0x1030] sm:$0xff]
  %v544 = vld [vmem:[%s1 + $0x1038] sm:$0xff]
  %v545 = vld [vmem:[%s1 + $0x1040] sm:$0xff]
  %v546 = vld [vmem:[%s1 + $0x1048] sm:$0xff]
  %v547 = vld [vmem:[%s1 + $0x1050] sm:$0xff]
  %v548 = vld [vmem:[%s1 + $0x1058] sm:$0xff]
  %v549 = vld [vmem:[%s1 + $0x1060] sm:$0xff]
  %v550 = vld [vmem:[%s1 + $0x1068] sm:$0xff]
  %v551 = vld [vmem:[%s1 + $0x1070] sm:$0xff]
  %v552 = vld [vmem:[%s1 + $0x1078] sm:$0xff]
  %v553 = vld [vmem:[%s1 + $0x1080] sm:$0xff]
  %v554 = vld [vmem:[%s1 + $0x1088] sm:$0xff]
  %v555 = vld [vmem:[%s1 + $0x1090] sm:$0xff]
  %v556 = vld [vmem:[%s1 + $0x1098] sm:$0xff]
  %v557 = vld [vmem:[%s1 + $0x10a0] sm:$0xff]
  %v558 = vld [vmem:[%s1 + $0x10a8] sm:$0xff]
  %v559 = vld [vmem:[%s1 + $0x10b0] sm:$0xff]
  %v560 = vld [vmem:[%s1 + $0x10b8] sm:$0xff]
  %v561 = vld [vmem:[%s1 + $0x10c0] sm:$0xff]
  %v562 = vld [vmem:[%s1 + $0x10c8] sm:$0xff]
  %v563 = vld [vmem:[%s1 + $0x10d0] sm:$0xff]
  %v564 = vld [vmem:[%s1 + $0x10d8] sm:$0xff]
  %v565 = vld [vmem:[%s1 + $0x10e0] sm:$0xff]
  %v566 = vld [vmem:[%s1 + $0x10e8] sm:$0xff]
  %v567 = vld [vmem:[%s1 + $0x10f0] sm:$0xff]
  %v568 = vld [vmem:[%s1 + $0x10f8] sm:$0xff]
  %v569 = vld [vmem:[%s1 + $0x1100] sm:$0xff]
  %v570 = vld [vmem:[%s1 + $0x1108] sm:$0xff]
  %v571 = vld [vmem:[%s1 + $0x1110] sm:$0xff]
  %v572 = vld [vmem:[%s1 + $0x1118] sm:$0xff]
  %v573 = vld [vmem:[%s1 + $0x1120] sm:$0xff]
  %v574 = vld [vmem:[%s1 + $0x1128] sm:$0xff]
  %v575 = vld [vmem:[%s1 + $0x1130] sm:$0xff]
  %v576 = vld [vmem:[%s1 + $0x1138] sm:$0xff]
  %v577 = vld [vmem:[%s1 + $0x1140] sm:$0xff]
  %v578 = vld [vmem:[%s1 + $0x1148] sm:$0xff]
  %v579 = vld [vmem:[%s1 + $0x1150] sm:$0xff]
  %v580 = vld [vmem:[%s1 + $0x1158] sm:$0xff]
  %v581 = vld [vmem:[%s1 + $0x1160] sm:$0xff]
  %v582 = vld [vmem:[%s1 + $0x1168] sm:$0xff]
  %v583 = vld [vmem:[%s1 + $0x1170] sm:$0xff]
  %v584 = vld [vmem:[%s1 + $0x1178] sm:$0xff]
  %v585 = vld [vmem:[%s1 + $0x1180] sm:$0xff]
  %v586 = vld [vmem:[%s1 + $0x1188] sm:$0xff]
  %v587 = vld [vmem:[%s1 + $0x1190] sm:$0xff]
  %v588 = vld [vmem:[%s1 + $0x1198] sm:$0xff]
  %v589 = vld [vmem:[%s1 + $0x11a0] sm:$0xff]
  %v590 = vld [vmem:[%s1 + $0x11a8] sm:$0xff]
  %v591 = vld [vmem:[%s1 + $0x11b0] sm:$0xff]
  %v592 = vld [vmem:[%s1 + $0x11b8] sm:$0xff]
  %v593 = vld [vmem:[%s1 + $0x11c0] sm:$0xff]
  %v594 = vld [vmem:[%s1 + $0x11c8] sm:$0xff]
  %v595 = vld [vmem:[%s1 + $0x11d0] sm:$0xff]
  %v596 = vld [vmem:[%s1 + $0x11d8] sm:$0xff]
  %v597 = vld [vmem:[%s1 + $0x11e0] sm:$0xff]
  %v598 = vld [vmem:[%s1 + $0x11e8] sm:$0xff]
  %v599 = vld [vmem:[%s1 + $0x11f0] sm:$0xff]
  %v600 = vld [vmem:[%s1 + $0x11f8] sm:$0xff]
  %v601 = vld [vmem:[%s1 + $0x1200] sm:$0xff]
  %v602 = vld [vmem:[%s1 + $0x1208] sm:$0xff]
  %v603 = vld [vmem:[%s1 + $0x1210] sm:$0xff]
  %v604 = vld [vmem:[%s1 + $0x1218] sm:$0xff]
  %v605 = vld [vmem:[%s1 + $0x1220] sm:$0xff]
  %v606 = vld [vmem:[%s1 + $0x1228] sm:$0xff]
  %v607 = vld [vmem:[%s1 + $0x1230] sm:$0xff]
  %v608 = vld [vmem:[%s1 + $0x1238] sm:$0xff]
  %v609 = vld [vmem:[%s1 + $0x1240] sm:$0xff]
  %v610 = vld [vmem:[%s1 + $0x1248] sm:$0xff]
  %v611 = vld [vmem:[%s1 + $0x1250] sm:$0xff]
  %v612 = vld [vmem:[%s1 + $0x1258] sm:$0xff]
  %v613 = vld [vmem:[%s1 + $0x1260] sm:$0xff]
  %v614 = vld [vmem:[%s1 + $0x1268] sm:$0xff]
  %v615 = vld [vmem:[%s1 + $0x1270] sm:$0xff]
  %v616 = vld [vmem:[%s1 + $0x1278] sm:$0xff]
  %v617 = vld [vmem:[%s1 + $0x1280] sm:$0xff]
  %v618 = vld [vmem:[%s1 + $0x1288] sm:$0xff]
  %v619 = vld [vmem:[%s1 + $0x1290] sm:$0xff]
  %v620 = vld [vmem:[%s1 + $0x1298] sm:$0xff]
  %v621 = vld [vmem:[%s1 + $0x12a0] sm:$0xff]
  %v622 = vld [vmem:[%s1 + $0x12a8] sm:$0xff]
  %v623 = vld [vmem:[%s1 + $0x12b0] sm:$0xff]
  %v624 = vld [vmem:[%s1 + $0x12b8] sm:$0xff]
  %v625 = vld [vmem:[%s1 + $0x12c0] sm:$0xff]
  %v626 = vld [vmem:[%s1 + $0x12c8] sm:$0xff]
  %v627 = vld [vmem:[%s1 + $0x12d0] sm:$0xff]
  %v628 = vld [vmem:[%s1 + $0x12d8] sm:$0xff]
  %v629 = vld [vmem:[%s1 + $0x12e0] sm:$0xff]
  %v630 = vld [vmem:[%s1 + $0x12e8] sm:$0xff]
  %v631 = vld [vmem:[%s1 + $0x12f0] sm:$0xff]
  %v632 = vld [vmem:[%s1 + $0x12f8] sm:$0xff]
  %v633 = vld [vmem:[%s1 + $0x1300] sm:$0xff]
  %v634 = vld [vmem:[%s1 + $0x1308] sm:$0xff]
  %v635 = vld [vmem:[%s1 + $0x1310] sm:$0xff]
  %v636 = vld [vmem:[%s1 + $0x1318] sm:$0xff]
  %v637 = vld [vmem:[%s1 + $0x1320] sm:$0xff]
  %v638 = vld [vmem:[%s1 + $0x1328] sm:$0xff]
  %v639 = vld [vmem:[%s1 + $0x1330] sm:$0xff]
  %v640 = vld [vmem:[%s1 + $0x1338] sm:$0xff]
  %v641 = vld [vmem:[%s1 + $0x1340] sm:$0xff]
  %v642 = vld [vmem:[%s1 + $0x1348] sm:$0xff]
  %v643 = vld [vmem:[%s1 + $0x1350] sm:$0xff]
  %v644 = vld [vmem:[%s1 + $0x1358] sm:$0xff]
  %v645 = vld [vmem:[%s1 + $0x1360] sm:$0xff]
  %v646 = vld [vmem:[%s1 + $0x1368] sm:$0xff]
  %v647 = vld [vmem:[%s1 + $0x1370] sm:$0xff]
  %v648 = vld [vmem:[%s1 + $0x1378] sm:$0xff]
  %v649 = vld [vmem:[%s1 + $0x1380] sm:$0xff]
  %v650 = vld [vmem:[%s1 + $0x1388] sm:$0xff]
  %v651 = vld [vmem:[%s1 + $0x1390] sm:$0xff]
  %v652 = vld [vmem:[%s1 + $0x1398] sm:$0xff]
  %v653 = vld [vmem:[%s1 + $0x13a0] sm:$0xff]
  %v654 = vld [vmem:[%s1 + $0x13a8] sm:$0xff]
  %v655 = vld [vmem:[%s1 + $0x13b0] sm:$0xff]
  %v656 = vld [vmem:[%s1 + $0x13b8] sm:$0xff]
  %v657 = vld [vmem:[%s1 + $0x13c0] sm:$0xff]
  %v658 = vld [vmem:[%s1 + $0x13c8] sm:$0xff]
  %v659 = vld [vmem:[%s1 + $0x13d0] sm:$0xff]
  %v660 = vld [vmem:[%s1 + $0x13d8] sm:$0xff]
  %v661 = vld [vmem:[%s1 + $0x13e0] sm:$0xff]
  %v662 = vld [vmem:[%s1 + $0x13e8] sm:$0xff]
  %v663 = vld [vmem:[%s1 + $0x13f0] sm:$0xff]
  %v664 = vld [vmem:[%s1 + $0x13f8] sm:$0xff]
  %v665 = vld [vmem:[%s1 + $0x1400] sm:$0xff]
  %v666 = vld [vmem:[%s1 + $0x1408] sm:$0xff]
  %v667 = vld [vmem:[%s1 + $0x1410] sm:$0xff]
  %v668 = vld [vmem:[%s1 + $0x1418] sm:$0xff]
  %v669 = vld [vmem:[%s1 + $0x1420] sm:$0xff]
  %v670 = vld [vmem:[%s1 + $0x1428] sm:$0xff]
  %v671 = vld [vmem:[%s1 + $0x1430] sm:$0xff]
  %v672 = vld [vmem:[%s1 + $0x1438] sm:$0xff]
  %v673 = vld [vmem:[%s1 + $0x1440] sm:$0xff]
  %v674 = vld [vmem:[%s1 + $0x1448] sm:$0xff]
  %v675 = vld [vmem:[%s1 + $0x1450] sm:$0xff]
  %v676 = vld [vmem:[%s1 + $0x1458] sm:$0xff]
  %v677 = vld [vmem:[%s1 + $0x1460] sm:$0xff]
  %v678 = vld [vmem:[%s1 + $0x1468] sm:$0xff]
  %v679 = vld [vmem:[%s1 + $0x1470] sm:$0xff]
  %v680 = vld [vmem:[%s1 + $0x1478] sm:$0xff]
  %v681 = vld [vmem:[%s1 + $0x1480] sm:$0xff]
  %v682 = vld [vmem:[%s1 + $0x1488] sm:$0xff]
  %v683 = vld [vmem:[%s1 + $0x1490] sm:$0xff]
  %v684 = vld [vmem:[%s1 + $0x1498] sm:$0xff]
  %v685 = vld [vmem:[%s1 + $0x14a0] sm:$0xff]
  %v686 = vld [vmem:[%s1 + $0x14a8] sm:$0xff]
  %v687 = vld [vmem:[%s1 + $0x14b0] sm:$0xff]
  %v688 = vld [vmem:[%s1 + $0x14b8] sm:$0xff]
  %v689 = vld [vmem:[%s1 + $0x14c0] sm:$0xff]
  %v690 = vld [vmem:[%s1 + $0x14c8] sm:$0xff]
  %v691 = vld [vmem:[%s1 + $0x14d0] sm:$0xff]
  %v692 = vld [vmem:[%s1 + $0x14d8] sm:$0xff]
  %v693 = vld [vmem:[%s1 + $0x14e0] sm:$0xff]
  %v694 = vld [vmem:[%s1 + $0x14e8] sm:$0xff]
  %v695 = vld [vmem:[%s1 + $0x14f0] sm:$0xff]
  %v696 = vld [vmem:[%s1 + $0x14f8] sm:$0xff]
  %v697 = vld [vmem:[%s1 + $0x1500] sm:$0xff]
  %v698 = vld [vmem:[%s1 + $0x1508] sm:$0xff]
  %v699 = vld [vmem:[%s1 + $0x1510] sm:$0xff]
  %v700 = vld [vmem:[%s1 + $0x1518] sm:$0xff]
  %v701 = vld [vmem:[%s1 + $0x1520] sm:$0xff]
  %v702 = vld [vmem:[%s1 + $0x1528] sm:$0xff]
  %v703 = vld [vmem:[%s1 + $0x1530] sm:$0xff]
  %v704 = vld [vmem:[%s1 + $0x1538] sm:$0xff]
  %v705 = vld [vmem:[%s1 + $0x1540] sm:$0xff]
  %v706 = vld [vmem:[%s1 + $0x1548] sm:$0xff]
  %v707 = vld [vmem:[%s1 + $0x1550] sm:$0xff]
  %v708 = vld [vmem:[%s1 + $0x1558] sm:$0xff]
  %v709 = vld [vmem:[%s1 + $0x1560] sm:$0xff]
  %v710 = vld [vmem:[%s1 + $0x1568] sm:$0xff]
  %v711 = vld [vmem:[%s1 + $0x1570] sm:$0xff]
  %v712 = vld [vmem:[%s1 + $0x1578] sm:$0xff]
  %v713 = vld [vmem:[%s1 + $0x1580] sm:$0xff]
  %v714 = vld [vmem:[%s1 + $0x1588] sm:$0xff]
  %v715 = vld [vmem:[%s1 + $0x1590] sm:$0xff]
  %v716 = vld [vmem:[%s1 + $0x1598] sm:$0xff]
  %v717 = vld [vmem:[%s1 + $0x15a0] sm:$0xff]
  %v718 = vld [vmem:[%s1 + $0x15a8] sm:$0xff]
  %v719 = vld [vmem:[%s1 + $0x15b0] sm:$0xff]
  %v720 = vld [vmem:[%s1 + $0x15b8] sm:$0xff]
  %v721 = vld [vmem:[%s1 + $0x15c0] sm:$0xff]
  %v722 = vld [vmem:[%s1 + $0x15c8] sm:$0xff]
  %v723 = vld [vmem:[%s1 + $0x15d0] sm:$0xff]
  %v724 = vld [vmem:[%s1 + $0x15d8] sm:$0xff]
  %v725 = vld [vmem:[%s1 + $0x15e0] sm:$0xff]
  %v726 = vld [vmem:[%s1 + $0x15e8] sm:$0xff]
  %v727 = vld [vmem:[%s1 + $0x15f0] sm:$0xff]
  %v728 = vld [vmem:[%s1 + $0x15f8] sm:$0xff]
  %v729 = vld [vmem:[%s1 + $0x1600] sm:$0xff]
  %v730 = vld [vmem:[%s1 + $0x1608] sm:$0xff]
  %v731 = vld [vmem:[%s1 + $0x1610] sm:$0xff]
  %v732 = vld [vmem:[%s1 + $0x1618] sm:$0xff]
  %v733 = vld [vmem:[%s1 + $0x1620] sm:$0xff]
  %v734 = vld [vmem:[%s1 + $0x1628] sm:$0xff]
  %v735 = vld [vmem:[%s1 + $0x1630] sm:$0xff]
  %v736 = vld [vmem:[%s1 + $0x1638] sm:$0xff]
  %v737 = vld [vmem:[%s1 + $0x1640] sm:$0xff]
  %v738 = vld [vmem:[%s1 + $0x1648] sm:$0xff]
  %v739 = vld [vmem:[%s1 + $0x1650] sm:$0xff]
  %v740 = vld [vmem:[%s1 + $0x1658] sm:$0xff]
  %v741 = vld [vmem:[%s1 + $0x1660] sm:$0xff]
  %v742 = vld [vmem:[%s1 + $0x1668] sm:$0xff]
  %v743 = vld [vmem:[%s1 + $0x1670] sm:$0xff]
  %v744 = vld [vmem:[%s1 + $0x1678] sm:$0xff]
  %v745 = vld [vmem:[%s1 + $0x1680] sm:$0xff]
  %v746 = vld [vmem:[%s1 + $0x1688] sm:$0xff]
  %v747 = vld [vmem:[%s1 + $0x1690] sm:$0xff]
  %v748 = vld [vmem:[%s1 + $0x1698] sm:$0xff]
  %v749 = vld [vmem:[%s1 + $0x16a0] sm:$0xff]
  %v750 = vld [vmem:[%s1 + $0x16a8] sm:$0xff]
  %v751 = vld [vmem:[%s1 + $0x16b0] sm:$0xff]
  %v752 = vld [vmem:[%s1 + $0x16b8] sm:$0xff]
  %v753 = vld [vmem:[%s1 + $0x16c0] sm:$0xff]
  %v754 = vld [vmem:[%s1 + $0x16c8] sm:$0xff]
  %v755 = vld [vmem:[%s1 + $0x16d0] sm:$0xff]
  %v756 = vld [vmem:[%s1 + $0x16d8] sm:$0xff]
  %v757 = vld [vmem:[%s1 + $0x16e0] sm:$0xff]
  %v758 = vld [vmem:[%s1 + $0x16e8] sm:$0xff]
  %v759 = vld [vmem:[%s1 + $0x16f0] sm:$0xff]
  %v760 = vld [vmem:[%s1 + $0x16f8] sm:$0xff]
  %v761 = vld [vmem:[%s1 + $0x1700] sm:$0xff]
  %v762 = vld [vmem:[%s1 + $0x1708] sm:$0xff]
  %v763 = vld [vmem:[%s1 + $0x1710] sm:$0xff]
  %v764 = vld [vmem:[%s1 + $0x1718] sm:$0xff]
  %v765 = vld [vmem:[%s1 + $0x1720] sm:$0xff]
  %v766 = vld [vmem:[%s1 + $0x1728] sm:$0xff]
  %v767 = vld [vmem:[%s1 + $0x1730] sm:$0xff]
  %v768 = vld [vmem:[%s1 + $0x1738] sm:$0xff]
  %v769 = vld [vmem:[%s1 + $0x1740] sm:$0xff]
  %v770 = vld [vmem:[%s1 + $0x1748] sm:$0xff]
  %v771 = vld [vmem:[%s1 + $0x1750] sm:$0xff]
  %v772 = vld [vmem:[%s1 + $0x1758] sm:$0xff]
  %v773 = vld [vmem:[%s1 + $0x1760] sm:$0xff]
  %v774 = vld [vmem:[%s1 + $0x1768] sm:$0xff]
  %v775 = vld [vmem:[%s1 + $0x1770] sm:$0xff]
  %v776 = vld [vmem:[%s1 + $0x1778] sm:$0xff]
  %v777 = vld [vmem:[%s1 + $0x1780] sm:$0xff]
  %v778 = vld [vmem:[%s1 + $0x1788] sm:$0xff]
  %v779 = vld [vmem:[%s1 + $0x1790] sm:$0xff]
  %v780 = vld [vmem:[%s1 + $0x1798] sm:$0xff]
  %v781 = vld [vmem:[%s1 + $0x17a0] sm:$0xff]
  %v782 = vld [vmem:[%s1 + $0x17a8] sm:$0xff]
  %v783 = vld [vmem:[%s1 + $0x17b0] sm:$0xff]
  %v784 = vld [vmem:[%s1 + $0x17b8] sm:$0xff]
  %v785 = vld [vmem:[%s1 + $0x17c0] sm:$0xff]
  %v786 = vld [vmem:[%s1 + $0x17c8] sm:$0xff]
  %v787 = vld [vmem:[%s1 + $0x17d0] sm:$0xff]
  %v788 = vld [vmem:[%s1 + $0x17d8] sm:$0xff]
  %v789 = vld [vmem:[%s1 + $0x17e0] sm:$0xff]
  %v790 = vld [vmem:[%s1 + $0x17e8] sm:$0xff]
  %v791 = vld [vmem:[%s1 + $0x17f0] sm:$0xff]
  %v792 = vld [vmem:[%s1 + $0x17f8] sm:$0xff]
  %v793 = vld [vmem:[%s1 + $0x1800] sm:$0xff]
  %v794 = vld [vmem:[%s1 + $0x1808] sm:$0xff]
  %v795 = vld [vmem:[%s1 + $0x1810] sm:$0xff]
  %v796 = vld [vmem:[%s1 + $0x1818] sm:$0xff]
  %v797 = vld [vmem:[%s1 + $0x1820] sm:$0xff]
  %v798 = vld [vmem:[%s1 + $0x1828] sm:$0xff]
  %v799 = vld [vmem:[%s1 + $0x1830] sm:$0xff]
  %v800 = vld [vmem:[%s1 + $0x1838] sm:$0xff]
  %v801 = vld [vmem:[%s1 + $0x1840] sm:$0xff]
  %v802 = vld [vmem:[%s1 + $0x1848] sm:$0xff]
  %v803 = vld [vmem:[%s1 + $0x1850] sm:$0xff]
  %v804 = vld [vmem:[%s1 + $0x1858] sm:$0xff]
  %v805 = vld [vmem:[%s1 + $0x1860] sm:$0xff]
  %v806 = vld [vmem:[%s1 + $0x1868] sm:$0xff]
  %v807 = vld [vmem:[%s1 + $0x1870] sm:$0xff]
  %v808 = vld [vmem:[%s1 + $0x1878] sm:$0xff]
  %v809 = vld [vmem:[%s2] sm:$0xf]
  %v811 = vlaneseq
  %v812 = vshrl.u32 %v811, 7
  %v813 = vsub.s32 0, %v812
  %v814 = vrot.slane %v809, %v813
  %v815 = vlaneseq
  %v816 = vshrl.u32 %v815, 7
  %v817 = vsub.s32 1, %v816
  %v818 = vrot.slane %v809, %v817
  %v819 = vlaneseq
  %v820 = vshrl.u32 %v819, 7
  %v821 = vsub.s32 2, %v820
  %v822 = vrot.slane %v809, %v821
  %v823 = vlaneseq
  %v824 = vshrl.u32 %v823, 7
  %v825 = vsub.s32 3, %v824
  %v826 = vrot.slane %v809, %v825
  %v835 = vcombine.high %v21, %v21
  %v837 = vunpack.c.l.s4 1966171168
  %v838 = vunpack.c.0.s8 %v837
  %v839 = vlaneseq
  %v840 = vshrl.u32 %v839, 7
  %v841 = vsub.s32 %v838, %v840
  %v842 = vrot.slane %v21, %v841
  %v844 = vunpack.c.l.s4 1966171168
  %v845 = vunpack.c.0.s8 %v844
  %v846 = vlaneseq
  %v847 = vshrl.u32 %v846, 7
  %v848 = vsub.s32 %v845, %v847
  %v849 = vrot.slane %v835, %v848
  %v850 = vcombine.high %v842, %v842
  %v851 = vcombine.high %v849, %v849
  %v853 = vunpack.c.l.s4 1966171168
  %v854 = vunpack.c.0.s8 %v853
  %v855 = vlaneseq
  %v856 = vshrl.u32 %v855, 7
  %v857 = vsub.s32 %v854, %v856
  %v858 = vrot.slane %v842, %v857
  %v860 = vunpack.c.l.s4 1966171168
  %v861 = vunpack.c.0.s8 %v860
  %v862 = vlaneseq
  %v863 = vshrl.u32 %v862, 7
  %v864 = vsub.s32 %v861, %v863
  %v865 = vrot.slane %v849, %v864
  %v867 = vunpack.c.l.s4 1966171168
  %v868 = vunpack.c.0.s8 %v867
  %v869 = vlaneseq
  %v870 = vshrl.u32 %v869, 7
  %v871 = vsub.s32 %v868, %v870
  %v872 = vrot.slane %v850, %v871
  %v874 = vunpack.c.l.s4 1966171168
  %v875 = vunpack.c.0.s8 %v874
  %v876 = vlaneseq
  %v877 = vshrl.u32 %v876, 7
  %v878 = vsub.s32 %v875, %v877
  %v879 = vrot.slane %v851, %v878
  %v880 = vcombine.high %v858, %v858
  %v881 = vcombine.high %v865, %v865
  %v882 = vcombine.high %v872, %v872
  %v883 = vcombine.high %v879, %v879
  %v884 = vcombine.high %v22, %v22
  %v886 = vunpack.c.l.s4 1966171168
  %v887 = vunpack.c.0.s8 %v886
  %v888 = vlaneseq
  %v889 = vshrl.u32 %v888, 7
  %v890 = vsub.s32 %v887, %v889
  %v891 = vrot.slane %v22, %v890
  %v893 = vunpack.c.l.s4 1966171168
  %v894 = vunpack.c.0.s8 %v893
  %v895 = vlaneseq
  %v896 = vshrl.u32 %v895, 7
  %v897 = vsub.s32 %v894, %v896
  %v898 = vrot.slane %v884, %v897
  %v899 = vcombine.high %v891, %v891
  %v900 = vcombine.high %v898, %v898
  %v902 = vunpack.c.l.s4 1966171168
  %v903 = vunpack.c.0.s8 %v902
  %v904 = vlaneseq
  %v905 = vshrl.u32 %v904, 7
  %v906 = vsub.s32 %v903, %v905
  %v907 = vrot.slane %v891, %v906
  %v909 = vunpack.c.l.s4 1966171168
  %v910 = vunpack.c.0.s8 %v909
  %v911 = vlaneseq
  %v912 = vshrl.u32 %v911, 7
  %v913 = vsub.s32 %v910, %v912
  %v914 = vrot.slane %v898, %v913
  %v916 = vunpack.c.l.s4 1966171168
  %v917 = vunpack.c.0.s8 %v916
  %v918 = vlaneseq
  %v919 = vshrl.u32 %v918, 7
  %v920 = vsub.s32 %v917, %v919
  %v921 = vrot.slane %v899, %v920
  %v923 = vunpack.c.l.s4 1966171168
  %v924 = vunpack.c.0.s8 %v923
  %v925 = vlaneseq
  %v926 = vshrl.u32 %v925, 7
  %v927 = vsub.s32 %v924, %v926
  %v928 = vrot.slane %v900, %v927
  %v929 = vcombine.high %v907, %v907
  %v930 = vcombine.high %v914, %v914
  %v931 = vcombine.high %v921, %v921
  %v932 = vcombine.high %v928, %v928
  %v933 = vcombine.high %v23, %v23
  %v935 = vunpack.c.l.s4 1966171168
  %v936 = vunpack.c.0.s8 %v935
  %v937 = vlaneseq
  %v938 = vshrl.u32 %v937, 7
  %v939 = vsub.s32 %v936, %v938
  %v940 = vrot.slane %v23, %v939
  %v942 = vunpack.c.l.s4 1966171168
  %v943 = vunpack.c.0.s8 %v942
  %v944 = vlaneseq
  %v945 = vshrl.u32 %v944, 7
  %v946 = vsub.s32 %v943, %v945
  %v947 = vrot.slane %v933, %v946
  %v948 = vcombine.high %v940, %v940
  %v949 = vcombine.high %v947, %v947
  %v951 = vunpack.c.l.s4 1966171168
  %v952 = vunpack.c.0.s8 %v951
  %v953 = vlaneseq
  %v954 = vshrl.u32 %v953, 7
  %v955 = vsub.s32 %v952, %v954
  %v956 = vrot.slane %v940, %v955
  %v958 = vunpack.c.l.s4 1966171168
  %v959 = vunpack.c.0.s8 %v958
  %v960 = vlaneseq
  %v961 = vshrl.u32 %v960, 7
  %v962 = vsub.s32 %v959, %v961
  %v963 = vrot.slane %v947, %v962
  %v965 = vunpack.c.l.s4 1966171168
  %v966 = vunpack.c.0.s8 %v965
  %v967 = vlaneseq
  %v968 = vshrl.u32 %v967, 7
  %v969 = vsub.s32 %v966, %v968
  %v970 = vrot.slane %v948, %v969
  %v972 = vunpack.c.l.s4 1966171168
  %v973 = vunpack.c.0.s8 %v972
  %v974 = vlaneseq
  %v975 = vshrl.u32 %v974, 7
  %v976 = vsub.s32 %v973, %v975
  %v977 = vrot.slane %v949, %v976
  %v978 = vcombine.high %v956, %v956
  %v979 = vcombine.high %v963, %v963
  %v980 = vcombine.high %v970, %v970
  %v981 = vcombine.high %v977, %v977
  %v983 = vunpack.c.l.s4 1966171168
  %v984 = vunpack.c.0.s8 %v983
  %v985 = vlaneseq
  %v986 = vshrl.u32 %v985, 7
  %v987 = vsub.s32 %v984, %v986
  %v988 = vrot.slane %v24, %v987
  %v990 = vunpack.c.l.s4 1966171168
  %v991 = vunpack.c.0.s8 %v990
  %v992 = vlaneseq
  %v993 = vshrl.u32 %v992, 7
  %v994 = vsub.s32 %v991, %v993
  %v995 = vrot.slane %v988, %v994
  %v1804 = vunpack.c.l.b16 %v25
  %v1805 = vunpack.c.h.b16 %v25
  %v1806 = vunpack.c.l.b16 %v26
  %v1807 = vunpack.c.h.b16 %v26
  %v1808 = vunpack.c.l.b16 %v27
  %v1809 = vunpack.c.h.b16 %v27
  %v1810 = vunpack.c.l.b16 %v28
  %v1811 = vunpack.c.h.b16 %v28
  %v1812 = vunpack.c.l.b16 %v29
  %v1813 = vunpack.c.h.b16 %v29
  %v1814 = vunpack.c.l.b16 %v30
  %v1815 = vunpack.c.h.b16 %v30
  %v1816 = vunpack.c.l.b16 %v31
  %v1817 = vunpack.c.h.b16 %v31
  %v1818 = vunpack.c.l.b16 %v32
  %v1819 = vunpack.c.h.b16 %v32
  %v1820 = vunpack.c.l.b16 %v33
  %v1821 = vunpack.c.h.b16 %v33
  %v1822 = vunpack.c.l.b16 %v34
  %v1823 = vunpack.c.h.b16 %v34
  %v1824 = vunpack.c.l.b16 %v35
  %v1825 = vunpack.c.h.b16 %v35
  %v1826 = vunpack.c.l.b16 %v36
  %v1827 = vunpack.c.h.b16 %v36
  %v1828 = vunpack.c.l.b16 %v37
  %v1829 = vunpack.c.h.b16 %v37
  %v1830 = vunpack.c.l.b16 %v38
  %v1831 = vunpack.c.h.b16 %v38
  %v1832 = vunpack.c.l.b16 %v39
  %v1833 = vunpack.c.h.b16 %v39
  %v1834 = vunpack.c.l.b16 %v40
  %v1835 = vunpack.c.h.b16 %v40
  %v1836 = vunpack.c.l.b16 %v41
  %v1837 = vunpack.c.h.b16 %v41
  %v1838 = vunpack.c.l.b16 %v42
  %v1839 = vunpack.c.h.b16 %v42
  %v1840 = vunpack.c.l.b16 %v43
  %v1841 = vunpack.c.h.b16 %v43
  %v1842 = vunpack.c.l.b16 %v44
  %v1843 = vunpack.c.h.b16 %v44
  %v1844 = vunpack.c.l.b16 %v45
  %v1845 = vunpack.c.h.b16 %v45
  %v1846 = vunpack.c.l.b16 %v46
  %v1847 = vunpack.c.h.b16 %v46
  %v1848 = vunpack.c.l.b16 %v47
  %v1849 = vunpack.c.h.b16 %v47
  %v1850 = vunpack.c.l.b16 %v48
  %v1851 = vunpack.c.h.b16 %v48
  %v1852 = vunpack.c.l.b16 %v49
  %v1853 = vunpack.c.h.b16 %v49
  %v1854 = vunpack.c.l.b16 %v50
  %v1855 = vunpack.c.h.b16 %v50
  %v1856 = vunpack.c.l.b16 %v51
  %v1857 = vunpack.c.h.b16 %v51
  %v1858 = vunpack.c.l.b16 %v52
  %v1859 = vunpack.c.h.b16 %v52
  %v1860 = vunpack.c.l.b16 %v53
  %v1861 = vunpack.c.h.b16 %v53
  %v1862 = vunpack.c.l.b16 %v54
  %v1863 = vunpack.c.h.b16 %v54
  %v1864 = vunpack.c.l.b16 %v55
  %v1865 = vunpack.c.h.b16 %v55
  %v1866 = vunpack.c.l.b16 %v56
  %v1867 = vunpack.c.h.b16 %v56
  %v1868 = vunpack.c.l.b16 %v57
  %v1869 = vunpack.c.h.b16 %v57
  %v1870 = vunpack.c.l.b16 %v58
  %v1871 = vunpack.c.h.b16 %v58
  %v1872 = vunpack.c.l.b16 %v59
  %v1873 = vunpack.c.h.b16 %v59
  %v1874 = vunpack.c.l.b16 %v60
  %v1875 = vunpack.c.h.b16 %v60
  %v1876 = vunpack.c.l.b16 %v61
  %v1877 = vunpack.c.h.b16 %v61
  %v1878 = vunpack.c.l.b16 %v62
  %v1879 = vunpack.c.h.b16 %v62
  %v1880 = vunpack.c.l.b16 %v63
  %v1881 = vunpack.c.h.b16 %v63
  %v1882 = vunpack.c.l.b16 %v64
  %v1883 = vunpack.c.h.b16 %v64
  %v1884 = vunpack.c.l.b16 %v65
  %v1885 = vunpack.c.h.b16 %v65
  %v1886 = vunpack.c.l.b16 %v66
  %v1887 = vunpack.c.h.b16 %v66
  %v1888 = vunpack.c.l.b16 %v67
  %v1889 = vunpack.c.h.b16 %v67
  %v1890 = vunpack.c.l.b16 %v68
  %v1891 = vunpack.c.h.b16 %v68
  %v1892 = vunpack.c.l.b16 %v69
  %v1893 = vunpack.c.h.b16 %v69
  %v1894 = vunpack.c.l.b16 %v70
  %v1895 = vunpack.c.h.b16 %v70
  %v1896 = vunpack.c.l.b16 %v71
  %v1897 = vunpack.c.h.b16 %v71
  %v1898 = vunpack.c.l.b16 %v72
  %v1899 = vunpack.c.h.b16 %v72
  %v1900 = vunpack.c.l.b16 %v73
  %v1901 = vunpack.c.h.b16 %v73
  %v1902 = vunpack.c.l.b16 %v74
  %v1903 = vunpack.c.h.b16 %v74
  %v1904 = vunpack.c.l.b16 %v75
  %v1905 = vunpack.c.h.b16 %v75
  %v1906 = vunpack.c.l.b16 %v76
  %v1907 = vunpack.c.h.b16 %v76
  %v1908 = vunpack.c.l.b16 %v77
  %v1909 = vunpack.c.h.b16 %v77
  %v1910 = vunpack.c.l.b16 %v78
  %v1911 = vunpack.c.h.b16 %v78
  %v1912 = vunpack.c.l.b16 %v79
  %v1913 = vunpack.c.h.b16 %v79
  %v1914 = vunpack.c.l.b16 %v80
  %v1915 = vunpack.c.h.b16 %v80
  %v1916 = vunpack.c.l.b16 %v81
  %v1917 = vunpack.c.h.b16 %v81
  %v1918 = vunpack.c.l.b16 %v82
  %v1919 = vunpack.c.h.b16 %v82
  %v1920 = vunpack.c.l.b16 %v83
  %v1921 = vunpack.c.h.b16 %v83
  %v1922 = vunpack.c.l.b16 %v84
  %v1923 = vunpack.c.h.b16 %v84
  %v1924 = vunpack.c.l.b16 %v85
  %v1925 = vunpack.c.h.b16 %v85
  %v1926 = vunpack.c.l.b16 %v86
  %v1927 = vunpack.c.h.b16 %v86
  %v1928 = vunpack.c.l.b16 %v87
  %v1929 = vunpack.c.h.b16 %v87
  %v1930 = vunpack.c.l.b16 %v88
  %v1931 = vunpack.c.h.b16 %v88
  %v1932 = vunpack.c.l.b16 %v89
  %v1933 = vunpack.c.h.b16 %v89
  %v1934 = vunpack.c.l.b16 %v90
  %v1935 = vunpack.c.h.b16 %v90
  %v1936 = vunpack.c.l.b16 %v91
  %v1937 = vunpack.c.h.b16 %v91
  %v1938 = vunpack.c.l.b16 %v92
  %v1939 = vunpack.c.h.b16 %v92
  %v1940 = vunpack.c.l.b16 %v93
  %v1941 = vunpack.c.h.b16 %v93
  %v1942 = vunpack.c.l.b16 %v94
  %v1943 = vunpack.c.h.b16 %v94
  %v1944 = vunpack.c.l.b16 %v95
  %v1945 = vunpack.c.h.b16 %v95
  %v1946 = vunpack.c.l.b16 %v96
  %v1947 = vunpack.c.h.b16 %v96
  %v1948 = vunpack.c.l.b16 %v97
  %v1949 = vunpack.c.h.b16 %v97
  %v1950 = vunpack.c.l.b16 %v98
  %v1951 = vunpack.c.h.b16 %v98
  %v1952 = vunpack.c.l.b16 %v99
  %v1953 = vunpack.c.h.b16 %v99
  %v1954 = vunpack.c.l.b16 %v100
  %v1955 = vunpack.c.h.b16 %v100
  %v1956 = vunpack.c.l.b16 %v101
  %v1957 = vunpack.c.h.b16 %v101
  %v1958 = vunpack.c.l.b16 %v102
  %v1959 = vunpack.c.h.b16 %v102
  %v1960 = vunpack.c.l.b16 %v103
  %v1961 = vunpack.c.h.b16 %v103
  %v1962 = vunpack.c.l.b16 %v104
  %v1963 = vunpack.c.h.b16 %v104
  %v1964 = vunpack.c.l.b16 %v105
  %v1965 = vunpack.c.h.b16 %v105
  %v1966 = vunpack.c.l.b16 %v106
  %v1967 = vunpack.c.h.b16 %v106
  %v1968 = vunpack.c.l.b16 %v107
  %v1969 = vunpack.c.h.b16 %v107
  %v1970 = vunpack.c.l.b16 %v108
  %v1971 = vunpack.c.h.b16 %v108
  %v1972 = vunpack.c.l.b16 %v109
  %v1973 = vunpack.c.h.b16 %v109
  %v1974 = vunpack.c.l.b16 %v110
  %v1975 = vunpack.c.h.b16 %v110
  %v1976 = vunpack.c.l.b16 %v111
  %v1977 = vunpack.c.h.b16 %v111
  %v1978 = vunpack.c.l.b16 %v112
  %v1979 = vunpack.c.h.b16 %v112
  %v1980 = vunpack.c.l.b16 %v113
  %v1981 = vunpack.c.h.b16 %v113
  %v1982 = vunpack.c.l.b16 %v114
  %v1983 = vunpack.c.h.b16 %v114
  %v1984 = vunpack.c.l.b16 %v115
  %v1985 = vunpack.c.h.b16 %v115
  %v1986 = vunpack.c.l.b16 %v116
  %v1987 = vunpack.c.h.b16 %v116
  %v1988 = vunpack.c.l.b16 %v117
  %v1989 = vunpack.c.h.b16 %v117
  %v1990 = vunpack.c.l.b16 %v118
  %v1991 = vunpack.c.h.b16 %v118
  %v1992 = vunpack.c.l.b16 %v119
  %v1993 = vunpack.c.h.b16 %v119
  %v1994 = vunpack.c.l.b16 %v120
  %v1995 = vunpack.c.h.b16 %v120
  %v1996 = vunpack.c.l.b16 %v121
  %v1997 = vunpack.c.h.b16 %v121
  %v1998 = vunpack.c.l.b16 %v122
  %v1999 = vunpack.c.h.b16 %v122
  %v2000 = vunpack.c.l.b16 %v123
  %v2001 = vunpack.c.h.b16 %v123
  %v2002 = vunpack.c.l.b16 %v124
  %v2003 = vunpack.c.h.b16 %v124
  %v2004 = vunpack.c.l.b16 %v125
  %v2005 = vunpack.c.h.b16 %v125
  %v2006 = vunpack.c.l.b16 %v126
  %v2007 = vunpack.c.h.b16 %v126
  %v2008 = vunpack.c.l.b16 %v127
  %v2009 = vunpack.c.h.b16 %v127
  %v2010 = vunpack.c.l.b16 %v128
  %v2011 = vunpack.c.h.b16 %v128
  %v2012 = vunpack.c.l.b16 %v129
  %v2013 = vunpack.c.h.b16 %v129
  %v2014 = vunpack.c.l.b16 %v130
  %v2015 = vunpack.c.h.b16 %v130
  %v2016 = vunpack.c.l.b16 %v131
  %v2017 = vunpack.c.h.b16 %v131
  %v2018 = vunpack.c.l.b16 %v132
  %v2019 = vunpack.c.h.b16 %v132
  %v2020 = vunpack.c.l.b16 %v133
  %v2021 = vunpack.c.h.b16 %v133
  %v2022 = vunpack.c.l.b16 %v134
  %v2023 = vunpack.c.h.b16 %v134
  %v2024 = vunpack.c.l.b16 %v135
  %v2025 = vunpack.c.h.b16 %v135
  %v2026 = vunpack.c.l.b16 %v136
  %v2027 = vunpack.c.h.b16 %v136
  %v2028 = vunpack.c.l.b16 %v137
  %v2029 = vunpack.c.h.b16 %v137
  %v2030 = vunpack.c.l.b16 %v138
  %v2031 = vunpack.c.h.b16 %v138
  %v2032 = vunpack.c.l.b16 %v139
  %v2033 = vunpack.c.h.b16 %v139
  %v2034 = vunpack.c.l.b16 %v140
  %v2035 = vunpack.c.h.b16 %v140
  %v2036 = vunpack.c.l.b16 %v141
  %v2037 = vunpack.c.h.b16 %v141
  %v2038 = vunpack.c.l.b16 %v142
  %v2039 = vunpack.c.h.b16 %v142
  %v2040 = vunpack.c.l.b16 %v143
  %v2041 = vunpack.c.h.b16 %v143
  %v2042 = vunpack.c.l.b16 %v144
  %v2043 = vunpack.c.h.b16 %v144
  %v2044 = vunpack.c.l.b16 %v145
  %v2045 = vunpack.c.h.b16 %v145
  %v2046 = vunpack.c.l.b16 %v146
  %v2047 = vunpack.c.h.b16 %v146
  %v2048 = vunpack.c.l.b16 %v147
  %v2049 = vunpack.c.h.b16 %v147
  %v2050 = vunpack.c.l.b16 %v148
  %v2051 = vunpack.c.h.b16 %v148
  %v2052 = vunpack.c.l.b16 %v149
  %v2053 = vunpack.c.h.b16 %v149
  %v2054 = vunpack.c.l.b16 %v150
  %v2055 = vunpack.c.h.b16 %v150
  %v2056 = vunpack.c.l.b16 %v151
  %v2057 = vunpack.c.h.b16 %v151
  %v2058 = vunpack.c.l.b16 %v152
  %v2059 = vunpack.c.h.b16 %v152
  %v2060 = vunpack.c.l.b16 %v153
  %v2061 = vunpack.c.h.b16 %v153
  %v2062 = vunpack.c.l.b16 %v154
  %v2063 = vunpack.c.h.b16 %v154
  %v2064 = vunpack.c.l.b16 %v155
  %v2065 = vunpack.c.h.b16 %v155
  %v2066 = vunpack.c.l.b16 %v156
  %v2067 = vunpack.c.h.b16 %v156
  %v2068 = vunpack.c.l.b16 %v157
  %v2069 = vunpack.c.h.b16 %v157
  %v2070 = vunpack.c.l.b16 %v158
  %v2071 = vunpack.c.h.b16 %v158
  %v2072 = vunpack.c.l.b16 %v159
  %v2073 = vunpack.c.h.b16 %v159
  %v2074 = vunpack.c.l.b16 %v160
  %v2075 = vunpack.c.h.b16 %v160
  %v2076 = vunpack.c.l.b16 %v161
  %v2077 = vunpack.c.h.b16 %v161
  %v2078 = vunpack.c.l.b16 %v162
  %v2079 = vunpack.c.h.b16 %v162
  %v2080 = vunpack.c.l.b16 %v163
  %v2081 = vunpack.c.h.b16 %v163
  %v2082 = vunpack.c.l.b16 %v164
  %v2083 = vunpack.c.h.b16 %v164
  %v2084 = vunpack.c.l.b16 %v165
  %v2085 = vunpack.c.h.b16 %v165
  %v2086 = vunpack.c.l.b16 %v166
  %v2087 = vunpack.c.h.b16 %v166
  %v2088 = vunpack.c.l.b16 %v167
  %v2089 = vunpack.c.h.b16 %v167
  %v2090 = vunpack.c.l.b16 %v168
  %v2091 = vunpack.c.h.b16 %v168
  %v2092 = vunpack.c.l.b16 %v169
  %v2093 = vunpack.c.h.b16 %v169
  %v2094 = vunpack.c.l.b16 %v170
  %v2095 = vunpack.c.h.b16 %v170
  %v2096 = vunpack.c.l.b16 %v171
  %v2097 = vunpack.c.h.b16 %v171
  %v2098 = vunpack.c.l.b16 %v172
  %v2099 = vunpack.c.h.b16 %v172
  %v2100 = vunpack.c.l.b16 %v173
  %v2101 = vunpack.c.h.b16 %v173
  %v2102 = vunpack.c.l.b16 %v174
  %v2103 = vunpack.c.h.b16 %v174
  %v2104 = vunpack.c.l.b16 %v175
  %v2105 = vunpack.c.h.b16 %v175
  %v2106 = vunpack.c.l.b16 %v176
  %v2107 = vunpack.c.h.b16 %v176
  %v2108 = vunpack.c.l.b16 %v177
  %v2109 = vunpack.c.h.b16 %v177
  %v2110 = vunpack.c.l.b16 %v178
  %v2111 = vunpack.c.h.b16 %v178
  %v2112 = vunpack.c.l.b16 %v179
  %v2113 = vunpack.c.h.b16 %v179
  %v2114 = vunpack.c.l.b16 %v180
  %v2115 = vunpack.c.h.b16 %v180
  %v2116 = vunpack.c.l.b16 %v181
  %v2117 = vunpack.c.h.b16 %v181
  %v2118 = vunpack.c.l.b16 %v182
  %v2119 = vunpack.c.h.b16 %v182
  %v2120 = vunpack.c.l.b16 %v183
  %v2121 = vunpack.c.h.b16 %v183
  %v2122 = vunpack.c.l.b16 %v184
  %v2123 = vunpack.c.h.b16 %v184
  %v2124 = vunpack.c.l.b16 %v185
  %v2125 = vunpack.c.h.b16 %v185
  %v2126 = vunpack.c.l.b16 %v186
  %v2127 = vunpack.c.h.b16 %v186
  %v2128 = vunpack.c.l.b16 %v187
  %v2129 = vunpack.c.h.b16 %v187
  %v2130 = vunpack.c.l.b16 %v188
  %v2131 = vunpack.c.h.b16 %v188
  %v2132 = vunpack.c.l.b16 %v189
  %v2133 = vunpack.c.h.b16 %v189
  %v2134 = vunpack.c.l.b16 %v190
  %v2135 = vunpack.c.h.b16 %v190
  %v2136 = vunpack.c.l.b16 %v191
  %v2137 = vunpack.c.h.b16 %v191
  %v2138 = vunpack.c.l.b16 %v192
  %v2139 = vunpack.c.h.b16 %v192
  %v2140 = vunpack.c.l.b16 %v193
  %v2141 = vunpack.c.h.b16 %v193
  %v2142 = vunpack.c.l.b16 %v194
  %v2143 = vunpack.c.h.b16 %v194
  %v2144 = vunpack.c.l.b16 %v195
  %v2145 = vunpack.c.h.b16 %v195
  %v2146 = vunpack.c.l.b16 %v196
  %v2147 = vunpack.c.h.b16 %v196
  %v2148 = vunpack.c.l.b16 %v197
  %v2149 = vunpack.c.h.b16 %v197
  %v2150 = vunpack.c.l.b16 %v198
  %v2151 = vunpack.c.h.b16 %v198
  %v2152 = vunpack.c.l.b16 %v199
  %v2153 = vunpack.c.h.b16 %v199
  %v2154 = vunpack.c.l.b16 %v200
  %v2155 = vunpack.c.h.b16 %v200
  %v2156 = vunpack.c.l.b16 %v201
  %v2157 = vunpack.c.h.b16 %v201
  %v2158 = vunpack.c.l.b16 %v202
  %v2159 = vunpack.c.h.b16 %v202
  %v2160 = vunpack.c.l.b16 %v203
  %v2161 = vunpack.c.h.b16 %v203
  %v2162 = vunpack.c.l.b16 %v204
  %v2163 = vunpack.c.h.b16 %v204
  %v2164 = vunpack.c.l.b16 %v205
  %v2165 = vunpack.c.h.b16 %v205
  %v2166 = vunpack.c.l.b16 %v206
  %v2167 = vunpack.c.h.b16 %v206
  %v2168 = vunpack.c.l.b16 %v207
  %v2169 = vunpack.c.h.b16 %v207
  %v2170 = vunpack.c.l.b16 %v208
  %v2171 = vunpack.c.h.b16 %v208
  %v2172 = vunpack.c.l.b16 %v209
  %v2173 = vunpack.c.h.b16 %v209
  %v2174 = vunpack.c.l.b16 %v210
  %v2175 = vunpack.c.h.b16 %v210
  %v2176 = vunpack.c.l.b16 %v211
  %v2177 = vunpack.c.h.b16 %v211
  %v2178 = vunpack.c.l.b16 %v212
  %v2179 = vunpack.c.h.b16 %v212
  %v2180 = vunpack.c.l.b16 %v213
  %v2181 = vunpack.c.h.b16 %v213
  %v2182 = vunpack.c.l.b16 %v214
  %v2183 = vunpack.c.h.b16 %v214
  %v2184 = vunpack.c.l.b16 %v215
  %v2185 = vunpack.c.h.b16 %v215
  %v2186 = vunpack.c.l.b16 %v216
  %v2187 = vunpack.c.h.b16 %v216
  %v2188 = vunpack.c.l.b16 %v217
  %v2189 = vunpack.c.h.b16 %v217
  %v2190 = vunpack.c.l.b16 %v218
  %v2191 = vunpack.c.h.b16 %v218
  %v2192 = vunpack.c.l.b16 %v219
  %v2193 = vunpack.c.h.b16 %v219
  %v2194 = vunpack.c.l.b16 %v220
  %v2195 = vunpack.c.h.b16 %v220
  %v2196 = vunpack.c.l.b16 %v221
  %v2197 = vunpack.c.h.b16 %v221
  %v2198 = vunpack.c.l.b16 %v222
  %v2199 = vunpack.c.h.b16 %v222
  %v2200 = vunpack.c.l.b16 %v223
  %v2201 = vunpack.c.h.b16 %v223
  %v2202 = vunpack.c.l.b16 %v224
  %v2203 = vunpack.c.h.b16 %v224
  %v2204 = vunpack.c.l.b16 %v225
  %v2205 = vunpack.c.h.b16 %v225
  %v2206 = vunpack.c.l.b16 %v226
  %v2207 = vunpack.c.h.b16 %v226
  %v2208 = vunpack.c.l.b16 %v227
  %v2209 = vunpack.c.h.b16 %v227
  %v2210 = vunpack.c.l.b16 %v228
  %v2211 = vunpack.c.h.b16 %v228
  %v2212 = vunpack.c.l.b16 %v229
  %v2213 = vunpack.c.h.b16 %v229
  %v2214 = vunpack.c.l.b16 %v230
  %v2215 = vunpack.c.h.b16 %v230
  %v2216 = vunpack.c.l.b16 %v231
  %v2217 = vunpack.c.h.b16 %v231
  %v2218 = vunpack.c.l.b16 %v232
  %v2219 = vunpack.c.h.b16 %v232
  %v2220 = vunpack.c.l.b16 %v233
  %v2221 = vunpack.c.h.b16 %v233
  %v2222 = vunpack.c.l.b16 %v234
  %v2223 = vunpack.c.h.b16 %v234
  %v2224 = vunpack.c.l.b16 %v235
  %v2225 = vunpack.c.h.b16 %v235
  %v2226 = vunpack.c.l.b16 %v236
  %v2227 = vunpack.c.h.b16 %v236
  %v2228 = vunpack.c.l.b16 %v237
  %v2229 = vunpack.c.h.b16 %v237
  %v2230 = vunpack.c.l.b16 %v238
  %v2231 = vunpack.c.h.b16 %v238
  %v2232 = vunpack.c.l.b16 %v239
  %v2233 = vunpack.c.h.b16 %v239
  %v2234 = vunpack.c.l.b16 %v240
  %v2235 = vunpack.c.h.b16 %v240
  %v2236 = vunpack.c.l.b16 %v241
  %v2237 = vunpack.c.h.b16 %v241
  %v2238 = vunpack.c.l.b16 %v242
  %v2239 = vunpack.c.h.b16 %v242
  %v2240 = vunpack.c.l.b16 %v243
  %v2241 = vunpack.c.h.b16 %v243
  %v2242 = vunpack.c.l.b16 %v244
  %v2243 = vunpack.c.h.b16 %v244
  %v2244 = vunpack.c.l.b16 %v245
  %v2245 = vunpack.c.h.b16 %v245
  %v2246 = vunpack.c.l.b16 %v246
  %v2247 = vunpack.c.h.b16 %v246
  %v2248 = vunpack.c.l.b16 %v247
  %v2249 = vunpack.c.h.b16 %v247
  %v2250 = vunpack.c.l.b16 %v248
  %v2251 = vunpack.c.h.b16 %v248
  %v2252 = vunpack.c.l.b16 %v249
  %v2253 = vunpack.c.h.b16 %v249
  %v2254 = vunpack.c.l.b16 %v250
  %v2255 = vunpack.c.h.b16 %v250
  %v2256 = vunpack.c.l.b16 %v251
  %v2257 = vunpack.c.h.b16 %v251
  %v2258 = vunpack.c.l.b16 %v252
  %v2259 = vunpack.c.h.b16 %v252
  %v2260 = vunpack.c.l.b16 %v253
  %v2261 = vunpack.c.h.b16 %v253
  %v2262 = vunpack.c.l.b16 %v254
  %v2263 = vunpack.c.h.b16 %v254
  %v2264 = vunpack.c.l.b16 %v255
  %v2265 = vunpack.c.h.b16 %v255
  %v2266 = vunpack.c.l.b16 %v256
  %v2267 = vunpack.c.h.b16 %v256
  %v2268 = vunpack.c.l.b16 %v257
  %v2269 = vunpack.c.h.b16 %v257
  %v2270 = vunpack.c.l.b16 %v258
  %v2271 = vunpack.c.h.b16 %v258
  %v2272 = vunpack.c.l.b16 %v259
  %v2273 = vunpack.c.h.b16 %v259
  %v2274 = vunpack.c.l.b16 %v260
  %v2275 = vunpack.c.h.b16 %v260
  %v2276 = vunpack.c.l.b16 %v261
  %v2277 = vunpack.c.h.b16 %v261
  %v2278 = vunpack.c.l.b16 %v262
  %v2279 = vunpack.c.h.b16 %v262
  %v2280 = vunpack.c.l.b16 %v263
  %v2281 = vunpack.c.h.b16 %v263
  %v2282 = vunpack.c.l.b16 %v264
  %v2283 = vunpack.c.h.b16 %v264
  %v2284 = vunpack.c.l.b16 %v265
  %v2285 = vunpack.c.h.b16 %v265
  %v2286 = vunpack.c.l.b16 %v266
  %v2287 = vunpack.c.h.b16 %v266
  %v2288 = vunpack.c.l.b16 %v267
  %v2289 = vunpack.c.h.b16 %v267
  %v2290 = vunpack.c.l.b16 %v268
  %v2291 = vunpack.c.h.b16 %v268
  %v2292 = vunpack.c.l.b16 %v269
  %v2293 = vunpack.c.h.b16 %v269
  %v2294 = vunpack.c.l.b16 %v270
  %v2295 = vunpack.c.h.b16 %v270
  %v2296 = vunpack.c.l.b16 %v271
  %v2297 = vunpack.c.h.b16 %v271
  %v2298 = vunpack.c.l.b16 %v272
  %v2299 = vunpack.c.h.b16 %v272
  %v2300 = vunpack.c.l.b16 %v273
  %v2301 = vunpack.c.h.b16 %v273
  %v2302 = vunpack.c.l.b16 %v274
  %v2303 = vunpack.c.h.b16 %v274
  %v2304 = vunpack.c.l.b16 %v275
  %v2305 = vunpack.c.h.b16 %v275
  %v2306 = vunpack.c.l.b16 %v276
  %v2307 = vunpack.c.h.b16 %v276
  %v2308 = vunpack.c.l.b16 %v277
  %v2309 = vunpack.c.h.b16 %v277
  %v2310 = vunpack.c.l.b16 %v278
  %v2311 = vunpack.c.h.b16 %v278
  %v2312 = vunpack.c.l.b16 %v279
  %v2313 = vunpack.c.h.b16 %v279
  %v2314 = vunpack.c.l.b16 %v280
  %v2315 = vunpack.c.h.b16 %v280
  %v2316 = vunpack.c.l.b16 %v281
  %v2317 = vunpack.c.h.b16 %v281
  %v2318 = vunpack.c.l.b16 %v282
  %v2319 = vunpack.c.h.b16 %v282
  %v2320 = vunpack.c.l.b16 %v283
  %v2321 = vunpack.c.h.b16 %v283
  %v2322 = vunpack.c.l.b16 %v284
  %v2323 = vunpack.c.h.b16 %v284
  %v2324 = vunpack.c.l.b16 %v285
  %v2325 = vunpack.c.h.b16 %v285
  %v2326 = vunpack.c.l.b16 %v286
  %v2327 = vunpack.c.h.b16 %v286
  %v2328 = vunpack.c.l.b16 %v287
  %v2329 = vunpack.c.h.b16 %v287
  %v2330 = vunpack.c.l.b16 %v288
  %v2331 = vunpack.c.h.b16 %v288
  %v2332 = vunpack.c.l.b16 %v289
  %v2333 = vunpack.c.h.b16 %v289
  %v2334 = vunpack.c.l.b16 %v290
  %v2335 = vunpack.c.h.b16 %v290
  %v2336 = vunpack.c.l.b16 %v291
  %v2337 = vunpack.c.h.b16 %v291
  %v2338 = vunpack.c.l.b16 %v292
  %v2339 = vunpack.c.h.b16 %v292
  %v2340 = vunpack.c.l.b16 %v293
  %v2341 = vunpack.c.h.b16 %v293
  %v2342 = vunpack.c.l.b16 %v294
  %v2343 = vunpack.c.h.b16 %v294
  %v2344 = vunpack.c.l.b16 %v295
  %v2345 = vunpack.c.h.b16 %v295
  %v2346 = vunpack.c.l.b16 %v296
  %v2347 = vunpack.c.h.b16 %v296
  %v2348 = vunpack.c.l.b16 %v297
  %v2349 = vunpack.c.h.b16 %v297
  %v2350 = vunpack.c.l.b16 %v298
  %v2351 = vunpack.c.h.b16 %v298
  %v2352 = vunpack.c.l.b16 %v299
  %v2353 = vunpack.c.h.b16 %v299
  %v2354 = vunpack.c.l.b16 %v300
  %v2355 = vunpack.c.h.b16 %v300
  %v2356 = vunpack.c.l.b16 %v301
  %v2357 = vunpack.c.h.b16 %v301
  %v2358 = vunpack.c.l.b16 %v302
  %v2359 = vunpack.c.h.b16 %v302
  %v2360 = vunpack.c.l.b16 %v303
  %v2361 = vunpack.c.h.b16 %v303
  %v2362 = vunpack.c.l.b16 %v304
  %v2363 = vunpack.c.h.b16 %v304
  %v2364 = vunpack.c.l.b16 %v305
  %v2365 = vunpack.c.h.b16 %v305
  %v2366 = vunpack.c.l.b16 %v306
  %v2367 = vunpack.c.h.b16 %v306
  %v2368 = vunpack.c.l.b16 %v307
  %v2369 = vunpack.c.h.b16 %v307
  %v2370 = vunpack.c.l.b16 %v308
  %v2371 = vunpack.c.h.b16 %v308
  %v2372 = vunpack.c.l.b16 %v309
  %v2373 = vunpack.c.h.b16 %v309
  %v2374 = vunpack.c.l.b16 %v310
  %v2375 = vunpack.c.h.b16 %v310
  %v2376 = vunpack.c.l.b16 %v311
  %v2377 = vunpack.c.h.b16 %v311
  %v2378 = vunpack.c.l.b16 %v312
  %v2379 = vunpack.c.h.b16 %v312
  %v2380 = vunpack.c.l.b16 %v313
  %v2381 = vunpack.c.h.b16 %v313
  %v2382 = vunpack.c.l.b16 %v314
  %v2383 = vunpack.c.h.b16 %v314
  %v2384 = vunpack.c.l.b16 %v315
  %v2385 = vunpack.c.h.b16 %v315
  %v2386 = vunpack.c.l.b16 %v316
  %v2387 = vunpack.c.h.b16 %v316
  %v2388 = vunpack.c.l.b16 %v317
  %v2389 = vunpack.c.h.b16 %v317
  %v2390 = vunpack.c.l.b16 %v318
  %v2391 = vunpack.c.h.b16 %v318
  %v2392 = vunpack.c.l.b16 %v319
  %v2393 = vunpack.c.h.b16 %v319
  %v2394 = vunpack.c.l.b16 %v320
  %v2395 = vunpack.c.h.b16 %v320
  %v2396 = vunpack.c.l.b16 %v321
  %v2397 = vunpack.c.h.b16 %v321
  %v2398 = vunpack.c.l.b16 %v322
  %v2399 = vunpack.c.h.b16 %v322
  %v2400 = vunpack.c.l.b16 %v323
  %v2401 = vunpack.c.h.b16 %v323
  %v2402 = vunpack.c.l.b16 %v324
  %v2403 = vunpack.c.h.b16 %v324
  %v2404 = vunpack.c.l.b16 %v325
  %v2405 = vunpack.c.h.b16 %v325
  %v2406 = vunpack.c.l.b16 %v326
  %v2407 = vunpack.c.h.b16 %v326
  %v2408 = vunpack.c.l.b16 %v327
  %v2409 = vunpack.c.h.b16 %v327
  %v2410 = vunpack.c.l.b16 %v328
  %v2411 = vunpack.c.h.b16 %v328
  %v2412 = vunpack.c.l.b16 %v329
  %v2413 = vunpack.c.h.b16 %v329
  %v2414 = vunpack.c.l.b16 %v330
  %v2415 = vunpack.c.h.b16 %v330
  %v2416 = vunpack.c.l.b16 %v331
  %v2417 = vunpack.c.h.b16 %v331
  %v2418 = vunpack.c.l.b16 %v332
  %v2419 = vunpack.c.h.b16 %v332
  %v2420 = vunpack.c.l.b16 %v333
  %v2421 = vunpack.c.h.b16 %v333
  %v2422 = vunpack.c.l.b16 %v334
  %v2423 = vunpack.c.h.b16 %v334
  %v2424 = vunpack.c.l.b16 %v335
  %v2425 = vunpack.c.h.b16 %v335
  %v2426 = vunpack.c.l.b16 %v336
  %v2427 = vunpack.c.h.b16 %v336
  %v2428 = vunpack.c.l.b16 %v337
  %v2429 = vunpack.c.h.b16 %v337
  %v2430 = vunpack.c.l.b16 %v338
  %v2431 = vunpack.c.h.b16 %v338
  %v2432 = vunpack.c.l.b16 %v339
  %v2433 = vunpack.c.h.b16 %v339
  %v2434 = vunpack.c.l.b16 %v340
  %v2435 = vunpack.c.h.b16 %v340
  %v2436 = vunpack.c.l.b16 %v341
  %v2437 = vunpack.c.h.b16 %v341
  %v2438 = vunpack.c.l.b16 %v342
  %v2439 = vunpack.c.h.b16 %v342
  %v2440 = vunpack.c.l.b16 %v343
  %v2441 = vunpack.c.h.b16 %v343
  %v2442 = vunpack.c.l.b16 %v344
  %v2443 = vunpack.c.h.b16 %v344
  %v2444 = vunpack.c.l.b16 %v345
  %v2445 = vunpack.c.h.b16 %v345
  %v2446 = vunpack.c.l.b16 %v346
  %v2447 = vunpack.c.h.b16 %v346
  %v2448 = vunpack.c.l.b16 %v347
  %v2449 = vunpack.c.h.b16 %v347
  %v2450 = vunpack.c.l.b16 %v348
  %v2451 = vunpack.c.h.b16 %v348
  %v2452 = vunpack.c.l.b16 %v349
  %v2453 = vunpack.c.h.b16 %v349
  %v2454 = vunpack.c.l.b16 %v350
  %v2455 = vunpack.c.h.b16 %v350
  %v2456 = vunpack.c.l.b16 %v351
  %v2457 = vunpack.c.h.b16 %v351
  %v2458 = vunpack.c.l.b16 %v352
  %v2459 = vunpack.c.h.b16 %v352
  %v2460 = vunpack.c.l.b16 %v353
  %v2461 = vunpack.c.h.b16 %v353
  %v2462 = vunpack.c.l.b16 %v354
  %v2463 = vunpack.c.h.b16 %v354
  %v2464 = vunpack.c.l.b16 %v355
  %v2465 = vunpack.c.h.b16 %v355
  %v2466 = vunpack.c.l.b16 %v356
  %v2467 = vunpack.c.h.b16 %v356
  %v2468 = vunpack.c.l.b16 %v357
  %v2469 = vunpack.c.h.b16 %v357
  %v2470 = vunpack.c.l.b16 %v358
  %v2471 = vunpack.c.h.b16 %v358
  %v2472 = vunpack.c.l.b16 %v359
  %v2473 = vunpack.c.h.b16 %v359
  %v2474 = vunpack.c.l.b16 %v360
  %v2475 = vunpack.c.h.b16 %v360
  %v2476 = vunpack.c.l.b16 %v361
  %v2477 = vunpack.c.h.b16 %v361
  %v2478 = vunpack.c.l.b16 %v362
  %v2479 = vunpack.c.h.b16 %v362
  %v2480 = vunpack.c.l.b16 %v363
  %v2481 = vunpack.c.h.b16 %v363
  %v2482 = vunpack.c.l.b16 %v364
  %v2483 = vunpack.c.h.b16 %v364
  %v2484 = vunpack.c.l.b16 %v365
  %v2485 = vunpack.c.h.b16 %v365
  %v2486 = vunpack.c.l.b16 %v366
  %v2487 = vunpack.c.h.b16 %v366
  %v2488 = vunpack.c.l.b16 %v367
  %v2489 = vunpack.c.h.b16 %v367
  %v2490 = vunpack.c.l.b16 %v368
  %v2491 = vunpack.c.h.b16 %v368
  %v2492 = vunpack.c.l.b16 %v369
  %v2493 = vunpack.c.h.b16 %v369
  %v2494 = vunpack.c.l.b16 %v370
  %v2495 = vunpack.c.h.b16 %v370
  %v2496 = vunpack.c.l.b16 %v371
  %v2497 = vunpack.c.h.b16 %v371
  %v2498 = vunpack.c.l.b16 %v372
  %v2499 = vunpack.c.h.b16 %v372
  %v2500 = vunpack.c.l.b16 %v373
  %v2501 = vunpack.c.h.b16 %v373
  %v2502 = vunpack.c.l.b16 %v374
  %v2503 = vunpack.c.h.b16 %v374
  %v2504 = vunpack.c.l.b16 %v375
  %v2505 = vunpack.c.h.b16 %v375
  %v2506 = vunpack.c.l.b16 %v376
  %v2507 = vunpack.c.h.b16 %v376
  %v2508 = vunpack.c.l.b16 %v377
  %v2509 = vunpack.c.h.b16 %v377
  %v2510 = vunpack.c.l.b16 %v378
  %v2511 = vunpack.c.h.b16 %v378
  %v2512 = vunpack.c.l.b16 %v379
  %v2513 = vunpack.c.h.b16 %v379
  %v2514 = vunpack.c.l.b16 %v380
  %v2515 = vunpack.c.h.b16 %v380
  %v2516 = vunpack.c.l.b16 %v381
  %v2517 = vunpack.c.h.b16 %v381
  %v2518 = vunpack.c.l.b16 %v382
  %v2519 = vunpack.c.h.b16 %v382
  %v2520 = vunpack.c.l.b16 %v383
  %v2521 = vunpack.c.h.b16 %v383
  %v2522 = vunpack.c.l.b16 %v384
  %v2523 = vunpack.c.h.b16 %v384
  %v2524 = vunpack.c.l.b16 %v385
  %v2525 = vunpack.c.h.b16 %v385
  %v2526 = vunpack.c.l.b16 %v386
  %v2527 = vunpack.c.h.b16 %v386
  %v2528 = vunpack.c.l.b16 %v387
  %v2529 = vunpack.c.h.b16 %v387
  %v2530 = vunpack.c.l.b16 %v388
  %v2531 = vunpack.c.h.b16 %v388
  %v2532 = vunpack.c.l.b16 %v389
  %v2533 = vunpack.c.h.b16 %v389
  %v2534 = vunpack.c.l.b16 %v390
  %v2535 = vunpack.c.h.b16 %v390
  %v2536 = vunpack.c.l.b16 %v391
  %v2537 = vunpack.c.h.b16 %v391
  %v2538 = vunpack.c.l.b16 %v392
  %v2539 = vunpack.c.h.b16 %v392
  %v2540 = vunpack.c.l.b16 %v393
  %v2541 = vunpack.c.h.b16 %v393
  %v2542 = vunpack.c.l.b16 %v394
  %v2543 = vunpack.c.h.b16 %v394
  %v2544 = vunpack.c.l.b16 %v395
  %v2545 = vunpack.c.h.b16 %v395
  %v2546 = vunpack.c.l.b16 %v396
  %v2547 = vunpack.c.h.b16 %v396
  %v2548 = vunpack.c.l.b16 %v397
  %v2549 = vunpack.c.h.b16 %v397
  %v2550 = vunpack.c.l.b16 %v398
  %v2551 = vunpack.c.h.b16 %v398
  %v2552 = vunpack.c.l.b16 %v399
  %v2553 = vunpack.c.h.b16 %v399
  %v2554 = vunpack.c.l.b16 %v400
  %v2555 = vunpack.c.h.b16 %v400
  %v2556 = vunpack.c.l.b16 %v401
  %v2557 = vunpack.c.h.b16 %v401
  %v2558 = vunpack.c.l.b16 %v402
  %v2559 = vunpack.c.h.b16 %v402
  %v2560 = vunpack.c.l.b16 %v403
  %v2561 = vunpack.c.h.b16 %v403
  %v2562 = vunpack.c.l.b16 %v404
  %v2563 = vunpack.c.h.b16 %v404
  %v2564 = vunpack.c.l.b16 %v405
  %v2565 = vunpack.c.h.b16 %v405
  %v2566 = vunpack.c.l.b16 %v406
  %v2567 = vunpack.c.h.b16 %v406
  %v2568 = vunpack.c.l.b16 %v407
  %v2569 = vunpack.c.h.b16 %v407
  %v2570 = vunpack.c.l.b16 %v408
  %v2571 = vunpack.c.h.b16 %v408
  %v2572 = vunpack.c.l.b16 %v409
  %v2573 = vunpack.c.h.b16 %v409
  %v2574 = vunpack.c.l.b16 %v410
  %v2575 = vunpack.c.h.b16 %v410
  %v2576 = vunpack.c.l.b16 %v411
  %v2577 = vunpack.c.h.b16 %v411
  %v2578 = vunpack.c.l.b16 %v412
  %v2579 = vunpack.c.h.b16 %v412
  %v2580 = vunpack.c.l.b16 %v413
  %v2581 = vunpack.c.h.b16 %v413
  %v2582 = vunpack.c.l.b16 %v414
  %v2583 = vunpack.c.h.b16 %v414
  %v2584 = vunpack.c.l.b16 %v415
  %v2585 = vunpack.c.h.b16 %v415
  %v2586 = vunpack.c.l.b16 %v416
  %v2587 = vunpack.c.h.b16 %v416
  %v2588 = vunpack.c.l.b16 %v417
  %v2589 = vunpack.c.h.b16 %v417
  %v2590 = vunpack.c.l.b16 %v418
  %v2591 = vunpack.c.h.b16 %v418
  %v2592 = vunpack.c.l.b16 %v419
  %v2593 = vunpack.c.h.b16 %v419
  %v2594 = vunpack.c.l.b16 %v420
  %v2595 = vunpack.c.h.b16 %v420
  %v2596 = vunpack.c.l.b16 %v421
  %v2597 = vunpack.c.h.b16 %v421
  %v2598 = vunpack.c.l.b16 %v422
  %v2599 = vunpack.c.h.b16 %v422
  %v2600 = vunpack.c.l.b16 %v423
  %v2601 = vunpack.c.h.b16 %v423
  %v2602 = vunpack.c.l.b16 %v424
  %v2603 = vunpack.c.h.b16 %v424
  %v2604 = vunpack.c.l.b16 %v425
  %v2605 = vunpack.c.h.b16 %v425
  %v2606 = vunpack.c.l.b16 %v426
  %v2607 = vunpack.c.h.b16 %v426
  %v2608 = vunpack.c.l.b16 %v427
  %v2609 = vunpack.c.h.b16 %v427
  %v2610 = vunpack.c.l.b16 %v428
  %v2611 = vunpack.c.h.b16 %v428
  %v2612 = vunpack.c.l.b16 %v429
  %v2613 = vunpack.c.h.b16 %v429
  %v2614 = vunpack.c.l.b16 %v430
  %v2615 = vunpack.c.h.b16 %v430
  %v2616 = vunpack.c.l.b16 %v431
  %v2617 = vunpack.c.h.b16 %v431
  %v2618 = vunpack.c.l.b16 %v432
  %v2619 = vunpack.c.h.b16 %v432
  %v2620 = vunpack.c.l.b16 %v433
  %v2621 = vunpack.c.h.b16 %v433
  %v2622 = vunpack.c.l.b16 %v434
  %v2623 = vunpack.c.h.b16 %v434
  %v2624 = vunpack.c.l.b16 %v435
  %v2625 = vunpack.c.h.b16 %v435
  %v2626 = vunpack.c.l.b16 %v436
  %v2627 = vunpack.c.h.b16 %v436
  %v2628 = vunpack.c.l.b16 %v437
  %v2629 = vunpack.c.h.b16 %v437
  %v2630 = vunpack.c.l.b16 %v438
  %v2631 = vunpack.c.h.b16 %v438
  %v2632 = vunpack.c.l.b16 %v439
  %v2633 = vunpack.c.h.b16 %v439
  %v2634 = vunpack.c.l.b16 %v440
  %v2635 = vunpack.c.h.b16 %v440
  %v2636 = vunpack.c.l.b16 %v441
  %v2637 = vunpack.c.h.b16 %v441
  %v2638 = vunpack.c.l.b16 %v442
  %v2639 = vunpack.c.h.b16 %v442
  %v2640 = vunpack.c.l.b16 %v443
  %v2641 = vunpack.c.h.b16 %v443
  %v2642 = vunpack.c.l.b16 %v444
  %v2643 = vunpack.c.h.b16 %v444
  %v2644 = vunpack.c.l.b16 %v445
  %v2645 = vunpack.c.h.b16 %v445
  %v2646 = vunpack.c.l.b16 %v446
  %v2647 = vunpack.c.h.b16 %v446
  %v2648 = vunpack.c.l.b16 %v447
  %v2649 = vunpack.c.h.b16 %v447
  %v2650 = vunpack.c.l.b16 %v448
  %v2651 = vunpack.c.h.b16 %v448
  %v2652 = vunpack.c.l.b16 %v449
  %v2653 = vunpack.c.h.b16 %v449
  %v2654 = vunpack.c.l.b16 %v450
  %v2655 = vunpack.c.h.b16 %v450
  %v2656 = vunpack.c.l.b16 %v451
  %v2657 = vunpack.c.h.b16 %v451
  %v2658 = vunpack.c.l.b16 %v452
  %v2659 = vunpack.c.h.b16 %v452
  %v2660 = vunpack.c.l.b16 %v453
  %v2661 = vunpack.c.h.b16 %v453
  %v2662 = vunpack.c.l.b16 %v454
  %v2663 = vunpack.c.h.b16 %v454
  %v2664 = vunpack.c.l.b16 %v455
  %v2665 = vunpack.c.h.b16 %v455
  %v2666 = vunpack.c.l.b16 %v456
  %v2667 = vunpack.c.h.b16 %v456
  %v2668 = vunpack.c.l.b16 %v457
  %v2669 = vunpack.c.h.b16 %v457
  %v2670 = vunpack.c.l.b16 %v458
  %v2671 = vunpack.c.h.b16 %v458
  %v2672 = vunpack.c.l.b16 %v459
  %v2673 = vunpack.c.h.b16 %v459
  %v2674 = vunpack.c.l.b16 %v460
  %v2675 = vunpack.c.h.b16 %v460
  %v2676 = vunpack.c.l.b16 %v461
  %v2677 = vunpack.c.h.b16 %v461
  %v2678 = vunpack.c.l.b16 %v462
  %v2679 = vunpack.c.h.b16 %v462
  %v2680 = vunpack.c.l.b16 %v463
  %v2681 = vunpack.c.h.b16 %v463
  %v2682 = vunpack.c.l.b16 %v464
  %v2683 = vunpack.c.h.b16 %v464
  %v2684 = vunpack.c.l.b16 %v465
  %v2685 = vunpack.c.h.b16 %v465
  %v2686 = vunpack.c.l.b16 %v466
  %v2687 = vunpack.c.h.b16 %v466
  %v2688 = vunpack.c.l.b16 %v467
  %v2689 = vunpack.c.h.b16 %v467
  %v2690 = vunpack.c.l.b16 %v468
  %v2691 = vunpack.c.h.b16 %v468
  %v2692 = vunpack.c.l.b16 %v469
  %v2693 = vunpack.c.h.b16 %v469
  %v2694 = vunpack.c.l.b16 %v470
  %v2695 = vunpack.c.h.b16 %v470
  %v2696 = vunpack.c.l.b16 %v471
  %v2697 = vunpack.c.h.b16 %v471
  %v2698 = vunpack.c.l.b16 %v472
  %v2699 = vunpack.c.h.b16 %v472
  %v2700 = vunpack.c.l.b16 %v473
  %v2701 = vunpack.c.h.b16 %v473
  %v2702 = vunpack.c.l.b16 %v474
  %v2703 = vunpack.c.h.b16 %v474
  %v2704 = vunpack.c.l.b16 %v475
  %v2705 = vunpack.c.h.b16 %v475
  %v2706 = vunpack.c.l.b16 %v476
  %v2707 = vunpack.c.h.b16 %v476
  %v2708 = vunpack.c.l.b16 %v477
  %v2709 = vunpack.c.h.b16 %v477
  %v2710 = vunpack.c.l.b16 %v478
  %v2711 = vunpack.c.h.b16 %v478
  %v2712 = vunpack.c.l.b16 %v479
  %v2713 = vunpack.c.h.b16 %v479
  %v2714 = vunpack.c.l.b16 %v480
  %v2715 = vunpack.c.h.b16 %v480
  %v2716 = vunpack.c.l.b16 %v481
  %v2717 = vunpack.c.h.b16 %v481
  %v2718 = vunpack.c.l.b16 %v482
  %v2719 = vunpack.c.h.b16 %v482
  %v2720 = vunpack.c.l.b16 %v483
  %v2721 = vunpack.c.h.b16 %v483
  %v2722 = vunpack.c.l.b16 %v484
  %v2723 = vunpack.c.h.b16 %v484
  %v2724 = vunpack.c.l.b16 %v485
  %v2725 = vunpack.c.h.b16 %v485
  %v2726 = vunpack.c.l.b16 %v486
  %v2727 = vunpack.c.h.b16 %v486
  %v2728 = vunpack.c.l.b16 %v487
  %v2729 = vunpack.c.h.b16 %v487
  %v2730 = vunpack.c.l.b16 %v488
  %v2731 = vunpack.c.h.b16 %v488
  %v2732 = vunpack.c.l.b16 %v489
  %v2733 = vunpack.c.h.b16 %v489
  %v2734 = vunpack.c.l.b16 %v490
  %v2735 = vunpack.c.h.b16 %v490
  %v2736 = vunpack.c.l.b16 %v491
  %v2737 = vunpack.c.h.b16 %v491
  %v2738 = vunpack.c.l.b16 %v492
  %v2739 = vunpack.c.h.b16 %v492
  %v2740 = vunpack.c.l.b16 %v493
  %v2741 = vunpack.c.h.b16 %v493
  %v2742 = vunpack.c.l.b16 %v494
  %v2743 = vunpack.c.h.b16 %v494
  %v2744 = vunpack.c.l.b16 %v495
  %v2745 = vunpack.c.h.b16 %v495
  %v2746 = vunpack.c.l.b16 %v496
  %v2747 = vunpack.c.h.b16 %v496
  %v2748 = vunpack.c.l.b16 %v497
  %v2749 = vunpack.c.h.b16 %v497
  %v2750 = vunpack.c.l.b16 %v498
  %v2751 = vunpack.c.h.b16 %v498
  %v2752 = vunpack.c.l.b16 %v499
  %v2753 = vunpack.c.h.b16 %v499
  %v2754 = vunpack.c.l.b16 %v500
  %v2755 = vunpack.c.h.b16 %v500
  %v2756 = vunpack.c.l.b16 %v501
  %v2757 = vunpack.c.h.b16 %v501
  %v2758 = vunpack.c.l.b16 %v502
  %v2759 = vunpack.c.h.b16 %v502
  %v2760 = vunpack.c.l.b16 %v503
  %v2761 = vunpack.c.h.b16 %v503
  %v2762 = vunpack.c.l.b16 %v504
  %v2763 = vunpack.c.h.b16 %v504
  %v2764 = vunpack.c.l.b16 %v505
  %v2765 = vunpack.c.h.b16 %v505
  %v2766 = vunpack.c.l.b16 %v506
  %v2767 = vunpack.c.h.b16 %v506
  %v2768 = vunpack.c.l.b16 %v507
  %v2769 = vunpack.c.h.b16 %v507
  %v2770 = vunpack.c.l.b16 %v508
  %v2771 = vunpack.c.h.b16 %v508
  %v2772 = vunpack.c.l.b16 %v509
  %v2773 = vunpack.c.h.b16 %v509
  %v2774 = vunpack.c.l.b16 %v510
  %v2775 = vunpack.c.h.b16 %v510
  %v2776 = vunpack.c.l.b16 %v511
  %v2777 = vunpack.c.h.b16 %v511
  %v2778 = vunpack.c.l.b16 %v512
  %v2779 = vunpack.c.h.b16 %v512
  %v2780 = vunpack.c.l.b16 %v513
  %v2781 = vunpack.c.h.b16 %v513
  %v2782 = vunpack.c.l.b16 %v514
  %v2783 = vunpack.c.h.b16 %v514
  %v2784 = vunpack.c.l.b16 %v515
  %v2785 = vunpack.c.h.b16 %v515
  %v2786 = vunpack.c.l.b16 %v516
  %v2787 = vunpack.c.h.b16 %v516
  %v2788 = vunpack.c.l.b16 %v517
  %v2789 = vunpack.c.h.b16 %v517
  %v2790 = vunpack.c.l.b16 %v518
  %v2791 = vunpack.c.h.b16 %v518
  %v2792 = vunpack.c.l.b16 %v519
  %v2793 = vunpack.c.h.b16 %v519
  %v2794 = vunpack.c.l.b16 %v520
  %v2795 = vunpack.c.h.b16 %v520
  %v2796 = vunpack.c.l.b16 %v521
  %v2797 = vunpack.c.h.b16 %v521
  %v2798 = vunpack.c.l.b16 %v522
  %v2799 = vunpack.c.h.b16 %v522
  %v2800 = vunpack.c.l.b16 %v523
  %v2801 = vunpack.c.h.b16 %v523
  %v2802 = vunpack.c.l.b16 %v524
  %v2803 = vunpack.c.h.b16 %v524
  %v2804 = vunpack.c.l.b16 %v525
  %v2805 = vunpack.c.h.b16 %v525
  %v2806 = vunpack.c.l.b16 %v526
  %v2807 = vunpack.c.h.b16 %v526
  %v2808 = vunpack.c.l.b16 %v527
  %v2809 = vunpack.c.h.b16 %v527
  %v2810 = vunpack.c.l.b16 %v528
  %v2811 = vunpack.c.h.b16 %v528
  %v2812 = vunpack.c.l.b16 %v529
  %v2813 = vunpack.c.h.b16 %v529
  %v2814 = vunpack.c.l.b16 %v530
  %v2815 = vunpack.c.h.b16 %v530
  %v2816 = vunpack.c.l.b16 %v531
  %v2817 = vunpack.c.h.b16 %v531
  %v2818 = vunpack.c.l.b16 %v532
  %v2819 = vunpack.c.h.b16 %v532
  %v2820 = vunpack.c.l.b16 %v533
  %v2821 = vunpack.c.h.b16 %v533
  %v2822 = vunpack.c.l.b16 %v534
  %v2823 = vunpack.c.h.b16 %v534
  %v2824 = vunpack.c.l.b16 %v535
  %v2825 = vunpack.c.h.b16 %v535
  %v2826 = vunpack.c.l.b16 %v536
  %v2827 = vunpack.c.h.b16 %v536
  %v2828 = vunpack.c.l.b16 %v537
  %v2829 = vunpack.c.h.b16 %v537
  %v2830 = vunpack.c.l.b16 %v538
  %v2831 = vunpack.c.h.b16 %v538
  %v2832 = vunpack.c.l.b16 %v539
  %v2833 = vunpack.c.h.b16 %v539
  %v2834 = vunpack.c.l.b16 %v540
  %v2835 = vunpack.c.h.b16 %v540
  %v2836 = vunpack.c.l.b16 %v541
  %v2837 = vunpack.c.h.b16 %v541
  %v2838 = vunpack.c.l.b16 %v542
  %v2839 = vunpack.c.h.b16 %v542
  %v2840 = vunpack.c.l.b16 %v543
  %v2841 = vunpack.c.h.b16 %v543
  %v2842 = vunpack.c.l.b16 %v544
  %v2843 = vunpack.c.h.b16 %v544
  %v2844 = vunpack.c.l.b16 %v545
  %v2845 = vunpack.c.h.b16 %v545
  %v2846 = vunpack.c.l.b16 %v546
  %v2847 = vunpack.c.h.b16 %v546
  %v2848 = vunpack.c.l.b16 %v547
  %v2849 = vunpack.c.h.b16 %v547
  %v2850 = vunpack.c.l.b16 %v548
  %v2851 = vunpack.c.h.b16 %v548
  %v2852 = vunpack.c.l.b16 %v549
  %v2853 = vunpack.c.h.b16 %v549
  %v2854 = vunpack.c.l.b16 %v550
  %v2855 = vunpack.c.h.b16 %v550
  %v2856 = vunpack.c.l.b16 %v551
  %v2857 = vunpack.c.h.b16 %v551
  %v2858 = vunpack.c.l.b16 %v552
  %v2859 = vunpack.c.h.b16 %v552
  %v2860 = vunpack.c.l.b16 %v553
  %v2861 = vunpack.c.h.b16 %v553
  %v2862 = vunpack.c.l.b16 %v554
  %v2863 = vunpack.c.h.b16 %v554
  %v2864 = vunpack.c.l.b16 %v555
  %v2865 = vunpack.c.h.b16 %v555
  %v2866 = vunpack.c.l.b16 %v556
  %v2867 = vunpack.c.h.b16 %v556
  %v2868 = vunpack.c.l.b16 %v557
  %v2869 = vunpack.c.h.b16 %v557
  %v2870 = vunpack.c.l.b16 %v558
  %v2871 = vunpack.c.h.b16 %v558
  %v2872 = vunpack.c.l.b16 %v559
  %v2873 = vunpack.c.h.b16 %v559
  %v2874 = vunpack.c.l.b16 %v560
  %v2875 = vunpack.c.h.b16 %v560
  %v2876 = vunpack.c.l.b16 %v561
  %v2877 = vunpack.c.h.b16 %v561
  %v2878 = vunpack.c.l.b16 %v562
  %v2879 = vunpack.c.h.b16 %v562
  %v2880 = vunpack.c.l.b16 %v563
  %v2881 = vunpack.c.h.b16 %v563
  %v2882 = vunpack.c.l.b16 %v564
  %v2883 = vunpack.c.h.b16 %v564
  %v2884 = vunpack.c.l.b16 %v565
  %v2885 = vunpack.c.h.b16 %v565
  %v2886 = vunpack.c.l.b16 %v566
  %v2887 = vunpack.c.h.b16 %v566
  %v2888 = vunpack.c.l.b16 %v567
  %v2889 = vunpack.c.h.b16 %v567
  %v2890 = vunpack.c.l.b16 %v568
  %v2891 = vunpack.c.h.b16 %v568
  %v2892 = vunpack.c.l.b16 %v569
  %v2893 = vunpack.c.h.b16 %v569
  %v2894 = vunpack.c.l.b16 %v570
  %v2895 = vunpack.c.h.b16 %v570
  %v2896 = vunpack.c.l.b16 %v571
  %v2897 = vunpack.c.h.b16 %v571
  %v2898 = vunpack.c.l.b16 %v572
  %v2899 = vunpack.c.h.b16 %v572
  %v2900 = vunpack.c.l.b16 %v573
  %v2901 = vunpack.c.h.b16 %v573
  %v2902 = vunpack.c.l.b16 %v574
  %v2903 = vunpack.c.h.b16 %v574
  %v2904 = vunpack.c.l.b16 %v575
  %v2905 = vunpack.c.h.b16 %v575
  %v2906 = vunpack.c.l.b16 %v576
  %v2907 = vunpack.c.h.b16 %v576
  %v2908 = vunpack.c.l.b16 %v577
  %v2909 = vunpack.c.h.b16 %v577
  %v2910 = vunpack.c.l.b16 %v578
  %v2911 = vunpack.c.h.b16 %v578
  %v2912 = vunpack.c.l.b16 %v579
  %v2913 = vunpack.c.h.b16 %v579
  %v2914 = vunpack.c.l.b16 %v580
  %v2915 = vunpack.c.h.b16 %v580
  %v2916 = vunpack.c.l.b16 %v581
  %v2917 = vunpack.c.h.b16 %v581
  %v2918 = vunpack.c.l.b16 %v582
  %v2919 = vunpack.c.h.b16 %v582
  %v2920 = vunpack.c.l.b16 %v583
  %v2921 = vunpack.c.h.b16 %v583
  %v2922 = vunpack.c.l.b16 %v584
  %v2923 = vunpack.c.h.b16 %v584
  %v2924 = vunpack.c.l.b16 %v585
  %v2925 = vunpack.c.h.b16 %v585
  %v2926 = vunpack.c.l.b16 %v586
  %v2927 = vunpack.c.h.b16 %v586
  %v2928 = vunpack.c.l.b16 %v587
  %v2929 = vunpack.c.h.b16 %v587
  %v2930 = vunpack.c.l.b16 %v588
  %v2931 = vunpack.c.h.b16 %v588
  %v2932 = vunpack.c.l.b16 %v589
  %v2933 = vunpack.c.h.b16 %v589
  %v2934 = vunpack.c.l.b16 %v590
  %v2935 = vunpack.c.h.b16 %v590
  %v2936 = vunpack.c.l.b16 %v591
  %v2937 = vunpack.c.h.b16 %v591
  %v2938 = vunpack.c.l.b16 %v592
  %v2939 = vunpack.c.h.b16 %v592
  %v2940 = vunpack.c.l.b16 %v593
  %v2941 = vunpack.c.h.b16 %v593
  %v2942 = vunpack.c.l.b16 %v594
  %v2943 = vunpack.c.h.b16 %v594
  %v2944 = vunpack.c.l.b16 %v595
  %v2945 = vunpack.c.h.b16 %v595
  %v2946 = vunpack.c.l.b16 %v596
  %v2947 = vunpack.c.h.b16 %v596
  %v2948 = vunpack.c.l.b16 %v597
  %v2949 = vunpack.c.h.b16 %v597
  %v2950 = vunpack.c.l.b16 %v598
  %v2951 = vunpack.c.h.b16 %v598
  %v2952 = vunpack.c.l.b16 %v599
  %v2953 = vunpack.c.h.b16 %v599
  %v2954 = vunpack.c.l.b16 %v600
  %v2955 = vunpack.c.h.b16 %v600
  %v2956 = vunpack.c.l.b16 %v601
  %v2957 = vunpack.c.h.b16 %v601
  %v2958 = vunpack.c.l.b16 %v602
  %v2959 = vunpack.c.h.b16 %v602
  %v2960 = vunpack.c.l.b16 %v603
  %v2961 = vunpack.c.h.b16 %v603
  %v2962 = vunpack.c.l.b16 %v604
  %v2963 = vunpack.c.h.b16 %v604
  %v2964 = vunpack.c.l.b16 %v605
  %v2965 = vunpack.c.h.b16 %v605
  %v2966 = vunpack.c.l.b16 %v606
  %v2967 = vunpack.c.h.b16 %v606
  %v2968 = vunpack.c.l.b16 %v607
  %v2969 = vunpack.c.h.b16 %v607
  %v2970 = vunpack.c.l.b16 %v608
  %v2971 = vunpack.c.h.b16 %v608
  %v2972 = vunpack.c.l.b16 %v609
  %v2973 = vunpack.c.h.b16 %v609
  %v2974 = vunpack.c.l.b16 %v610
  %v2975 = vunpack.c.h.b16 %v610
  %v2976 = vunpack.c.l.b16 %v611
  %v2977 = vunpack.c.h.b16 %v611
  %v2978 = vunpack.c.l.b16 %v612
  %v2979 = vunpack.c.h.b16 %v612
  %v2980 = vunpack.c.l.b16 %v613
  %v2981 = vunpack.c.h.b16 %v613
  %v2982 = vunpack.c.l.b16 %v614
  %v2983 = vunpack.c.h.b16 %v614
  %v2984 = vunpack.c.l.b16 %v615
  %v2985 = vunpack.c.h.b16 %v615
  %v2986 = vunpack.c.l.b16 %v616
  %v2987 = vunpack.c.h.b16 %v616
  %v2988 = vunpack.c.l.b16 %v617
  %v2989 = vunpack.c.h.b16 %v617
  %v2990 = vunpack.c.l.b16 %v618
  %v2991 = vunpack.c.h.b16 %v618
  %v2992 = vunpack.c.l.b16 %v619
  %v2993 = vunpack.c.h.b16 %v619
  %v2994 = vunpack.c.l.b16 %v620
  %v2995 = vunpack.c.h.b16 %v620
  %v2996 = vunpack.c.l.b16 %v621
  %v2997 = vunpack.c.h.b16 %v621
  %v2998 = vunpack.c.l.b16 %v622
  %v2999 = vunpack.c.h.b16 %v622
  %v3000 = vunpack.c.l.b16 %v623
  %v3001 = vunpack.c.h.b16 %v623
  %v3002 = vunpack.c.l.b16 %v624
  %v3003 = vunpack.c.h.b16 %v624
  %v3004 = vunpack.c.l.b16 %v625
  %v3005 = vunpack.c.h.b16 %v625
  %v3006 = vunpack.c.l.b16 %v626
  %v3007 = vunpack.c.h.b16 %v626
  %v3008 = vunpack.c.l.b16 %v627
  %v3009 = vunpack.c.h.b16 %v627
  %v3010 = vunpack.c.l.b16 %v628
  %v3011 = vunpack.c.h.b16 %v628
  %v3012 = vunpack.c.l.b16 %v629
  %v3013 = vunpack.c.h.b16 %v629
  %v3014 = vunpack.c.l.b16 %v630
  %v3015 = vunpack.c.h.b16 %v630
  %v3016 = vunpack.c.l.b16 %v631
  %v3017 = vunpack.c.h.b16 %v631
  %v3018 = vunpack.c.l.b16 %v632
  %v3019 = vunpack.c.h.b16 %v632
  %v3020 = vunpack.c.l.b16 %v633
  %v3021 = vunpack.c.h.b16 %v633
  %v3022 = vunpack.c.l.b16 %v634
  %v3023 = vunpack.c.h.b16 %v634
  %v3024 = vunpack.c.l.b16 %v635
  %v3025 = vunpack.c.h.b16 %v635
  %v3026 = vunpack.c.l.b16 %v636
  %v3027 = vunpack.c.h.b16 %v636
  %v3028 = vunpack.c.l.b16 %v637
  %v3029 = vunpack.c.h.b16 %v637
  %v3030 = vunpack.c.l.b16 %v638
  %v3031 = vunpack.c.h.b16 %v638
  %v3032 = vunpack.c.l.b16 %v639
  %v3033 = vunpack.c.h.b16 %v639
  %v3034 = vunpack.c.l.b16 %v640
  %v3035 = vunpack.c.h.b16 %v640
  %v3036 = vunpack.c.l.b16 %v641
  %v3037 = vunpack.c.h.b16 %v641
  %v3038 = vunpack.c.l.b16 %v642
  %v3039 = vunpack.c.h.b16 %v642
  %v3040 = vunpack.c.l.b16 %v643
  %v3041 = vunpack.c.h.b16 %v643
  %v3042 = vunpack.c.l.b16 %v644
  %v3043 = vunpack.c.h.b16 %v644
  %v3044 = vunpack.c.l.b16 %v645
  %v3045 = vunpack.c.h.b16 %v645
  %v3046 = vunpack.c.l.b16 %v646
  %v3047 = vunpack.c.h.b16 %v646
  %v3048 = vunpack.c.l.b16 %v647
  %v3049 = vunpack.c.h.b16 %v647
  %v3050 = vunpack.c.l.b16 %v648
  %v3051 = vunpack.c.h.b16 %v648
  %v3052 = vunpack.c.l.b16 %v649
  %v3053 = vunpack.c.h.b16 %v649
  %v3054 = vunpack.c.l.b16 %v650
  %v3055 = vunpack.c.h.b16 %v650
  %v3056 = vunpack.c.l.b16 %v651
  %v3057 = vunpack.c.h.b16 %v651
  %v3058 = vunpack.c.l.b16 %v652
  %v3059 = vunpack.c.h.b16 %v652
  %v3060 = vunpack.c.l.b16 %v653
  %v3061 = vunpack.c.h.b16 %v653
  %v3062 = vunpack.c.l.b16 %v654
  %v3063 = vunpack.c.h.b16 %v654
  %v3064 = vunpack.c.l.b16 %v655
  %v3065 = vunpack.c.h.b16 %v655
  %v3066 = vunpack.c.l.b16 %v656
  %v3067 = vunpack.c.h.b16 %v656
  %v3068 = vunpack.c.l.b16 %v657
  %v3069 = vunpack.c.h.b16 %v657
  %v3070 = vunpack.c.l.b16 %v658
  %v3071 = vunpack.c.h.b16 %v658
  %v3072 = vunpack.c.l.b16 %v659
  %v3073 = vunpack.c.h.b16 %v659
  %v3074 = vunpack.c.l.b16 %v660
  %v3075 = vunpack.c.h.b16 %v660
  %v3076 = vunpack.c.l.b16 %v661
  %v3077 = vunpack.c.h.b16 %v661
  %v3078 = vunpack.c.l.b16 %v662
  %v3079 = vunpack.c.h.b16 %v662
  %v3080 = vunpack.c.l.b16 %v663
  %v3081 = vunpack.c.h.b16 %v663
  %v3082 = vunpack.c.l.b16 %v664
  %v3083 = vunpack.c.h.b16 %v664
  %v3084 = vunpack.c.l.b16 %v665
  %v3085 = vunpack.c.h.b16 %v665
  %v3086 = vunpack.c.l.b16 %v666
  %v3087 = vunpack.c.h.b16 %v666
  %v3088 = vunpack.c.l.b16 %v667
  %v3089 = vunpack.c.h.b16 %v667
  %v3090 = vunpack.c.l.b16 %v668
  %v3091 = vunpack.c.h.b16 %v668
  %v3092 = vunpack.c.l.b16 %v669
  %v3093 = vunpack.c.h.b16 %v669
  %v3094 = vunpack.c.l.b16 %v670
  %v3095 = vunpack.c.h.b16 %v670
  %v3096 = vunpack.c.l.b16 %v671
  %v3097 = vunpack.c.h.b16 %v671
  %v3098 = vunpack.c.l.b16 %v672
  %v3099 = vunpack.c.h.b16 %v672
  %v3100 = vunpack.c.l.b16 %v673
  %v3101 = vunpack.c.h.b16 %v673
  %v3102 = vunpack.c.l.b16 %v674
  %v3103 = vunpack.c.h.b16 %v674
  %v3104 = vunpack.c.l.b16 %v675
  %v3105 = vunpack.c.h.b16 %v675
  %v3106 = vunpack.c.l.b16 %v676
  %v3107 = vunpack.c.h.b16 %v676
  %v3108 = vunpack.c.l.b16 %v677
  %v3109 = vunpack.c.h.b16 %v677
  %v3110 = vunpack.c.l.b16 %v678
  %v3111 = vunpack.c.h.b16 %v678
  %v3112 = vunpack.c.l.b16 %v679
  %v3113 = vunpack.c.h.b16 %v679
  %v3114 = vunpack.c.l.b16 %v680
  %v3115 = vunpack.c.h.b16 %v680
  %v3116 = vunpack.c.l.b16 %v681
  %v3117 = vunpack.c.h.b16 %v681
  %v3118 = vunpack.c.l.b16 %v682
  %v3119 = vunpack.c.h.b16 %v682
  %v3120 = vunpack.c.l.b16 %v683
  %v3121 = vunpack.c.h.b16 %v683
  %v3122 = vunpack.c.l.b16 %v684
  %v3123 = vunpack.c.h.b16 %v684
  %v3124 = vunpack.c.l.b16 %v685
  %v3125 = vunpack.c.h.b16 %v685
  %v3126 = vunpack.c.l.b16 %v686
  %v3127 = vunpack.c.h.b16 %v686
  %v3128 = vunpack.c.l.b16 %v687
  %v3129 = vunpack.c.h.b16 %v687
  %v3130 = vunpack.c.l.b16 %v688
  %v3131 = vunpack.c.h.b16 %v688
  %v3132 = vunpack.c.l.b16 %v689
  %v3133 = vunpack.c.h.b16 %v689
  %v3134 = vunpack.c.l.b16 %v690
  %v3135 = vunpack.c.h.b16 %v690
  %v3136 = vunpack.c.l.b16 %v691
  %v3137 = vunpack.c.h.b16 %v691
  %v3138 = vunpack.c.l.b16 %v692
  %v3139 = vunpack.c.h.b16 %v692
  %v3140 = vunpack.c.l.b16 %v693
  %v3141 = vunpack.c.h.b16 %v693
  %v3142 = vunpack.c.l.b16 %v694
  %v3143 = vunpack.c.h.b16 %v694
  %v3144 = vunpack.c.l.b16 %v695
  %v3145 = vunpack.c.h.b16 %v695
  %v3146 = vunpack.c.l.b16 %v696
  %v3147 = vunpack.c.h.b16 %v696
  %v3148 = vunpack.c.l.b16 %v697
  %v3149 = vunpack.c.h.b16 %v697
  %v3150 = vunpack.c.l.b16 %v698
  %v3151 = vunpack.c.h.b16 %v698
  %v3152 = vunpack.c.l.b16 %v699
  %v3153 = vunpack.c.h.b16 %v699
  %v3154 = vunpack.c.l.b16 %v700
  %v3155 = vunpack.c.h.b16 %v700
  %v3156 = vunpack.c.l.b16 %v701
  %v3157 = vunpack.c.h.b16 %v701
  %v3158 = vunpack.c.l.b16 %v702
  %v3159 = vunpack.c.h.b16 %v702
  %v3160 = vunpack.c.l.b16 %v703
  %v3161 = vunpack.c.h.b16 %v703
  %v3162 = vunpack.c.l.b16 %v704
  %v3163 = vunpack.c.h.b16 %v704
  %v3164 = vunpack.c.l.b16 %v705
  %v3165 = vunpack.c.h.b16 %v705
  %v3166 = vunpack.c.l.b16 %v706
  %v3167 = vunpack.c.h.b16 %v706
  %v3168 = vunpack.c.l.b16 %v707
  %v3169 = vunpack.c.h.b16 %v707
  %v3170 = vunpack.c.l.b16 %v708
  %v3171 = vunpack.c.h.b16 %v708
  %v3172 = vunpack.c.l.b16 %v709
  %v3173 = vunpack.c.h.b16 %v709
  %v3174 = vunpack.c.l.b16 %v710
  %v3175 = vunpack.c.h.b16 %v710
  %v3176 = vunpack.c.l.b16 %v711
  %v3177 = vunpack.c.h.b16 %v711
  %v3178 = vunpack.c.l.b16 %v712
  %v3179 = vunpack.c.h.b16 %v712
  %v3180 = vunpack.c.l.b16 %v713
  %v3181 = vunpack.c.h.b16 %v713
  %v3182 = vunpack.c.l.b16 %v714
  %v3183 = vunpack.c.h.b16 %v714
  %v3184 = vunpack.c.l.b16 %v715
  %v3185 = vunpack.c.h.b16 %v715
  %v3186 = vunpack.c.l.b16 %v716
  %v3187 = vunpack.c.h.b16 %v716
  %v3188 = vunpack.c.l.b16 %v717
  %v3189 = vunpack.c.h.b16 %v717
  %v3190 = vunpack.c.l.b16 %v718
  %v3191 = vunpack.c.h.b16 %v718
  %v3192 = vunpack.c.l.b16 %v719
  %v3193 = vunpack.c.h.b16 %v719
  %v3194 = vunpack.c.l.b16 %v720
  %v3195 = vunpack.c.h.b16 %v720
  %v3196 = vunpack.c.l.b16 %v721
  %v3197 = vunpack.c.h.b16 %v721
  %v3198 = vunpack.c.l.b16 %v722
  %v3199 = vunpack.c.h.b16 %v722
  %v3200 = vunpack.c.l.b16 %v723
  %v3201 = vunpack.c.h.b16 %v723
  %v3202 = vunpack.c.l.b16 %v724
  %v3203 = vunpack.c.h.b16 %v724
  %v3204 = vunpack.c.l.b16 %v725
  %v3205 = vunpack.c.h.b16 %v725
  %v3206 = vunpack.c.l.b16 %v726
  %v3207 = vunpack.c.h.b16 %v726
  %v3208 = vunpack.c.l.b16 %v727
  %v3209 = vunpack.c.h.b16 %v727
  %v3210 = vunpack.c.l.b16 %v728
  %v3211 = vunpack.c.h.b16 %v728
  %v3212 = vunpack.c.l.b16 %v729
  %v3213 = vunpack.c.h.b16 %v729
  %v3214 = vunpack.c.l.b16 %v730
  %v3215 = vunpack.c.h.b16 %v730
  %v3216 = vunpack.c.l.b16 %v731
  %v3217 = vunpack.c.h.b16 %v731
  %v3218 = vunpack.c.l.b16 %v732
  %v3219 = vunpack.c.h.b16 %v732
  %v3220 = vunpack.c.l.b16 %v733
  %v3221 = vunpack.c.h.b16 %v733
  %v3222 = vunpack.c.l.b16 %v734
  %v3223 = vunpack.c.h.b16 %v734
  %v3224 = vunpack.c.l.b16 %v735
  %v3225 = vunpack.c.h.b16 %v735
  %v3226 = vunpack.c.l.b16 %v736
  %v3227 = vunpack.c.h.b16 %v736
  %v3228 = vunpack.c.l.b16 %v737
  %v3229 = vunpack.c.h.b16 %v737
  %v3230 = vunpack.c.l.b16 %v738
  %v3231 = vunpack.c.h.b16 %v738
  %v3232 = vunpack.c.l.b16 %v739
  %v3233 = vunpack.c.h.b16 %v739
  %v3234 = vunpack.c.l.b16 %v740
  %v3235 = vunpack.c.h.b16 %v740
  %v3236 = vunpack.c.l.b16 %v741
  %v3237 = vunpack.c.h.b16 %v741
  %v3238 = vunpack.c.l.b16 %v742
  %v3239 = vunpack.c.h.b16 %v742
  %v3240 = vunpack.c.l.b16 %v743
  %v3241 = vunpack.c.h.b16 %v743
  %v3242 = vunpack.c.l.b16 %v744
  %v3243 = vunpack.c.h.b16 %v744
  %v3244 = vunpack.c.l.b16 %v745
  %v3245 = vunpack.c.h.b16 %v745
  %v3246 = vunpack.c.l.b16 %v746
  %v3247 = vunpack.c.h.b16 %v746
  %v3248 = vunpack.c.l.b16 %v747
  %v3249 = vunpack.c.h.b16 %v747
  %v3250 = vunpack.c.l.b16 %v748
  %v3251 = vunpack.c.h.b16 %v748
  %v3252 = vunpack.c.l.b16 %v749
  %v3253 = vunpack.c.h.b16 %v749
  %v3254 = vunpack.c.l.b16 %v750
  %v3255 = vunpack.c.h.b16 %v750
  %v3256 = vunpack.c.l.b16 %v751
  %v3257 = vunpack.c.h.b16 %v751
  %v3258 = vunpack.c.l.b16 %v752
  %v3259 = vunpack.c.h.b16 %v752
  %v3260 = vunpack.c.l.b16 %v753
  %v3261 = vunpack.c.h.b16 %v753
  %v3262 = vunpack.c.l.b16 %v754
  %v3263 = vunpack.c.h.b16 %v754
  %v3264 = vunpack.c.l.b16 %v755
  %v3265 = vunpack.c.h.b16 %v755
  %v3266 = vunpack.c.l.b16 %v756
  %v3267 = vunpack.c.h.b16 %v756
  %v3268 = vunpack.c.l.b16 %v757
  %v3269 = vunpack.c.h.b16 %v757
  %v3270 = vunpack.c.l.b16 %v758
  %v3271 = vunpack.c.h.b16 %v758
  %v3272 = vunpack.c.l.b16 %v759
  %v3273 = vunpack.c.h.b16 %v759
  %v3274 = vunpack.c.l.b16 %v760
  %v3275 = vunpack.c.h.b16 %v760
  %v3276 = vunpack.c.l.b16 %v761
  %v3277 = vunpack.c.h.b16 %v761
  %v3278 = vunpack.c.l.b16 %v762
  %v3279 = vunpack.c.h.b16 %v762
  %v3280 = vunpack.c.l.b16 %v763
  %v3281 = vunpack.c.h.b16 %v763
  %v3282 = vunpack.c.l.b16 %v764
  %v3283 = vunpack.c.h.b16 %v764
  %v3284 = vunpack.c.l.b16 %v765
  %v3285 = vunpack.c.h.b16 %v765
  %v3286 = vunpack.c.l.b16 %v766
  %v3287 = vunpack.c.h.b16 %v766
  %v3288 = vunpack.c.l.b16 %v767
  %v3289 = vunpack.c.h.b16 %v767
  %v3290 = vunpack.c.l.b16 %v768
  %v3291 = vunpack.c.h.b16 %v768
  %v3292 = vunpack.c.l.b16 %v769
  %v3293 = vunpack.c.h.b16 %v769
  %v3294 = vunpack.c.l.b16 %v770
  %v3295 = vunpack.c.h.b16 %v770
  %v3296 = vunpack.c.l.b16 %v771
  %v3297 = vunpack.c.h.b16 %v771
  %v3298 = vunpack.c.l.b16 %v772
  %v3299 = vunpack.c.h.b16 %v772
  %v3300 = vunpack.c.l.b16 %v773
  %v3301 = vunpack.c.h.b16 %v773
  %v3302 = vunpack.c.l.b16 %v774
  %v3303 = vunpack.c.h.b16 %v774
  %v3304 = vunpack.c.l.b16 %v775
  %v3305 = vunpack.c.h.b16 %v775
  %v3306 = vunpack.c.l.b16 %v776
  %v3307 = vunpack.c.h.b16 %v776
  %v3308 = vunpack.c.l.b16 %v777
  %v3309 = vunpack.c.h.b16 %v777
  %v3310 = vunpack.c.l.b16 %v778
  %v3311 = vunpack.c.h.b16 %v778
  %v3312 = vunpack.c.l.b16 %v779
  %v3313 = vunpack.c.h.b16 %v779
  %v3314 = vunpack.c.l.b16 %v780
  %v3315 = vunpack.c.h.b16 %v780
  %v3316 = vunpack.c.l.b16 %v781
  %v3317 = vunpack.c.h.b16 %v781
  %v3318 = vunpack.c.l.b16 %v782
  %v3319 = vunpack.c.h.b16 %v782
  %v3320 = vunpack.c.l.b16 %v783
  %v3321 = vunpack.c.h.b16 %v783
  %v3322 = vunpack.c.l.b16 %v784
  %v3323 = vunpack.c.h.b16 %v784
  %v3324 = vunpack.c.l.b16 %v785
  %v3325 = vunpack.c.h.b16 %v785
  %v3326 = vunpack.c.l.b16 %v786
  %v3327 = vunpack.c.h.b16 %v786
  %v3328 = vunpack.c.l.b16 %v787
  %v3329 = vunpack.c.h.b16 %v787
  %v3330 = vunpack.c.l.b16 %v788
  %v3331 = vunpack.c.h.b16 %v788
  %v3332 = vunpack.c.l.b16 %v789
  %v3333 = vunpack.c.h.b16 %v789
  %v3334 = vunpack.c.l.b16 %v790
  %v3335 = vunpack.c.h.b16 %v790
  %v3336 = vunpack.c.l.b16 %v791
  %v3337 = vunpack.c.h.b16 %v791
  %v3338 = vunpack.c.l.b16 %v792
  %v3339 = vunpack.c.h.b16 %v792
  %v3340 = vunpack.c.l.b16 %v793
  %v3341 = vunpack.c.h.b16 %v793
  %v3342 = vunpack.c.l.b16 %v794
  %v3343 = vunpack.c.h.b16 %v794
  %v3344 = vunpack.c.l.b16 %v795
  %v3345 = vunpack.c.h.b16 %v795
  %v3346 = vunpack.c.l.b16 %v796
  %v3347 = vunpack.c.h.b16 %v796
  %v3348 = vunpack.c.l.b16 %v797
  %v3349 = vunpack.c.h.b16 %v797
  %v3350 = vunpack.c.l.b16 %v798
  %v3351 = vunpack.c.h.b16 %v798
  %v3352 = vunpack.c.l.b16 %v799
  %v3353 = vunpack.c.h.b16 %v799
  %v3354 = vunpack.c.l.b16 %v800
  %v3355 = vunpack.c.h.b16 %v800
  %v3356 = vunpack.c.l.b16 %v801
  %v3357 = vunpack.c.h.b16 %v801
  %v3358 = vunpack.c.l.b16 %v802
  %v3359 = vunpack.c.h.b16 %v802
  %v3360 = vunpack.c.l.b16 %v803
  %v3361 = vunpack.c.h.b16 %v803
  %v3362 = vunpack.c.l.b16 %v804
  %v3363 = vunpack.c.h.b16 %v804
  %v3364 = vunpack.c.l.b16 %v805
  %v3365 = vunpack.c.h.b16 %v805
  %v3366 = vunpack.c.l.b16 %v806
  %v3367 = vunpack.c.h.b16 %v806
  %v3368 = vunpack.c.l.b16 %v807
  %v3369 = vunpack.c.h.b16 %v807
  %v3370 = vunpack.c.l.b16 %v808
  %v3371 = vunpack.c.h.b16 %v808
  %v3372 = vpack.c.b16 %v1808, %v1804
  %v3373 = vpack.c.b16 %v1809, %v1805
  %v3374 = vpack.c.b16 %v1810, %v1806
  %v3375 = vpack.c.b16 %v1811, %v1807
  %v3376 = vpack.c.b16 %v1816, %v1812
  %v3377 = vpack.c.b16 %v1817, %v1813
  %v3378 = vpack.c.b16 %v1818, %v1814
  %v3379 = vpack.c.b16 %v1819, %v1815
  %v3380 = vpack.c.b16 %v1824, %v1820
  %v3381 = vpack.c.b16 %v1825, %v1821
  %v3382 = vpack.c.b16 %v1826, %v1822
  %v3383 = vpack.c.b16 %v1827, %v1823
  %v3384 = vpack.c.b16 %v1832, %v1828
  %v3385 = vpack.c.b16 %v1833, %v1829
  %v3386 = vpack.c.b16 %v1834, %v1830
  %v3387 = vpack.c.b16 %v1835, %v1831
  %v3388 = vpack.c.b16 %v1840, %v1836
  %v3389 = vpack.c.b16 %v1841, %v1837
  %v3390 = vpack.c.b16 %v1842, %v1838
  %v3391 = vpack.c.b16 %v1843, %v1839
  %v3392 = vpack.c.b16 %v1848, %v1844
  %v3393 = vpack.c.b16 %v1849, %v1845
  %v3394 = vpack.c.b16 %v1850, %v1846
  %v3395 = vpack.c.b16 %v1851, %v1847
  %v3396 = vpack.c.b16 %v1856, %v1852
  %v3397 = vpack.c.b16 %v1857, %v1853
  %v3398 = vpack.c.b16 %v1858, %v1854
  %v3399 = vpack.c.b16 %v1859, %v1855
  %v3400 = vpack.c.b16 %v1864, %v1860
  %v3401 = vpack.c.b16 %v1865, %v1861
  %v3402 = vpack.c.b16 %v1866, %v1862
  %v3403 = vpack.c.b16 %v1867, %v1863
  %v3404 = vpack.c.b16 %v1872, %v1868
  %v3405 = vpack.c.b16 %v1873, %v1869
  %v3406 = vpack.c.b16 %v1874, %v1870
  %v3407 = vpack.c.b16 %v1875, %v1871
  %v3408 = vpack.c.b16 %v1880, %v1876
  %v3409 = vpack.c.b16 %v1881, %v1877
  %v3410 = vpack.c.b16 %v1882, %v1878
  %v3411 = vpack.c.b16 %v1883, %v1879
  %v3412 = vpack.c.b16 %v1888, %v1884
  %v3413 = vpack.c.b16 %v1889, %v1885
  %v3414 = vpack.c.b16 %v1890, %v1886
  %v3415 = vpack.c.b16 %v1891, %v1887
  %v3416 = vpack.c.b16 %v1896, %v1892
  %v3417 = vpack.c.b16 %v1897, %v1893
  %v3418 = vpack.c.b16 %v1898, %v1894
  %v3419 = vpack.c.b16 %v1899, %v1895
  %v3420 = vpack.c.b16 %v1904, %v1900
  %v3421 = vpack.c.b16 %v1905, %v1901
  %v3422 = vpack.c.b16 %v1906, %v1902
  %v3423 = vpack.c.b16 %v1907, %v1903
  %v3424 = vpack.c.b16 %v1912, %v1908
  %v3425 = vpack.c.b16 %v1913, %v1909
  %v3426 = vpack.c.b16 %v1914, %v1910
  %v3427 = vpack.c.b16 %v1915, %v1911
  %v3428 = vpack.c.b16 %v1920, %v1916
  %v3429 = vpack.c.b16 %v1921, %v1917
  %v3430 = vpack.c.b16 %v1922, %v1918
  %v3431 = vpack.c.b16 %v1923, %v1919
  %v3432 = vpack.c.b16 %v1928, %v1924
  %v3433 = vpack.c.b16 %v1929, %v1925
  %v3434 = vpack.c.b16 %v1930, %v1926
  %v3435 = vpack.c.b16 %v1931, %v1927
  %v3436 = vpack.c.b16 %v1936, %v1932
  %v3437 = vpack.c.b16 %v1937, %v1933
  %v3438 = vpack.c.b16 %v1938, %v1934
  %v3439 = vpack.c.b16 %v1939, %v1935
  %v3440 = vpack.c.b16 %v1944, %v1940
  %v3441 = vpack.c.b16 %v1945, %v1941
  %v3442 = vpack.c.b16 %v1946, %v1942
  %v3443 = vpack.c.b16 %v1947, %v1943
  %v3444 = vpack.c.b16 %v1952, %v1948
  %v3445 = vpack.c.b16 %v1953, %v1949
  %v3446 = vpack.c.b16 %v1954, %v1950
  %v3447 = vpack.c.b16 %v1955, %v1951
  %v3448 = vpack.c.b16 %v1960, %v1956
  %v3449 = vpack.c.b16 %v1961, %v1957
  %v3450 = vpack.c.b16 %v1962, %v1958
  %v3451 = vpack.c.b16 %v1963, %v1959
  %v3452 = vpack.c.b16 %v1968, %v1964
  %v3453 = vpack.c.b16 %v1969, %v1965
  %v3454 = vpack.c.b16 %v1970, %v1966
  %v3455 = vpack.c.b16 %v1971, %v1967
  %v3456 = vpack.c.b16 %v1976, %v1972
  %v3457 = vpack.c.b16 %v1977, %v1973
  %v3458 = vpack.c.b16 %v1978, %v1974
  %v3459 = vpack.c.b16 %v1979, %v1975
  %v3460 = vpack.c.b16 %v1984, %v1980
  %v3461 = vpack.c.b16 %v1985, %v1981
  %v3462 = vpack.c.b16 %v1986, %v1982
  %v3463 = vpack.c.b16 %v1987, %v1983
  %v3464 = vpack.c.b16 %v1992, %v1988
  %v3465 = vpack.c.b16 %v1993, %v1989
  %v3466 = vpack.c.b16 %v1994, %v1990
  %v3467 = vpack.c.b16 %v1995, %v1991
  %v3468 = vpack.c.b16 %v2000, %v1996
  %v3469 = vpack.c.b16 %v2001, %v1997
  %v3470 = vpack.c.b16 %v2002, %v1998
  %v3471 = vpack.c.b16 %v2003, %v1999
  %v3472 = vpack.c.b16 %v2008, %v2004
  %v3473 = vpack.c.b16 %v2009, %v2005
  %v3474 = vpack.c.b16 %v2010, %v2006
  %v3475 = vpack.c.b16 %v2011, %v2007
  %v3476 = vpack.c.b16 %v2016, %v2012
  %v3477 = vpack.c.b16 %v2017, %v2013
  %v3478 = vpack.c.b16 %v2018, %v2014
  %v3479 = vpack.c.b16 %v2019, %v2015
  %v3480 = vpack.c.b16 %v2024, %v2020
  %v3481 = vpack.c.b16 %v2025, %v2021
  %v3482 = vpack.c.b16 %v2026, %v2022
  %v3483 = vpack.c.b16 %v2027, %v2023
  %v3484 = vpack.c.b16 %v2032, %v2028
  %v3485 = vpack.c.b16 %v2033, %v2029
  %v3486 = vpack.c.b16 %v2034, %v2030
  %v3487 = vpack.c.b16 %v2035, %v2031
  %v3488 = vpack.c.b16 %v2040, %v2036
  %v3489 = vpack.c.b16 %v2041, %v2037
  %v3490 = vpack.c.b16 %v2042, %v2038
  %v3491 = vpack.c.b16 %v2043, %v2039
  %v3492 = vpack.c.b16 %v2048, %v2044
  %v3493 = vpack.c.b16 %v2049, %v2045
  %v3494 = vpack.c.b16 %v2050, %v2046
  %v3495 = vpack.c.b16 %v2051, %v2047
  %v3496 = vpack.c.b16 %v2056, %v2052
  %v3497 = vpack.c.b16 %v2057, %v2053
  %v3498 = vpack.c.b16 %v2058, %v2054
  %v3499 = vpack.c.b16 %v2059, %v2055
  %v3500 = vpack.c.b16 %v2064, %v2060
  %v3501 = vpack.c.b16 %v2065, %v2061
  %v3502 = vpack.c.b16 %v2066, %v2062
  %v3503 = vpack.c.b16 %v2067, %v2063
  %v3504 = vpack.c.b16 %v2072, %v2068
  %v3505 = vpack.c.b16 %v2073, %v2069
  %v3506 = vpack.c.b16 %v2074, %v2070
  %v3507 = vpack.c.b16 %v2075, %v2071
  %v3508 = vpack.c.b16 %v2080, %v2076
  %v3509 = vpack.c.b16 %v2081, %v2077
  %v3510 = vpack.c.b16 %v2082, %v2078
  %v3511 = vpack.c.b16 %v2083, %v2079
  %v3512 = vpack.c.b16 %v2088, %v2084
  %v3513 = vpack.c.b16 %v2089, %v2085
  %v3514 = vpack.c.b16 %v2090, %v2086
  %v3515 = vpack.c.b16 %v2091, %v2087
  %v3516 = vpack.c.b16 %v2096, %v2092
  %v3517 = vpack.c.b16 %v2097, %v2093
  %v3518 = vpack.c.b16 %v2098, %v2094
  %v3519 = vpack.c.b16 %v2099, %v2095
  %v3520 = vpack.c.b16 %v2104, %v2100
  %v3521 = vpack.c.b16 %v2105, %v2101
  %v3522 = vpack.c.b16 %v2106, %v2102
  %v3523 = vpack.c.b16 %v2107, %v2103
  %v3524 = vpack.c.b16 %v2112, %v2108
  %v3525 = vpack.c.b16 %v2113, %v2109
  %v3526 = vpack.c.b16 %v2114, %v2110
  %v3527 = vpack.c.b16 %v2115, %v2111
  %v3528 = vpack.c.b16 %v2120, %v2116
  %v3529 = vpack.c.b16 %v2121, %v2117
  %v3530 = vpack.c.b16 %v2122, %v2118
  %v3531 = vpack.c.b16 %v2123, %v2119
  %v3532 = vpack.c.b16 %v2128, %v2124
  %v3533 = vpack.c.b16 %v2129, %v2125
  %v3534 = vpack.c.b16 %v2130, %v2126
  %v3535 = vpack.c.b16 %v2131, %v2127
  %v3536 = vpack.c.b16 %v2136, %v2132
  %v3537 = vpack.c.b16 %v2137, %v2133
  %v3538 = vpack.c.b16 %v2138, %v2134
  %v3539 = vpack.c.b16 %v2139, %v2135
  %v3540 = vpack.c.b16 %v2144, %v2140
  %v3541 = vpack.c.b16 %v2145, %v2141
  %v3542 = vpack.c.b16 %v2146, %v2142
  %v3543 = vpack.c.b16 %v2147, %v2143
  %v3544 = vpack.c.b16 %v2152, %v2148
  %v3545 = vpack.c.b16 %v2153, %v2149
  %v3546 = vpack.c.b16 %v2154, %v2150
  %v3547 = vpack.c.b16 %v2155, %v2151
  %v3548 = vpack.c.b16 %v2160, %v2156
  %v3549 = vpack.c.b16 %v2161, %v2157
  %v3550 = vpack.c.b16 %v2162, %v2158
  %v3551 = vpack.c.b16 %v2163, %v2159
  %v3552 = vpack.c.b16 %v2168, %v2164
  %v3553 = vpack.c.b16 %v2169, %v2165
  %v3554 = vpack.c.b16 %v2170, %v2166
  %v3555 = vpack.c.b16 %v2171, %v2167
  %v3556 = vpack.c.b16 %v2176, %v2172
  %v3557 = vpack.c.b16 %v2177, %v2173
  %v3558 = vpack.c.b16 %v2178, %v2174
  %v3559 = vpack.c.b16 %v2179, %v2175
  %v3560 = vpack.c.b16 %v2184, %v2180
  %v3561 = vpack.c.b16 %v2185, %v2181
  %v3562 = vpack.c.b16 %v2186, %v2182
  %v3563 = vpack.c.b16 %v2187, %v2183
  %v3564 = vpack.c.b16 %v2192, %v2188
  %v3565 = vpack.c.b16 %v2193, %v2189
  %v3566 = vpack.c.b16 %v2194, %v2190
  %v3567 = vpack.c.b16 %v2195, %v2191
  %v3568 = vpack.c.b16 %v2200, %v2196
  %v3569 = vpack.c.b16 %v2201, %v2197
  %v3570 = vpack.c.b16 %v2202, %v2198
  %v3571 = vpack.c.b16 %v2203, %v2199
  %v3572 = vpack.c.b16 %v2208, %v2204
  %v3573 = vpack.c.b16 %v2209, %v2205
  %v3574 = vpack.c.b16 %v2210, %v2206
  %v3575 = vpack.c.b16 %v2211, %v2207
  %v3576 = vpack.c.b16 %v2216, %v2212
  %v3577 = vpack.c.b16 %v2217, %v2213
  %v3578 = vpack.c.b16 %v2218, %v2214
  %v3579 = vpack.c.b16 %v2219, %v2215
  %v3580 = vpack.c.b16 %v2224, %v2220
  %v3581 = vpack.c.b16 %v2225, %v2221
  %v3582 = vpack.c.b16 %v2226, %v2222
  %v3583 = vpack.c.b16 %v2227, %v2223
  %v3584 = vpack.c.b16 %v2232, %v2228
  %v3585 = vpack.c.b16 %v2233, %v2229
  %v3586 = vpack.c.b16 %v2234, %v2230
  %v3587 = vpack.c.b16 %v2235, %v2231
  %v3588 = vpack.c.b16 %v2240, %v2236
  %v3589 = vpack.c.b16 %v2241, %v2237
  %v3590 = vpack.c.b16 %v2242, %v2238
  %v3591 = vpack.c.b16 %v2243, %v2239
  %v3592 = vpack.c.b16 %v2248, %v2244
  %v3593 = vpack.c.b16 %v2249, %v2245
  %v3594 = vpack.c.b16 %v2250, %v2246
  %v3595 = vpack.c.b16 %v2251, %v2247
  %v3596 = vpack.c.b16 %v2256, %v2252
  %v3597 = vpack.c.b16 %v2257, %v2253
  %v3598 = vpack.c.b16 %v2258, %v2254
  %v3599 = vpack.c.b16 %v2259, %v2255
  %v3600 = vpack.c.b16 %v2264, %v2260
  %v3601 = vpack.c.b16 %v2265, %v2261
  %v3602 = vpack.c.b16 %v2266, %v2262
  %v3603 = vpack.c.b16 %v2267, %v2263
  %v3604 = vpack.c.b16 %v2272, %v2268
  %v3605 = vpack.c.b16 %v2273, %v2269
  %v3606 = vpack.c.b16 %v2274, %v2270
  %v3607 = vpack.c.b16 %v2275, %v2271
  %v3608 = vpack.c.b16 %v2280, %v2276
  %v3609 = vpack.c.b16 %v2281, %v2277
  %v3610 = vpack.c.b16 %v2282, %v2278
  %v3611 = vpack.c.b16 %v2283, %v2279
  %v3612 = vpack.c.b16 %v2288, %v2284
  %v3613 = vpack.c.b16 %v2289, %v2285
  %v3614 = vpack.c.b16 %v2290, %v2286
  %v3615 = vpack.c.b16 %v2291, %v2287
  %v3616 = vpack.c.b16 %v2296, %v2292
  %v3617 = vpack.c.b16 %v2297, %v2293
  %v3618 = vpack.c.b16 %v2298, %v2294
  %v3619 = vpack.c.b16 %v2299, %v2295
  %v3620 = vpack.c.b16 %v2304, %v2300
  %v3621 = vpack.c.b16 %v2305, %v2301
  %v3622 = vpack.c.b16 %v2306, %v2302
  %v3623 = vpack.c.b16 %v2307, %v2303
  %v3624 = vpack.c.b16 %v2312, %v2308
  %v3625 = vpack.c.b16 %v2313, %v2309
  %v3626 = vpack.c.b16 %v2314, %v2310
  %v3627 = vpack.c.b16 %v2315, %v2311
  %v3628 = vpack.c.b16 %v2320, %v2316
  %v3629 = vpack.c.b16 %v2321, %v2317
  %v3630 = vpack.c.b16 %v2322, %v2318
  %v3631 = vpack.c.b16 %v2323, %v2319
  %v3632 = vpack.c.b16 %v2328, %v2324
  %v3633 = vpack.c.b16 %v2329, %v2325
  %v3634 = vpack.c.b16 %v2330, %v2326
  %v3635 = vpack.c.b16 %v2331, %v2327
  %v3636 = vpack.c.b16 %v2336, %v2332
  %v3637 = vpack.c.b16 %v2337, %v2333
  %v3638 = vpack.c.b16 %v2338, %v2334
  %v3639 = vpack.c.b16 %v2339, %v2335
  %v3640 = vpack.c.b16 %v2344, %v2340
  %v3641 = vpack.c.b16 %v2345, %v2341
  %v3642 = vpack.c.b16 %v2346, %v2342
  %v3643 = vpack.c.b16 %v2347, %v2343
  %v3644 = vpack.c.b16 %v2352, %v2348
  %v3645 = vpack.c.b16 %v2353, %v2349
  %v3646 = vpack.c.b16 %v2354, %v2350
  %v3647 = vpack.c.b16 %v2355, %v2351
  %v3648 = vpack.c.b16 %v2360, %v2356
  %v3649 = vpack.c.b16 %v2361, %v2357
  %v3650 = vpack.c.b16 %v2362, %v2358
  %v3651 = vpack.c.b16 %v2363, %v2359
  %v3652 = vpack.c.b16 %v2368, %v2364
  %v3653 = vpack.c.b16 %v2369, %v2365
  %v3654 = vpack.c.b16 %v2370, %v2366
  %v3655 = vpack.c.b16 %v2371, %v2367
  %v3656 = vpack.c.b16 %v2376, %v2372
  %v3657 = vpack.c.b16 %v2377, %v2373
  %v3658 = vpack.c.b16 %v2378, %v2374
  %v3659 = vpack.c.b16 %v2379, %v2375
  %v3660 = vpack.c.b16 %v2384, %v2380
  %v3661 = vpack.c.b16 %v2385, %v2381
  %v3662 = vpack.c.b16 %v2386, %v2382
  %v3663 = vpack.c.b16 %v2387, %v2383
  %v3664 = vpack.c.b16 %v2392, %v2388
  %v3665 = vpack.c.b16 %v2393, %v2389
  %v3666 = vpack.c.b16 %v2394, %v2390
  %v3667 = vpack.c.b16 %v2395, %v2391
  %v3668 = vpack.c.b16 %v2400, %v2396
  %v3669 = vpack.c.b16 %v2401, %v2397
  %v3670 = vpack.c.b16 %v2402, %v2398
  %v3671 = vpack.c.b16 %v2403, %v2399
  %v3672 = vpack.c.b16 %v2408, %v2404
  %v3673 = vpack.c.b16 %v2409, %v2405
  %v3674 = vpack.c.b16 %v2410, %v2406
  %v3675 = vpack.c.b16 %v2411, %v2407
  %v3676 = vpack.c.b16 %v2416, %v2412
  %v3677 = vpack.c.b16 %v2417, %v2413
  %v3678 = vpack.c.b16 %v2418, %v2414
  %v3679 = vpack.c.b16 %v2419, %v2415
  %v3680 = vpack.c.b16 %v2424, %v2420
  %v3681 = vpack.c.b16 %v2425, %v2421
  %v3682 = vpack.c.b16 %v2426, %v2422
  %v3683 = vpack.c.b16 %v2427, %v2423
  %v3684 = vpack.c.b16 %v2432, %v2428
  %v3685 = vpack.c.b16 %v2433, %v2429
  %v3686 = vpack.c.b16 %v2434, %v2430
  %v3687 = vpack.c.b16 %v2435, %v2431
  %v3688 = vpack.c.b16 %v2440, %v2436
  %v3689 = vpack.c.b16 %v2441, %v2437
  %v3690 = vpack.c.b16 %v2442, %v2438
  %v3691 = vpack.c.b16 %v2443, %v2439
  %v3692 = vpack.c.b16 %v2448, %v2444
  %v3693 = vpack.c.b16 %v2449, %v2445
  %v3694 = vpack.c.b16 %v2450, %v2446
  %v3695 = vpack.c.b16 %v2451, %v2447
  %v3696 = vpack.c.b16 %v2456, %v2452
  %v3697 = vpack.c.b16 %v2457, %v2453
  %v3698 = vpack.c.b16 %v2458, %v2454
  %v3699 = vpack.c.b16 %v2459, %v2455
  %v3700 = vpack.c.b16 %v2464, %v2460
  %v3701 = vpack.c.b16 %v2465, %v2461
  %v3702 = vpack.c.b16 %v2466, %v2462
  %v3703 = vpack.c.b16 %v2467, %v2463
  %v3704 = vpack.c.b16 %v2472, %v2468
  %v3705 = vpack.c.b16 %v2473, %v2469
  %v3706 = vpack.c.b16 %v2474, %v2470
  %v3707 = vpack.c.b16 %v2475, %v2471
  %v3708 = vpack.c.b16 %v2480, %v2476
  %v3709 = vpack.c.b16 %v2481, %v2477
  %v3710 = vpack.c.b16 %v2482, %v2478
  %v3711 = vpack.c.b16 %v2483, %v2479
  %v3712 = vpack.c.b16 %v2488, %v2484
  %v3713 = vpack.c.b16 %v2489, %v2485
  %v3714 = vpack.c.b16 %v2490, %v2486
  %v3715 = vpack.c.b16 %v2491, %v2487
  %v3716 = vpack.c.b16 %v2496, %v2492
  %v3717 = vpack.c.b16 %v2497, %v2493
  %v3718 = vpack.c.b16 %v2498, %v2494
  %v3719 = vpack.c.b16 %v2499, %v2495
  %v3720 = vpack.c.b16 %v2504, %v2500
  %v3721 = vpack.c.b16 %v2505, %v2501
  %v3722 = vpack.c.b16 %v2506, %v2502
  %v3723 = vpack.c.b16 %v2507, %v2503
  %v3724 = vpack.c.b16 %v2512, %v2508
  %v3725 = vpack.c.b16 %v2513, %v2509
  %v3726 = vpack.c.b16 %v2514, %v2510
  %v3727 = vpack.c.b16 %v2515, %v2511
  %v3728 = vpack.c.b16 %v2520, %v2516
  %v3729 = vpack.c.b16 %v2521, %v2517
  %v3730 = vpack.c.b16 %v2522, %v2518
  %v3731 = vpack.c.b16 %v2523, %v2519
  %v3732 = vpack.c.b16 %v2528, %v2524
  %v3733 = vpack.c.b16 %v2529, %v2525
  %v3734 = vpack.c.b16 %v2530, %v2526
  %v3735 = vpack.c.b16 %v2531, %v2527
  %v3736 = vpack.c.b16 %v2536, %v2532
  %v3737 = vpack.c.b16 %v2537, %v2533
  %v3738 = vpack.c.b16 %v2538, %v2534
  %v3739 = vpack.c.b16 %v2539, %v2535
  %v3740 = vpack.c.b16 %v2544, %v2540
  %v3741 = vpack.c.b16 %v2545, %v2541
  %v3742 = vpack.c.b16 %v2546, %v2542
  %v3743 = vpack.c.b16 %v2547, %v2543
  %v3744 = vpack.c.b16 %v2552, %v2548
  %v3745 = vpack.c.b16 %v2553, %v2549
  %v3746 = vpack.c.b16 %v2554, %v2550
  %v3747 = vpack.c.b16 %v2555, %v2551
  %v3748 = vpack.c.b16 %v2560, %v2556
  %v3749 = vpack.c.b16 %v2561, %v2557
  %v3750 = vpack.c.b16 %v2562, %v2558
  %v3751 = vpack.c.b16 %v2563, %v2559
  %v3752 = vpack.c.b16 %v2568, %v2564
  %v3753 = vpack.c.b16 %v2569, %v2565
  %v3754 = vpack.c.b16 %v2570, %v2566
  %v3755 = vpack.c.b16 %v2571, %v2567
  %v3756 = vpack.c.b16 %v2576, %v2572
  %v3757 = vpack.c.b16 %v2577, %v2573
  %v3758 = vpack.c.b16 %v2578, %v2574
  %v3759 = vpack.c.b16 %v2579, %v2575
  %v3760 = vpack.c.b16 %v2584, %v2580
  %v3761 = vpack.c.b16 %v2585, %v2581
  %v3762 = vpack.c.b16 %v2586, %v2582
  %v3763 = vpack.c.b16 %v2587, %v2583
  %v3764 = vpack.c.b16 %v2592, %v2588
  %v3765 = vpack.c.b16 %v2593, %v2589
  %v3766 = vpack.c.b16 %v2594, %v2590
  %v3767 = vpack.c.b16 %v2595, %v2591
  %v3768 = vpack.c.b16 %v2600, %v2596
  %v3769 = vpack.c.b16 %v2601, %v2597
  %v3770 = vpack.c.b16 %v2602, %v2598
  %v3771 = vpack.c.b16 %v2603, %v2599
  %v3772 = vpack.c.b16 %v2608, %v2604
  %v3773 = vpack.c.b16 %v2609, %v2605
  %v3774 = vpack.c.b16 %v2610, %v2606
  %v3775 = vpack.c.b16 %v2611, %v2607
  %v3776 = vpack.c.b16 %v2616, %v2612
  %v3777 = vpack.c.b16 %v2617, %v2613
  %v3778 = vpack.c.b16 %v2618, %v2614
  %v3779 = vpack.c.b16 %v2619, %v2615
  %v3780 = vpack.c.b16 %v2624, %v2620
  %v3781 = vpack.c.b16 %v2625, %v2621
  %v3782 = vpack.c.b16 %v2626, %v2622
  %v3783 = vpack.c.b16 %v2627, %v2623
  %v3784 = vpack.c.b16 %v2632, %v2628
  %v3785 = vpack.c.b16 %v2633, %v2629
  %v3786 = vpack.c.b16 %v2634, %v2630
  %v3787 = vpack.c.b16 %v2635, %v2631
  %v3788 = vpack.c.b16 %v2640, %v2636
  %v3789 = vpack.c.b16 %v2641, %v2637
  %v3790 = vpack.c.b16 %v2642, %v2638
  %v3791 = vpack.c.b16 %v2643, %v2639
  %v3792 = vpack.c.b16 %v2648, %v2644
  %v3793 = vpack.c.b16 %v2649, %v2645
  %v3794 = vpack.c.b16 %v2650, %v2646
  %v3795 = vpack.c.b16 %v2651, %v2647
  %v3796 = vpack.c.b16 %v2656, %v2652
  %v3797 = vpack.c.b16 %v2657, %v2653
  %v3798 = vpack.c.b16 %v2658, %v2654
  %v3799 = vpack.c.b16 %v2659, %v2655
  %v3800 = vpack.c.b16 %v2664, %v2660
  %v3801 = vpack.c.b16 %v2665, %v2661
  %v3802 = vpack.c.b16 %v2666, %v2662
  %v3803 = vpack.c.b16 %v2667, %v2663
  %v3804 = vpack.c.b16 %v2672, %v2668
  %v3805 = vpack.c.b16 %v2673, %v2669
  %v3806 = vpack.c.b16 %v2674, %v2670
  %v3807 = vpack.c.b16 %v2675, %v2671
  %v3808 = vpack.c.b16 %v2680, %v2676
  %v3809 = vpack.c.b16 %v2681, %v2677
  %v3810 = vpack.c.b16 %v2682, %v2678
  %v3811 = vpack.c.b16 %v2683, %v2679
  %v3812 = vpack.c.b16 %v2688, %v2684
  %v3813 = vpack.c.b16 %v2689, %v2685
  %v3814 = vpack.c.b16 %v2690, %v2686
  %v3815 = vpack.c.b16 %v2691, %v2687
  %v3816 = vpack.c.b16 %v2696, %v2692
  %v3817 = vpack.c.b16 %v2697, %v2693
  %v3818 = vpack.c.b16 %v2698, %v2694
  %v3819 = vpack.c.b16 %v2699, %v2695
  %v3820 = vpack.c.b16 %v2704, %v2700
  %v3821 = vpack.c.b16 %v2705, %v2701
  %v3822 = vpack.c.b16 %v2706, %v2702
  %v3823 = vpack.c.b16 %v2707, %v2703
  %v3824 = vpack.c.b16 %v2712, %v2708
  %v3825 = vpack.c.b16 %v2713, %v2709
  %v3826 = vpack.c.b16 %v2714, %v2710
  %v3827 = vpack.c.b16 %v2715, %v2711
  %v3828 = vpack.c.b16 %v2720, %v2716
  %v3829 = vpack.c.b16 %v2721, %v2717
  %v3830 = vpack.c.b16 %v2722, %v2718
  %v3831 = vpack.c.b16 %v2723, %v2719
  %v3832 = vpack.c.b16 %v2728, %v2724
  %v3833 = vpack.c.b16 %v2729, %v2725
  %v3834 = vpack.c.b16 %v2730, %v2726
  %v3835 = vpack.c.b16 %v2731, %v2727
  %v3836 = vpack.c.b16 %v2736, %v2732
  %v3837 = vpack.c.b16 %v2737, %v2733
  %v3838 = vpack.c.b16 %v2738, %v2734
  %v3839 = vpack.c.b16 %v2739, %v2735
  %v3840 = vpack.c.b16 %v2744, %v2740
  %v3841 = vpack.c.b16 %v2745, %v2741
  %v3842 = vpack.c.b16 %v2746, %v2742
  %v3843 = vpack.c.b16 %v2747, %v2743
  %v3844 = vpack.c.b16 %v2752, %v2748
  %v3845 = vpack.c.b16 %v2753, %v2749
  %v3846 = vpack.c.b16 %v2754, %v2750
  %v3847 = vpack.c.b16 %v2755, %v2751
  %v3848 = vpack.c.b16 %v2760, %v2756
  %v3849 = vpack.c.b16 %v2761, %v2757
  %v3850 = vpack.c.b16 %v2762, %v2758
  %v3851 = vpack.c.b16 %v2763, %v2759
  %v3852 = vpack.c.b16 %v2768, %v2764
  %v3853 = vpack.c.b16 %v2769, %v2765
  %v3854 = vpack.c.b16 %v2770, %v2766
  %v3855 = vpack.c.b16 %v2771, %v2767
  %v3856 = vpack.c.b16 %v2776, %v2772
  %v3857 = vpack.c.b16 %v2777, %v2773
  %v3858 = vpack.c.b16 %v2778, %v2774
  %v3859 = vpack.c.b16 %v2779, %v2775
  %v3860 = vpack.c.b16 %v2784, %v2780
  %v3861 = vpack.c.b16 %v2785, %v2781
  %v3862 = vpack.c.b16 %v2786, %v2782
  %v3863 = vpack.c.b16 %v2787, %v2783
  %v3864 = vpack.c.b16 %v2792, %v2788
  %v3865 = vpack.c.b16 %v2793, %v2789
  %v3866 = vpack.c.b16 %v2794, %v2790
  %v3867 = vpack.c.b16 %v2795, %v2791
  %v3868 = vpack.c.b16 %v2800, %v2796
  %v3869 = vpack.c.b16 %v2801, %v2797
  %v3870 = vpack.c.b16 %v2802, %v2798
  %v3871 = vpack.c.b16 %v2803, %v2799
  %v3872 = vpack.c.b16 %v2808, %v2804
  %v3873 = vpack.c.b16 %v2809, %v2805
  %v3874 = vpack.c.b16 %v2810, %v2806
  %v3875 = vpack.c.b16 %v2811, %v2807
  %v3876 = vpack.c.b16 %v2816, %v2812
  %v3877 = vpack.c.b16 %v2817, %v2813
  %v3878 = vpack.c.b16 %v2818, %v2814
  %v3879 = vpack.c.b16 %v2819, %v2815
  %v3880 = vpack.c.b16 %v2824, %v2820
  %v3881 = vpack.c.b16 %v2825, %v2821
  %v3882 = vpack.c.b16 %v2826, %v2822
  %v3883 = vpack.c.b16 %v2827, %v2823
  %v3884 = vpack.c.b16 %v2832, %v2828
  %v3885 = vpack.c.b16 %v2833, %v2829
  %v3886 = vpack.c.b16 %v2834, %v2830
  %v3887 = vpack.c.b16 %v2835, %v2831
  %v3888 = vpack.c.b16 %v2840, %v2836
  %v3889 = vpack.c.b16 %v2841, %v2837
  %v3890 = vpack.c.b16 %v2842, %v2838
  %v3891 = vpack.c.b16 %v2843, %v2839
  %v3892 = vpack.c.b16 %v2848, %v2844
  %v3893 = vpack.c.b16 %v2849, %v2845
  %v3894 = vpack.c.b16 %v2850, %v2846
  %v3895 = vpack.c.b16 %v2851, %v2847
  %v3896 = vpack.c.b16 %v2856, %v2852
  %v3897 = vpack.c.b16 %v2857, %v2853
  %v3898 = vpack.c.b16 %v2858, %v2854
  %v3899 = vpack.c.b16 %v2859, %v2855
  %v3900 = vpack.c.b16 %v2864, %v2860
  %v3901 = vpack.c.b16 %v2865, %v2861
  %v3902 = vpack.c.b16 %v2866, %v2862
  %v3903 = vpack.c.b16 %v2867, %v2863
  %v3904 = vpack.c.b16 %v2872, %v2868
  %v3905 = vpack.c.b16 %v2873, %v2869
  %v3906 = vpack.c.b16 %v2874, %v2870
  %v3907 = vpack.c.b16 %v2875, %v2871
  %v3908 = vpack.c.b16 %v2880, %v2876
  %v3909 = vpack.c.b16 %v2881, %v2877
  %v3910 = vpack.c.b16 %v2882, %v2878
  %v3911 = vpack.c.b16 %v2883, %v2879
  %v3912 = vpack.c.b16 %v2888, %v2884
  %v3913 = vpack.c.b16 %v2889, %v2885
  %v3914 = vpack.c.b16 %v2890, %v2886
  %v3915 = vpack.c.b16 %v2891, %v2887
  %v3916 = vpack.c.b16 %v2896, %v2892
  %v3917 = vpack.c.b16 %v2897, %v2893
  %v3918 = vpack.c.b16 %v2898, %v2894
  %v3919 = vpack.c.b16 %v2899, %v2895
  %v3920 = vpack.c.b16 %v2904, %v2900
  %v3921 = vpack.c.b16 %v2905, %v2901
  %v3922 = vpack.c.b16 %v2906, %v2902
  %v3923 = vpack.c.b16 %v2907, %v2903
  %v3924 = vpack.c.b16 %v2912, %v2908
  %v3925 = vpack.c.b16 %v2913, %v2909
  %v3926 = vpack.c.b16 %v2914, %v2910
  %v3927 = vpack.c.b16 %v2915, %v2911
  %v3928 = vpack.c.b16 %v2920, %v2916
  %v3929 = vpack.c.b16 %v2921, %v2917
  %v3930 = vpack.c.b16 %v2922, %v2918
  %v3931 = vpack.c.b16 %v2923, %v2919
  %v3932 = vpack.c.b16 %v2928, %v2924
  %v3933 = vpack.c.b16 %v2929, %v2925
  %v3934 = vpack.c.b16 %v2930, %v2926
  %v3935 = vpack.c.b16 %v2931, %v2927
  %v3936 = vpack.c.b16 %v2936, %v2932
  %v3937 = vpack.c.b16 %v2937, %v2933
  %v3938 = vpack.c.b16 %v2938, %v2934
  %v3939 = vpack.c.b16 %v2939, %v2935
  %v3940 = vpack.c.b16 %v2944, %v2940
  %v3941 = vpack.c.b16 %v2945, %v2941
  %v3942 = vpack.c.b16 %v2946, %v2942
  %v3943 = vpack.c.b16 %v2947, %v2943
  %v3944 = vpack.c.b16 %v2952, %v2948
  %v3945 = vpack.c.b16 %v2953, %v2949
  %v3946 = vpack.c.b16 %v2954, %v2950
  %v3947 = vpack.c.b16 %v2955, %v2951
  %v3948 = vpack.c.b16 %v2960, %v2956
  %v3949 = vpack.c.b16 %v2961, %v2957
  %v3950 = vpack.c.b16 %v2962, %v2958
  %v3951 = vpack.c.b16 %v2963, %v2959
  %v3952 = vpack.c.b16 %v2968, %v2964
  %v3953 = vpack.c.b16 %v2969, %v2965
  %v3954 = vpack.c.b16 %v2970, %v2966
  %v3955 = vpack.c.b16 %v2971, %v2967
  %v3956 = vpack.c.b16 %v2976, %v2972
  %v3957 = vpack.c.b16 %v2977, %v2973
  %v3958 = vpack.c.b16 %v2978, %v2974
  %v3959 = vpack.c.b16 %v2979, %v2975
  %v3960 = vpack.c.b16 %v2984, %v2980
  %v3961 = vpack.c.b16 %v2985, %v2981
  %v3962 = vpack.c.b16 %v2986, %v2982
  %v3963 = vpack.c.b16 %v2987, %v2983
  %v3964 = vpack.c.b16 %v2992, %v2988
  %v3965 = vpack.c.b16 %v2993, %v2989
  %v3966 = vpack.c.b16 %v2994, %v2990
  %v3967 = vpack.c.b16 %v2995, %v2991
  %v3968 = vpack.c.b16 %v3000, %v2996
  %v3969 = vpack.c.b16 %v3001, %v2997
  %v3970 = vpack.c.b16 %v3002, %v2998
  %v3971 = vpack.c.b16 %v3003, %v2999
  %v3972 = vpack.c.b16 %v3008, %v3004
  %v3973 = vpack.c.b16 %v3009, %v3005
  %v3974 = vpack.c.b16 %v3010, %v3006
  %v3975 = vpack.c.b16 %v3011, %v3007
  %v3976 = vpack.c.b16 %v3016, %v3012
  %v3977 = vpack.c.b16 %v3017, %v3013
  %v3978 = vpack.c.b16 %v3018, %v3014
  %v3979 = vpack.c.b16 %v3019, %v3015
  %v3980 = vpack.c.b16 %v3024, %v3020
  %v3981 = vpack.c.b16 %v3025, %v3021
  %v3982 = vpack.c.b16 %v3026, %v3022
  %v3983 = vpack.c.b16 %v3027, %v3023
  %v3984 = vpack.c.b16 %v3032, %v3028
  %v3985 = vpack.c.b16 %v3033, %v3029
  %v3986 = vpack.c.b16 %v3034, %v3030
  %v3987 = vpack.c.b16 %v3035, %v3031
  %v3988 = vpack.c.b16 %v3040, %v3036
  %v3989 = vpack.c.b16 %v3041, %v3037
  %v3990 = vpack.c.b16 %v3042, %v3038
  %v3991 = vpack.c.b16 %v3043, %v3039
  %v3992 = vpack.c.b16 %v3048, %v3044
  %v3993 = vpack.c.b16 %v3049, %v3045
  %v3994 = vpack.c.b16 %v3050, %v3046
  %v3995 = vpack.c.b16 %v3051, %v3047
  %v3996 = vpack.c.b16 %v3056, %v3052
  %v3997 = vpack.c.b16 %v3057, %v3053
  %v3998 = vpack.c.b16 %v3058, %v3054
  %v3999 = vpack.c.b16 %v3059, %v3055
  %v4000 = vpack.c.b16 %v3064, %v3060
  %v4001 = vpack.c.b16 %v3065, %v3061
  %v4002 = vpack.c.b16 %v3066, %v3062
  %v4003 = vpack.c.b16 %v3067, %v3063
  %v4004 = vpack.c.b16 %v3072, %v3068
  %v4005 = vpack.c.b16 %v3073, %v3069
  %v4006 = vpack.c.b16 %v3074, %v3070
  %v4007 = vpack.c.b16 %v3075, %v3071
  %v4008 = vpack.c.b16 %v3080, %v3076
  %v4009 = vpack.c.b16 %v3081, %v3077
  %v4010 = vpack.c.b16 %v3082, %v3078
  %v4011 = vpack.c.b16 %v3083, %v3079
  %v4012 = vpack.c.b16 %v3088, %v3084
  %v4013 = vpack.c.b16 %v3089, %v3085
  %v4014 = vpack.c.b16 %v3090, %v3086
  %v4015 = vpack.c.b16 %v3091, %v3087
  %v4016 = vpack.c.b16 %v3096, %v3092
  %v4017 = vpack.c.b16 %v3097, %v3093
  %v4018 = vpack.c.b16 %v3098, %v3094
  %v4019 = vpack.c.b16 %v3099, %v3095
  %v4020 = vpack.c.b16 %v3104, %v3100
  %v4021 = vpack.c.b16 %v3105, %v3101
  %v4022 = vpack.c.b16 %v3106, %v3102
  %v4023 = vpack.c.b16 %v3107, %v3103
  %v4024 = vpack.c.b16 %v3112, %v3108
  %v4025 = vpack.c.b16 %v3113, %v3109
  %v4026 = vpack.c.b16 %v3114, %v3110
  %v4027 = vpack.c.b16 %v3115, %v3111
  %v4028 = vpack.c.b16 %v3120, %v3116
  %v4029 = vpack.c.b16 %v3121, %v3117
  %v4030 = vpack.c.b16 %v3122, %v3118
  %v4031 = vpack.c.b16 %v3123, %v3119
  %v4032 = vpack.c.b16 %v3128, %v3124
  %v4033 = vpack.c.b16 %v3129, %v3125
  %v4034 = vpack.c.b16 %v3130, %v3126
  %v4035 = vpack.c.b16 %v3131, %v3127
  %v4036 = vpack.c.b16 %v3136, %v3132
  %v4037 = vpack.c.b16 %v3137, %v3133
  %v4038 = vpack.c.b16 %v3138, %v3134
  %v4039 = vpack.c.b16 %v3139, %v3135
  %v4040 = vpack.c.b16 %v3144, %v3140
  %v4041 = vpack.c.b16 %v3145, %v3141
  %v4042 = vpack.c.b16 %v3146, %v3142
  %v4043 = vpack.c.b16 %v3147, %v3143
  %v4044 = vpack.c.b16 %v3152, %v3148
  %v4045 = vpack.c.b16 %v3153, %v3149
  %v4046 = vpack.c.b16 %v3154, %v3150
  %v4047 = vpack.c.b16 %v3155, %v3151
  %v4048 = vpack.c.b16 %v3160, %v3156
  %v4049 = vpack.c.b16 %v3161, %v3157
  %v4050 = vpack.c.b16 %v3162, %v3158
  %v4051 = vpack.c.b16 %v3163, %v3159
  %v4052 = vpack.c.b16 %v3168, %v3164
  %v4053 = vpack.c.b16 %v3169, %v3165
  %v4054 = vpack.c.b16 %v3170, %v3166
  %v4055 = vpack.c.b16 %v3171, %v3167
  %v4056 = vpack.c.b16 %v3176, %v3172
  %v4057 = vpack.c.b16 %v3177, %v3173
  %v4058 = vpack.c.b16 %v3178, %v3174
  %v4059 = vpack.c.b16 %v3179, %v3175
  %v4060 = vpack.c.b16 %v3184, %v3180
  %v4061 = vpack.c.b16 %v3185, %v3181
  %v4062 = vpack.c.b16 %v3186, %v3182
  %v4063 = vpack.c.b16 %v3187, %v3183
  %v4064 = vpack.c.b16 %v3192, %v3188
  %v4065 = vpack.c.b16 %v3193, %v3189
  %v4066 = vpack.c.b16 %v3194, %v3190
  %v4067 = vpack.c.b16 %v3195, %v3191
  %v4068 = vpack.c.b16 %v3200, %v3196
  %v4069 = vpack.c.b16 %v3201, %v3197
  %v4070 = vpack.c.b16 %v3202, %v3198
  %v4071 = vpack.c.b16 %v3203, %v3199
  %v4072 = vpack.c.b16 %v3208, %v3204
  %v4073 = vpack.c.b16 %v3209, %v3205
  %v4074 = vpack.c.b16 %v3210, %v3206
  %v4075 = vpack.c.b16 %v3211, %v3207
  %v4076 = vpack.c.b16 %v3216, %v3212
  %v4077 = vpack.c.b16 %v3217, %v3213
  %v4078 = vpack.c.b16 %v3218, %v3214
  %v4079 = vpack.c.b16 %v3219, %v3215
  %v4080 = vpack.c.b16 %v3224, %v3220
  %v4081 = vpack.c.b16 %v3225, %v3221
  %v4082 = vpack.c.b16 %v3226, %v3222
  %v4083 = vpack.c.b16 %v3227, %v3223
  %v4084 = vpack.c.b16 %v3232, %v3228
  %v4085 = vpack.c.b16 %v3233, %v3229
  %v4086 = vpack.c.b16 %v3234, %v3230
  %v4087 = vpack.c.b16 %v3235, %v3231
  %v4088 = vpack.c.b16 %v3240, %v3236
  %v4089 = vpack.c.b16 %v3241, %v3237
  %v4090 = vpack.c.b16 %v3242, %v3238
  %v4091 = vpack.c.b16 %v3243, %v3239
  %v4092 = vpack.c.b16 %v3248, %v3244
  %v4093 = vpack.c.b16 %v3249, %v3245
  %v4094 = vpack.c.b16 %v3250, %v3246
  %v4095 = vpack.c.b16 %v3251, %v3247
  %v4096 = vpack.c.b16 %v3256, %v3252
  %v4097 = vpack.c.b16 %v3257, %v3253
  %v4098 = vpack.c.b16 %v3258, %v3254
  %v4099 = vpack.c.b16 %v3259, %v3255
  %v4100 = vpack.c.b16 %v3264, %v3260
  %v4101 = vpack.c.b16 %v3265, %v3261
  %v4102 = vpack.c.b16 %v3266, %v3262
  %v4103 = vpack.c.b16 %v3267, %v3263
  %v4104 = vpack.c.b16 %v3272, %v3268
  %v4105 = vpack.c.b16 %v3273, %v3269
  %v4106 = vpack.c.b16 %v3274, %v3270
  %v4107 = vpack.c.b16 %v3275, %v3271
  %v4108 = vpack.c.b16 %v3280, %v3276
  %v4109 = vpack.c.b16 %v3281, %v3277
  %v4110 = vpack.c.b16 %v3282, %v3278
  %v4111 = vpack.c.b16 %v3283, %v3279
  %v4112 = vpack.c.b16 %v3288, %v3284
  %v4113 = vpack.c.b16 %v3289, %v3285
  %v4114 = vpack.c.b16 %v3290, %v3286
  %v4115 = vpack.c.b16 %v3291, %v3287
  %v4116 = vpack.c.b16 %v3296, %v3292
  %v4117 = vpack.c.b16 %v3297, %v3293
  %v4118 = vpack.c.b16 %v3298, %v3294
  %v4119 = vpack.c.b16 %v3299, %v3295
  %v4120 = vpack.c.b16 %v3304, %v3300
  %v4121 = vpack.c.b16 %v3305, %v3301
  %v4122 = vpack.c.b16 %v3306, %v3302
  %v4123 = vpack.c.b16 %v3307, %v3303
  %v4124 = vpack.c.b16 %v3312, %v3308
  %v4125 = vpack.c.b16 %v3313, %v3309
  %v4126 = vpack.c.b16 %v3314, %v3310
  %v4127 = vpack.c.b16 %v3315, %v3311
  %v4128 = vpack.c.b16 %v3320, %v3316
  %v4129 = vpack.c.b16 %v3321, %v3317
  %v4130 = vpack.c.b16 %v3322, %v3318
  %v4131 = vpack.c.b16 %v3323, %v3319
  %v4132 = vpack.c.b16 %v3328, %v3324
  %v4133 = vpack.c.b16 %v3329, %v3325
  %v4134 = vpack.c.b16 %v3330, %v3326
  %v4135 = vpack.c.b16 %v3331, %v3327
  %v4136 = vpack.c.b16 %v3336, %v3332
  %v4137 = vpack.c.b16 %v3337, %v3333
  %v4138 = vpack.c.b16 %v3338, %v3334
  %v4139 = vpack.c.b16 %v3339, %v3335
  %v4140 = vpack.c.b16 %v3344, %v3340
  %v4141 = vpack.c.b16 %v3345, %v3341
  %v4142 = vpack.c.b16 %v3346, %v3342
  %v4143 = vpack.c.b16 %v3347, %v3343
  %v4144 = vpack.c.b16 %v3352, %v3348
  %v4145 = vpack.c.b16 %v3353, %v3349
  %v4146 = vpack.c.b16 %v3354, %v3350
  %v4147 = vpack.c.b16 %v3355, %v3351
  %v4148 = vpack.c.b16 %v3360, %v3356
  %v4149 = vpack.c.b16 %v3361, %v3357
  %v4150 = vpack.c.b16 %v3362, %v3358
  %v4151 = vpack.c.b16 %v3363, %v3359
  %v4152 = vpack.c.b16 %v3368, %v3364
  %v4153 = vpack.c.b16 %v3369, %v3365
  %v4154 = vpack.c.b16 %v3370, %v3366
  %v4155 = vpack.c.b16 %v3371, %v3367
  %vm4940 = vcmask 523264
  %v4942 = vsel %vm4940, %v995, 0
  %4944 = vmatprep.subr.bf16.mxu0 %v3373
  %4945 = vmatpush1.bf16.msra.mxu0 %v3372
  %4946 = vmatprep.subr.bf16.mxu0 %v3377
  %4947 = vmatpush1.bf16.msra.mxu0 %v3376
  %4948 = vmatprep.subr.bf16.mxu0 %v3381
  %4949 = vmatpush1.bf16.msra.mxu0 %v3380
  %4950 = vmatprep.subr.bf16.mxu0 %v3385
  %4951 = vmatpush1.bf16.msra.mxu0 %v3384
  %4952 = vmatprep.subr.bf16.mxu0 %v3389
  %4953 = vmatpush1.bf16.msra.mxu0 %v3388
  %4954 = vmatprep.subr.bf16.mxu0 %v3393
  %4955 = vmatpush1.bf16.msra.mxu0 %v3392
  %4956 = vmatprep.subr.bf16.mxu0 %v3397
  %4957 = vmatpush1.bf16.msra.mxu0 %v3396
  %4958 = vmatprep.subr.bf16.mxu0 %v3401
  %4959 = vmatpush1.bf16.msra.mxu0 %v3400
  %4960 = vmatprep.subr.bf16.mxu0 %v3405
  %4961 = vmatpush1.bf16.msra.mxu0 %v3404
  %4962 = vmatprep.subr.bf16.mxu0 %v3409
  %4963 = vmatpush1.bf16.msra.mxu0 %v3408
  %4964 = vmatprep.subr.bf16.mxu0 %v3413
  %4965 = vmatpush1.bf16.msra.mxu0 %v3412
  %4966 = vmatprep.subr.bf16.mxu0 %v3417
  %4967 = vmatpush1.bf16.msra.mxu0 %v3416
  %4968 = vmatprep.subr.bf16.mxu0 %v3421
  %4969 = vmatpush1.bf16.msra.mxu0 %v3420
  %4970 = vmatprep.subr.bf16.mxu0 %v3425
  %4971 = vmatpush1.bf16.msra.mxu0 %v3424
  %4972 = vmatprep.subr.bf16.mxu0 %v3429
  %4973 = vmatpush1.bf16.msra.mxu0 %v3428
  %4974 = vmatprep.subr.bf16.mxu0 %v3433
  %4975 = vmatpush1.bf16.msra.mxu0 %v3432
  %4976 = vmatprep.mubr.bf16.mxu0 %v872
  %4977 = vmatmul.mubr.bf16.gmra.mrb[0].mxu0 %v858
  %v4978 = vpop.f32.mrb[0].mxu0
  %v4979 = vadd.f32 %v814, %v4978
  %v4980 = vpop.f32.mrb[0].mxu0
  %v4981 = vadd.f32 %v818, %v4980
  %v4982 = vpop.f32.mrb[0].mxu0
  %v4983 = vpop.f32.mrb[0].mxu0
  %4984 = vdwg.mxu0
  %4985 = vmatprep.subr.bf16.mxu0 %v3437
  %4986 = vmatpush1.bf16.msra.mxu0 %v3436
  %4987 = vmatprep.subr.bf16.mxu0 %v3441
  %4988 = vmatpush1.bf16.msra.mxu0 %v3440
  %4989 = vmatprep.subr.bf16.mxu0 %v3445
  %4990 = vmatpush1.bf16.msra.mxu0 %v3444
  %4991 = vmatprep.subr.bf16.mxu0 %v3449
  %4992 = vmatpush1.bf16.msra.mxu0 %v3448
  %4993 = vmatprep.subr.bf16.mxu0 %v3453
  %4994 = vmatpush1.bf16.msra.mxu0 %v3452
  %4995 = vmatprep.subr.bf16.mxu0 %v3457
  %4996 = vmatpush1.bf16.msra.mxu0 %v3456
  %4997 = vmatprep.subr.bf16.mxu0 %v3461
  %4998 = vmatpush1.bf16.msra.mxu0 %v3460
  %4999 = vmatprep.subr.bf16.mxu0 %v3465
  %5000 = vmatpush1.bf16.msra.mxu0 %v3464
  %5001 = vmatprep.subr.bf16.mxu0 %v3469
  %5002 = vmatpush1.bf16.msra.mxu0 %v3468
  %5003 = vmatprep.subr.bf16.mxu0 %v3473
  %5004 = vmatpush1.bf16.msra.mxu0 %v3472
  %5005 = vmatprep.subr.bf16.mxu0 %v3477
  %5006 = vmatpush1.bf16.msra.mxu0 %v3476
  %5007 = vmatprep.subr.bf16.mxu0 %v3481
  %5008 = vmatpush1.bf16.msra.mxu0 %v3480
  %5009 = vmatprep.subr.bf16.mxu0 %v3485
  %5010 = vmatpush1.bf16.msra.mxu0 %v3484
  %5011 = vmatprep.subr.bf16.mxu0 %v3489
  %5012 = vmatpush1.bf16.msra.mxu0 %v3488
  %5013 = vmatprep.subr.bf16.mxu0 %v3493
  %5014 = vmatpush1.bf16.msra.mxu0 %v3492
  %5015 = vmatprep.subr.bf16.mxu0 %v3497
  %5016 = vmatpush1.bf16.msra.mxu0 %v3496
  %5017 = vmatprep.mubr.bf16.mxu0 %v882
  %5018 = vmatmul.mubr.bf16.gmra.mrb[0].mxu0 %v880
  %v5019 = vpop.f32.mrb[0].mxu0
  %v5020 = vadd.f32 %v4979, %v5019
  %v5021 = vpop.f32.mrb[0].mxu0
  %v5022 = vadd.f32 %v4981, %v5021
  %v5023 = vpop.f32.mrb[0].mxu0
  %v5024 = vpop.f32.mrb[0].mxu0
  %5025 = vdwg.mxu0
  %5026 = vmatprep.subr.bf16.mxu0 %v3501
  %5027 = vmatpush1.bf16.msra.mxu0 %v3500
  %5028 = vmatprep.subr.bf16.mxu0 %v3505
  %5029 = vmatpush1.bf16.msra.mxu0 %v3504
  %5030 = vmatprep.subr.bf16.mxu0 %v3509
  %5031 = vmatpush1.bf16.msra.mxu0 %v3508
  %5032 = vmatprep.subr.bf16.mxu0 %v3513
  %5033 = vmatpush1.bf16.msra.mxu0 %v3512
  %5034 = vmatprep.subr.bf16.mxu0 %v3517
  %5035 = vmatpush1.bf16.msra.mxu0 %v3516
  %5036 = vmatprep.subr.bf16.mxu0 %v3521
  %5037 = vmatpush1.bf16.msra.mxu0 %v3520
  %5038 = vmatprep.subr.bf16.mxu0 %v3525
  %5039 = vmatpush1.bf16.msra.mxu0 %v3524
  %5040 = vmatprep.subr.bf16.mxu0 %v3529
  %5041 = vmatpush1.bf16.msra.mxu0 %v3528
  %5042 = vmatprep.subr.bf16.mxu0 %v3533
  %5043 = vmatpush1.bf16.msra.mxu0 %v3532
  %5044 = vmatprep.subr.bf16.mxu0 %v3537
  %5045 = vmatpush1.bf16.msra.mxu0 %v3536
  %5046 = vmatprep.subr.bf16.mxu0 %v3541
  %5047 = vmatpush1.bf16.msra.mxu0 %v3540
  %5048 = vmatprep.subr.bf16.mxu0 %v3545
  %5049 = vmatpush1.bf16.msra.mxu0 %v3544
  %5050 = vmatprep.subr.bf16.mxu0 %v3549
  %5051 = vmatpush1.bf16.msra.mxu0 %v3548
  %5052 = vmatprep.subr.bf16.mxu0 %v3553
  %5053 = vmatpush1.bf16.msra.mxu0 %v3552
  %5054 = vmatprep.subr.bf16.mxu0 %v3557
  %5055 = vmatpush1.bf16.msra.mxu0 %v3556
  %5056 = vmatprep.subr.bf16.mxu0 %v3561
  %5057 = vmatpush1.bf16.msra.mxu0 %v3560
  %5058 = vmatprep.mubr.bf16.mxu0 %v879
  %5059 = vmatmul.mubr.bf16.gmra.mrb[0].mxu0 %v865
  %v5060 = vpop.f32.mrb[0].mxu0
  %v5061 = vadd.f32 %v5020, %v5060
  %v5062 = vpop.f32.mrb[0].mxu0
  %v5063 = vadd.f32 %v5022, %v5062
  %v5064 = vpop.f32.mrb[0].mxu0
  %v5065 = vpop.f32.mrb[0].mxu0
  %5066 = vdwg.mxu0
  %5067 = vmatprep.subr.bf16.mxu0 %v3565
  %5068 = vmatpush1.bf16.msra.mxu0 %v3564
  %5069 = vmatprep.subr.bf16.mxu0 %v3569
  %5070 = vmatpush1.bf16.msra.mxu0 %v3568
  %5071 = vmatprep.subr.bf16.mxu0 %v3573
  %5072 = vmatpush1.bf16.msra.mxu0 %v3572
  %5073 = vmatprep.subr.bf16.mxu0 %v3577
  %5074 = vmatpush1.bf16.msra.mxu0 %v3576
  %5075 = vmatprep.subr.bf16.mxu0 %v3581
  %5076 = vmatpush1.bf16.msra.mxu0 %v3580
  %5077 = vmatprep.subr.bf16.mxu0 %v3585
  %5078 = vmatpush1.bf16.msra.mxu0 %v3584
  %5079 = vmatprep.subr.bf16.mxu0 %v3589
  %5080 = vmatpush1.bf16.msra.mxu0 %v3588
  %5081 = vmatprep.subr.bf16.mxu0 %v3593
  %5082 = vmatpush1.bf16.msra.mxu0 %v3592
  %5083 = vmatprep.subr.bf16.mxu0 %v3597
  %5084 = vmatpush1.bf16.msra.mxu0 %v3596
  %5085 = vmatprep.subr.bf16.mxu0 %v3601
  %5086 = vmatpush1.bf16.msra.mxu0 %v3600
  %5087 = vmatprep.subr.bf16.mxu0 %v3605
  %5088 = vmatpush1.bf16.msra.mxu0 %v3604
  %5089 = vmatprep.subr.bf16.mxu0 %v3609
  %5090 = vmatpush1.bf16.msra.mxu0 %v3608
  %5091 = vmatprep.subr.bf16.mxu0 %v3613
  %5092 = vmatpush1.bf16.msra.mxu0 %v3612
  %5093 = vmatprep.subr.bf16.mxu0 %v3617
  %5094 = vmatpush1.bf16.msra.mxu0 %v3616
  %5095 = vmatprep.subr.bf16.mxu0 %v3621
  %5096 = vmatpush1.bf16.msra.mxu0 %v3620
  %5097 = vmatprep.subr.bf16.mxu0 %v3625
  %5098 = vmatpush1.bf16.msra.mxu0 %v3624
  %5099 = vmatprep.mubr.bf16.mxu0 %v883
  %5100 = vmatmul.mubr.bf16.gmra.mrb[0].mxu0 %v881
  %v5101 = vpop.f32.mrb[0].mxu0
  %v5102 = vadd.f32 %v5061, %v5101
  %v5103 = vpop.f32.mrb[0].mxu0
  %v5104 = vadd.f32 %v5063, %v5103
  %v5105 = vpop.f32.mrb[0].mxu0
  %v5106 = vpop.f32.mrb[0].mxu0
  %5107 = vdwg.mxu0
  %5108 = vmatprep.subr.bf16.mxu0 %v3629
  %5109 = vmatpush1.bf16.msra.mxu0 %v3628
  %5110 = vmatprep.subr.bf16.mxu0 %v3633
  %5111 = vmatpush1.bf16.msra.mxu0 %v3632
  %5112 = vmatprep.subr.bf16.mxu0 %v3637
  %5113 = vmatpush1.bf16.msra.mxu0 %v3636
  %5114 = vmatprep.subr.bf16.mxu0 %v3641
  %5115 = vmatpush1.bf16.msra.mxu0 %v3640
  %5116 = vmatprep.subr.bf16.mxu0 %v3645
  %5117 = vmatpush1.bf16.msra.mxu0 %v3644
  %5118 = vmatprep.subr.bf16.mxu0 %v3649
  %5119 = vmatpush1.bf16.msra.mxu0 %v3648
  %5120 = vmatprep.subr.bf16.mxu0 %v3653
  %5121 = vmatpush1.bf16.msra.mxu0 %v3652
  %5122 = vmatprep.subr.bf16.mxu0 %v3657
  %5123 = vmatpush1.bf16.msra.mxu0 %v3656
  %5124 = vmatprep.subr.bf16.mxu0 %v3661
  %5125 = vmatpush1.bf16.msra.mxu0 %v3660
  %5126 = vmatprep.subr.bf16.mxu0 %v3665
  %5127 = vmatpush1.bf16.msra.mxu0 %v3664
  %5128 = vmatprep.subr.bf16.mxu0 %v3669
  %5129 = vmatpush1.bf16.msra.mxu0 %v3668
  %5130 = vmatprep.subr.bf16.mxu0 %v3673
  %5131 = vmatpush1.bf16.msra.mxu0 %v3672
  %5132 = vmatprep.subr.bf16.mxu0 %v3677
  %5133 = vmatpush1.bf16.msra.mxu0 %v3676
  %5134 = vmatprep.subr.bf16.mxu0 %v3681
  %5135 = vmatpush1.bf16.msra.mxu0 %v3680
  %5136 = vmatprep.subr.bf16.mxu0 %v3685
  %5137 = vmatpush1.bf16.msra.mxu0 %v3684
  %5138 = vmatprep.subr.bf16.mxu0 %v3689
  %5139 = vmatpush1.bf16.msra.mxu0 %v3688
  %5140 = vmatprep.mubr.bf16.mxu0 %v921
  %5141 = vmatmul.mubr.bf16.gmra.mrb[0].mxu0 %v907
  %v5142 = vpop.f32.mrb[0].mxu0
  %v5143 = vadd.f32 %v5102, %v5142
  %v5144 = vpop.f32.mrb[0].mxu0
  %v5145 = vadd.f32 %v5104, %v5144
  %v5146 = vpop.f32.mrb[0].mxu0
  %v5147 = vpop.f32.mrb[0].mxu0
  %5148 = vdwg.mxu0
  %5149 = vmatprep.subr.bf16.mxu0 %v3693
  %5150 = vmatpush1.bf16.msra.mxu0 %v3692
  %5151 = vmatprep.subr.bf16.mxu0 %v3697
  %5152 = vmatpush1.bf16.msra.mxu0 %v3696
  %5153 = vmatprep.subr.bf16.mxu0 %v3701
  %5154 = vmatpush1.bf16.msra.mxu0 %v3700
  %5155 = vmatprep.subr.bf16.mxu0 %v3705
  %5156 = vmatpush1.bf16.msra.mxu0 %v3704
  %5157 = vmatprep.subr.bf16.mxu0 %v3709
  %5158 = vmatpush1.bf16.msra.mxu0 %v3708
  %5159 = vmatprep.subr.bf16.mxu0 %v3713
  %5160 = vmatpush1.bf16.msra.mxu0 %v3712
  %5161 = vmatprep.subr.bf16.mxu0 %v3717
  %5162 = vmatpush1.bf16.msra.mxu0 %v3716
  %5163 = vmatprep.subr.bf16.mxu0 %v3721
  %5164 = vmatpush1.bf16.msra.mxu0 %v3720
  %5165 = vmatprep.subr.bf16.mxu0 %v3725
  %5166 = vmatpush1.bf16.msra.mxu0 %v3724
  %5167 = vmatprep.subr.bf16.mxu0 %v3729
  %5168 = vmatpush1.bf16.msra.mxu0 %v3728
  %5169 = vmatprep.subr.bf16.mxu0 %v3733
  %5170 = vmatpush1.bf16.msra.mxu0 %v3732
  %5171 = vmatprep.subr.bf16.mxu0 %v3737
  %5172 = vmatpush1.bf16.msra.mxu0 %v3736
  %5173 = vmatprep.subr.bf16.mxu0 %v3741
  %5174 = vmatpush1.bf16.msra.mxu0 %v3740
  %5175 = vmatprep.subr.bf16.mxu0 %v3745
  %5176 = vmatpush1.bf16.msra.mxu0 %v3744
  %5177 = vmatprep.subr.bf16.mxu0 %v3749
  %5178 = vmatpush1.bf16.msra.mxu0 %v3748
  %5179 = vmatprep.subr.bf16.mxu0 %v3753
  %5180 = vmatpush1.bf16.msra.mxu0 %v3752
  %5181 = vmatprep.mubr.bf16.mxu0 %v931
  %5182 = vmatmul.mubr.bf16.gmra.mrb[0].mxu0 %v929
  %v5183 = vpop.f32.mrb[0].mxu0
  %v5184 = vadd.f32 %v5143, %v5183
  %v5185 = vpop.f32.mrb[0].mxu0
  %v5186 = vadd.f32 %v5145, %v5185
  %v5187 = vpop.f32.mrb[0].mxu0
  %v5188 = vpop.f32.mrb[0].mxu0
  %5189 = vdwg.mxu0
  %5190 = vmatprep.subr.bf16.mxu0 %v3757
  %5191 = vmatpush1.bf16.msra.mxu0 %v3756
  %5192 = vmatprep.subr.bf16.mxu0 %v3761
  %5193 = vmatpush1.bf16.msra.mxu0 %v3760
  %5194 = vmatprep.subr.bf16.mxu0 %v3765
  %5195 = vmatpush1.bf16.msra.mxu0 %v3764
  %5196 = vmatprep.subr.bf16.mxu0 %v3769
  %5197 = vmatpush1.bf16.msra.mxu0 %v3768
  %5198 = vmatprep.subr.bf16.mxu0 %v3773
  %5199 = vmatpush1.bf16.msra.mxu0 %v3772
  %5200 = vmatprep.subr.bf16.mxu0 %v3777
  %5201 = vmatpush1.bf16.msra.mxu0 %v3776
  %5202 = vmatprep.subr.bf16.mxu0 %v3781
  %5203 = vmatpush1.bf16.msra.mxu0 %v3780
  %5204 = vmatprep.subr.bf16.mxu0 %v3785
  %5205 = vmatpush1.bf16.msra.mxu0 %v3784
  %5206 = vmatprep.subr.bf16.mxu0 %v3789
  %5207 = vmatpush1.bf16.msra.mxu0 %v3788
  %5208 = vmatprep.subr.bf16.mxu0 %v3793
  %5209 = vmatpush1.bf16.msra.mxu0 %v3792
  %5210 = vmatprep.subr.bf16.mxu0 %v3797
  %5211 = vmatpush1.bf16.msra.mxu0 %v3796
  %5212 = vmatprep.subr.bf16.mxu0 %v3801
  %5213 = vmatpush1.bf16.msra.mxu0 %v3800
  %5214 = vmatprep.subr.bf16.mxu0 %v3805
  %5215 = vmatpush1.bf16.msra.mxu0 %v3804
  %5216 = vmatprep.subr.bf16.mxu0 %v3809
  %5217 = vmatpush1.bf16.msra.mxu0 %v3808
  %5218 = vmatprep.subr.bf16.mxu0 %v3813
  %5219 = vmatpush1.bf16.msra.mxu0 %v3812
  %5220 = vmatprep.subr.bf16.mxu0 %v3817
  %5221 = vmatpush1.bf16.msra.mxu0 %v3816
  %5222 = vmatprep.mubr.bf16.mxu0 %v928
  %5223 = vmatmul.mubr.bf16.gmra.mrb[0].mxu0 %v914
  %v5224 = vpop.f32.mrb[0].mxu0
  %v5225 = vadd.f32 %v5184, %v5224
  %v5226 = vpop.f32.mrb[0].mxu0
  %v5227 = vadd.f32 %v5186, %v5226
  %v5228 = vpop.f32.mrb[0].mxu0
  %v5229 = vpop.f32.mrb[0].mxu0
  %5230 = vdwg.mxu0
  %5231 = vmatprep.subr.bf16.mxu0 %v3821
  %5232 = vmatpush1.bf16.msra.mxu0 %v3820
  %5233 = vmatprep.subr.bf16.mxu0 %v3825
  %5234 = vmatpush1.bf16.msra.mxu0 %v3824
  %5235 = vmatprep.subr.bf16.mxu0 %v3829
  %5236 = vmatpush1.bf16.msra.mxu0 %v3828
  %5237 = vmatprep.subr.bf16.mxu0 %v3833
  %5238 = vmatpush1.bf16.msra.mxu0 %v3832
  %5239 = vmatprep.subr.bf16.mxu0 %v3837
  %5240 = vmatpush1.bf16.msra.mxu0 %v3836
  %5241 = vmatprep.subr.bf16.mxu0 %v3841
  %5242 = vmatpush1.bf16.msra.mxu0 %v3840
  %5243 = vmatprep.subr.bf16.mxu0 %v3845
  %5244 = vmatpush1.bf16.msra.mxu0 %v3844
  %5245 = vmatprep.subr.bf16.mxu0 %v3849
  %5246 = vmatpush1.bf16.msra.mxu0 %v3848
  %5247 = vmatprep.subr.bf16.mxu0 %v3853
  %5248 = vmatpush1.bf16.msra.mxu0 %v3852
  %5249 = vmatprep.subr.bf16.mxu0 %v3857
  %5250 = vmatpush1.bf16.msra.mxu0 %v3856
  %5251 = vmatprep.subr.bf16.mxu0 %v3861
  %5252 = vmatpush1.bf16.msra.mxu0 %v3860
  %5253 = vmatprep.subr.bf16.mxu0 %v3865
  %5254 = vmatpush1.bf16.msra.mxu0 %v3864
  %5255 = vmatprep.subr.bf16.mxu0 %v3869
  %5256 = vmatpush1.bf16.msra.mxu0 %v3868
  %5257 = vmatprep.subr.bf16.mxu0 %v3873
  %5258 = vmatpush1.bf16.msra.mxu0 %v3872
  %5259 = vmatprep.subr.bf16.mxu0 %v3877
  %5260 = vmatpush1.bf16.msra.mxu0 %v3876
  %5261 = vmatprep.subr.bf16.mxu0 %v3881
  %5262 = vmatpush1.bf16.msra.mxu0 %v3880
  %5263 = vmatprep.mubr.bf16.mxu0 %v932
  %5264 = vmatmul.mubr.bf16.gmra.mrb[0].mxu0 %v930
  %v5265 = vpop.f32.mrb[0].mxu0
  %v5266 = vadd.f32 %v5225, %v5265
  %v5267 = vpop.f32.mrb[0].mxu0
  %v5268 = vadd.f32 %v5227, %v5267
  %v5269 = vpop.f32.mrb[0].mxu0
  %v5270 = vpop.f32.mrb[0].mxu0
  %5271 = vdwg.mxu0
  %5272 = vmatprep.subr.bf16.mxu0 %v3885
  %5273 = vmatpush1.bf16.msra.mxu0 %v3884
  %5274 = vmatprep.subr.bf16.mxu0 %v3889
  %5275 = vmatpush1.bf16.msra.mxu0 %v3888
  %5276 = vmatprep.subr.bf16.mxu0 %v3893
  %5277 = vmatpush1.bf16.msra.mxu0 %v3892
  %5278 = vmatprep.subr.bf16.mxu0 %v3897
  %5279 = vmatpush1.bf16.msra.mxu0 %v3896
  %5280 = vmatprep.subr.bf16.mxu0 %v3901
  %5281 = vmatpush1.bf16.msra.mxu0 %v3900
  %5282 = vmatprep.subr.bf16.mxu0 %v3905
  %5283 = vmatpush1.bf16.msra.mxu0 %v3904
  %5284 = vmatprep.subr.bf16.mxu0 %v3909
  %5285 = vmatpush1.bf16.msra.mxu0 %v3908
  %5286 = vmatprep.subr.bf16.mxu0 %v3913
  %5287 = vmatpush1.bf16.msra.mxu0 %v3912
  %5288 = vmatprep.subr.bf16.mxu0 %v3917
  %5289 = vmatpush1.bf16.msra.mxu0 %v3916
  %5290 = vmatprep.subr.bf16.mxu0 %v3921
  %5291 = vmatpush1.bf16.msra.mxu0 %v3920
  %5292 = vmatprep.subr.bf16.mxu0 %v3925
  %5293 = vmatpush1.bf16.msra.mxu0 %v3924
  %5294 = vmatprep.subr.bf16.mxu0 %v3929
  %5295 = vmatpush1.bf16.msra.mxu0 %v3928
  %5296 = vmatprep.subr.bf16.mxu0 %v3933
  %5297 = vmatpush1.bf16.msra.mxu0 %v3932
  %5298 = vmatprep.subr.bf16.mxu0 %v3937
  %5299 = vmatpush1.bf16.msra.mxu0 %v3936
  %5300 = vmatprep.subr.bf16.mxu0 %v3941
  %5301 = vmatpush1.bf16.msra.mxu0 %v3940
  %5302 = vmatprep.subr.bf16.mxu0 %v3945
  %5303 = vmatpush1.bf16.msra.mxu0 %v3944
  %5304 = vmatprep.mubr.bf16.mxu0 %v970
  %5305 = vmatmul.mubr.bf16.gmra.mrb[0].mxu0 %v956
  %v5306 = vpop.f32.mrb[0].mxu0
  %v5307 = vadd.f32 %v5266, %v5306
  %v5308 = vpop.f32.mrb[0].mxu0
  %v5309 = vadd.f32 %v5268, %v5308
  %v5310 = vpop.f32.mrb[0].mxu0
  %v5311 = vpop.f32.mrb[0].mxu0
  %5312 = vdwg.mxu0
  %5313 = vmatprep.subr.bf16.mxu0 %v3949
  %5314 = vmatpush1.bf16.msra.mxu0 %v3948
  %5315 = vmatprep.subr.bf16.mxu0 %v3953
  %5316 = vmatpush1.bf16.msra.mxu0 %v3952
  %5317 = vmatprep.subr.bf16.mxu0 %v3957
  %5318 = vmatpush1.bf16.msra.mxu0 %v3956
  %5319 = vmatprep.subr.bf16.mxu0 %v3961
  %5320 = vmatpush1.bf16.msra.mxu0 %v3960
  %5321 = vmatprep.subr.bf16.mxu0 %v3965
  %5322 = vmatpush1.bf16.msra.mxu0 %v3964
  %5323 = vmatprep.subr.bf16.mxu0 %v3969
  %5324 = vmatpush1.bf16.msra.mxu0 %v3968
  %5325 = vmatprep.subr.bf16.mxu0 %v3973
  %5326 = vmatpush1.bf16.msra.mxu0 %v3972
  %5327 = vmatprep.subr.bf16.mxu0 %v3977
  %5328 = vmatpush1.bf16.msra.mxu0 %v3976
  %5329 = vmatprep.subr.bf16.mxu0 %v3981
  %5330 = vmatpush1.bf16.msra.mxu0 %v3980
  %5331 = vmatprep.subr.bf16.mxu0 %v3985
  %5332 = vmatpush1.bf16.msra.mxu0 %v3984
  %5333 = vmatprep.subr.bf16.mxu0 %v3989
  %5334 = vmatpush1.bf16.msra.mxu0 %v3988
  %5335 = vmatprep.subr.bf16.mxu0 %v3993
  %5336 = vmatpush1.bf16.msra.mxu0 %v3992
  %5337 = vmatprep.subr.bf16.mxu0 %v3997
  %5338 = vmatpush1.bf16.msra.mxu0 %v3996
  %5339 = vmatprep.subr.bf16.mxu0 %v4001
  %5340 = vmatpush1.bf16.msra.mxu0 %v4000
  %5341 = vmatprep.subr.bf16.mxu0 %v4005
  %5342 = vmatpush1.bf16.msra.mxu0 %v4004
  %5343 = vmatprep.subr.bf16.mxu0 %v4009
  %5344 = vmatpush1.bf16.msra.mxu0 %v4008
  %5345 = vmatprep.mubr.bf16.mxu0 %v980
  %5346 = vmatmul.mubr.bf16.gmra.mrb[0].mxu0 %v978
  %v5347 = vpop.f32.mrb[0].mxu0
  %v5348 = vadd.f32 %v5307, %v5347
  %v5349 = vpop.f32.mrb[0].mxu0
  %v5350 = vadd.f32 %v5309, %v5349
  %v5351 = vpop.f32.mrb[0].mxu0
  %v5352 = vpop.f32.mrb[0].mxu0
  %5353 = vdwg.mxu0
  %5354 = vmatprep.subr.bf16.mxu0 %v4013
  %5355 = vmatpush1.bf16.msra.mxu0 %v4012
  %5356 = vmatprep.subr.bf16.mxu0 %v4017
  %5357 = vmatpush1.bf16.msra.mxu0 %v4016
  %5358 = vmatprep.subr.bf16.mxu0 %v4021
  %5359 = vmatpush1.bf16.msra.mxu0 %v4020
  %5360 = vmatprep.subr.bf16.mxu0 %v4025
  %5361 = vmatpush1.bf16.msra.mxu0 %v4024
  %5362 = vmatprep.subr.bf16.mxu0 %v4029
  %5363 = vmatpush1.bf16.msra.mxu0 %v4028
  %5364 = vmatprep.subr.bf16.mxu0 %v4033
  %5365 = vmatpush1.bf16.msra.mxu0 %v4032
  %5366 = vmatprep.subr.bf16.mxu0 %v4037
  %5367 = vmatpush1.bf16.msra.mxu0 %v4036
  %5368 = vmatprep.subr.bf16.mxu0 %v4041
  %5369 = vmatpush1.bf16.msra.mxu0 %v4040
  %5370 = vmatprep.subr.bf16.mxu0 %v4045
  %5371 = vmatpush1.bf16.msra.mxu0 %v4044
  %5372 = vmatprep.subr.bf16.mxu0 %v4049
  %5373 = vmatpush1.bf16.msra.mxu0 %v4048
  %5374 = vmatprep.subr.bf16.mxu0 %v4053
  %5375 = vmatpush1.bf16.msra.mxu0 %v4052
  %5376 = vmatprep.subr.bf16.mxu0 %v4057
  %5377 = vmatpush1.bf16.msra.mxu0 %v4056
  %5378 = vmatprep.subr.bf16.mxu0 %v4061
  %5379 = vmatpush1.bf16.msra.mxu0 %v4060
  %5380 = vmatprep.subr.bf16.mxu0 %v4065
  %5381 = vmatpush1.bf16.msra.mxu0 %v4064
  %5382 = vmatprep.subr.bf16.mxu0 %v4069
  %5383 = vmatpush1.bf16.msra.mxu0 %v4068
  %5384 = vmatprep.subr.bf16.mxu0 %v4073
  %5385 = vmatpush1.bf16.msra.mxu0 %v4072
  %5386 = vmatprep.mubr.bf16.mxu0 %v977
  %5387 = vmatmul.mubr.bf16.gmra.mrb[0].mxu0 %v963
  %v5388 = vpop.f32.mrb[0].mxu0
  %v5389 = vadd.f32 %v5348, %v5388
  %v5390 = vpop.f32.mrb[0].mxu0
  %v5391 = vadd.f32 %v5350, %v5390
  %v5392 = vpop.f32.mrb[0].mxu0
  %v5393 = vpop.f32.mrb[0].mxu0
  %5394 = vdwg.mxu0
  %5395 = vmatprep.subr.bf16.mxu0 %v4077
  %5396 = vmatpush1.bf16.msra.mxu0 %v4076
  %5397 = vmatprep.subr.bf16.mxu0 %v4081
  %5398 = vmatpush1.bf16.msra.mxu0 %v4080
  %5399 = vmatprep.subr.bf16.mxu0 %v4085
  %5400 = vmatpush1.bf16.msra.mxu0 %v4084
  %5401 = vmatprep.subr.bf16.mxu0 %v4089
  %5402 = vmatpush1.bf16.msra.mxu0 %v4088
  %5403 = vmatprep.subr.bf16.mxu0 %v4093
  %5404 = vmatpush1.bf16.msra.mxu0 %v4092
  %5405 = vmatprep.subr.bf16.mxu0 %v4097
  %5406 = vmatpush1.bf16.msra.mxu0 %v4096
  %5407 = vmatprep.subr.bf16.mxu0 %v4101
  %5408 = vmatpush1.bf16.msra.mxu0 %v4100
  %5409 = vmatprep.subr.bf16.mxu0 %v4105
  %5410 = vmatpush1.bf16.msra.mxu0 %v4104
  %5411 = vmatprep.subr.bf16.mxu0 %v4109
  %5412 = vmatpush1.bf16.msra.mxu0 %v4108
  %5413 = vmatprep.subr.bf16.mxu0 %v4113
  %5414 = vmatpush1.bf16.msra.mxu0 %v4112
  %5415 = vmatprep.subr.bf16.mxu0 %v4117
  %5416 = vmatpush1.bf16.msra.mxu0 %v4116
  %5417 = vmatprep.subr.bf16.mxu0 %v4121
  %5418 = vmatpush1.bf16.msra.mxu0 %v4120
  %5419 = vmatprep.subr.bf16.mxu0 %v4125
  %5420 = vmatpush1.bf16.msra.mxu0 %v4124
  %5421 = vmatprep.subr.bf16.mxu0 %v4129
  %5422 = vmatpush1.bf16.msra.mxu0 %v4128
  %5423 = vmatprep.subr.bf16.mxu0 %v4133
  %5424 = vmatpush1.bf16.msra.mxu0 %v4132
  %5425 = vmatprep.subr.bf16.mxu0 %v4137
  %5426 = vmatpush1.bf16.msra.mxu0 %v4136
  %5427 = vmatprep.mubr.bf16.mxu0 %v981
  %5428 = vmatmul.mubr.bf16.gmra.mrb[0].mxu0 %v979
  %v5429 = vpop.f32.mrb[0].mxu0
  %v5430 = vadd.f32 %v5389, %v5429
  %v5431 = vpop.f32.mrb[0].mxu0
  %v5432 = vadd.f32 %v5391, %v5431
  %v5433 = vpop.f32.mrb[0].mxu0
  %v5434 = vpop.f32.mrb[0].mxu0
  %5435 = vdwg.mxu0
  %5436 = vmatprep.subr.bf16.mxu0 %v4141
  %5437 = vmatpush1.bf16.msra.mxu0 %v4140
  %5438 = vmatprep.subr.bf16.mxu0 %v4145
  %5439 = vmatpush1.bf16.msra.mxu0 %v4144
  %5440 = vmatprep.subr.bf16.mxu0 %v4149
  %5441 = vmatpush1.bf16.msra.mxu0 %v4148
  %5442 = vmatprep.subr.bf16.mxu0 %v4153
  %5443 = vmatpush1.bf16.msra.mxu0 %v4152
  %5444 = vmatprep.subr.bf16.mxu0 0
  %5445 = vmatpush1.bf16.msra.mxu0 0
  %5446 = vmatprep.subr.bf16.mxu0 0
  %5447 = vmatpush1.bf16.msra.mxu0 0
  %5448 = vmatprep.subr.bf16.mxu0 0
  %5449 = vmatpush1.bf16.msra.mxu0 0
  %5450 = vmatprep.subr.bf16.mxu0 0
  %5451 = vmatpush1.bf16.msra.mxu0 0
  %5452 = vmatprep.subr.bf16.mxu0 0
  %5453 = vmatpush1.bf16.msra.mxu0 0
  %5454 = vmatprep.subr.bf16.mxu0 0
  %5455 = vmatpush1.bf16.msra.mxu0 0
  %5456 = vmatprep.subr.bf16.mxu0 0
  %5457 = vmatpush1.bf16.msra.mxu0 0
  %5458 = vmatprep.subr.bf16.mxu0 0
  %5459 = vmatpush1.bf16.msra.mxu0 0
  %5460 = vmatprep.subr.bf16.mxu0 0
  %5461 = vmatpush1.bf16.msra.mxu0 0
  %5462 = vmatprep.subr.bf16.mxu0 0
  %5463 = vmatpush1.bf16.msra.mxu0 0
  %5464 = vmatprep.subr.bf16.mxu0 0
  %5465 = vmatpush1.bf16.msra.mxu0 0
  %5466 = vmatprep.subr.bf16.mxu0 0
  %5467 = vmatpush1.bf16.msra.mxu0 0
  %5468 = vmatprep.mubr.bf16.mxu0 0
  %5469 = vmatmul.mubr.bf16.gmra.mrb[0].mxu0 %v4942
  %v5470 = vpop.f32.mrb[0].mxu0
  %v5471 = vadd.f32 %v5430, %v5470
  %v5472 = vpop.f32.mrb[0].mxu0
  %v5473 = vadd.f32 %v5432, %v5472
  %v5474 = vpop.f32.mrb[0].mxu0
  %v5475 = vpop.f32.mrb[0].mxu0
  %5476 = vdwg.mxu0
  %5477 = vmatprep.subr.bf16.mxu0 %v3375
  %5478 = vmatpush1.bf16.msra.mxu0 %v3374
  %5479 = vmatprep.subr.bf16.mxu0 %v3379
  %5480 = vmatpush1.bf16.msra.mxu0 %v3378
  %5481 = vmatprep.subr.bf16.mxu0 %v3383
  %5482 = vmatpush1.bf16.msra.mxu0 %v3382
  %5483 = vmatprep.subr.bf16.mxu0 %v3387
  %5484 = vmatpush1.bf16.msra.mxu0 %v3386
  %5485 = vmatprep.subr.bf16.mxu0 %v3391
  %5486 = vmatpush1.bf16.msra.mxu0 %v3390
  %5487 = vmatprep.subr.bf16.mxu0 %v3395
  %5488 = vmatpush1.bf16.msra.mxu0 %v3394
  %5489 = vmatprep.subr.bf16.mxu0 %v3399
  %5490 = vmatpush1.bf16.msra.mxu0 %v3398
  %5491 = vmatprep.subr.bf16.mxu0 %v3403
  %5492 = vmatpush1.bf16.msra.mxu0 %v3402
  %5493 = vmatprep.subr.bf16.mxu0 %v3407
  %5494 = vmatpush1.bf16.msra.mxu0 %v3406
  %5495 = vmatprep.subr.bf16.mxu0 %v3411
  %5496 = vmatpush1.bf16.msra.mxu0 %v3410
  %5497 = vmatprep.subr.bf16.mxu0 %v3415
  %5498 = vmatpush1.bf16.msra.mxu0 %v3414
  %5499 = vmatprep.subr.bf16.mxu0 %v3419
  %5500 = vmatpush1.bf16.msra.mxu0 %v3418
  %5501 = vmatprep.subr.bf16.mxu0 %v3423
  %5502 = vmatpush1.bf16.msra.mxu0 %v3422
  %5503 = vmatprep.subr.bf16.mxu0 %v3427
  %5504 = vmatpush1.bf16.msra.mxu0 %v3426
  %5505 = vmatprep.subr.bf16.mxu0 %v3431
  %5506 = vmatpush1.bf16.msra.mxu0 %v3430
  %5507 = vmatprep.subr.bf16.mxu0 %v3435
  %5508 = vmatpush1.bf16.msra.mxu0 %v3434
  %5509 = vmatprep.mubr.bf16.mxu0 %v872
  %5510 = vmatmul.mubr.bf16.gmra.mrb[0].mxu0 %v858
  %v5511 = vpop.f32.mrb[0].mxu0
  %v5512 = vadd.f32 %v822, %v5511
  %v5513 = vpop.f32.mrb[0].mxu0
  %v5514 = vadd.f32 %v826, %v5513
  %v5515 = vpop.f32.mrb[0].mxu0
  %v5516 = vpop.f32.mrb[0].mxu0
  %5517 = vdwg.mxu0
  %5518 = vmatprep.subr.bf16.mxu0 %v3439
  %5519 = vmatpush1.bf16.msra.mxu0 %v3438
  %5520 = vmatprep.subr.bf16.mxu0 %v3443
  %5521 = vmatpush1.bf16.msra.mxu0 %v3442
  %5522 = vmatprep.subr.bf16.mxu0 %v3447
  %5523 = vmatpush1.bf16.msra.mxu0 %v3446
  %5524 = vmatprep.subr.bf16.mxu0 %v3451
  %5525 = vmatpush1.bf16.msra.mxu0 %v3450
  %5526 = vmatprep.subr.bf16.mxu0 %v3455
  %5527 = vmatpush1.bf16.msra.mxu0 %v3454
  %5528 = vmatprep.subr.bf16.mxu0 %v3459
  %5529 = vmatpush1.bf16.msra.mxu0 %v3458
  %5530 = vmatprep.subr.bf16.mxu0 %v3463
  %5531 = vmatpush1.bf16.msra.mxu0 %v3462
  %5532 = vmatprep.subr.bf16.mxu0 %v3467
  %5533 = vmatpush1.bf16.msra.mxu0 %v3466
  %5534 = vmatprep.subr.bf16.mxu0 %v3471
  %5535 = vmatpush1.bf16.msra.mxu0 %v3470
  %5536 = vmatprep.subr.bf16.mxu0 %v3475
  %5537 = vmatpush1.bf16.msra.mxu0 %v3474
  %5538 = vmatprep.subr.bf16.mxu0 %v3479
  %5539 = vmatpush1.bf16.msra.mxu0 %v3478
  %5540 = vmatprep.subr.bf16.mxu0 %v3483
  %5541 = vmatpush1.bf16.msra.mxu0 %v3482
  %5542 = vmatprep.subr.bf16.mxu0 %v3487
  %5543 = vmatpush1.bf16.msra.mxu0 %v3486
  %5544 = vmatprep.subr.bf16.mxu0 %v3491
  %5545 = vmatpush1.bf16.msra.mxu0 %v3490
  %5546 = vmatprep.subr.bf16.mxu0 %v3495
  %5547 = vmatpush1.bf16.msra.mxu0 %v3494
  %5548 = vmatprep.subr.bf16.mxu0 %v3499
  %5549 = vmatpush1.bf16.msra.mxu0 %v3498
  %5550 = vmatprep.mubr.bf16.mxu0 %v882
  %5551 = vmatmul.mubr.bf16.gmra.mrb[0].mxu0 %v880
  %v5552 = vpop.f32.mrb[0].mxu0
  %v5553 = vadd.f32 %v5512, %v5552
  %v5554 = vpop.f32.mrb[0].mxu0
  %v5555 = vadd.f32 %v5514, %v5554
  %v5556 = vpop.f32.mrb[0].mxu0
  %v5557 = vpop.f32.mrb[0].mxu0
  %5558 = vdwg.mxu0
  %5559 = vmatprep.subr.bf16.mxu0 %v3503
  %5560 = vmatpush1.bf16.msra.mxu0 %v3502
  %5561 = vmatprep.subr.bf16.mxu0 %v3507
  %5562 = vmatpush1.bf16.msra.mxu0 %v3506
  %5563 = vmatprep.subr.bf16.mxu0 %v3511
  %5564 = vmatpush1.bf16.msra.mxu0 %v3510
  %5565 = vmatprep.subr.bf16.mxu0 %v3515
  %5566 = vmatpush1.bf16.msra.mxu0 %v3514
  %5567 = vmatprep.subr.bf16.mxu0 %v3519
  %5568 = vmatpush1.bf16.msra.mxu0 %v3518
  %5569 = vmatprep.subr.bf16.mxu0 %v3523
  %5570 = vmatpush1.bf16.msra.mxu0 %v3522
  %5571 = vmatprep.subr.bf16.mxu0 %v3527
  %5572 = vmatpush1.bf16.msra.mxu0 %v3526
  %5573 = vmatprep.subr.bf16.mxu0 %v3531
  %5574 = vmatpush1.bf16.msra.mxu0 %v3530
  %5575 = vmatprep.subr.bf16.mxu0 %v3535
  %5576 = vmatpush1.bf16.msra.mxu0 %v3534
  %5577 = vmatprep.subr.bf16.mxu0 %v3539
  %5578 = vmatpush1.bf16.msra.mxu0 %v3538
  %5579 = vmatprep.subr.bf16.mxu0 %v3543
  %5580 = vmatpush1.bf16.msra.mxu0 %v3542
  %5581 = vmatprep.subr.bf16.mxu0 %v3547
  %5582 = vmatpush1.bf16.msra.mxu0 %v3546
  %5583 = vmatprep.subr.bf16.mxu0 %v3551
  %5584 = vmatpush1.bf16.msra.mxu0 %v3550
  %5585 = vmatprep.subr.bf16.mxu0 %v3555
  %5586 = vmatpush1.bf16.msra.mxu0 %v3554
  %5587 = vmatprep.subr.bf16.mxu0 %v3559
  %5588 = vmatpush1.bf16.msra.mxu0 %v3558
  %5589 = vmatprep.subr.bf16.mxu0 %v3563
  %5590 = vmatpush1.bf16.msra.mxu0 %v3562
  %5591 = vmatprep.mubr.bf16.mxu0 %v879
  %5592 = vmatmul.mubr.bf16.gmra.mrb[0].mxu0 %v865
  %v5593 = vpop.f32.mrb[0].mxu0
  %v5594 = vadd.f32 %v5553, %v5593
  %v5595 = vpop.f32.mrb[0].mxu0
  %v5596 = vadd.f32 %v5555, %v5595
  %v5597 = vpop.f32.mrb[0].mxu0
  %v5598 = vpop.f32.mrb[0].mxu0
  %5599 = vdwg.mxu0
  %5600 = vmatprep.subr.bf16.mxu0 %v3567
  %5601 = vmatpush1.bf16.msra.mxu0 %v3566
  %5602 = vmatprep.subr.bf16.mxu0 %v3571
  %5603 = vmatpush1.bf16.msra.mxu0 %v3570
  %5604 = vmatprep.subr.bf16.mxu0 %v3575
  %5605 = vmatpush1.bf16.msra.mxu0 %v3574
  %5606 = vmatprep.subr.bf16.mxu0 %v3579
  %5607 = vmatpush1.bf16.msra.mxu0 %v3578
  %5608 = vmatprep.subr.bf16.mxu0 %v3583
  %5609 = vmatpush1.bf16.msra.mxu0 %v3582
  %5610 = vmatprep.subr.bf16.mxu0 %v3587
  %5611 = vmatpush1.bf16.msra.mxu0 %v3586
  %5612 = vmatprep.subr.bf16.mxu0 %v3591
  %5613 = vmatpush1.bf16.msra.mxu0 %v3590
  %5614 = vmatprep.subr.bf16.mxu0 %v3595
  %5615 = vmatpush1.bf16.msra.mxu0 %v3594
  %5616 = vmatprep.subr.bf16.mxu0 %v3599
  %5617 = vmatpush1.bf16.msra.mxu0 %v3598
  %5618 = vmatprep.subr.bf16.mxu0 %v3603
  %5619 = vmatpush1.bf16.msra.mxu0 %v3602
  %5620 = vmatprep.subr.bf16.mxu0 %v3607
  %5621 = vmatpush1.bf16.msra.mxu0 %v3606
  %5622 = vmatprep.subr.bf16.mxu0 %v3611
  %5623 = vmatpush1.bf16.msra.mxu0 %v3610
  %5624 = vmatprep.subr.bf16.mxu0 %v3615
  %5625 = vmatpush1.bf16.msra.mxu0 %v3614
  %5626 = vmatprep.subr.bf16.mxu0 %v3619
  %5627 = vmatpush1.bf16.msra.mxu0 %v3618
  %5628 = vmatprep.subr.bf16.mxu0 %v3623
  %5629 = vmatpush1.bf16.msra.mxu0 %v3622
  %5630 = vmatprep.subr.bf16.mxu0 %v3627
  %5631 = vmatpush1.bf16.msra.mxu0 %v3626
  %5632 = vmatprep.mubr.bf16.mxu0 %v883
  %5633 = vmatmul.mubr.bf16.gmra.mrb[0].mxu0 %v881
  %v5634 = vpop.f32.mrb[0].mxu0
  %v5635 = vadd.f32 %v5594, %v5634
  %v5636 = vpop.f32.mrb[0].mxu0
  %v5637 = vadd.f32 %v5596, %v5636
  %v5638 = vpop.f32.mrb[0].mxu0
  %v5639 = vpop.f32.mrb[0].mxu0
  %5640 = vdwg.mxu0
  %5641 = vmatprep.subr.bf16.mxu0 %v3631
  %5642 = vmatpush1.bf16.msra.mxu0 %v3630
  %5643 = vmatprep.subr.bf16.mxu0 %v3635
  %5644 = vmatpush1.bf16.msra.mxu0 %v3634
  %5645 = vmatprep.subr.bf16.mxu0 %v3639
  %5646 = vmatpush1.bf16.msra.mxu0 %v3638
  %5647 = vmatprep.subr.bf16.mxu0 %v3643
  %5648 = vmatpush1.bf16.msra.mxu0 %v3642
  %5649 = vmatprep.subr.bf16.mxu0 %v3647
  %5650 = vmatpush1.bf16.msra.mxu0 %v3646
  %5651 = vmatprep.subr.bf16.mxu0 %v3651
  %5652 = vmatpush1.bf16.msra.mxu0 %v3650
  %5653 = vmatprep.subr.bf16.mxu0 %v3655
  %5654 = vmatpush1.bf16.msra.mxu0 %v3654
  %5655 = vmatprep.subr.bf16.mxu0 %v3659
  %5656 = vmatpush1.bf16.msra.mxu0 %v3658
  %5657 = vmatprep.subr.bf16.mxu0 %v3663
  %5658 = vmatpush1.bf16.msra.mxu0 %v3662
  %5659 = vmatprep.subr.bf16.mxu0 %v3667
  %5660 = vmatpush1.bf16.msra.mxu0 %v3666
  %5661 = vmatprep.subr.bf16.mxu0 %v3671
  %5662 = vmatpush1.bf16.msra.mxu0 %v3670
  %5663 = vmatprep.subr.bf16.mxu0 %v3675
  %5664 = vmatpush1.bf16.msra.mxu0 %v3674
  %5665 = vmatprep.subr.bf16.mxu0 %v3679
  %5666 = vmatpush1.bf16.msra.mxu0 %v3678
  %5667 = vmatprep.subr.bf16.mxu0 %v3683
  %5668 = vmatpush1.bf16.msra.mxu0 %v3682
  %5669 = vmatprep.subr.bf16.mxu0 %v3687
  %5670 = vmatpush1.bf16.msra.mxu0 %v3686
  %5671 = vmatprep.subr.bf16.mxu0 %v3691
  %5672 = vmatpush1.bf16.msra.mxu0 %v3690
  %5673 = vmatprep.mubr.bf16.mxu0 %v921
  %5674 = vmatmul.mubr.bf16.gmra.mrb[0].mxu0 %v907
  %v5675 = vpop.f32.mrb[0].mxu0
  %v5676 = vadd.f32 %v5635, %v5675
  %v5677 = vpop.f32.mrb[0].mxu0
  %v5678 = vadd.f32 %v5637, %v5677
  %v5679 = vpop.f32.mrb[0].mxu0
  %v5680 = vpop.f32.mrb[0].mxu0
  %5681 = vdwg.mxu0
  %5682 = vmatprep.subr.bf16.mxu0 %v3695
  %5683 = vmatpush1.bf16.msra.mxu0 %v3694
  %5684 = vmatprep.subr.bf16.mxu0 %v3699
  %5685 = vmatpush1.bf16.msra.mxu0 %v3698
  %5686 = vmatprep.subr.bf16.mxu0 %v3703
  %5687 = vmatpush1.bf16.msra.mxu0 %v3702
  %5688 = vmatprep.subr.bf16.mxu0 %v3707
  %5689 = vmatpush1.bf16.msra.mxu0 %v3706
  %5690 = vmatprep.subr.bf16.mxu0 %v3711
  %5691 = vmatpush1.bf16.msra.mxu0 %v3710
  %5692 = vmatprep.subr.bf16.mxu0 %v3715
  %5693 = vmatpush1.bf16.msra.mxu0 %v3714
  %5694 = vmatprep.subr.bf16.mxu0 %v3719
  %5695 = vmatpush1.bf16.msra.mxu0 %v3718
  %5696 = vmatprep.subr.bf16.mxu0 %v3723
  %5697 = vmatpush1.bf16.msra.mxu0 %v3722
  %5698 = vmatprep.subr.bf16.mxu0 %v3727
  %5699 = vmatpush1.bf16.msra.mxu0 %v3726
  %5700 = vmatprep.subr.bf16.mxu0 %v3731
  %5701 = vmatpush1.bf16.msra.mxu0 %v3730
  %5702 = vmatprep.subr.bf16.mxu0 %v3735
  %5703 = vmatpush1.bf16.msra.mxu0 %v3734
  %5704 = vmatprep.subr.bf16.mxu0 %v3739
  %5705 = vmatpush1.bf16.msra.mxu0 %v3738
  %5706 = vmatprep.subr.bf16.mxu0 %v3743
  %5707 = vmatpush1.bf16.msra.mxu0 %v3742
  %5708 = vmatprep.subr.bf16.mxu0 %v3747
  %5709 = vmatpush1.bf16.msra.mxu0 %v3746
  %5710 = vmatprep.subr.bf16.mxu0 %v3751
  %5711 = vmatpush1.bf16.msra.mxu0 %v3750
  %5712 = vmatprep.subr.bf16.mxu0 %v3755
  %5713 = vmatpush1.bf16.msra.mxu0 %v3754
  %5714 = vmatprep.mubr.bf16.mxu0 %v931
  %5715 = vmatmul.mubr.bf16.gmra.mrb[0].mxu0 %v929
  %v5716 = vpop.f32.mrb[0].mxu0
  %v5717 = vadd.f32 %v5676, %v5716
  %v5718 = vpop.f32.mrb[0].mxu0
  %v5719 = vadd.f32 %v5678, %v5718
  %v5720 = vpop.f32.mrb[0].mxu0
  %v5721 = vpop.f32.mrb[0].mxu0
  %5722 = vdwg.mxu0
  %5723 = vmatprep.subr.bf16.mxu0 %v3759
  %5724 = vmatpush1.bf16.msra.mxu0 %v3758
  %5725 = vmatprep.subr.bf16.mxu0 %v3763
  %5726 = vmatpush1.bf16.msra.mxu0 %v3762
  %5727 = vmatprep.subr.bf16.mxu0 %v3767
  %5728 = vmatpush1.bf16.msra.mxu0 %v3766
  %5729 = vmatprep.subr.bf16.mxu0 %v3771
  %5730 = vmatpush1.bf16.msra.mxu0 %v3770
  %5731 = vmatprep.subr.bf16.mxu0 %v3775
  %5732 = vmatpush1.bf16.msra.mxu0 %v3774
  %5733 = vmatprep.subr.bf16.mxu0 %v3779
  %5734 = vmatpush1.bf16.msra.mxu0 %v3778
  %5735 = vmatprep.subr.bf16.mxu0 %v3783
  %5736 = vmatpush1.bf16.msra.mxu0 %v3782
  %5737 = vmatprep.subr.bf16.mxu0 %v3787
  %5738 = vmatpush1.bf16.msra.mxu0 %v3786
  %5739 = vmatprep.subr.bf16.mxu0 %v3791
  %5740 = vmatpush1.bf16.msra.mxu0 %v3790
  %5741 = vmatprep.subr.bf16.mxu0 %v3795
  %5742 = vmatpush1.bf16.msra.mxu0 %v3794
  %5743 = vmatprep.subr.bf16.mxu0 %v3799
  %5744 = vmatpush1.bf16.msra.mxu0 %v3798
  %5745 = vmatprep.subr.bf16.mxu0 %v3803
  %5746 = vmatpush1.bf16.msra.mxu0 %v3802
  %5747 = vmatprep.subr.bf16.mxu0 %v3807
  %5748 = vmatpush1.bf16.msra.mxu0 %v3806
  %5749 = vmatprep.subr.bf16.mxu0 %v3811
  %5750 = vmatpush1.bf16.msra.mxu0 %v3810
  %5751 = vmatprep.subr.bf16.mxu0 %v3815
  %5752 = vmatpush1.bf16.msra.mxu0 %v3814
  %5753 = vmatprep.subr.bf16.mxu0 %v3819
  %5754 = vmatpush1.bf16.msra.mxu0 %v3818
  %5755 = vmatprep.mubr.bf16.mxu0 %v928
  %5756 = vmatmul.mubr.bf16.gmra.mrb[0].mxu0 %v914
  %v5757 = vpop.f32.mrb[0].mxu0
  %v5758 = vadd.f32 %v5717, %v5757
  %v5759 = vpop.f32.mrb[0].mxu0
  %v5760 = vadd.f32 %v5719, %v5759
  %v5761 = vpop.f32.mrb[0].mxu0
  %v5762 = vpop.f32.mrb[0].mxu0
  %5763 = vdwg.mxu0
  %5764 = vmatprep.subr.bf16.mxu0 %v3823
  %5765 = vmatpush1.bf16.msra.mxu0 %v3822
  %5766 = vmatprep.subr.bf16.mxu0 %v3827
  %5767 = vmatpush1.bf16.msra.mxu0 %v3826
  %5768 = vmatprep.subr.bf16.mxu0 %v3831
  %5769 = vmatpush1.bf16.msra.mxu0 %v3830
  %5770 = vmatprep.subr.bf16.mxu0 %v3835
  %5771 = vmatpush1.bf16.msra.mxu0 %v3834
  %5772 = vmatprep.subr.bf16.mxu0 %v3839
  %5773 = vmatpush1.bf16.msra.mxu0 %v3838
  %5774 = vmatprep.subr.bf16.mxu0 %v3843
  %5775 = vmatpush1.bf16.msra.mxu0 %v3842
  %5776 = vmatprep.subr.bf16.mxu0 %v3847
  %5777 = vmatpush1.bf16.msra.mxu0 %v3846
  %5778 = vmatprep.subr.bf16.mxu0 %v3851
  %5779 = vmatpush1.bf16.msra.mxu0 %v3850
  %5780 = vmatprep.subr.bf16.mxu0 %v3855
  %5781 = vmatpush1.bf16.msra.mxu0 %v3854
  %5782 = vmatprep.subr.bf16.mxu0 %v3859
  %5783 = vmatpush1.bf16.msra.mxu0 %v3858
  %5784 = vmatprep.subr.bf16.mxu0 %v3863
  %5785 = vmatpush1.bf16.msra.mxu0 %v3862
  %5786 = vmatprep.subr.bf16.mxu0 %v3867
  %5787 = vmatpush1.bf16.msra.mxu0 %v3866
  %5788 = vmatprep.subr.bf16.mxu0 %v3871
  %5789 = vmatpush1.bf16.msra.mxu0 %v3870
  %5790 = vmatprep.subr.bf16.mxu0 %v3875
  %5791 = vmatpush1.bf16.msra.mxu0 %v3874
  %5792 = vmatprep.subr.bf16.mxu0 %v3879
  %5793 = vmatpush1.bf16.msra.mxu0 %v3878
  %5794 = vmatprep.subr.bf16.mxu0 %v3883
  %5795 = vmatpush1.bf16.msra.mxu0 %v3882
  %5796 = vmatprep.mubr.bf16.mxu0 %v932
  %5797 = vmatmul.mubr.bf16.gmra.mrb[0].mxu0 %v930
  %v5798 = vpop.f32.mrb[0].mxu0
  %v5799 = vadd.f32 %v5758, %v5798
  %v5800 = vpop.f32.mrb[0].mxu0
  %v5801 = vadd.f32 %v5760, %v5800
  %v5802 = vpop.f32.mrb[0].mxu0
  %v5803 = vpop.f32.mrb[0].mxu0
  %5804 = vdwg.mxu0
  %5805 = vmatprep.subr.bf16.mxu0 %v3887
  %5806 = vmatpush1.bf16.msra.mxu0 %v3886
  %5807 = vmatprep.subr.bf16.mxu0 %v3891
  %5808 = vmatpush1.bf16.msra.mxu0 %v3890
  %5809 = vmatprep.subr.bf16.mxu0 %v3895
  %5810 = vmatpush1.bf16.msra.mxu0 %v3894
  %5811 = vmatprep.subr.bf16.mxu0 %v3899
  %5812 = vmatpush1.bf16.msra.mxu0 %v3898
  %5813 = vmatprep.subr.bf16.mxu0 %v3903
  %5814 = vmatpush1.bf16.msra.mxu0 %v3902
  %5815 = vmatprep.subr.bf16.mxu0 %v3907
  %5816 = vmatpush1.bf16.msra.mxu0 %v3906
  %5817 = vmatprep.subr.bf16.mxu0 %v3911
  %5818 = vmatpush1.bf16.msra.mxu0 %v3910
  %5819 = vmatprep.subr.bf16.mxu0 %v3915
  %5820 = vmatpush1.bf16.msra.mxu0 %v3914
  %5821 = vmatprep.subr.bf16.mxu0 %v3919
  %5822 = vmatpush1.bf16.msra.mxu0 %v3918
  %5823 = vmatprep.subr.bf16.mxu0 %v3923
  %5824 = vmatpush1.bf16.msra.mxu0 %v3922
  %5825 = vmatprep.subr.bf16.mxu0 %v3927
  %5826 = vmatpush1.bf16.msra.mxu0 %v3926
  %5827 = vmatprep.subr.bf16.mxu0 %v3931
  %5828 = vmatpush1.bf16.msra.mxu0 %v3930
  %5829 = vmatprep.subr.bf16.mxu0 %v3935
  %5830 = vmatpush1.bf16.msra.mxu0 %v3934
  %5831 = vmatprep.subr.bf16.mxu0 %v3939
  %5832 = vmatpush1.bf16.msra.mxu0 %v3938
  %5833 = vmatprep.subr.bf16.mxu0 %v3943
  %5834 = vmatpush1.bf16.msra.mxu0 %v3942
  %5835 = vmatprep.subr.bf16.mxu0 %v3947
  %5836 = vmatpush1.bf16.msra.mxu0 %v3946
  %5837 = vmatprep.mubr.bf16.mxu0 %v970
  %5838 = vmatmul.mubr.bf16.gmra.mrb[0].mxu0 %v956
  %v5839 = vpop.f32.mrb[0].mxu0
  %v5840 = vadd.f32 %v5799, %v5839
  %v5841 = vpop.f32.mrb[0].mxu0
  %v5842 = vadd.f32 %v5801, %v5841
  %v5843 = vpop.f32.mrb[0].mxu0
  %v5844 = vpop.f32.mrb[0].mxu0
  %5845 = vdwg.mxu0
  %5846 = vmatprep.subr.bf16.mxu0 %v3951
  %5847 = vmatpush1.bf16.msra.mxu0 %v3950
  %5848 = vmatprep.subr.bf16.mxu0 %v3955
  %5849 = vmatpush1.bf16.msra.mxu0 %v3954
  %5850 = vmatprep.subr.bf16.mxu0 %v3959
  %5851 = vmatpush1.bf16.msra.mxu0 %v3958
  %5852 = vmatprep.subr.bf16.mxu0 %v3963
  %5853 = vmatpush1.bf16.msra.mxu0 %v3962
  %5854 = vmatprep.subr.bf16.mxu0 %v3967
  %5855 = vmatpush1.bf16.msra.mxu0 %v3966
  %5856 = vmatprep.subr.bf16.mxu0 %v3971
  %5857 = vmatpush1.bf16.msra.mxu0 %v3970
  %5858 = vmatprep.subr.bf16.mxu0 %v3975
  %5859 = vmatpush1.bf16.msra.mxu0 %v3974
  %5860 = vmatprep.subr.bf16.mxu0 %v3979
  %5861 = vmatpush1.bf16.msra.mxu0 %v3978
  %5862 = vmatprep.subr.bf16.mxu0 %v3983
  %5863 = vmatpush1.bf16.msra.mxu0 %v3982
  %5864 = vmatprep.subr.bf16.mxu0 %v3987
  %5865 = vmatpush1.bf16.msra.mxu0 %v3986
  %5866 = vmatprep.subr.bf16.mxu0 %v3991
  %5867 = vmatpush1.bf16.msra.mxu0 %v3990
  %5868 = vmatprep.subr.bf16.mxu0 %v3995
  %5869 = vmatpush1.bf16.msra.mxu0 %v3994
  %5870 = vmatprep.subr.bf16.mxu0 %v3999
  %5871 = vmatpush1.bf16.msra.mxu0 %v3998
  %5872 = vmatprep.subr.bf16.mxu0 %v4003
  %5873 = vmatpush1.bf16.msra.mxu0 %v4002
  %5874 = vmatprep.subr.bf16.mxu0 %v4007
  %5875 = vmatpush1.bf16.msra.mxu0 %v4006
  %5876 = vmatprep.subr.bf16.mxu0 %v4011
  %5877 = vmatpush1.bf16.msra.mxu0 %v4010
  %5878 = vmatprep.mubr.bf16.mxu0 %v980
  %5879 = vmatmul.mubr.bf16.gmra.mrb[0].mxu0 %v978
  %v5880 = vpop.f32.mrb[0].mxu0
  %v5881 = vadd.f32 %v5840, %v5880
  %v5882 = vpop.f32.mrb[0].mxu0
  %v5883 = vadd.f32 %v5842, %v5882
  %v5884 = vpop.f32.mrb[0].mxu0
  %v5885 = vpop.f32.mrb[0].mxu0
  %5886 = vdwg.mxu0
  %5887 = vmatprep.subr.bf16.mxu0 %v4015
  %5888 = vmatpush1.bf16.msra.mxu0 %v4014
  %5889 = vmatprep.subr.bf16.mxu0 %v4019
  %5890 = vmatpush1.bf16.msra.mxu0 %v4018
  %5891 = vmatprep.subr.bf16.mxu0 %v4023
  %5892 = vmatpush1.bf16.msra.mxu0 %v4022
  %5893 = vmatprep.subr.bf16.mxu0 %v4027
  %5894 = vmatpush1.bf16.msra.mxu0 %v4026
  %5895 = vmatprep.subr.bf16.mxu0 %v4031
  %5896 = vmatpush1.bf16.msra.mxu0 %v4030
  %5897 = vmatprep.subr.bf16.mxu0 %v4035
  %5898 = vmatpush1.bf16.msra.mxu0 %v4034
  %5899 = vmatprep.subr.bf16.mxu0 %v4039
  %5900 = vmatpush1.bf16.msra.mxu0 %v4038
  %5901 = vmatprep.subr.bf16.mxu0 %v4043
  %5902 = vmatpush1.bf16.msra.mxu0 %v4042
  %5903 = vmatprep.subr.bf16.mxu0 %v4047
  %5904 = vmatpush1.bf16.msra.mxu0 %v4046
  %5905 = vmatprep.subr.bf16.mxu0 %v4051
  %5906 = vmatpush1.bf16.msra.mxu0 %v4050
  %5907 = vmatprep.subr.bf16.mxu0 %v4055
  %5908 = vmatpush1.bf16.msra.mxu0 %v4054
  %5909 = vmatprep.subr.bf16.mxu0 %v4059
  %5910 = vmatpush1.bf16.msra.mxu0 %v4058
  %5911 = vmatprep.subr.bf16.mxu0 %v4063
  %5912 = vmatpush1.bf16.msra.mxu0 %v4062
  %5913 = vmatprep.subr.bf16.mxu0 %v4067
  %5914 = vmatpush1.bf16.msra.mxu0 %v4066
  %5915 = vmatprep.subr.bf16.mxu0 %v4071
  %5916 = vmatpush1.bf16.msra.mxu0 %v4070
  %5917 = vmatprep.subr.bf16.mxu0 %v4075
  %5918 = vmatpush1.bf16.msra.mxu0 %v4074
  %5919 = vmatprep.mubr.bf16.mxu0 %v977
  %5920 = vmatmul.mubr.bf16.gmra.mrb[0].mxu0 %v963
  %v5921 = vpop.f32.mrb[0].mxu0
  %v5922 = vadd.f32 %v5881, %v5921
  %v5923 = vpop.f32.mrb[0].mxu0
  %v5924 = vadd.f32 %v5883, %v5923
  %v5925 = vpop.f32.mrb[0].mxu0
  %v5926 = vpop.f32.mrb[0].mxu0
  %5927 = vdwg.mxu0
  %5928 = vmatprep.subr.bf16.mxu0 %v4079
  %5929 = vmatpush1.bf16.msra.mxu0 %v4078
  %5930 = vmatprep.subr.bf16.mxu0 %v4083
  %5931 = vmatpush1.bf16.msra.mxu0 %v4082
  %5932 = vmatprep.subr.bf16.mxu0 %v4087
  %5933 = vmatpush1.bf16.msra.mxu0 %v4086
  %5934 = vmatprep.subr.bf16.mxu0 %v4091
  %5935 = vmatpush1.bf16.msra.mxu0 %v4090
  %5936 = vmatprep.subr.bf16.mxu0 %v4095
  %5937 = vmatpush1.bf16.msra.mxu0 %v4094
  %5938 = vmatprep.subr.bf16.mxu0 %v4099
  %5939 = vmatpush1.bf16.msra.mxu0 %v4098
  %5940 = vmatprep.subr.bf16.mxu0 %v4103
  %5941 = vmatpush1.bf16.msra.mxu0 %v4102
  %5942 = vmatprep.subr.bf16.mxu0 %v4107
  %5943 = vmatpush1.bf16.msra.mxu0 %v4106
  %5944 = vmatprep.subr.bf16.mxu0 %v4111
  %5945 = vmatpush1.bf16.msra.mxu0 %v4110
  %5946 = vmatprep.subr.bf16.mxu0 %v4115
  %5947 = vmatpush1.bf16.msra.mxu0 %v4114
  %5948 = vmatprep.subr.bf16.mxu0 %v4119
  %5949 = vmatpush1.bf16.msra.mxu0 %v4118
  %5950 = vmatprep.subr.bf16.mxu0 %v4123
  %5951 = vmatpush1.bf16.msra.mxu0 %v4122
  %5952 = vmatprep.subr.bf16.mxu0 %v4127
  %5953 = vmatpush1.bf16.msra.mxu0 %v4126
  %5954 = vmatprep.subr.bf16.mxu0 %v4131
  %5955 = vmatpush1.bf16.msra.mxu0 %v4130
  %5956 = vmatprep.subr.bf16.mxu0 %v4135
  %5957 = vmatpush1.bf16.msra.mxu0 %v4134
  %5958 = vmatprep.subr.bf16.mxu0 %v4139
  %5959 = vmatpush1.bf16.msra.mxu0 %v4138
  %5960 = vmatprep.mubr.bf16.mxu0 %v981
  %5961 = vmatmul.mubr.bf16.gmra.mrb[0].mxu0 %v979
  %v5962 = vpop.f32.mrb[0].mxu0
  %v5963 = vadd.f32 %v5922, %v5962
  %v5964 = vpop.f32.mrb[0].mxu0
  %v5965 = vadd.f32 %v5924, %v5964
  %v5966 = vpop.f32.mrb[0].mxu0
  %v5967 = vpop.f32.mrb[0].mxu0
  %5968 = vdwg.mxu0
  %5969 = vmatprep.subr.bf16.mxu0 %v4143
  %5970 = vmatpush1.bf16.msra.mxu0 %v4142
  %5971 = vmatprep.subr.bf16.mxu0 %v4147
  %5972 = vmatpush1.bf16.msra.mxu0 %v4146
  %5973 = vmatprep.subr.bf16.mxu0 %v4151
  %5974 = vmatpush1.bf16.msra.mxu0 %v4150
  %5975 = vmatprep.subr.bf16.mxu0 %v4155
  %5976 = vmatpush1.bf16.msra.mxu0 %v4154
  %5977 = vmatprep.subr.bf16.mxu0 0
  %5978 = vmatpush1.bf16.msra.mxu0 0
  %5979 = vmatprep.subr.bf16.mxu0 0
  %5980 = vmatpush1.bf16.msra.mxu0 0
  %5981 = vmatprep.subr.bf16.mxu0 0
  %5982 = vmatpush1.bf16.msra.mxu0 0
  %5983 = vmatprep.subr.bf16.mxu0 0
  %5984 = vmatpush1.bf16.msra.mxu0 0
  %5985 = vmatprep.subr.bf16.mxu0 0
  %5986 = vmatpush1.bf16.msra.mxu0 0
  %5987 = vmatprep.subr.bf16.mxu0 0
  %5988 = vmatpush1.bf16.msra.mxu0 0
  %5989 = vmatprep.subr.bf16.mxu0 0
  %5990 = vmatpush1.bf16.msra.mxu0 0
  %5991 = vmatprep.subr.bf16.mxu0 0
  %5992 = vmatpush1.bf16.msra.mxu0 0
  %5993 = vmatprep.subr.bf16.mxu0 0
  %5994 = vmatpush1.bf16.msra.mxu0 0
  %5995 = vmatprep.subr.bf16.mxu0 0
  %5996 = vmatpush1.bf16.msra.mxu0 0
  %5997 = vmatprep.subr.bf16.mxu0 0
  %5998 = vmatpush1.bf16.msra.mxu0 0
  %5999 = vmatprep.subr.bf16.mxu0 0
  %6000 = vmatpush1.bf16.msra.mxu0 0
  %6001 = vmatprep.mubr.bf16.mxu0 0
  %6002 = vmatmul.mubr.bf16.gmra.mrb[0].mxu0 %v4942
  %v6003 = vpop.f32.mrb[0].mxu0
  %v6004 = vadd.f32 %v5963, %v6003
  %v6005 = vpop.f32.mrb[0].mxu0
  %v6006 = vadd.f32 %v5965, %v6005
  %v6007 = vpop.f32.mrb[0].mxu0
  %v6008 = vpop.f32.mrb[0].mxu0
  %6009 = vdwg.mxu0
  %v6010 = vtanh.pop %v5471
  %v6011 = vtanh.pop %v5473
  %v6012 = vtanh.pop %v6004
  %v6013 = vtanh.pop %v6006
  %v6014 = vpack.c.bf16 %v6010, %v6010
  %v6015 = vpack.c.bf16 %v6011, %v6011
  %v6016 = vpack.c.bf16 %v6012, %v6012
  %v6017 = vpack.c.bf16 %v6013, %v6013
  %v6018 = vld [vmem:[%s3] sm:$0xf]
  %v6019 = vld [vmem:[%s3 + $0x4] sm:$0xf]
  %v6020 = vld [vmem:[%s3 + $0x8] sm:$0xf]
  %v6021 = vld [vmem:[%s3 + $0xc] sm:$0xf]
  %v6022 = vld [vmem:[%s3 + $0x10] sm:$0xf]
  %v6023 = vld [vmem:[%s3 + $0x14] sm:$0xf]
  %v6024 = vld [vmem:[%s3 + $0x18] sm:$0xf]
  %v6025 = vld [vmem:[%s3 + $0x1c] sm:$0xf]
  %v6026 = vld [vmem:[%s3 + $0x20] sm:$0xf]
  %v6027 = vld [vmem:[%s3 + $0x24] sm:$0xf]
  %v6028 = vld [vmem:[%s3 + $0x28] sm:$0xf]
  %v6029 = vld [vmem:[%s3 + $0x2c] sm:$0xf]
  %v6030 = vld [vmem:[%s3 + $0x30] sm:$0xf]
  %v6031 = vld [vmem:[%s3 + $0x34] sm:$0xf]
  %v6032 = vld [vmem:[%s3 + $0x38] sm:$0xf]
  %v6033 = vld [vmem:[%s3 + $0x3c] sm:$0xf]
  %v6034 = vld [vmem:[%s3 + $0x40] sm:$0xf]
  %v6035 = vld [vmem:[%s3 + $0x44] sm:$0xf]
  %v6036 = vld [vmem:[%s3 + $0x48] sm:$0xf]
  %v6037 = vld [vmem:[%s3 + $0x4c] sm:$0xf]
  %v6038 = vld [vmem:[%s3 + $0x50] sm:$0xf]
  %v6039 = vld [vmem:[%s3 + $0x54] sm:$0xf]
  %v6040 = vld [vmem:[%s3 + $0x58] sm:$0xf]
  %v6041 = vld [vmem:[%s3 + $0x5c] sm:$0xf]
  %v6042 = vld [vmem:[%s3 + $0x60] sm:$0xf]
  %v6043 = vld [vmem:[%s3 + $0x64] sm:$0xf]
  %v6044 = vld [vmem:[%s3 + $0x68] sm:$0xf]
  %v6045 = vld [vmem:[%s3 + $0x6c] sm:$0xf]
  %v6046 = vld [vmem:[%s3 + $0x70] sm:$0xf]
  %v6047 = vld [vmem:[%s3 + $0x74] sm:$0xf]
  %v6048 = vld [vmem:[%s3 + $0x78] sm:$0xf]
  %v6049 = vld [vmem:[%s3 + $0x7c] sm:$0xf]
  %v6050 = vld [vmem:[%s3 + $0x80] sm:$0xf]
  %v6051 = vld [vmem:[%s3 + $0x84] sm:$0xf]
  %v6052 = vld [vmem:[%s3 + $0x88] sm:$0xf]
  %v6053 = vld [vmem:[%s3 + $0x8c] sm:$0xf]
  %v6054 = vld [vmem:[%s3 + $0x90] sm:$0xf]
  %v6055 = vld [vmem:[%s3 + $0x94] sm:$0xf]
  %v6056 = vld [vmem:[%s3 + $0x98] sm:$0xf]
  %v6057 = vld [vmem:[%s3 + $0x9c] sm:$0xf]
  %v6058 = vld [vmem:[%s3 + $0xa0] sm:$0xf]
  %v6059 = vld [vmem:[%s3 + $0xa4] sm:$0xf]
  %v6060 = vld [vmem:[%s3 + $0xa8] sm:$0xf]
  %v6061 = vld [vmem:[%s3 + $0xac] sm:$0xf]
  %v6062 = vld [vmem:[%s3 + $0xb0] sm:$0xf]
  %v6063 = vld [vmem:[%s3 + $0xb4] sm:$0xf]
  %v6064 = vld [vmem:[%s3 + $0xb8] sm:$0xf]
  %v6065 = vld [vmem:[%s3 + $0xbc] sm:$0xf]
  %v6066 = vld [vmem:[%s3 + $0xc0] sm:$0xf]
  %v6067 = vld [vmem:[%s3 + $0xc4] sm:$0xf]
  %v6068 = vld [vmem:[%s3 + $0xc8] sm:$0xf]
  %v6069 = vld [vmem:[%s3 + $0xcc] sm:$0xf]
  %v6070 = vld [vmem:[%s3 + $0xd0] sm:$0xf]
  %v6071 = vld [vmem:[%s3 + $0xd4] sm:$0xf]
  %v6072 = vld [vmem:[%s3 + $0xd8] sm:$0xf]
  %v6073 = vld [vmem:[%s3 + $0xdc] sm:$0xf]
  %v6074 = vld [vmem:[%s3 + $0xe0] sm:$0xf]
  %v6075 = vld [vmem:[%s3 + $0xe4] sm:$0xf]
  %v6076 = vld [vmem:[%s3 + $0xe8] sm:$0xf]
  %v6077 = vld [vmem:[%s3 + $0xec] sm:$0xf]
  %v6078 = vld [vmem:[%s3 + $0xf0] sm:$0xf]
  %v6079 = vld [vmem:[%s3 + $0xf4] sm:$0xf]
  %v6080 = vld [vmem:[%s3 + $0xf8] sm:$0xf]
  %v6081 = vld [vmem:[%s3 + $0xfc] sm:$0xf]
  %v6082 = vld [vmem:[%s4] sm:$0x1]
  %v6084 = vlaneseq
  %v6085 = vshrl.u32 %v6084, 7
  %v6086 = vsub.s32 0, %v6085
  %v6087 = vrot.slane %v6082, %v6086
  %v6153 = vunpack.c.l.b16 %v6018
  %v6154 = vunpack.c.l.b16 %v6019
  %v6155 = vunpack.c.l.b16 %v6020
  %v6156 = vunpack.c.l.b16 %v6021
  %v6157 = vunpack.c.l.b16 %v6022
  %v6158 = vunpack.c.l.b16 %v6023
  %v6159 = vunpack.c.l.b16 %v6024
  %v6160 = vunpack.c.l.b16 %v6025
  %v6161 = vunpack.c.l.b16 %v6026
  %v6162 = vunpack.c.l.b16 %v6027
  %v6163 = vunpack.c.l.b16 %v6028
  %v6164 = vunpack.c.l.b16 %v6029
  %v6165 = vunpack.c.l.b16 %v6030
  %v6166 = vunpack.c.l.b16 %v6031
  %v6167 = vunpack.c.l.b16 %v6032
  %v6168 = vunpack.c.l.b16 %v6033
  %v6169 = vunpack.c.l.b16 %v6034
  %v6170 = vunpack.c.l.b16 %v6035
  %v6171 = vunpack.c.l.b16 %v6036
  %v6172 = vunpack.c.l.b16 %v6037
  %v6173 = vunpack.c.l.b16 %v6038
  %v6174 = vunpack.c.l.b16 %v6039
  %v6175 = vunpack.c.l.b16 %v6040
  %v6176 = vunpack.c.l.b16 %v6041
  %v6177 = vunpack.c.l.b16 %v6042
  %v6178 = vunpack.c.l.b16 %v6043
  %v6179 = vunpack.c.l.b16 %v6044
  %v6180 = vunpack.c.l.b16 %v6045
  %v6181 = vunpack.c.l.b16 %v6046
  %v6182 = vunpack.c.l.b16 %v6047
  %v6183 = vunpack.c.l.b16 %v6048
  %v6184 = vunpack.c.l.b16 %v6049
  %v6185 = vunpack.c.l.b16 %v6050
  %v6186 = vunpack.c.l.b16 %v6051
  %v6187 = vunpack.c.l.b16 %v6052
  %v6188 = vunpack.c.l.b16 %v6053
  %v6189 = vunpack.c.l.b16 %v6054
  %v6190 = vunpack.c.l.b16 %v6055
  %v6191 = vunpack.c.l.b16 %v6056
  %v6192 = vunpack.c.l.b16 %v6057
  %v6193 = vunpack.c.l.b16 %v6058
  %v6194 = vunpack.c.l.b16 %v6059
  %v6195 = vunpack.c.l.b16 %v6060
  %v6196 = vunpack.c.l.b16 %v6061
  %v6197 = vunpack.c.l.b16 %v6062
  %v6198 = vunpack.c.l.b16 %v6063
  %v6199 = vunpack.c.l.b16 %v6064
  %v6200 = vunpack.c.l.b16 %v6065
  %v6201 = vunpack.c.l.b16 %v6066
  %v6202 = vunpack.c.l.b16 %v6067
  %v6203 = vunpack.c.l.b16 %v6068
  %v6204 = vunpack.c.l.b16 %v6069
  %v6205 = vunpack.c.l.b16 %v6070
  %v6206 = vunpack.c.l.b16 %v6071
  %v6207 = vunpack.c.l.b16 %v6072
  %v6208 = vunpack.c.l.b16 %v6073
  %v6209 = vunpack.c.l.b16 %v6074
  %v6210 = vunpack.c.l.b16 %v6075
  %v6211 = vunpack.c.l.b16 %v6076
  %v6212 = vunpack.c.l.b16 %v6077
  %v6213 = vunpack.c.l.b16 %v6078
  %v6214 = vunpack.c.l.b16 %v6079
  %v6215 = vunpack.c.l.b16 %v6080
  %v6216 = vunpack.c.l.b16 %v6081
  %v6217 = vpack.c.b16 %v6154, %v6153
  %v6218 = vpack.c.b16 %v6156, %v6155
  %v6219 = vpack.c.b16 %v6158, %v6157
  %v6220 = vpack.c.b16 %v6160, %v6159
  %v6221 = vpack.c.b16 %v6162, %v6161
  %v6222 = vpack.c.b16 %v6164, %v6163
  %v6223 = vpack.c.b16 %v6166, %v6165
  %v6224 = vpack.c.b16 %v6168, %v6167
  %v6225 = vpack.c.b16 %v6170, %v6169
  %v6226 = vpack.c.b16 %v6172, %v6171
  %v6227 = vpack.c.b16 %v6174, %v6173
  %v6228 = vpack.c.b16 %v6176, %v6175
  %v6229 = vpack.c.b16 %v6178, %v6177
  %v6230 = vpack.c.b16 %v6180, %v6179
  %v6231 = vpack.c.b16 %v6182, %v6181
  %v6232 = vpack.c.b16 %v6184, %v6183
  %v6233 = vpack.c.b16 %v6186, %v6185
  %v6234 = vpack.c.b16 %v6188, %v6187
  %v6235 = vpack.c.b16 %v6190, %v6189
  %v6236 = vpack.c.b16 %v6192, %v6191
  %v6237 = vpack.c.b16 %v6194, %v6193
  %v6238 = vpack.c.b16 %v6196, %v6195
  %v6239 = vpack.c.b16 %v6198, %v6197
  %v6240 = vpack.c.b16 %v6200, %v6199
  %v6241 = vpack.c.b16 %v6202, %v6201
  %v6242 = vpack.c.b16 %v6204, %v6203
  %v6243 = vpack.c.b16 %v6206, %v6205
  %v6244 = vpack.c.b16 %v6208, %v6207
  %v6245 = vpack.c.b16 %v6210, %v6209
  %v6246 = vpack.c.b16 %v6212, %v6211
  %v6247 = vpack.c.b16 %v6214, %v6213
  %v6248 = vpack.c.b16 %v6216, %v6215
  %6281 = vmatprep.subr.bf16.mxu0 0
  %6282 = vmatpush1.bf16.msra.mxu0 %v6217
  %6283 = vmatprep.subr.bf16.mxu0 0
  %6284 = vmatpush1.bf16.msra.mxu0 %v6218
  %6285 = vmatprep.subr.bf16.mxu0 0
  %6286 = vmatpush1.bf16.msra.mxu0 %v6219
  %6287 = vmatprep.subr.bf16.mxu0 0
  %6288 = vmatpush1.bf16.msra.mxu0 %v6220
  %6289 = vmatprep.subr.bf16.mxu0 0
  %6290 = vmatpush1.bf16.msra.mxu0 %v6221
  %6291 = vmatprep.subr.bf16.mxu0 0
  %6292 = vmatpush1.bf16.msra.mxu0 %v6222
  %6293 = vmatprep.subr.bf16.mxu0 0
  %6294 = vmatpush1.bf16.msra.mxu0 %v6223
  %6295 = vmatprep.subr.bf16.mxu0 0
  %6296 = vmatpush1.bf16.msra.mxu0 %v6224
  %6297 = vmatprep.subr.bf16.mxu0 0
  %6298 = vmatpush1.bf16.msra.mxu0 %v6225
  %6299 = vmatprep.subr.bf16.mxu0 0
  %6300 = vmatpush1.bf16.msra.mxu0 %v6226
  %6301 = vmatprep.subr.bf16.mxu0 0
  %6302 = vmatpush1.bf16.msra.mxu0 %v6227
  %6303 = vmatprep.subr.bf16.mxu0 0
  %6304 = vmatpush1.bf16.msra.mxu0 %v6228
  %6305 = vmatprep.subr.bf16.mxu0 0
  %6306 = vmatpush1.bf16.msra.mxu0 %v6229
  %6307 = vmatprep.subr.bf16.mxu0 0
  %6308 = vmatpush1.bf16.msra.mxu0 %v6230
  %6309 = vmatprep.subr.bf16.mxu0 0
  %6310 = vmatpush1.bf16.msra.mxu0 %v6231
  %6311 = vmatprep.subr.bf16.mxu0 0
  %6312 = vmatpush1.bf16.msra.mxu0 %v6232
  %6313 = vmatprep.mubr.bf16.mxu0 %v6015
  %6314 = vmatmul.mubr.bf16.gmra.mrb[0].mxu0 %v6014
  %v6315 = vpop.f32.mrb[0].mxu0
  %v6316 = vadd.f32 %v6087, %v6315
  %v6317 = vpop.f32.mrb[0].mxu0
  %v6318 = vpop.f32.mrb[0].mxu0
  %v6319 = vpop.f32.mrb[0].mxu0
  %6320 = vdwg.mxu0
  %6321 = vmatprep.subr.bf16.mxu0 0
  %6322 = vmatpush1.bf16.msra.mxu0 %v6233
  %6323 = vmatprep.subr.bf16.mxu0 0
  %6324 = vmatpush1.bf16.msra.mxu0 %v6234
  %6325 = vmatprep.subr.bf16.mxu0 0
  %6326 = vmatpush1.bf16.msra.mxu0 %v6235
  %6327 = vmatprep.subr.bf16.mxu0 0
  %6328 = vmatpush1.bf16.msra.mxu0 %v6236
  %6329 = vmatprep.subr.bf16.mxu0 0
  %6330 = vmatpush1.bf16.msra.mxu0 %v6237
  %6331 = vmatprep.subr.bf16.mxu0 0
  %6332 = vmatpush1.bf16.msra.mxu0 %v6238
  %6333 = vmatprep.subr.bf16.mxu0 0
  %6334 = vmatpush1.bf16.msra.mxu0 %v6239
  %6335 = vmatprep.subr.bf16.mxu0 0
  %6336 = vmatpush1.bf16.msra.mxu0 %v6240
  %6337 = vmatprep.subr.bf16.mxu0 0
  %6338 = vmatpush1.bf16.msra.mxu0 %v6241
  %6339 = vmatprep.subr.bf16.mxu0 0
  %6340 = vmatpush1.bf16.msra.mxu0 %v6242
  %6341 = vmatprep.subr.bf16.mxu0 0
  %6342 = vmatpush1.bf16.msra.mxu0 %v6243
  %6343 = vmatprep.subr.bf16.mxu0 0
  %6344 = vmatpush1.bf16.msra.mxu0 %v6244
  %6345 = vmatprep.subr.bf16.mxu0 0
  %6346 = vmatpush1.bf16.msra.mxu0 %v6245
  %6347 = vmatprep.subr.bf16.mxu0 0
  %6348 = vmatpush1.bf16.msra.mxu0 %v6246
  %6349 = vmatprep.subr.bf16.mxu0 0
  %6350 = vmatpush1.bf16.msra.mxu0 %v6247
  %6351 = vmatprep.subr.bf16.mxu0 0
  %6352 = vmatpush1.bf16.msra.mxu0 %v6248
  %6353 = vmatprep.mubr.bf16.mxu0 %v6017
  %6354 = vmatmul.mubr.bf16.gmra.mrb[0].mxu0 %v6016
  %v6355 = vpop.f32.mrb[0].mxu0
  %v6356 = vadd.f32 %v6316, %v6355
  %v6357 = vpop.f32.mrb[0].mxu0
  %v6358 = vpop.f32.mrb[0].mxu0
  %v6359 = vpop.f32.mrb[0].mxu0
  %6360 = vdwg.mxu0
  %6361 = vst [vmem:[%s5] sm:$0x3] %v6356
  // Predicated region
  $region22: #{value_net_forward.3} parent=0 // pred_check
    _
  $region23: #{value_net_forward.3} parent=0 // pred_check_branch
    %6363 = sbr.rel (0) target = $region25
  $region24: #{value_net_forward.3} parent=0 // pred_region
    _
  $region25: #{value_net_forward.3} parent=0 // pred_fallthru
    _
  // Predicated region
  $region26: #{value_net_forward.3} parent=0 // pred_check
    _
  $region27: #{value_net_forward.3} parent=0 // pred_check_branch
    %6365 = sbr.rel (0) target = $region29
  $region28: #{value_net_forward.3} parent=0 // pred_region
    _
  $region29: #{value_net_forward.3} parent=0 // pred_fallthru
    _

</llo_original>
